<compile_context>
chip_gen: v5e
topology: v5e:2x2
jax: 0.10.0
libtpu: 0.0.40
codegen_flags: <defaults>
</compile_context>

<pallas_src>
import jax
import jax.numpy as jnp
from jax import lax
from jax.experimental import pallas as pl
from jax.experimental.pallas import tpu as pltpu


def _round_up(v, m):
    return ((v + m - 1) // m) * m


# ----------------------------- Pallas kernels ------------------------------

def _make_residual_kernel(W, Wp, n_out):
    """x + Conv1x1(ReLU(Conv3x3(ReLU(x)))) on a zero-padded, row-flattened image.

    Input / output blocks are (P_store, C): the (H+2)x(W+2) padded grid flattened
    row-major plus a small zero tail.  Tap (dy,dx) of the 3x3 conv is the slice
    starting at dy*Wp+dx; the result is written back at offset Wp+1 so that the
    output is again a zero-padded grid and feeds the next layer directly.
    """
    shifts = [dy * Wp + dx for dy in range(3) for dx in range(3)]

    def kernel(x_ref, w3_ref, w1_ref, o_ref):
        chid = w3_ref.shape[2]
        c_out = o_ref.shape[1]
        acc = jnp.zeros((n_out, chid), jnp.float32)
        for t, s in enumerate(shifts):                       # 9 unrolled taps
            xt = jnp.maximum(x_ref[pl.ds(s, n_out), :], 0.0).astype(jnp.bfloat16)
            acc = acc + jnp.dot(xt, w3_ref[t], preferred_element_type=jnp.float32)
        h = jnp.maximum(acc, 0.0).astype(jnp.bfloat16)
        # skip connection: centre tap (dy=dx=1) of the padded grid is the raw x
        y = x_ref[pl.ds(Wp + 1, n_out), :] + jnp.dot(
            h, w1_ref[...], preferred_element_type=jnp.float32)
        # zero the garbage columns (px >= W in compute coords) so the written
        # padded grid has exact zero padding for the next layer
        col = lax.broadcasted_iota(jnp.int32, (n_out, 1), 0) % Wp
        y = jnp.where(col < W, y, 0.0)
        p_store = o_ref.shape[0]
        tail = p_store - (Wp + 1) - n_out
        o_ref[pl.ds(0, Wp + 1), :] = jnp.zeros((Wp + 1, c_out), jnp.float32)
        o_ref[pl.ds(Wp + 1, n_out), :] = y
        o_ref[pl.ds(Wp + 1 + n_out, tail), :] = jnp.zeros((tail, c_out), jnp.float32)

    return kernel


def _make_upconv_kernel(W, Wp, n_out):
    """4-phase sub-pixel ConvTranspose (k=4,s=2,p=1) with ReLU on the input and
    fused BatchNorm partial statistics.

    Output block: (n_out, 4*Cout) = all four output phases for one image,
    rows = H*Wp compute grid (garbage columns masked to zero so they neither
    pollute the statistics nor the pixel-shuffle).  Stats are per-batch partial
    sums -> 'parallel' grid, reduced in the wrapper.
    """
    shifts = [dy * Wp + dx for dy in range(3) for dx in range(3)]

    def kernel(x_ref, wc_ref, o_ref, s_ref, q_ref):
        cout4 = wc_ref.shape[2]
        acc = jnp.zeros((n_out, cout4), jnp.float32)
        for t, s in enumerate(shifts):                       # 9 unrolled taps
            xt = jnp.maximum(x_ref[pl.ds(s, n_out), :], 0.0).astype(jnp.bfloat16)
            acc = acc + jnp.dot(xt, wc_ref[t], preferred_element_type=jnp.float32)
        col = lax.broadcasted_iota(jnp.int32, (n_out, 1), 0) % Wp
        acc = jnp.where(col < W, acc, 0.0)
        o_ref[...] = acc
        s_ref[...] = jnp.sum(acc, axis=0, keepdims=True)
        q_ref[...] = jnp.sum(acc * acc, axis=0, keepdims=True)

    return kernel


# ----------------------------- Pallas wrappers -----------------------------

def residual_layer_pallas(xf, w3c, w1c, H, W):
    """xf: (N, P_store, C) zero-padded flattened images -> same layout."""
    N, P_store, C = xf.shape
    Wp = W + 2
    n_out = H * Wp
    Chid = w3c.shape[2]
    kernel = _make_residual_kernel(W, Wp, n_out)
    return pl.pallas_call(
        kernel,
        out_shape=jax.ShapeDtypeStruct((N, P_store, C), jnp.float32),
        grid_spec=pltpu.PrefetchScalarGridSpec(
            num_scalar_prefetch=0,
            grid=(N,),
            in_specs=[
                pl.BlockSpec((None, P_store, C), lambda i: (i, 0, 0)),
                pl.BlockSpec((9, C, Chid), lambda i: (0, 0, 0)),
                pl.BlockSpec((Chid, C), lambda i: (0, 0)),
            ],
            out_specs=pl.BlockSpec((None, P_store, C), lambda i: (i, 0, 0)),
        ),
        compiler_params=pltpu.CompilerParams(dimension_semantics=("parallel",)),
    )(xf, w3c, w1c)


def upconv_pallas(xf, wc, H, W):
    """xf: (N, P_store, Cin) zero-padded flattened images.
    Returns (y, sum, sumsq): y (N, H*(W+2), 4*Cout), stats (N, 1, 4*Cout)."""
    N, P_store, Cin = xf.shape
    Wp = W + 2
    n_out = H * Wp
    Cout4 = wc.shape[2]
    kernel = _make_upconv_kernel(W, Wp, n_out)
    return pl.pallas_call(
        kernel,
        out_shape=(
            jax.ShapeDtypeStruct((N, n_out, Cout4), jnp.float32),
            jax.ShapeDtypeStruct((N, 1, Cout4), jnp.float32),
            jax.ShapeDtypeStruct((N, 1, Cout4), jnp.float32),
        ),
        grid_spec=pltpu.PrefetchScalarGridSpec(
            num_scalar_prefetch=0,
            grid=(N,),
            in_specs=[
                pl.BlockSpec((None, P_store, Cin), lambda i: (i, 0, 0)),
                pl.BlockSpec((9, Cin, Cout4), lambda i: (0, 0, 0)),
            ],
            out_specs=[
                pl.BlockSpec((None, n_out, Cout4), lambda i: (i, 0, 0)),
                pl.BlockSpec((None, 1, Cout4), lambda i: (i, 0, 0)),
                pl.BlockSpec((None, 1, Cout4), lambda i: (i, 0, 0)),
            ],
        ),
        compiler_params=pltpu.CompilerParams(dimension_semantics=("parallel",)),
    )(xf, wc)


# ------------------------------- JAX glue ----------------------------------

def pad_flatten(x):
    """(N,H,W,C) NHWC -> (N, P_store, C): zero-pad by 1, flatten rows, zero tail."""
    N, H, W, C = x.shape
    Hp, Wp = H + 2, W + 2
    P = Hp * Wp
    P_store = _round_up(P + 2, 8)          # +2 covers the max tap read overshoot
    xp = jnp.pad(x, ((0, 0), (1, 1), (1, 1), (0, 0)))
    xf = xp.reshape(N, P, C)
    return jnp.pad(xf, ((0, 0), (0, P_store - P), (0, 0)))


def prep_residual_weights(w3, w1):
    """w3: (Chid, Cin, 3, 3), w1: (Cout, Chid, 1, 1) PyTorch layouts -> bf16 mats."""
    Cin = w3.shape[1]
    Chid = w3.shape[0]
    w3c = jnp.transpose(w3, (2, 3, 1, 0)).reshape(9, Cin, Chid).astype(jnp.bfloat16)
    w1c = jnp.transpose(w1[:, :, 0, 0], (1, 0)).astype(jnp.bfloat16)  # (Chid, Cout)
    return w3c, w1c


def prep_upconv_weights(wt):
    """wt: PyTorch ConvTranspose2d weight (Cin, Cout, 4, 4) -> combined (9, Cin, 4*Cout).

    Sub-pixel decomposition: output phase (ry,rx), tap (ty,tx) reads padded input
    offset (ry+ty, rx+tx) and uses kernel element (ky,kx) = ((3-ry)-2ty, (3-rx)-2tx).
    """
    Cin, Cout = wt.shape[0], wt.shape[1]
    wc = jnp.zeros((9, Cin, 4 * Cout), jnp.float32)
    for ry in range(2):
        for rx in range(2):
            ph = ry * 2 + rx
            for ty in range(2):
                for tx in range(2):
                    a, b = ry + ty, rx + tx          # shift offsets (row, col)
                    ky = (3 - ry) - 2 * ty
                    kx = (3 - rx) - 2 * tx
                    t = a * 3 + b                    # matches shift = a*Wp + b
                    wc = wc.at[t, :, ph * Cout:(ph + 1) * Cout].set(wt[:, :, ky, kx])
    return wc.astype(jnp.bfloat16)


def bn_apply_pixel_shuffle(y, psum, psq, gamma, beta, H, W, eps=1e-5):
    """Finish ReLUUpConvBN: reduce fused BN partials, apply the per-channel affine
    and pixel-shuffle the 4 phases to (N, 2H, 2W, Cout).  Pure layout/elementwise
    glue, left to XLA (it fuses with the transpose it must do anyway)."""
    N, n_out, Cout4 = y.shape
    Cout = Cout4 // 4
    Wp = W + 2
    count = 4.0 * N * H * W                          # = N * 2H * 2W elements / channel
    s = jnp.sum(psum, axis=(0, 1)).reshape(4, Cout).sum(0)
    q = jnp.sum(psq, axis=(0, 1)).reshape(4, Cout).sum(0)
    mean = s / count
    # NOTE: E[x^2]-E[x]^2 in f32, clamped at 0 to guard against cancellation;
    # a two-pass / Welford variance can be substituted for tighter BN parity.
    var = jnp.maximum(q / count - mean * mean, 0.0)
    scale = gamma.astype(jnp.float32) / jnp.sqrt(var + eps)
    shift = beta.astype(jnp.float32) - mean * scale
    y = y.reshape(N, H, Wp, 2, 2, Cout)[:, :, :W]    # crop garbage columns
    y = y * scale + shift
    y = jnp.transpose(y, (0, 1, 3, 2, 4, 5)).reshape(N, 2 * H, 2 * W, Cout)
    return y


def decoder_forward(x_nchw, params):
    """NCHW in -> NCHW out, matching PyTorch Decoder.forward."""
    x = jnp.transpose(x_nchw, (0, 2, 3, 1)).astype(jnp.float32)   # NHWC
    N, H, W, C = x.shape

    r1_w3, r1_w1 = prep_residual_weights(params["res1_w3"], params["res1_w1"])
    r2_w3, r2_w1 = prep_residual_weights(params["res2_w3"], params["res2_w1"])
    wc1 = prep_upconv_weights(params["up1_wt"])
    wc2 = prep_upconv_weights(params["up2_wt"])

    xf = pad_flatten(x)                                           # (N, P_store, C)
    xf = residual_layer_pallas(xf, r1_w3, r1_w1, H, W)
    xf = residual_layer_pallas(xf, r2_w3, r2_w1, H, W)

    # ReLUUpConvBN 1: dim -> dim//2, spatial x2
    y, s1, q1 = upconv_pallas(xf, wc1, H, W)
    y = bn_apply_pixel_shuffle(y, s1, q1, params["up1_gamma"], params["up1_beta"], H, W)

    # ReLUUpConvBN 2: dim//2 -> 3, spatial x2
    xf2 = pad_flatten(y)
    y2, s2, q2 = upconv_pallas(xf2, wc2, 2 * H, 2 * W)
    y2 = bn_apply_pixel_shuffle(y2, s2, q2, params["up2_gamma"], params["up2_beta"],
                                2 * H, 2 * W)

    return jnp.transpose(y2, (0, 3, 1, 2))                        # NCHW


# --------------------------------- main -------------------------------------

if __name__ == "__main__":
    dim = 128          # default Decoder(dim=128); keeps the 128-lane axis full
    N, H, W = 2, 8, 8

    key = jax.random.PRNGKey(0)
    ks = jax.random.split(key, 7)

    def init(k, shape, scale=0.05):
        return (scale * jax.random.normal(k, shape)).astype(jnp.float32)

    params = {
        # ResidualLayer 1 / 2  (Conv3x3 then Conv1x1, bias=False)
        "res1_w3": init(ks[0], (dim, dim, 3, 3)),
        "res1_w1": init(ks[1], (dim, dim, 1, 1)),
        "res2_w3": init(ks[2], (dim, dim, 3, 3)),
        "res2_w1": init(ks[3], (dim, dim, 1, 1)),
        # ReLUUpConvBN 1: dim -> dim//2  (ConvTranspose2d weight layout)
        "up1_wt": init(ks[4], (dim, dim // 2, 4, 4)),
        "up1_gamma": jnp.ones((dim // 2,), jnp.float32),
        "up1_beta": jnp.zeros((dim // 2,), jnp.float32),
        # ReLUUpConvBN 2: dim//2 -> 3
        "up2_wt": init(ks[5], (dim // 2, 3, 4, 4)),
        "up2_gamma": jnp.ones((3,), jnp.float32),
        "up2_beta": jnp.zeros((3,), jnp.float32),
    }

    x = jax.random.normal(ks[6], (N, dim, H, W)).astype(jnp.float32)   # NCHW

    out = jax.jit(decoder_forward)(x, params)
    out = jax.block_until_ready(out)
    assert out.shape == (N, 3, 4 * H, 4 * W), out.shape
    assert bool(jnp.all(jnp.isfinite(out)))
    print("KERNEL_OK")
</pallas_src>

<mosaic_0001>
module attributes {stable_mosaic.version = 11 : i64} {
  func.func @kernel(%arg0: i32, %arg1: memref<1x104x128xf32, #tpu.memory_space<vmem>>, %arg2: memref<9x128x256xbf16, #tpu.memory_space<vmem>>, %arg3: memref<1x80x256xf32, #tpu.memory_space<vmem>>, %arg4: memref<1x1x256xf32, #tpu.memory_space<vmem>>, %arg5: memref<1x1x256xf32, #tpu.memory_space<vmem>>) attributes {dimension_semantics = [#tpu.dimension_semantics<parallel>], iteration_bounds = array<i64: 2>, scalar_prefetch = 0 : i64, scratch_operands = 0 : i64, tpu.core_type = #tpu.core_type<tc>, window_params = [{transform_indices = @transform_0, window_bounds = array<i64: 1, 104, 128>}, {pipeline_mode = #tpu.pipeline_mode<synchronous>, transform_indices = @transform_1, window_bounds = array<i64: 9, 128, 256>}, {transform_indices = @transform_2, window_bounds = array<i64: 1, 80, 256>}, {transform_indices = @transform_3, window_bounds = array<i64: 1, 1, 256>}, {transform_indices = @transform_4, window_bounds = array<i64: 1, 1, 256>}]} {
    %cst = arith.constant 0.000000e+00 : f32
    %0 = vector.broadcast %cst : f32 to vector<80x256xf32>
    %c0 = arith.constant 0 : index
    %c0_0 = arith.constant 0 : index
    %c0_1 = arith.constant 0 : index
    %1 = vector.load %arg1[%c0, %c0_0, %c0_1] : memref<1x104x128xf32, #tpu.memory_space<vmem>>, vector<1x80x128xf32>
    %2 = vector.shape_cast %1 : vector<1x80x128xf32> to vector<80x128xf32>
    %cst_2 = arith.constant 0.000000e+00 : f32
    %3 = vector.broadcast %cst_2 : f32 to vector<80x128xf32>
    %4 = arith.maximumf %2, %3 : vector<80x128xf32>
    %5 = arith.truncf %4 : vector<80x128xf32> to vector<80x128xbf16>
    %c0_3 = arith.constant 0 : index
    %c0_4 = arith.constant 0 : index
    %c0_5 = arith.constant 0 : index
    %6 = vector.load %arg2[%c0_3, %c0_4, %c0_5] : memref<9x128x256xbf16, #tpu.memory_space<vmem>>, vector<1x128x256xbf16>
    %7 = vector.shape_cast %6 : vector<1x128x256xbf16> to vector<128x256xbf16>
    %cst_6 = arith.constant dense<0.000000e+00> : vector<80x256xf32>
    %8 = tpu.matmul %5, %7, %cst_6 {dimension_numbers = #tpu.dot_dimension_numbers<[1], [0], [0], [1], [0, 0, 1, 1], [], []>} : vector<80x128xbf16>, vector<128x256xbf16>, vector<80x256xf32> -> vector<80x256xf32>
    %9 = arith.addf %0, %8 : vector<80x256xf32>
    %c0_7 = arith.constant 0 : index
    %c1 = arith.constant 1 : index
    %c0_8 = arith.constant 0 : index
    %10 = vector.load %arg1[%c0_7, %c1, %c0_8] : memref<1x104x128xf32, #tpu.memory_space<vmem>>, vector<1x80x128xf32>
    %11 = vector.shape_cast %10 : vector<1x80x128xf32> to vector<80x128xf32>
    %cst_9 = arith.constant 0.000000e+00 : f32
    %12 = vector.broadcast %cst_9 : f32 to vector<80x128xf32>
    %13 = arith.maximumf %11, %12 : vector<80x128xf32>
    %14 = arith.truncf %13 : vector<80x128xf32> to vector<80x128xbf16>
    %c1_10 = arith.constant 1 : index
    %c0_11 = arith.constant 0 : index
    %c0_12 = arith.constant 0 : index
    %15 = vector.load %arg2[%c1_10, %c0_11, %c0_12] : memref<9x128x256xbf16, #tpu.memory_space<vmem>>, vector<1x128x256xbf16>
    %16 = vector.shape_cast %15 : vector<1x128x256xbf16> to vector<128x256xbf16>
    %cst_13 = arith.constant dense<0.000000e+00> : vector<80x256xf32>
    %17 = tpu.matmul %14, %16, %cst_13 {dimension_numbers = #tpu.dot_dimension_numbers<[1], [0], [0], [1], [0, 0, 1, 1], [], []>} : vector<80x128xbf16>, vector<128x256xbf16>, vector<80x256xf32> -> vector<80x256xf32>
    %18 = arith.addf %9, %17 : vector<80x256xf32>
    %c0_14 = arith.constant 0 : index
    %c2 = arith.constant 2 : index
    %c0_15 = arith.constant 0 : index
    %19 = vector.load %arg1[%c0_14, %c2, %c0_15] : memref<1x104x128xf32, #tpu.memory_space<vmem>>, vector<1x80x128xf32>
    %20 = vector.shape_cast %19 : vector<1x80x128xf32> to vector<80x128xf32>
    %cst_16 = arith.constant 0.000000e+00 : f32
    %21 = vector.broadcast %cst_16 : f32 to vector<80x128xf32>
    %22 = arith.maximumf %20, %21 : vector<80x128xf32>
    %23 = arith.truncf %22 : vector<80x128xf32> to vector<80x128xbf16>
    %c2_17 = arith.constant 2 : index
    %c0_18 = arith.constant 0 : index
    %c0_19 = arith.constant 0 : index
    %24 = vector.load %arg2[%c2_17, %c0_18, %c0_19] : memref<9x128x256xbf16, #tpu.memory_space<vmem>>, vector<1x128x256xbf16>
    %25 = vector.shape_cast %24 : vector<1x128x256xbf16> to vector<128x256xbf16>
    %cst_20 = arith.constant dense<0.000000e+00> : vector<80x256xf32>
    %26 = tpu.matmul %23, %25, %cst_20 {dimension_numbers = #tpu.dot_dimension_numbers<[1], [0], [0], [1], [0, 0, 1, 1], [], []>} : vector<80x128xbf16>, vector<128x256xbf16>, vector<80x256xf32> -> vector<80x256xf32>
    %27 = arith.addf %18, %26 : vector<80x256xf32>
    %c0_21 = arith.constant 0 : index
    %c10 = arith.constant 10 : index
    %c0_22 = arith.constant 0 : index
    %28 = vector.load %arg1[%c0_21, %c10, %c0_22] : memref<1x104x128xf32, #tpu.memory_space<vmem>>, vector<1x80x128xf32>
    %29 = vector.shape_cast %28 : vector<1x80x128xf32> to vector<80x128xf32>
    %cst_23 = arith.constant 0.000000e+00 : f32
    %30 = vector.broadcast %cst_23 : f32 to vector<80x128xf32>
    %31 = arith.maximumf %29, %30 : vector<80x128xf32>
    %32 = arith.truncf %31 : vector<80x128xf32> to vector<80x128xbf16>
    %c3 = arith.constant 3 : index
    %c0_24 = arith.constant 0 : index
    %c0_25 = arith.constant 0 : index
    %33 = vector.load %arg2[%c3, %c0_24, %c0_25] : memref<9x128x256xbf16, #tpu.memory_space<vmem>>, vector<1x128x256xbf16>
    %34 = vector.shape_cast %33 : vector<1x128x256xbf16> to vector<128x256xbf16>
    %cst_26 = arith.constant dense<0.000000e+00> : vector<80x256xf32>
    %35 = tpu.matmul %32, %34, %cst_26 {dimension_numbers = #tpu.dot_dimension_numbers<[1], [0], [0], [1], [0, 0, 1, 1], [], []>} : vector<80x128xbf16>, vector<128x256xbf16>, vector<80x256xf32> -> vector<80x256xf32>
    %36 = arith.addf %27, %35 : vector<80x256xf32>
    %c0_27 = arith.constant 0 : index
    %c11 = arith.constant 11 : index
    %c0_28 = arith.constant 0 : index
    %37 = vector.load %arg1[%c0_27, %c11, %c0_28] : memref<1x104x128xf32, #tpu.memory_space<vmem>>, vector<1x80x128xf32>
    %38 = vector.shape_cast %37 : vector<1x80x128xf32> to vector<80x128xf32>
    %cst_29 = arith.constant 0.000000e+00 : f32
    %39 = vector.broadcast %cst_29 : f32 to vector<80x128xf32>
    %40 = arith.maximumf %38, %39 : vector<80x128xf32>
    %41 = arith.truncf %40 : vector<80x128xf32> to vector<80x128xbf16>
    %c4 = arith.constant 4 : index
    %c0_30 = arith.constant 0 : index
    %c0_31 = arith.constant 0 : index
    %42 = vector.load %arg2[%c4, %c0_30, %c0_31] : memref<9x128x256xbf16, #tpu.memory_space<vmem>>, vector<1x128x256xbf16>
    %43 = vector.shape_cast %42 : vector<1x128x256xbf16> to vector<128x256xbf16>
    %cst_32 = arith.constant dense<0.000000e+00> : vector<80x256xf32>
    %44 = tpu.matmul %41, %43, %cst_32 {dimension_numbers = #tpu.dot_dimension_numbers<[1], [0], [0], [1], [0, 0, 1, 1], [], []>} : vector<80x128xbf16>, vector<128x256xbf16>, vector<80x256xf32> -> vector<80x256xf32>
    %45 = arith.addf %36, %44 : vector<80x256xf32>
    %c0_33 = arith.constant 0 : index
    %c12 = arith.constant 12 : index
    %c0_34 = arith.constant 0 : index
    %46 = vector.load %arg1[%c0_33, %c12, %c0_34] : memref<1x104x128xf32, #tpu.memory_space<vmem>>, vector<1x80x128xf32>
    %47 = vector.shape_cast %46 : vector<1x80x128xf32> to vector<80x128xf32>
    %cst_35 = arith.constant 0.000000e+00 : f32
    %48 = vector.broadcast %cst_35 : f32 to vector<80x128xf32>
    %49 = arith.maximumf %47, %48 : vector<80x128xf32>
    %50 = arith.truncf %49 : vector<80x128xf32> to vector<80x128xbf16>
    %c5 = arith.constant 5 : index
    %c0_36 = arith.constant 0 : index
    %c0_37 = arith.constant 0 : index
    %51 = vector.load %arg2[%c5, %c0_36, %c0_37] : memref<9x128x256xbf16, #tpu.memory_space<vmem>>, vector<1x128x256xbf16>
    %52 = vector.shape_cast %51 : vector<1x128x256xbf16> to vector<128x256xbf16>
    %cst_38 = arith.constant dense<0.000000e+00> : vector<80x256xf32>
    %53 = tpu.matmul %50, %52, %cst_38 {dimension_numbers = #tpu.dot_dimension_numbers<[1], [0], [0], [1], [0, 0, 1, 1], [], []>} : vector<80x128xbf16>, vector<128x256xbf16>, vector<80x256xf32> -> vector<80x256xf32>
    %54 = arith.addf %45, %53 : vector<80x256xf32>
    %c0_39 = arith.constant 0 : index
    %c20 = arith.constant 20 : index
    %c0_40 = arith.constant 0 : index
    %55 = vector.load %arg1[%c0_39, %c20, %c0_40] : memref<1x104x128xf32, #tpu.memory_space<vmem>>, vector<1x80x128xf32>
    %56 = vector.shape_cast %55 : vector<1x80x128xf32> to vector<80x128xf32>
    %cst_41 = arith.constant 0.000000e+00 : f32
    %57 = vector.broadcast %cst_41 : f32 to vector<80x128xf32>
    %58 = arith.maximumf %56, %57 : vector<80x128xf32>
    %59 = arith.truncf %58 : vector<80x128xf32> to vector<80x128xbf16>
    %c6 = arith.constant 6 : index
    %c0_42 = arith.constant 0 : index
    %c0_43 = arith.constant 0 : index
    %60 = vector.load %arg2[%c6, %c0_42, %c0_43] : memref<9x128x256xbf16, #tpu.memory_space<vmem>>, vector<1x128x256xbf16>
    %61 = vector.shape_cast %60 : vector<1x128x256xbf16> to vector<128x256xbf16>
    %cst_44 = arith.constant dense<0.000000e+00> : vector<80x256xf32>
    %62 = tpu.matmul %59, %61, %cst_44 {dimension_numbers = #tpu.dot_dimension_numbers<[1], [0], [0], [1], [0, 0, 1, 1], [], []>} : vector<80x128xbf16>, vector<128x256xbf16>, vector<80x256xf32> -> vector<80x256xf32>
    %63 = arith.addf %54, %62 : vector<80x256xf32>
    %c0_45 = arith.constant 0 : index
    %c21 = arith.constant 21 : index
    %c0_46 = arith.constant 0 : index
    %64 = vector.load %arg1[%c0_45, %c21, %c0_46] : memref<1x104x128xf32, #tpu.memory_space<vmem>>, vector<1x80x128xf32>
    %65 = vector.shape_cast %64 : vector<1x80x128xf32> to vector<80x128xf32>
    %cst_47 = arith.constant 0.000000e+00 : f32
    %66 = vector.broadcast %cst_47 : f32 to vector<80x128xf32>
    %67 = arith.maximumf %65, %66 : vector<80x128xf32>
    %68 = arith.truncf %67 : vector<80x128xf32> to vector<80x128xbf16>
    %c7 = arith.constant 7 : index
    %c0_48 = arith.constant 0 : index
    %c0_49 = arith.constant 0 : index
    %69 = vector.load %arg2[%c7, %c0_48, %c0_49] : memref<9x128x256xbf16, #tpu.memory_space<vmem>>, vector<1x128x256xbf16>
    %70 = vector.shape_cast %69 : vector<1x128x256xbf16> to vector<128x256xbf16>
    %cst_50 = arith.constant dense<0.000000e+00> : vector<80x256xf32>
    %71 = tpu.matmul %68, %70, %cst_50 {dimension_numbers = #tpu.dot_dimension_numbers<[1], [0], [0], [1], [0, 0, 1, 1], [], []>} : vector<80x128xbf16>, vector<128x256xbf16>, vector<80x256xf32> -> vector<80x256xf32>
    %72 = arith.addf %63, %71 : vector<80x256xf32>
    %c0_51 = arith.constant 0 : index
    %c22 = arith.constant 22 : index
    %c0_52 = arith.constant 0 : index
    %73 = vector.load %arg1[%c0_51, %c22, %c0_52] : memref<1x104x128xf32, #tpu.memory_space<vmem>>, vector<1x80x128xf32>
    %74 = vector.shape_cast %73 : vector<1x80x128xf32> to vector<80x128xf32>
    %cst_53 = arith.constant 0.000000e+00 : f32
    %75 = vector.broadcast %cst_53 : f32 to vector<80x128xf32>
    %76 = arith.maximumf %74, %75 : vector<80x128xf32>
    %77 = arith.truncf %76 : vector<80x128xf32> to vector<80x128xbf16>
    %c8 = arith.constant 8 : index
    %c0_54 = arith.constant 0 : index
    %c0_55 = arith.constant 0 : index
    %78 = vector.load %arg2[%c8, %c0_54, %c0_55] : memref<9x128x256xbf16, #tpu.memory_space<vmem>>, vector<1x128x256xbf16>
    %79 = vector.shape_cast %78 : vector<1x128x256xbf16> to vector<128x256xbf16>
    %cst_56 = arith.constant dense<0.000000e+00> : vector<80x256xf32>
    %80 = tpu.matmul %77, %79, %cst_56 {dimension_numbers = #tpu.dot_dimension_numbers<[1], [0], [0], [1], [0, 0, 1, 1], [], []>} : vector<80x128xbf16>, vector<128x256xbf16>, vector<80x256xf32> -> vector<80x256xf32>
    %81 = arith.addf %72, %80 : vector<80x256xf32>
    %82 = tpu.iota {dimensions = array<i32: 0>} : vector<80x1xi32>
    %c10_i32 = arith.constant 10 : i32
    %c0_i32 = arith.constant 0 : i32
    %83 = arith.cmpi eq, %c10_i32, %c0_i32 : i32
    %c1_i32 = arith.constant 1 : i32
    %84 = arith.select %83, %c1_i32, %c10_i32 : i32
    %85 = vector.broadcast %84 : i32 to vector<80x1xi32>
    %86 = arith.remsi %82, %85 : vector<80x1xi32>
    %c0_i32_57 = arith.constant 0 : i32
    %87 = vector.broadcast %c0_i32_57 : i32 to vector<80x1xi32>
    %88 = arith.cmpi ne, %86, %87 : vector<80x1xi32>
    %c0_i32_58 = arith.constant 0 : i32
    %89 = vector.broadcast %c0_i32_58 : i32 to vector<80x1xi32>
    %90 = arith.cmpi slt, %86, %89 : vector<80x1xi32>
    %c0_i32_59 = arith.constant 0 : i32
    %91 = arith.cmpi slt, %84, %c0_i32_59 : i32
    %92 = vector.broadcast %91 : i1 to vector<80x1xi1>
    %93 = vector.broadcast %92 : vector<80x1xi1> to vector<80x1xi1>
    %94 = arith.xori %90, %93 : vector<80x1xi1>
    %95 = arith.andi %94, %88 : vector<80x1xi1>
    %96 = vector.broadcast %84 : i32 to vector<80x1xi32>
    %97 = arith.addi %86, %96 : vector<80x1xi32>
    %98 = arith.select %95, %97, %86 : vector<80x1xi1>, vector<80x1xi32>
    %c8_i32 = arith.constant 8 : i32
    %99 = vector.broadcast %c8_i32 : i32 to vector<80x1xi32>
    %100 = arith.cmpi slt, %98, %99 : vector<80x1xi32>
    %cst_60 = arith.constant 0.000000e+00 : f32
    %101 = vector.shape_cast %100 : vector<80x1xi1> to vector<80x1xi1>
    %102 = vector.broadcast %101 : vector<80x1xi1> to vector<80x256xi1>
    %103 = vector.broadcast %cst_60 : f32 to vector<80x256xf32>
    %104 = arith.select %102, %81, %103 : vector<80x256xi1>, vector<80x256xf32>
    %c0_61 = arith.constant 0 : index
    %c0_62 = arith.constant 0 : index
    %c0_63 = arith.constant 0 : index
    %105 = vector.load %arg3[%c0_61, %c0_62, %c0_63] : memref<1x80x256xf32, #tpu.memory_space<vmem>>, vector<1x80x256xf32>
    %106 = vector.shape_cast %105 : vector<1x80x256xf32> to vector<80x256xf32>
    %107 = vector.shape_cast %104 : vector<80x256xf32> to vector<1x80x256xf32>
    tpu.vector_store %arg3[%c0_61, %c0_62, %c0_63], %107 {strides = array<i32>} : memref<1x80x256xf32, #tpu.memory_space<vmem>>, vector<1x80x256xf32>,
    %cst_64 = arith.constant dense<0.000000e+00> : vector<256xf32>
    %108 = vector.multi_reduction <add>, %104, %cst_64 [0] : vector<80x256xf32> to vector<256xf32>
    %109 = vector.shape_cast %108 : vector<256xf32> to vector<1x256xf32>
    %c0_65 = arith.constant 0 : index
    %c0_66 = arith.constant 0 : index
    %c0_67 = arith.constant 0 : index
    %110 = vector.load %arg4[%c0_65, %c0_66, %c0_67] : memref<1x1x256xf32, #tpu.memory_space<vmem>>, vector<1x1x256xf32>
    %111 = vector.shape_cast %110 : vector<1x1x256xf32> to vector<1x256xf32>
    %112 = vector.shape_cast %109 : vector<1x256xf32> to vector<1x1x256xf32>
    tpu.vector_store %arg4[%c0_65, %c0_66, %c0_67], %112 {strides = array<i32>} : memref<1x1x256xf32, #tpu.memory_space<vmem>>, vector<1x1x256xf32>,
    %113 = arith.mulf %104, %104 : vector<80x256xf32>
    %cst_68 = arith.constant dense<0.000000e+00> : vector<256xf32>
    %114 = vector.multi_reduction <add>, %113, %cst_68 [0] : vector<80x256xf32> to vector<256xf32>
    %115 = vector.shape_cast %114 : vector<256xf32> to vector<1x256xf32>
    %c0_69 = arith.constant 0 : index
    %c0_70 = arith.constant 0 : index
    %c0_71 = arith.constant 0 : index
    %116 = vector.load %arg5[%c0_69, %c0_70, %c0_71] : memref<1x1x256xf32, #tpu.memory_space<vmem>>, vector<1x1x256xf32>
    %117 = vector.shape_cast %116 : vector<1x1x256xf32> to vector<1x256xf32>
    %118 = vector.shape_cast %115 : vector<1x256xf32> to vector<1x1x256xf32>
    tpu.vector_store %arg5[%c0_69, %c0_70, %c0_71], %118 {strides = array<i32>} : memref<1x1x256xf32, #tpu.memory_space<vmem>>, vector<1x1x256xf32>,
    return
  }
  func.func @transform_0(%arg0: i32) -> (i32, i32, i32) {
    %c0_i32 = arith.constant 0 : i32
    %c0_i32_0 = arith.constant 0 : i32
    %c0_i32_1 = arith.constant 0 : i32
    return %arg0, %c0_i32, %c0_i32_0 : i32, i32, i32
  }
  func.func @transform_1(%arg0: i32) -> (i32, i32, i32) {
    %c0_i32 = arith.constant 0 : i32
    %c0_i32_0 = arith.constant 0 : i32
    %c0_i32_1 = arith.constant 0 : i32
    %c0_i32_2 = arith.constant 0 : i32
    return %c0_i32, %c0_i32_0, %c0_i32_1 : i32, i32, i32
  }
  func.func @transform_2(%arg0: i32) -> (i32, i32, i32) {
    %c0_i32 = arith.constant 0 : i32
    %c0_i32_0 = arith.constant 0 : i32
    %c0_i32_1 = arith.constant 0 : i32
    return %arg0, %c0_i32, %c0_i32_0 : i32, i32, i32
  }
  func.func @transform_3(%arg0: i32) -> (i32, i32, i32) {
    %c0_i32 = arith.constant 0 : i32
    %c0_i32_0 = arith.constant 0 : i32
    %c0_i32_1 = arith.constant 0 : i32
    return %arg0, %c0_i32, %c0_i32_0 : i32, i32, i32
  }
  func.func @transform_4(%arg0: i32) -> (i32, i32, i32) {
    %c0_i32 = arith.constant 0 : i32
    %c0_i32_0 = arith.constant 0 : i32
    %c0_i32_1 = arith.constant 0 : i32
    return %arg0, %c0_i32, %c0_i32_0 : i32, i32, i32
  }
}

module attributes {stable_mosaic.version = 11 : i64} {
  func.func @kernel(%arg0: i32, %arg1: memref<1x104x128xf32, #tpu.memory_space<vmem>>, %arg2: memref<9x128x128xbf16, #tpu.memory_space<vmem>>, %arg3: memref<128x128xbf16, #tpu.memory_space<vmem>>, %arg4: memref<1x104x128xf32, #tpu.memory_space<vmem>>) attributes {dimension_semantics = [#tpu.dimension_semantics<parallel>], iteration_bounds = array<i64: 2>, scalar_prefetch = 0 : i64, scratch_operands = 0 : i64, tpu.core_type = #tpu.core_type<tc>, window_params = [{transform_indices = @transform_0, window_bounds = array<i64: 1, 104, 128>}, {pipeline_mode = #tpu.pipeline_mode<synchronous>, transform_indices = @transform_1, window_bounds = array<i64: 9, 128, 128>}, {pipeline_mode = #tpu.pipeline_mode<synchronous>, transform_indices = @transform_2, window_bounds = array<i64: 128, 128>}, {transform_indices = @transform_3, window_bounds = array<i64: 1, 104, 128>}]} {
    %cst = arith.constant 0.000000e+00 : f32
    %0 = vector.broadcast %cst : f32 to vector<80x128xf32>
    %c0 = arith.constant 0 : index
    %c0_0 = arith.constant 0 : index
    %c0_1 = arith.constant 0 : index
    %1 = vector.load %arg1[%c0, %c0_0, %c0_1] : memref<1x104x128xf32, #tpu.memory_space<vmem>>, vector<1x80x128xf32>
    %2 = vector.shape_cast %1 : vector<1x80x128xf32> to vector<80x128xf32>
    %cst_2 = arith.constant 0.000000e+00 : f32
    %3 = vector.broadcast %cst_2 : f32 to vector<80x128xf32>
    %4 = arith.maximumf %2, %3 : vector<80x128xf32>
    %5 = arith.truncf %4 : vector<80x128xf32> to vector<80x128xbf16>
    %c0_3 = arith.constant 0 : index
    %c0_4 = arith.constant 0 : index
    %c0_5 = arith.constant 0 : index
    %6 = vector.load %arg2[%c0_3, %c0_4, %c0_5] : memref<9x128x128xbf16, #tpu.memory_space<vmem>>, vector<1x128x128xbf16>
    %7 = vector.shape_cast %6 : vector<1x128x128xbf16> to vector<128x128xbf16>
    %cst_6 = arith.constant dense<0.000000e+00> : vector<80x128xf32>
    %8 = tpu.matmul %5, %7, %cst_6 {dimension_numbers = #tpu.dot_dimension_numbers<[1], [0], [0], [1], [0, 0, 1, 1], [], []>} : vector<80x128xbf16>, vector<128x128xbf16>, vector<80x128xf32> -> vector<80x128xf32>
    %9 = arith.addf %0, %8 : vector<80x128xf32>
    %c0_7 = arith.constant 0 : index
    %c1 = arith.constant 1 : index
    %c0_8 = arith.constant 0 : index
    %10 = vector.load %arg1[%c0_7, %c1, %c0_8] : memref<1x104x128xf32, #tpu.memory_space<vmem>>, vector<1x80x128xf32>
    %11 = vector.shape_cast %10 : vector<1x80x128xf32> to vector<80x128xf32>
    %cst_9 = arith.constant 0.000000e+00 : f32
    %12 = vector.broadcast %cst_9 : f32 to vector<80x128xf32>
    %13 = arith.maximumf %11, %12 : vector<80x128xf32>
    %14 = arith.truncf %13 : vector<80x128xf32> to vector<80x128xbf16>
    %c1_10 = arith.constant 1 : index
    %c0_11 = arith.constant 0 : index
    %c0_12 = arith.constant 0 : index
    %15 = vector.load %arg2[%c1_10, %c0_11, %c0_12] : memref<9x128x128xbf16, #tpu.memory_space<vmem>>, vector<1x128x128xbf16>
    %16 = vector.shape_cast %15 : vector<1x128x128xbf16> to vector<128x128xbf16>
    %cst_13 = arith.constant dense<0.000000e+00> : vector<80x128xf32>
    %17 = tpu.matmul %14, %16, %cst_13 {dimension_numbers = #tpu.dot_dimension_numbers<[1], [0], [0], [1], [0, 0, 1, 1], [], []>} : vector<80x128xbf16>, vector<128x128xbf16>, vector<80x128xf32> -> vector<80x128xf32>
    %18 = arith.addf %9, %17 : vector<80x128xf32>
    %c0_14 = arith.constant 0 : index
    %c2 = arith.constant 2 : index
    %c0_15 = arith.constant 0 : index
    %19 = vector.load %arg1[%c0_14, %c2, %c0_15] : memref<1x104x128xf32, #tpu.memory_space<vmem>>, vector<1x80x128xf32>
    %20 = vector.shape_cast %19 : vector<1x80x128xf32> to vector<80x128xf32>
    %cst_16 = arith.constant 0.000000e+00 : f32
    %21 = vector.broadcast %cst_16 : f32 to vector<80x128xf32>
    %22 = arith.maximumf %20, %21 : vector<80x128xf32>
    %23 = arith.truncf %22 : vector<80x128xf32> to vector<80x128xbf16>
    %c2_17 = arith.constant 2 : index
    %c0_18 = arith.constant 0 : index
    %c0_19 = arith.constant 0 : index
    %24 = vector.load %arg2[%c2_17, %c0_18, %c0_19] : memref<9x128x128xbf16, #tpu.memory_space<vmem>>, vector<1x128x128xbf16>
    %25 = vector.shape_cast %24 : vector<1x128x128xbf16> to vector<128x128xbf16>
    %cst_20 = arith.constant dense<0.000000e+00> : vector<80x128xf32>
    %26 = tpu.matmul %23, %25, %cst_20 {dimension_numbers = #tpu.dot_dimension_numbers<[1], [0], [0], [1], [0, 0, 1, 1], [], []>} : vector<80x128xbf16>, vector<128x128xbf16>, vector<80x128xf32> -> vector<80x128xf32>
    %27 = arith.addf %18, %26 : vector<80x128xf32>
    %c0_21 = arith.constant 0 : index
    %c10 = arith.constant 10 : index
    %c0_22 = arith.constant 0 : index
    %28 = vector.load %arg1[%c0_21, %c10, %c0_22] : memref<1x104x128xf32, #tpu.memory_space<vmem>>, vector<1x80x128xf32>
    %29 = vector.shape_cast %28 : vector<1x80x128xf32> to vector<80x128xf32>
    %cst_23 = arith.constant 0.000000e+00 : f32
    %30 = vector.broadcast %cst_23 : f32 to vector<80x128xf32>
    %31 = arith.maximumf %29, %30 : vector<80x128xf32>
    %32 = arith.truncf %31 : vector<80x128xf32> to vector<80x128xbf16>
    %c3 = arith.constant 3 : index
    %c0_24 = arith.constant 0 : index
    %c0_25 = arith.constant 0 : index
    %33 = vector.load %arg2[%c3, %c0_24, %c0_25] : memref<9x128x128xbf16, #tpu.memory_space<vmem>>, vector<1x128x128xbf16>
    %34 = vector.shape_cast %33 : vector<1x128x128xbf16> to vector<128x128xbf16>
    %cst_26 = arith.constant dense<0.000000e+00> : vector<80x128xf32>
    %35 = tpu.matmul %32, %34, %cst_26 {dimension_numbers = #tpu.dot_dimension_numbers<[1], [0], [0], [1], [0, 0, 1, 1], [], []>} : vector<80x128xbf16>, vector<128x128xbf16>, vector<80x128xf32> -> vector<80x128xf32>
    %36 = arith.addf %27, %35 : vector<80x128xf32>
    %c0_27 = arith.constant 0 : index
    %c11 = arith.constant 11 : index
    %c0_28 = arith.constant 0 : index
    %37 = vector.load %arg1[%c0_27, %c11, %c0_28] : memref<1x104x128xf32, #tpu.memory_space<vmem>>, vector<1x80x128xf32>
    %38 = vector.shape_cast %37 : vector<1x80x128xf32> to vector<80x128xf32>
    %cst_29 = arith.constant 0.000000e+00 : f32
    %39 = vector.broadcast %cst_29 : f32 to vector<80x128xf32>
    %40 = arith.maximumf %38, %39 : vector<80x128xf32>
    %41 = arith.truncf %40 : vector<80x128xf32> to vector<80x128xbf16>
    %c4 = arith.constant 4 : index
    %c0_30 = arith.constant 0 : index
    %c0_31 = arith.constant 0 : index
    %42 = vector.load %arg2[%c4, %c0_30, %c0_31] : memref<9x128x128xbf16, #tpu.memory_space<vmem>>, vector<1x128x128xbf16>
    %43 = vector.shape_cast %42 : vector<1x128x128xbf16> to vector<128x128xbf16>
    %cst_32 = arith.constant dense<0.000000e+00> : vector<80x128xf32>
    %44 = tpu.matmul %41, %43, %cst_32 {dimension_numbers = #tpu.dot_dimension_numbers<[1], [0], [0], [1], [0, 0, 1, 1], [], []>} : vector<80x128xbf16>, vector<128x128xbf16>, vector<80x128xf32> -> vector<80x128xf32>
    %45 = arith.addf %36, %44 : vector<80x128xf32>
    %c0_33 = arith.constant 0 : index
    %c12 = arith.constant 12 : index
    %c0_34 = arith.constant 0 : index
    %46 = vector.load %arg1[%c0_33, %c12, %c0_34] : memref<1x104x128xf32, #tpu.memory_space<vmem>>, vector<1x80x128xf32>
    %47 = vector.shape_cast %46 : vector<1x80x128xf32> to vector<80x128xf32>
    %cst_35 = arith.constant 0.000000e+00 : f32
    %48 = vector.broadcast %cst_35 : f32 to vector<80x128xf32>
    %49 = arith.maximumf %47, %48 : vector<80x128xf32>
    %50 = arith.truncf %49 : vector<80x128xf32> to vector<80x128xbf16>
    %c5 = arith.constant 5 : index
    %c0_36 = arith.constant 0 : index
    %c0_37 = arith.constant 0 : index
    %51 = vector.load %arg2[%c5, %c0_36, %c0_37] : memref<9x128x128xbf16, #tpu.memory_space<vmem>>, vector<1x128x128xbf16>
    %52 = vector.shape_cast %51 : vector<1x128x128xbf16> to vector<128x128xbf16>
    %cst_38 = arith.constant dense<0.000000e+00> : vector<80x128xf32>
    %53 = tpu.matmul %50, %52, %cst_38 {dimension_numbers = #tpu.dot_dimension_numbers<[1], [0], [0], [1], [0, 0, 1, 1], [], []>} : vector<80x128xbf16>, vector<128x128xbf16>, vector<80x128xf32> -> vector<80x128xf32>
    %54 = arith.addf %45, %53 : vector<80x128xf32>
    %c0_39 = arith.constant 0 : index
    %c20 = arith.constant 20 : index
    %c0_40 = arith.constant 0 : index
    %55 = vector.load %arg1[%c0_39, %c20, %c0_40] : memref<1x104x128xf32, #tpu.memory_space<vmem>>, vector<1x80x128xf32>
    %56 = vector.shape_cast %55 : vector<1x80x128xf32> to vector<80x128xf32>
    %cst_41 = arith.constant 0.000000e+00 : f32
    %57 = vector.broadcast %cst_41 : f32 to vector<80x128xf32>
    %58 = arith.maximumf %56, %57 : vector<80x128xf32>
    %59 = arith.truncf %58 : vector<80x128xf32> to vector<80x128xbf16>
    %c6 = arith.constant 6 : index
    %c0_42 = arith.constant 0 : index
    %c0_43 = arith.constant 0 : index
    %60 = vector.load %arg2[%c6, %c0_42, %c0_43] : memref<9x128x128xbf16, #tpu.memory_space<vmem>>, vector<1x128x128xbf16>
    %61 = vector.shape_cast %60 : vector<1x128x128xbf16> to vector<128x128xbf16>
    %cst_44 = arith.constant dense<0.000000e+00> : vector<80x128xf32>
    %62 = tpu.matmul %59, %61, %cst_44 {dimension_numbers = #tpu.dot_dimension_numbers<[1], [0], [0], [1], [0, 0, 1, 1], [], []>} : vector<80x128xbf16>, vector<128x128xbf16>, vector<80x128xf32> -> vector<80x128xf32>
    %63 = arith.addf %54, %62 : vector<80x128xf32>
    %c0_45 = arith.constant 0 : index
    %c21 = arith.constant 21 : index
    %c0_46 = arith.constant 0 : index
    %64 = vector.load %arg1[%c0_45, %c21, %c0_46] : memref<1x104x128xf32, #tpu.memory_space<vmem>>, vector<1x80x128xf32>
    %65 = vector.shape_cast %64 : vector<1x80x128xf32> to vector<80x128xf32>
    %cst_47 = arith.constant 0.000000e+00 : f32
    %66 = vector.broadcast %cst_47 : f32 to vector<80x128xf32>
    %67 = arith.maximumf %65, %66 : vector<80x128xf32>
    %68 = arith.truncf %67 : vector<80x128xf32> to vector<80x128xbf16>
    %c7 = arith.constant 7 : index
    %c0_48 = arith.constant 0 : index
    %c0_49 = arith.constant 0 : index
    %69 = vector.load %arg2[%c7, %c0_48, %c0_49] : memref<9x128x128xbf16, #tpu.memory_space<vmem>>, vector<1x128x128xbf16>
    %70 = vector.shape_cast %69 : vector<1x128x128xbf16> to vector<128x128xbf16>
    %cst_50 = arith.constant dense<0.000000e+00> : vector<80x128xf32>
    %71 = tpu.matmul %68, %70, %cst_50 {dimension_numbers = #tpu.dot_dimension_numbers<[1], [0], [0], [1], [0, 0, 1, 1], [], []>} : vector<80x128xbf16>, vector<128x128xbf16>, vector<80x128xf32> -> vector<80x128xf32>
    %72 = arith.addf %63, %71 : vector<80x128xf32>
    %c0_51 = arith.constant 0 : index
    %c22 = arith.constant 22 : index
    %c0_52 = arith.constant 0 : index
    %73 = vector.load %arg1[%c0_51, %c22, %c0_52] : memref<1x104x128xf32, #tpu.memory_space<vmem>>, vector<1x80x128xf32>
    %74 = vector.shape_cast %73 : vector<1x80x128xf32> to vector<80x128xf32>
    %cst_53 = arith.constant 0.000000e+00 : f32
    %75 = vector.broadcast %cst_53 : f32 to vector<80x128xf32>
    %76 = arith.maximumf %74, %75 : vector<80x128xf32>
    %77 = arith.truncf %76 : vector<80x128xf32> to vector<80x128xbf16>
    %c8 = arith.constant 8 : index
    %c0_54 = arith.constant 0 : index
    %c0_55 = arith.constant 0 : index
    %78 = vector.load %arg2[%c8, %c0_54, %c0_55] : memref<9x128x128xbf16, #tpu.memory_space<vmem>>, vector<1x128x128xbf16>
    %79 = vector.shape_cast %78 : vector<1x128x128xbf16> to vector<128x128xbf16>
    %cst_56 = arith.constant dense<0.000000e+00> : vector<80x128xf32>
    %80 = tpu.matmul %77, %79, %cst_56 {dimension_numbers = #tpu.dot_dimension_numbers<[1], [0], [0], [1], [0, 0, 1, 1], [], []>} : vector<80x128xbf16>, vector<128x128xbf16>, vector<80x128xf32> -> vector<80x128xf32>
    %81 = arith.addf %72, %80 : vector<80x128xf32>
    %cst_57 = arith.constant 0.000000e+00 : f32
    %82 = vector.broadcast %cst_57 : f32 to vector<80x128xf32>
    %83 = arith.maximumf %81, %82 : vector<80x128xf32>
    %84 = arith.truncf %83 : vector<80x128xf32> to vector<80x128xbf16>
    %c0_58 = arith.constant 0 : index
    %c11_59 = arith.constant 11 : index
    %c0_60 = arith.constant 0 : index
    %85 = vector.load %arg1[%c0_58, %c11_59, %c0_60] : memref<1x104x128xf32, #tpu.memory_space<vmem>>, vector<1x80x128xf32>
    %86 = vector.shape_cast %85 : vector<1x80x128xf32> to vector<80x128xf32>
    %c0_61 = arith.constant 0 : index
    %c0_62 = arith.constant 0 : index
    %87 = vector.load %arg3[%c0_61, %c0_62] : memref<128x128xbf16, #tpu.memory_space<vmem>>, vector<128x128xbf16>
    %cst_63 = arith.constant dense<0.000000e+00> : vector<80x128xf32>
    %88 = tpu.matmul %84, %87, %cst_63 {dimension_numbers = #tpu.dot_dimension_numbers<[1], [0], [0], [1], [0, 0, 1, 1], [], []>} : vector<80x128xbf16>, vector<128x128xbf16>, vector<80x128xf32> -> vector<80x128xf32>
    %89 = arith.addf %86, %88 : vector<80x128xf32>
    %90 = tpu.iota {dimensions = array<i32: 0>} : vector<80x1xi32>
    %c10_i32 = arith.constant 10 : i32
    %c0_i32 = arith.constant 0 : i32
    %91 = arith.cmpi eq, %c10_i32, %c0_i32 : i32
    %c1_i32 = arith.constant 1 : i32
    %92 = arith.select %91, %c1_i32, %c10_i32 : i32
    %93 = vector.broadcast %92 : i32 to vector<80x1xi32>
    %94 = arith.remsi %90, %93 : vector<80x1xi32>
    %c0_i32_64 = arith.constant 0 : i32
    %95 = vector.broadcast %c0_i32_64 : i32 to vector<80x1xi32>
    %96 = arith.cmpi ne, %94, %95 : vector<80x1xi32>
    %c0_i32_65 = arith.constant 0 : i32
    %97 = vector.broadcast %c0_i32_65 : i32 to vector<80x1xi32>
    %98 = arith.cmpi slt, %94, %97 : vector<80x1xi32>
    %c0_i32_66 = arith.constant 0 : i32
    %99 = arith.cmpi slt, %92, %c0_i32_66 : i32
    %100 = vector.broadcast %99 : i1 to vector<80x1xi1>
    %101 = vector.broadcast %100 : vector<80x1xi1> to vector<80x1xi1>
    %102 = arith.xori %98, %101 : vector<80x1xi1>
    %103 = arith.andi %102, %96 : vector<80x1xi1>
    %104 = vector.broadcast %92 : i32 to vector<80x1xi32>
    %105 = arith.addi %94, %104 : vector<80x1xi32>
    %106 = arith.select %103, %105, %94 : vector<80x1xi1>, vector<80x1xi32>
    %c8_i32 = arith.constant 8 : i32
    %107 = vector.broadcast %c8_i32 : i32 to vector<80x1xi32>
    %108 = arith.cmpi slt, %106, %107 : vector<80x1xi32>
    %cst_67 = arith.constant 0.000000e+00 : f32
    %109 = vector.shape_cast %108 : vector<80x1xi1> to vector<80x1xi1>
    %110 = vector.broadcast %109 : vector<80x1xi1> to vector<80x128xi1>
    %111 = vector.broadcast %cst_67 : f32 to vector<80x128xf32>
    %112 = arith.select %110, %89, %111 : vector<80x128xi1>, vector<80x128xf32>
    %cst_68 = arith.constant 0.000000e+00 : f32
    %113 = vector.broadcast %cst_68 : f32 to vector<11x128xf32>
    %c0_69 = arith.constant 0 : index
    %c0_70 = arith.constant 0 : index
    %c0_71 = arith.constant 0 : index
    %114 = vector.load %arg4[%c0_69, %c0_70, %c0_71] : memref<1x104x128xf32, #tpu.memory_space<vmem>>, vector<1x11x128xf32>
    %115 = vector.shape_cast %114 : vector<1x11x128xf32> to vector<11x128xf32>
    %116 = vector.shape_cast %113 : vector<11x128xf32> to vector<1x11x128xf32>
    tpu.vector_store %arg4[%c0_69, %c0_70, %c0_71], %116 {strides = array<i32>} : memref<1x104x128xf32, #tpu.memory_space<vmem>>, vector<1x11x128xf32>,
    %c0_72 = arith.constant 0 : index
    %c11_73 = arith.constant 11 : index
    %c0_74 = arith.constant 0 : index
    %117 = vector.load %arg4[%c0_72, %c11_73, %c0_74] : memref<1x104x128xf32, #tpu.memory_space<vmem>>, vector<1x80x128xf32>
    %118 = vector.shape_cast %117 : vector<1x80x128xf32> to vector<80x128xf32>
    %119 = vector.shape_cast %112 : vector<80x128xf32> to vector<1x80x128xf32>
    tpu.vector_store %arg4[%c0_72, %c11_73, %c0_74], %119 {strides = array<i32>} : memref<1x104x128xf32, #tpu.memory_space<vmem>>, vector<1x80x128xf32>,
    %cst_75 = arith.constant 0.000000e+00 : f32
    %120 = vector.broadcast %cst_75 : f32 to vector<13x128xf32>
    %c0_76 = arith.constant 0 : index
    %c91 = arith.constant 91 : index
    %c0_77 = arith.constant 0 : index
    %121 = vector.load %arg4[%c0_76, %c91, %c0_77] : memref<1x104x128xf32, #tpu.memory_space<vmem>>, vector<1x13x128xf32>
    %122 = vector.shape_cast %121 : vector<1x13x128xf32> to vector<13x128xf32>
    %123 = vector.shape_cast %120 : vector<13x128xf32> to vector<1x13x128xf32>
    tpu.vector_store %arg4[%c0_76, %c91, %c0_77], %123 {strides = array<i32>} : memref<1x104x128xf32, #tpu.memory_space<vmem>>, vector<1x13x128xf32>,
    return
  }
  func.func @transform_0(%arg0: i32) -> (i32, i32, i32) {
    %c0_i32 = arith.constant 0 : i32
    %c0_i32_0 = arith.constant 0 : i32
    %c0_i32_1 = arith.constant 0 : i32
    return %arg0, %c0_i32, %c0_i32_0 : i32, i32, i32
  }
  func.func @transform_1(%arg0: i32) -> (i32, i32, i32) {
    %c0_i32 = arith.constant 0 : i32
    %c0_i32_0 = arith.constant 0 : i32
    %c0_i32_1 = arith.constant 0 : i32
    %c0_i32_2 = arith.constant 0 : i32
    return %c0_i32, %c0_i32_0, %c0_i32_1 : i32, i32, i32
  }
  func.func @transform_2(%arg0: i32) -> (i32, i32) {
    %c0_i32 = arith.constant 0 : i32
    %c0_i32_0 = arith.constant 0 : i32
    %c0_i32_1 = arith.constant 0 : i32
    return %c0_i32, %c0_i32_0 : i32, i32
  }
  func.func @transform_3(%arg0: i32) -> (i32, i32, i32) {
    %c0_i32 = arith.constant 0 : i32
    %c0_i32_0 = arith.constant 0 : i32
    %c0_i32_1 = arith.constant 0 : i32
    return %arg0, %c0_i32, %c0_i32_0 : i32, i32, i32
  }
}

module attributes {stable_mosaic.version = 11 : i64} {
  func.func @kernel(%arg0: i32, %arg1: memref<1x328x64xf32, #tpu.memory_space<vmem>>, %arg2: memref<9x64x12xbf16, #tpu.memory_space<vmem>>, %arg3: memref<1x288x12xf32, #tpu.memory_space<vmem>>, %arg4: memref<1x1x12xf32, #tpu.memory_space<vmem>>, %arg5: memref<1x1x12xf32, #tpu.memory_space<vmem>>) attributes {dimension_semantics = [#tpu.dimension_semantics<parallel>], iteration_bounds = array<i64: 2>, scalar_prefetch = 0 : i64, scratch_operands = 0 : i64, tpu.core_type = #tpu.core_type<tc>, window_params = [{transform_indices = @transform_0, window_bounds = array<i64: 1, 328, 64>}, {pipeline_mode = #tpu.pipeline_mode<synchronous>, transform_indices = @transform_1, window_bounds = array<i64: 9, 64, 12>}, {transform_indices = @transform_2, window_bounds = array<i64: 1, 288, 12>}, {transform_indices = @transform_3, window_bounds = array<i64: 1, 1, 12>}, {transform_indices = @transform_4, window_bounds = array<i64: 1, 1, 12>}]} {
    %cst = arith.constant 0.000000e+00 : f32
    %0 = vector.broadcast %cst : f32 to vector<288x12xf32>
    %c0 = arith.constant 0 : index
    %c0_0 = arith.constant 0 : index
    %c0_1 = arith.constant 0 : index
    %1 = vector.load %arg1[%c0, %c0_0, %c0_1] : memref<1x328x64xf32, #tpu.memory_space<vmem>>, vector<1x288x64xf32>
    %2 = vector.shape_cast %1 : vector<1x288x64xf32> to vector<288x64xf32>
    %cst_2 = arith.constant 0.000000e+00 : f32
    %3 = vector.broadcast %cst_2 : f32 to vector<288x64xf32>
    %4 = arith.maximumf %2, %3 : vector<288x64xf32>
    %5 = arith.truncf %4 : vector<288x64xf32> to vector<288x64xbf16>
    %c0_3 = arith.constant 0 : index
    %c0_4 = arith.constant 0 : index
    %c0_5 = arith.constant 0 : index
    %6 = vector.load %arg2[%c0_3, %c0_4, %c0_5] : memref<9x64x12xbf16, #tpu.memory_space<vmem>>, vector<1x64x12xbf16>
    %7 = vector.shape_cast %6 : vector<1x64x12xbf16> to vector<64x12xbf16>
    %cst_6 = arith.constant dense<0.000000e+00> : vector<288x12xf32>
    %8 = tpu.matmul %5, %7, %cst_6 {dimension_numbers = #tpu.dot_dimension_numbers<[1], [0], [0], [1], [0, 0, 1, 1], [], []>} : vector<288x64xbf16>, vector<64x12xbf16>, vector<288x12xf32> -> vector<288x12xf32>
    %9 = arith.addf %0, %8 : vector<288x12xf32>
    %c0_7 = arith.constant 0 : index
    %c1 = arith.constant 1 : index
    %c0_8 = arith.constant 0 : index
    %10 = vector.load %arg1[%c0_7, %c1, %c0_8] : memref<1x328x64xf32, #tpu.memory_space<vmem>>, vector<1x288x64xf32>
    %11 = vector.shape_cast %10 : vector<1x288x64xf32> to vector<288x64xf32>
    %cst_9 = arith.constant 0.000000e+00 : f32
    %12 = vector.broadcast %cst_9 : f32 to vector<288x64xf32>
    %13 = arith.maximumf %11, %12 : vector<288x64xf32>
    %14 = arith.truncf %13 : vector<288x64xf32> to vector<288x64xbf16>
    %c1_10 = arith.constant 1 : index
    %c0_11 = arith.constant 0 : index
    %c0_12 = arith.constant 0 : index
    %15 = vector.load %arg2[%c1_10, %c0_11, %c0_12] : memref<9x64x12xbf16, #tpu.memory_space<vmem>>, vector<1x64x12xbf16>
    %16 = vector.shape_cast %15 : vector<1x64x12xbf16> to vector<64x12xbf16>
    %cst_13 = arith.constant dense<0.000000e+00> : vector<288x12xf32>
    %17 = tpu.matmul %14, %16, %cst_13 {dimension_numbers = #tpu.dot_dimension_numbers<[1], [0], [0], [1], [0, 0, 1, 1], [], []>} : vector<288x64xbf16>, vector<64x12xbf16>, vector<288x12xf32> -> vector<288x12xf32>
    %18 = arith.addf %9, %17 : vector<288x12xf32>
    %c0_14 = arith.constant 0 : index
    %c2 = arith.constant 2 : index
    %c0_15 = arith.constant 0 : index
    %19 = vector.load %arg1[%c0_14, %c2, %c0_15] : memref<1x328x64xf32, #tpu.memory_space<vmem>>, vector<1x288x64xf32>
    %20 = vector.shape_cast %19 : vector<1x288x64xf32> to vector<288x64xf32>
    %cst_16 = arith.constant 0.000000e+00 : f32
    %21 = vector.broadcast %cst_16 : f32 to vector<288x64xf32>
    %22 = arith.maximumf %20, %21 : vector<288x64xf32>
    %23 = arith.truncf %22 : vector<288x64xf32> to vector<288x64xbf16>
    %c2_17 = arith.constant 2 : index
    %c0_18 = arith.constant 0 : index
    %c0_19 = arith.constant 0 : index
    %24 = vector.load %arg2[%c2_17, %c0_18, %c0_19] : memref<9x64x12xbf16, #tpu.memory_space<vmem>>, vector<1x64x12xbf16>
    %25 = vector.shape_cast %24 : vector<1x64x12xbf16> to vector<64x12xbf16>
    %cst_20 = arith.constant dense<0.000000e+00> : vector<288x12xf32>
    %26 = tpu.matmul %23, %25, %cst_20 {dimension_numbers = #tpu.dot_dimension_numbers<[1], [0], [0], [1], [0, 0, 1, 1], [], []>} : vector<288x64xbf16>, vector<64x12xbf16>, vector<288x12xf32> -> vector<288x12xf32>
    %27 = arith.addf %18, %26 : vector<288x12xf32>
    %c0_21 = arith.constant 0 : index
    %c18 = arith.constant 18 : index
    %c0_22 = arith.constant 0 : index
    %28 = vector.load %arg1[%c0_21, %c18, %c0_22] : memref<1x328x64xf32, #tpu.memory_space<vmem>>, vector<1x288x64xf32>
    %29 = vector.shape_cast %28 : vector<1x288x64xf32> to vector<288x64xf32>
    %cst_23 = arith.constant 0.000000e+00 : f32
    %30 = vector.broadcast %cst_23 : f32 to vector<288x64xf32>
    %31 = arith.maximumf %29, %30 : vector<288x64xf32>
    %32 = arith.truncf %31 : vector<288x64xf32> to vector<288x64xbf16>
    %c3 = arith.constant 3 : index
    %c0_24 = arith.constant 0 : index
    %c0_25 = arith.constant 0 : index
    %33 = vector.load %arg2[%c3, %c0_24, %c0_25] : memref<9x64x12xbf16, #tpu.memory_space<vmem>>, vector<1x64x12xbf16>
    %34 = vector.shape_cast %33 : vector<1x64x12xbf16> to vector<64x12xbf16>
    %cst_26 = arith.constant dense<0.000000e+00> : vector<288x12xf32>
    %35 = tpu.matmul %32, %34, %cst_26 {dimension_numbers = #tpu.dot_dimension_numbers<[1], [0], [0], [1], [0, 0, 1, 1], [], []>} : vector<288x64xbf16>, vector<64x12xbf16>, vector<288x12xf32> -> vector<288x12xf32>
    %36 = arith.addf %27, %35 : vector<288x12xf32>
    %c0_27 = arith.constant 0 : index
    %c19 = arith.constant 19 : index
    %c0_28 = arith.constant 0 : index
    %37 = vector.load %arg1[%c0_27, %c19, %c0_28] : memref<1x328x64xf32, #tpu.memory_space<vmem>>, vector<1x288x64xf32>
    %38 = vector.shape_cast %37 : vector<1x288x64xf32> to vector<288x64xf32>
    %cst_29 = arith.constant 0.000000e+00 : f32
    %39 = vector.broadcast %cst_29 : f32 to vector<288x64xf32>
    %40 = arith.maximumf %38, %39 : vector<288x64xf32>
    %41 = arith.truncf %40 : vector<288x64xf32> to vector<288x64xbf16>
    %c4 = arith.constant 4 : index
    %c0_30 = arith.constant 0 : index
    %c0_31 = arith.constant 0 : index
    %42 = vector.load %arg2[%c4, %c0_30, %c0_31] : memref<9x64x12xbf16, #tpu.memory_space<vmem>>, vector<1x64x12xbf16>
    %43 = vector.shape_cast %42 : vector<1x64x12xbf16> to vector<64x12xbf16>
    %cst_32 = arith.constant dense<0.000000e+00> : vector<288x12xf32>
    %44 = tpu.matmul %41, %43, %cst_32 {dimension_numbers = #tpu.dot_dimension_numbers<[1], [0], [0], [1], [0, 0, 1, 1], [], []>} : vector<288x64xbf16>, vector<64x12xbf16>, vector<288x12xf32> -> vector<288x12xf32>
    %45 = arith.addf %36, %44 : vector<288x12xf32>
    %c0_33 = arith.constant 0 : index
    %c20 = arith.constant 20 : index
    %c0_34 = arith.constant 0 : index
    %46 = vector.load %arg1[%c0_33, %c20, %c0_34] : memref<1x328x64xf32, #tpu.memory_space<vmem>>, vector<1x288x64xf32>
    %47 = vector.shape_cast %46 : vector<1x288x64xf32> to vector<288x64xf32>
    %cst_35 = arith.constant 0.000000e+00 : f32
    %48 = vector.broadcast %cst_35 : f32 to vector<288x64xf32>
    %49 = arith.maximumf %47, %48 : vector<288x64xf32>
    %50 = arith.truncf %49 : vector<288x64xf32> to vector<288x64xbf16>
    %c5 = arith.constant 5 : index
    %c0_36 = arith.constant 0 : index
    %c0_37 = arith.constant 0 : index
    %51 = vector.load %arg2[%c5, %c0_36, %c0_37] : memref<9x64x12xbf16, #tpu.memory_space<vmem>>, vector<1x64x12xbf16>
    %52 = vector.shape_cast %51 : vector<1x64x12xbf16> to vector<64x12xbf16>
    %cst_38 = arith.constant dense<0.000000e+00> : vector<288x12xf32>
    %53 = tpu.matmul %50, %52, %cst_38 {dimension_numbers = #tpu.dot_dimension_numbers<[1], [0], [0], [1], [0, 0, 1, 1], [], []>} : vector<288x64xbf16>, vector<64x12xbf16>, vector<288x12xf32> -> vector<288x12xf32>
    %54 = arith.addf %45, %53 : vector<288x12xf32>
    %c0_39 = arith.constant 0 : index
    %c36 = arith.constant 36 : index
    %c0_40 = arith.constant 0 : index
    %55 = vector.load %arg1[%c0_39, %c36, %c0_40] : memref<1x328x64xf32, #tpu.memory_space<vmem>>, vector<1x288x64xf32>
    %56 = vector.shape_cast %55 : vector<1x288x64xf32> to vector<288x64xf32>
    %cst_41 = arith.constant 0.000000e+00 : f32
    %57 = vector.broadcast %cst_41 : f32 to vector<288x64xf32>
    %58 = arith.maximumf %56, %57 : vector<288x64xf32>
    %59 = arith.truncf %58 : vector<288x64xf32> to vector<288x64xbf16>
    %c6 = arith.constant 6 : index
    %c0_42 = arith.constant 0 : index
    %c0_43 = arith.constant 0 : index
    %60 = vector.load %arg2[%c6, %c0_42, %c0_43] : memref<9x64x12xbf16, #tpu.memory_space<vmem>>, vector<1x64x12xbf16>
    %61 = vector.shape_cast %60 : vector<1x64x12xbf16> to vector<64x12xbf16>
    %cst_44 = arith.constant dense<0.000000e+00> : vector<288x12xf32>
    %62 = tpu.matmul %59, %61, %cst_44 {dimension_numbers = #tpu.dot_dimension_numbers<[1], [0], [0], [1], [0, 0, 1, 1], [], []>} : vector<288x64xbf16>, vector<64x12xbf16>, vector<288x12xf32> -> vector<288x12xf32>
    %63 = arith.addf %54, %62 : vector<288x12xf32>
    %c0_45 = arith.constant 0 : index
    %c37 = arith.constant 37 : index
    %c0_46 = arith.constant 0 : index
    %64 = vector.load %arg1[%c0_45, %c37, %c0_46] : memref<1x328x64xf32, #tpu.memory_space<vmem>>, vector<1x288x64xf32>
    %65 = vector.shape_cast %64 : vector<1x288x64xf32> to vector<288x64xf32>
    %cst_47 = arith.constant 0.000000e+00 : f32
    %66 = vector.broadcast %cst_47 : f32 to vector<288x64xf32>
    %67 = arith.maximumf %65, %66 : vector<288x64xf32>
    %68 = arith.truncf %67 : vector<288x64xf32> to vector<288x64xbf16>
    %c7 = arith.constant 7 : index
    %c0_48 = arith.constant 0 : index
    %c0_49 = arith.constant 0 : index
    %69 = vector.load %arg2[%c7, %c0_48, %c0_49] : memref<9x64x12xbf16, #tpu.memory_space<vmem>>, vector<1x64x12xbf16>
    %70 = vector.shape_cast %69 : vector<1x64x12xbf16> to vector<64x12xbf16>
    %cst_50 = arith.constant dense<0.000000e+00> : vector<288x12xf32>
    %71 = tpu.matmul %68, %70, %cst_50 {dimension_numbers = #tpu.dot_dimension_numbers<[1], [0], [0], [1], [0, 0, 1, 1], [], []>} : vector<288x64xbf16>, vector<64x12xbf16>, vector<288x12xf32> -> vector<288x12xf32>
    %72 = arith.addf %63, %71 : vector<288x12xf32>
    %c0_51 = arith.constant 0 : index
    %c38 = arith.constant 38 : index
    %c0_52 = arith.constant 0 : index
    %73 = vector.load %arg1[%c0_51, %c38, %c0_52] : memref<1x328x64xf32, #tpu.memory_space<vmem>>, vector<1x288x64xf32>
    %74 = vector.shape_cast %73 : vector<1x288x64xf32> to vector<288x64xf32>
    %cst_53 = arith.constant 0.000000e+00 : f32
    %75 = vector.broadcast %cst_53 : f32 to vector<288x64xf32>
    %76 = arith.maximumf %74, %75 : vector<288x64xf32>
    %77 = arith.truncf %76 : vector<288x64xf32> to vector<288x64xbf16>
    %c8 = arith.constant 8 : index
    %c0_54 = arith.constant 0 : index
    %c0_55 = arith.constant 0 : index
    %78 = vector.load %arg2[%c8, %c0_54, %c0_55] : memref<9x64x12xbf16, #tpu.memory_space<vmem>>, vector<1x64x12xbf16>
    %79 = vector.shape_cast %78 : vector<1x64x12xbf16> to vector<64x12xbf16>
    %cst_56 = arith.constant dense<0.000000e+00> : vector<288x12xf32>
    %80 = tpu.matmul %77, %79, %cst_56 {dimension_numbers = #tpu.dot_dimension_numbers<[1], [0], [0], [1], [0, 0, 1, 1], [], []>} : vector<288x64xbf16>, vector<64x12xbf16>, vector<288x12xf32> -> vector<288x12xf32>
    %81 = arith.addf %72, %80 : vector<288x12xf32>
    %82 = tpu.iota {dimensions = array<i32: 0>} : vector<288x1xi32>
    %c18_i32 = arith.constant 18 : i32
    %c0_i32 = arith.constant 0 : i32
    %83 = arith.cmpi eq, %c18_i32, %c0_i32 : i32
    %c1_i32 = arith.constant 1 : i32
    %84 = arith.select %83, %c1_i32, %c18_i32 : i32
    %85 = vector.broadcast %84 : i32 to vector<288x1xi32>
    %86 = arith.remsi %82, %85 : vector<288x1xi32>
    %c0_i32_57 = arith.constant 0 : i32
    %87 = vector.broadcast %c0_i32_57 : i32 to vector<288x1xi32>
    %88 = arith.cmpi ne, %86, %87 : vector<288x1xi32>
    %c0_i32_58 = arith.constant 0 : i32
    %89 = vector.broadcast %c0_i32_58 : i32 to vector<288x1xi32>
    %90 = arith.cmpi slt, %86, %89 : vector<288x1xi32>
    %c0_i32_59 = arith.constant 0 : i32
    %91 = arith.cmpi slt, %84, %c0_i32_59 : i32
    %92 = vector.broadcast %91 : i1 to vector<288x1xi1>
    %93 = vector.broadcast %92 : vector<288x1xi1> to vector<288x1xi1>
    %94 = arith.xori %90, %93 : vector<288x1xi1>
    %95 = arith.andi %94, %88 : vector<288x1xi1>
    %96 = vector.broadcast %84 : i32 to vector<288x1xi32>
    %97 = arith.addi %86, %96 : vector<288x1xi32>
    %98 = arith.select %95, %97, %86 : vector<288x1xi1>, vector<288x1xi32>
    %c16_i32 = arith.constant 16 : i32
    %99 = vector.broadcast %c16_i32 : i32 to vector<288x1xi32>
    %100 = arith.cmpi slt, %98, %99 : vector<288x1xi32>
    %cst_60 = arith.constant 0.000000e+00 : f32
    %101 = vector.shape_cast %100 : vector<288x1xi1> to vector<288x1xi1>
    %102 = vector.broadcast %101 : vector<288x1xi1> to vector<288x12xi1>
    %103 = vector.broadcast %cst_60 : f32 to vector<288x12xf32>
    %104 = arith.select %102, %81, %103 : vector<288x12xi1>, vector<288x12xf32>
    %c0_61 = arith.constant 0 : index
    %c0_62 = arith.constant 0 : index
    %c0_63 = arith.constant 0 : index
    %105 = vector.load %arg3[%c0_61, %c0_62, %c0_63] : memref<1x288x12xf32, #tpu.memory_space<vmem>>, vector<1x288x12xf32>
    %106 = vector.shape_cast %105 : vector<1x288x12xf32> to vector<288x12xf32>
    %107 = vector.shape_cast %104 : vector<288x12xf32> to vector<1x288x12xf32>
    tpu.vector_store %arg3[%c0_61, %c0_62, %c0_63], %107 {strides = array<i32>} : memref<1x288x12xf32, #tpu.memory_space<vmem>>, vector<1x288x12xf32>,
    %cst_64 = arith.constant dense<0.000000e+00> : vector<12xf32>
    %108 = vector.multi_reduction <add>, %104, %cst_64 [0] : vector<288x12xf32> to vector<12xf32>
    %109 = vector.shape_cast %108 : vector<12xf32> to vector<1x12xf32>
    %c0_65 = arith.constant 0 : index
    %c0_66 = arith.constant 0 : index
    %c0_67 = arith.constant 0 : index
    %110 = vector.load %arg4[%c0_65, %c0_66, %c0_67] : memref<1x1x12xf32, #tpu.memory_space<vmem>>, vector<1x1x12xf32>
    %111 = vector.shape_cast %110 : vector<1x1x12xf32> to vector<1x12xf32>
    %112 = vector.shape_cast %109 : vector<1x12xf32> to vector<1x1x12xf32>
    tpu.vector_store %arg4[%c0_65, %c0_66, %c0_67], %112 {strides = array<i32>} : memref<1x1x12xf32, #tpu.memory_space<vmem>>, vector<1x1x12xf32>,
    %113 = arith.mulf %104, %104 : vector<288x12xf32>
    %cst_68 = arith.constant dense<0.000000e+00> : vector<12xf32>
    %114 = vector.multi_reduction <add>, %113, %cst_68 [0] : vector<288x12xf32> to vector<12xf32>
    %115 = vector.shape_cast %114 : vector<12xf32> to vector<1x12xf32>
    %c0_69 = arith.constant 0 : index
    %c0_70 = arith.constant 0 : index
    %c0_71 = arith.constant 0 : index
    %116 = vector.load %arg5[%c0_69, %c0_70, %c0_71] : memref<1x1x12xf32, #tpu.memory_space<vmem>>, vector<1x1x12xf32>
    %117 = vector.shape_cast %116 : vector<1x1x12xf32> to vector<1x12xf32>
    %118 = vector.shape_cast %115 : vector<1x12xf32> to vector<1x1x12xf32>
    tpu.vector_store %arg5[%c0_69, %c0_70, %c0_71], %118 {strides = array<i32>} : memref<1x1x12xf32, #tpu.memory_space<vmem>>, vector<1x1x12xf32>,
    return
  }
  func.func @transform_0(%arg0: i32) -> (i32, i32, i32) {
    %c0_i32 = arith.constant 0 : i32
    %c0_i32_0 = arith.constant 0 : i32
    %c0_i32_1 = arith.constant 0 : i32
    return %arg0, %c0_i32, %c0_i32_0 : i32, i32, i32
  }
  func.func @transform_1(%arg0: i32) -> (i32, i32, i32) {
    %c0_i32 = arith.constant 0 : i32
    %c0_i32_0 = arith.constant 0 : i32
    %c0_i32_1 = arith.constant 0 : i32
    %c0_i32_2 = arith.constant 0 : i32
    return %c0_i32, %c0_i32_0, %c0_i32_1 : i32, i32, i32
  }
  func.func @transform_2(%arg0: i32) -> (i32, i32, i32) {
    %c0_i32 = arith.constant 0 : i32
    %c0_i32_0 = arith.constant 0 : i32
    %c0_i32_1 = arith.constant 0 : i32
    return %arg0, %c0_i32, %c0_i32_0 : i32, i32, i32
  }
  func.func @transform_3(%arg0: i32) -> (i32, i32, i32) {
    %c0_i32 = arith.constant 0 : i32
    %c0_i32_0 = arith.constant 0 : i32
    %c0_i32_1 = arith.constant 0 : i32
    return %arg0, %c0_i32, %c0_i32_0 : i32, i32, i32
  }
  func.func @transform_4(%arg0: i32) -> (i32, i32, i32) {
    %c0_i32 = arith.constant 0 : i32
    %c0_i32_0 = arith.constant 0 : i32
    %c0_i32_1 = arith.constant 0 : i32
    return %arg0, %c0_i32, %c0_i32_0 : i32, i32, i32
  }
}

</mosaic_0001>

<llo_original>
// kernel: decoder_forward.4
$region0: #{decoder_forward.4}
  #allocation0 [shape = 'u32[]', space=smem, size = 0x4, offset = 0x4, fixed_abs, tag = 'smem constant byte address 0x4 - core index']
  #allocation1 [shape = 'u32[72,128]{1,0:T(1,128)}', space=vmem, size = 0x9000, scoped, tag = 'internal scratch']
  %s0 = inlined_call_operand.vmem [shape: f32[2,104,128], index: 0, kind: input, shape index: {}]
  %s1 = inlined_call_operand.vmem [shape: bf16[9,128,128], index: 1, kind: input, shape index: {}]
  %s2 = inlined_call_operand.vmem [shape: bf16[128,128], index: 2, kind: input, shape index: {}]
  %s3 = inlined_call_operand.vmem [shape: f32[2,104,128], index: 3, kind: output, shape index: {}]
  %s4 = sld [smem:[#allocation0]]
  $region45: #{decoder_forward.4} parent=0
    _
  %s6 = ssub.s32 1, %s4
  %s7 = scalar_select 0, %s6, %s4
  loop: start=0, step=1, limit=4
  $region2: #{decoder_forward.4} parent=0 // loop_pre_header
    _
  $region3: #{decoder_forward.4} parent=0 // loop_header
    %s9 = sphi 0, %s13
    %p10 = scmp.ge.s32.totalorder %s9, 4
    %s19 = sphi 0, %s21
    %s22 = sphi 0, %s19
    %s23 = sphi 0, %s22
    %s39 = sphi 0, %s23
    %s43 = sphi 0, %s43
    %s45 = sphi 0, %s43
    %s46 = sphi 0, %s45
    %s60 = sphi 0, %s46
    %s64 = sphi 0, %s64
    %s66 = sphi 0, %s64
    %s67 = sphi 0, %s66
    %s81 = sphi 0, %s67
    %s87 = sphi 0, %s89
    %s90 = sphi 0, %s87
    %s91 = sphi 0, %s90
    %s107 = sphi 0, %s91
  $region4: #{decoder_forward.4} parent=0 // loop_header_branch
    %12 = sbr.rel (%p10) target = $region8
  $region5: #{decoder_forward.4} parent=0 // loop_body
    %s14 = ssub.s32 %s9, 1
    %s15 = ssub.s32 %s9, 2
    %s16 = sadd.s32 %s9, 1
    %s17 = ssub.s32 %s9, %s16
    %p18 = scmp.eq.s32.totalorder %s17, 0
    %s20 = sadd.s32 %s19, 1
    %s21 = scalar_select %p18, %s19, %s20
    %p24 = pneg %p18
    %p25 = scmp.eq.s32.totalorder %s9, 1
    %p26 = por %p24, %p25
    %p27 = scmp.ne.s32.totalorder %s19, %s22
    %p28 = scmp.eq.s32.totalorder %s9, 0
    %p29 = por %p27, %p28
    %p30 = scmp.ne.s32.totalorder %s19, %s22
    %p31 = scmp.eq.s32.totalorder %s14, 1
    %p32 = por %p30, %p31
    %p33 = scmp.ne.s32.totalorder %s22, %s23
    %p34 = scmp.eq.s32.totalorder %s14, 0
    %p35 = por %p33, %p34
    %p36 = scmp.ne.s32.totalorder %s22, %s23
    %p37 = scmp.eq.s32.totalorder %s15, 1
    %p38 = por %p36, %p37
    %p40 = scmp.ne.s32.totalorder %s23, %s39
    %p41 = scmp.eq.s32.totalorder %s15, 0
    %p42 = por %p40, %p41
    %s44 = sadd.s32 %s43, 1
    %p47 = scmp.eq.s32.totalorder %s9, 1
    %p48 = scmp.ne.s32.totalorder %s43, %s45
    %p49 = scmp.eq.s32.totalorder %s9, 0
    %p50 = por %p48, %p49
    %p51 = scmp.ne.s32.totalorder %s43, %s45
    %p52 = scmp.eq.s32.totalorder %s14, 1
    %p53 = por %p51, %p52
    %p54 = scmp.ne.s32.totalorder %s45, %s46
    %p55 = scmp.eq.s32.totalorder %s14, 0
    %p56 = por %p54, %p55
    %p57 = scmp.ne.s32.totalorder %s45, %s46
    %p58 = scmp.eq.s32.totalorder %s15, 1
    %p59 = por %p57, %p58
    %p61 = scmp.ne.s32.totalorder %s46, %s60
    %p62 = scmp.eq.s32.totalorder %s15, 0
    %p63 = por %p61, %p62
    %s65 = sadd.s32 %s64, 1
    %p68 = scmp.eq.s32.totalorder %s9, 1
    %p69 = scmp.ne.s32.totalorder %s64, %s66
    %p70 = scmp.eq.s32.totalorder %s9, 0
    %p71 = por %p69, %p70
    %p72 = scmp.ne.s32.totalorder %s64, %s66
    %p73 = scmp.eq.s32.totalorder %s14, 1
    %p74 = por %p72, %p73
    %p75 = scmp.ne.s32.totalorder %s66, %s67
    %p76 = scmp.eq.s32.totalorder %s14, 0
    %p77 = por %p75, %p76
    %p78 = scmp.ne.s32.totalorder %s66, %s67
    %p79 = scmp.eq.s32.totalorder %s15, 1
    %p80 = por %p78, %p79
    %p82 = scmp.ne.s32.totalorder %s67, %s81
    %p83 = scmp.eq.s32.totalorder %s15, 0
    %p84 = por %p82, %p83
    %s85 = ssub.s32 %s9, %s16
    %p86 = scmp.eq.s32.totalorder %s85, 0
    %s88 = sadd.s32 %s87, 1
    %s89 = scalar_select %p86, %s87, %s88
    %p92 = pneg %p86
    %p93 = scmp.eq.s32.totalorder %s9, 1
    %p94 = por %p92, %p93
    %p95 = scmp.ne.s32.totalorder %s87, %s90
    %p96 = scmp.eq.s32.totalorder %s9, 0
    %p97 = por %p95, %p96
    %p98 = scmp.ne.s32.totalorder %s87, %s90
    %p99 = scmp.eq.s32.totalorder %s14, 1
    %p100 = por %p98, %p99
    %p101 = scmp.ne.s32.totalorder %s90, %s91
    %p102 = scmp.eq.s32.totalorder %s14, 0
    %p103 = por %p101, %p102
    %p104 = scmp.ne.s32.totalorder %s90, %s91
    %p105 = scmp.eq.s32.totalorder %s15, 1
    %p106 = por %p104, %p105
    %p108 = scmp.ne.s32.totalorder %s91, %s107
    %p109 = scmp.eq.s32.totalorder %s15, 0
    %p110 = por %p108, %p109
    %p111 = scmp.le.s32.totalorder 1, %s9
    %p112 = scmp.lt.s32.totalorder %s9, 3
    %p113 = pnand %p111, %p112
    %p114 = pneg %p113
    // Predicated region
    $region9: #{decoder_forward.4} parent=5 // pred_check
      _
    $region10: #{decoder_forward.4} parent=5 // pred_check_branch
      %116 = sbr.rel (%p113) target = $region12
    $region11: #{decoder_forward.4} parent=5 // pred_region
      %s117 = ssub.s32 %s9, 1
      // Predicated region
      $region13: #{decoder_forward.4} parent=11 // pred_check
        %p118 = pneg %p56
      $region14: #{decoder_forward.4} parent=11 // pred_check_branch
        %120 = sbr.rel (%p118) target = $region16
      $region15: #{decoder_forward.4} parent=11 // pred_region
        _
      $region16: #{decoder_forward.4} parent=11 // pred_fallthru
        _
      // Predicated region
      $region17: #{decoder_forward.4} parent=11 // pred_check
        %p121 = pneg %p77
      $region18: #{decoder_forward.4} parent=11 // pred_check_branch
        %123 = sbr.rel (%p121) target = $region20
      $region19: #{decoder_forward.4} parent=11 // pred_region
        _
      $region20: #{decoder_forward.4} parent=11 // pred_fallthru
        _
    $region12: #{decoder_forward.4} parent=5 // pred_fallthru
      _
    %p124 = scmp.lt.s32.totalorder %s9, 2
    // Predicated region
    $region21: #{decoder_forward.4} parent=5 // pred_check
      %p125 = pneg %p124
    $region22: #{decoder_forward.4} parent=5 // pred_check_branch
      %127 = sbr.rel (%p125) target = $region24
    $region23: #{decoder_forward.4} parent=5 // pred_region
      // Predicated region
      $region25: #{decoder_forward.4} parent=23 // pred_check
        %p128 = pneg %p29
      $region26: #{decoder_forward.4} parent=23 // pred_check_branch
        %130 = sbr.rel (%p128) target = $region28
      $region27: #{decoder_forward.4} parent=23 // pred_region
        %p131 = scmp.lt.s32.totalorder %s9, 1
        %s132 = scalar_select %p131, %s9, 1
        %s133 = smul.addr %s132, 13
        %s134 = smul.addr %s133, 8
        %s135 = scalar_lea.vmem %s0, %s134
      $region28: #{decoder_forward.4} parent=23 // pred_fallthru
        _
    $region24: #{decoder_forward.4} parent=5 // pred_fallthru
      _
    %p136 = scmp.le.s32.totalorder 1, %s9
    %p137 = scmp.lt.s32.totalorder %s9, 3
    %p138 = pnand %p136, %p137
    %p139 = pneg %p138
    // Predicated region
    $region29: #{decoder_forward.4} parent=5 // pred_check
      _
    $region30: #{decoder_forward.4} parent=5 // pred_check_branch
      %141 = sbr.rel (%p138) target = $region32
    $region31: #{decoder_forward.4} parent=5 // pred_region
      %s142 = ssub.s32 %s9, 1
      %p143 = scmp.lt.s32.totalorder %s14, 1
      %s144 = scalar_select %p143, %s14, 1
      %s145 = smul.addr %s144, 13
      %s146 = smul.addr %s145, 8
      %s147 = scalar_lea.vmem %s0, %s146
      %p148 = pneg %p35
      %p149 = pneg %p32
      %p150 = pneg %p56
      %p151 = pneg %p53
      %p152 = pneg %p77
      %p153 = pneg %p74
      %p154 = pneg %p103
      %p155 = pneg %p100
      %p156 = scmp.lt.s32.totalorder %s14, 1
      %s157 = scalar_select %p156, %s14, 1
      %s158 = smul.addr %s157, 13
      %s159 = smul.addr %s158, 8
      %s160 = scalar_lea.vmem %s3, %s159
      %p161 = scmp.lt.s32.totalorder %s14, 1
      %s162 = scalar_select %p161, %s14, 1
      %s163 = smul.addr %s162, 13
      %s164 = smul.addr %s163, 8
      %s165 = scalar_lea.vmem %s0, %s164
      %p166 = scmp.lt.s32.totalorder %s14, 1
      %s167 = scalar_select %p166, %s14, 1
      %s168 = smul.addr %s167, 13
      %s169 = smul.addr %s168, 8
      %s170 = scalar_lea.vmem %s3, %s169
      %v171 = vld [vmem:[%s165] sm:$0xff]
      %v172 = vld [vmem:[%s165 + $0x8] sm:$0xff]
      %v173 = vld [vmem:[%s165 + $0x10] sm:$0xff]
      %v174 = vld [vmem:[%s165 + $0x18] sm:$0xff]
      %v175 = vld [vmem:[%s165 + $0x20] sm:$0xff]
      %v176 = vld [vmem:[%s165 + $0x28] sm:$0xff]
      %v177 = vld [vmem:[%s165 + $0x30] sm:$0xff]
      %v178 = vld [vmem:[%s165 + $0x38] sm:$0xff]
      %v179 = vld [vmem:[%s165 + $0x40] sm:$0xff]
      %v180 = vld [vmem:[%s165 + $0x48] sm:$0xff]
      %v181 = vmax.f32 %v171, 0.0
      %v182 = vmax.f32 %v172, 0.0
      %v183 = vmax.f32 %v173, 0.0
      %v184 = vmax.f32 %v174, 0.0
      %v185 = vmax.f32 %v175, 0.0
      %v186 = vmax.f32 %v176, 0.0
      %v187 = vmax.f32 %v177, 0.0
      %v188 = vmax.f32 %v178, 0.0
      %v189 = vmax.f32 %v179, 0.0
      %v190 = vmax.f32 %v180, 0.0
      %v191 = vpack.c.bf16 %v182, %v181
      %v192 = vpack.c.bf16 %v184, %v183
      %v193 = vpack.c.bf16 %v186, %v185
      %v194 = vpack.c.bf16 %v188, %v187
      %v195 = vpack.c.bf16 %v190, %v189
      %v196 = vld [vmem:[%s1] sm:$0xf]
      %v197 = vld [vmem:[%s1 + $0x4] sm:$0xf]
      %v198 = vld [vmem:[%s1 + $0x8] sm:$0xf]
      %v199 = vld [vmem:[%s1 + $0xc] sm:$0xf]
      %v200 = vld [vmem:[%s1 + $0x10] sm:$0xf]
      %v201 = vld [vmem:[%s1 + $0x14] sm:$0xf]
      %v202 = vld [vmem:[%s1 + $0x18] sm:$0xf]
      %v203 = vld [vmem:[%s1 + $0x1c] sm:$0xf]
      %v204 = vld [vmem:[%s1 + $0x20] sm:$0xf]
      %v205 = vld [vmem:[%s1 + $0x24] sm:$0xf]
      %v206 = vld [vmem:[%s1 + $0x28] sm:$0xf]
      %v207 = vld [vmem:[%s1 + $0x2c] sm:$0xf]
      %v208 = vld [vmem:[%s1 + $0x30] sm:$0xf]
      %v209 = vld [vmem:[%s1 + $0x34] sm:$0xf]
      %v210 = vld [vmem:[%s1 + $0x38] sm:$0xf]
      %v211 = vld [vmem:[%s1 + $0x3c] sm:$0xf]
      %v212 = vld [vmem:[%s165 + $0x1] sm:$0xff]
      %v213 = vld [vmem:[%s165 + $0x9] sm:$0xff]
      %v214 = vld [vmem:[%s165 + $0x11] sm:$0xff]
      %v215 = vld [vmem:[%s165 + $0x19] sm:$0xff]
      %v216 = vld [vmem:[%s165 + $0x21] sm:$0xff]
      %v217 = vld [vmem:[%s165 + $0x29] sm:$0xff]
      %v218 = vld [vmem:[%s165 + $0x31] sm:$0xff]
      %v219 = vld [vmem:[%s165 + $0x39] sm:$0xff]
      %v220 = vld [vmem:[%s165 + $0x41] sm:$0xff]
      %v221 = vld [vmem:[%s165 + $0x49] sm:$0xff]
      %v222 = vmax.f32 %v212, 0.0
      %v223 = vmax.f32 %v213, 0.0
      %v224 = vmax.f32 %v214, 0.0
      %v225 = vmax.f32 %v215, 0.0
      %v226 = vmax.f32 %v216, 0.0
      %v227 = vmax.f32 %v217, 0.0
      %v228 = vmax.f32 %v218, 0.0
      %v229 = vmax.f32 %v219, 0.0
      %v230 = vmax.f32 %v220, 0.0
      %v231 = vmax.f32 %v221, 0.0
      %v232 = vpack.c.bf16 %v223, %v222
      %v233 = vpack.c.bf16 %v225, %v224
      %v234 = vpack.c.bf16 %v227, %v226
      %v235 = vpack.c.bf16 %v229, %v228
      %v236 = vpack.c.bf16 %v231, %v230
      %s237 = scalar_lea.vmem %s1, 64
      %v238 = vld [vmem:[%s237] sm:$0xf]
      %v239 = vld [vmem:[%s237 + $0x4] sm:$0xf]
      %v240 = vld [vmem:[%s237 + $0x8] sm:$0xf]
      %v241 = vld [vmem:[%s237 + $0xc] sm:$0xf]
      %v242 = vld [vmem:[%s237 + $0x10] sm:$0xf]
      %v243 = vld [vmem:[%s237 + $0x14] sm:$0xf]
      %v244 = vld [vmem:[%s237 + $0x18] sm:$0xf]
      %v245 = vld [vmem:[%s237 + $0x1c] sm:$0xf]
      %v246 = vld [vmem:[%s237 + $0x20] sm:$0xf]
      %v247 = vld [vmem:[%s237 + $0x24] sm:$0xf]
      %v248 = vld [vmem:[%s237 + $0x28] sm:$0xf]
      %v249 = vld [vmem:[%s237 + $0x2c] sm:$0xf]
      %v250 = vld [vmem:[%s237 + $0x30] sm:$0xf]
      %v251 = vld [vmem:[%s237 + $0x34] sm:$0xf]
      %v252 = vld [vmem:[%s237 + $0x38] sm:$0xf]
      %v253 = vld [vmem:[%s237 + $0x3c] sm:$0xf]
      %v270 = vunpack.c.l.b16 %v238
      %v271 = vunpack.c.l.b16 %v239
      %v272 = vunpack.c.l.b16 %v240
      %v273 = vunpack.c.l.b16 %v241
      %v274 = vunpack.c.l.b16 %v242
      %v275 = vunpack.c.l.b16 %v243
      %v276 = vunpack.c.l.b16 %v244
      %v277 = vunpack.c.l.b16 %v245
      %v278 = vunpack.c.l.b16 %v246
      %v279 = vunpack.c.l.b16 %v247
      %v280 = vunpack.c.l.b16 %v248
      %v281 = vunpack.c.l.b16 %v249
      %v282 = vunpack.c.l.b16 %v250
      %v283 = vunpack.c.l.b16 %v251
      %v284 = vunpack.c.l.b16 %v252
      %v285 = vunpack.c.l.b16 %v253
      %v286 = vpack.c.b16 %v271, %v270
      %v287 = vpack.c.b16 %v273, %v272
      %v288 = vpack.c.b16 %v275, %v274
      %v289 = vpack.c.b16 %v277, %v276
      %v290 = vpack.c.b16 %v279, %v278
      %v291 = vpack.c.b16 %v281, %v280
      %v292 = vpack.c.b16 %v283, %v282
      %v293 = vpack.c.b16 %v285, %v284
      %302 = vmatpush.bf16.msra.mxu0 %v293
      %303 = vmatpush.bf16.msra.mxu0 %v292
      %304 = vmatpush.bf16.msra.mxu0 %v291
      %305 = vmatpush.bf16.msra.mxu0 %v290
      %306 = vmatpush.bf16.msra.mxu0 %v289
      %307 = vmatpush.bf16.msra.mxu0 %v288
      %308 = vmatpush.bf16.msra.mxu0 %v287
      %309 = vmatpush.bf16.msra.mxu0 %v286
      %310 = vmatmul.bf16.gmra.mxu0 %v232
      %v311 = vpop.f32.mrf.mxu0
      %v312 = vadd.f32 0.0, %v311
      %v313 = vpop.f32.mrf.mxu0
      %v314 = vadd.f32 0.0, %v313
      %315 = vmatmul.bf16.gmra.mxu0 %v233
      %v316 = vpop.f32.mrf.mxu0
      %v317 = vadd.f32 0.0, %v316
      %v318 = vpop.f32.mrf.mxu0
      %v319 = vadd.f32 0.0, %v318
      %320 = vmatmul.bf16.gmra.mxu0 %v234
      %v321 = vpop.f32.mrf.mxu0
      %v322 = vadd.f32 0.0, %v321
      %v323 = vpop.f32.mrf.mxu0
      %v324 = vadd.f32 0.0, %v323
      %325 = vmatmul.bf16.gmra.mxu0 %v235
      %v326 = vpop.f32.mrf.mxu0
      %v327 = vadd.f32 0.0, %v326
      %v328 = vpop.f32.mrf.mxu0
      %v329 = vadd.f32 0.0, %v328
      %330 = vmatmul.bf16.gmra.mxu0 %v236
      %v331 = vpop.f32.mrf.mxu0
      %v332 = vadd.f32 0.0, %v331
      %v333 = vpop.f32.mrf.mxu0
      %v334 = vadd.f32 0.0, %v333
      %335 = vdwg.mxu0
      %v352 = vunpack.c.l.b16 %v196
      %v353 = vunpack.c.l.b16 %v197
      %v354 = vunpack.c.l.b16 %v198
      %v355 = vunpack.c.l.b16 %v199
      %v356 = vunpack.c.l.b16 %v200
      %v357 = vunpack.c.l.b16 %v201
      %v358 = vunpack.c.l.b16 %v202
      %v359 = vunpack.c.l.b16 %v203
      %v360 = vunpack.c.l.b16 %v204
      %v361 = vunpack.c.l.b16 %v205
      %v362 = vunpack.c.l.b16 %v206
      %v363 = vunpack.c.l.b16 %v207
      %v364 = vunpack.c.l.b16 %v208
      %v365 = vunpack.c.l.b16 %v209
      %v366 = vunpack.c.l.b16 %v210
      %v367 = vunpack.c.l.b16 %v211
      %v368 = vpack.c.b16 %v353, %v352
      %v369 = vpack.c.b16 %v355, %v354
      %v370 = vpack.c.b16 %v357, %v356
      %v371 = vpack.c.b16 %v359, %v358
      %v372 = vpack.c.b16 %v361, %v360
      %v373 = vpack.c.b16 %v363, %v362
      %v374 = vpack.c.b16 %v365, %v364
      %v375 = vpack.c.b16 %v367, %v366
      %384 = vmatpush.bf16.msra.mxu0 %v375
      %385 = vmatpush.bf16.msra.mxu0 %v374
      %386 = vmatpush.bf16.msra.mxu0 %v373
      %387 = vmatpush.bf16.msra.mxu0 %v372
      %388 = vmatpush.bf16.msra.mxu0 %v371
      %389 = vmatpush.bf16.msra.mxu0 %v370
      %390 = vmatpush.bf16.msra.mxu0 %v369
      %391 = vmatpush.bf16.msra.mxu0 %v368
      %392 = vmatmul.bf16.gmra.mxu0 %v191
      %v393 = vpop.f32.mrf.mxu0
      %v394 = vadd.f32 %v312, %v393
      %v395 = vpop.f32.mrf.mxu0
      %v396 = vadd.f32 %v314, %v395
      %397 = vmatmul.bf16.gmra.mxu0 %v192
      %v398 = vpop.f32.mrf.mxu0
      %v399 = vadd.f32 %v317, %v398
      %v400 = vpop.f32.mrf.mxu0
      %v401 = vadd.f32 %v319, %v400
      %402 = vmatmul.bf16.gmra.mxu0 %v193
      %v403 = vpop.f32.mrf.mxu0
      %v404 = vadd.f32 %v322, %v403
      %v405 = vpop.f32.mrf.mxu0
      %v406 = vadd.f32 %v324, %v405
      %407 = vmatmul.bf16.gmra.mxu0 %v194
      %v408 = vpop.f32.mrf.mxu0
      %v409 = vadd.f32 %v327, %v408
      %v410 = vpop.f32.mrf.mxu0
      %v411 = vadd.f32 %v329, %v410
      %412 = vmatmul.bf16.gmra.mxu0 %v195
      %v413 = vpop.f32.mrf.mxu0
      %v414 = vadd.f32 %v332, %v413
      %v415 = vpop.f32.mrf.mxu0
      %v416 = vadd.f32 %v334, %v415
      %417 = vdwg.mxu0
      %v418 = vld [vmem:[%s165 + $0x2] sm:$0xff]
      %v419 = vld [vmem:[%s165 + $0xa] sm:$0xff]
      %v420 = vld [vmem:[%s165 + $0x12] sm:$0xff]
      %v421 = vld [vmem:[%s165 + $0x1a] sm:$0xff]
      %v422 = vld [vmem:[%s165 + $0x22] sm:$0xff]
      %v423 = vld [vmem:[%s165 + $0x2a] sm:$0xff]
      %v424 = vld [vmem:[%s165 + $0x32] sm:$0xff]
      %v425 = vld [vmem:[%s165 + $0x3a] sm:$0xff]
      %v426 = vld [vmem:[%s165 + $0x42] sm:$0xff]
      %v427 = vld [vmem:[%s165 + $0x4a] sm:$0xff]
      %v428 = vmax.f32 %v418, 0.0
      %v429 = vmax.f32 %v419, 0.0
      %v430 = vmax.f32 %v420, 0.0
      %v431 = vmax.f32 %v421, 0.0
      %v432 = vmax.f32 %v422, 0.0
      %v433 = vmax.f32 %v423, 0.0
      %v434 = vmax.f32 %v424, 0.0
      %v435 = vmax.f32 %v425, 0.0
      %v436 = vmax.f32 %v426, 0.0
      %v437 = vmax.f32 %v427, 0.0
      %v438 = vpack.c.bf16 %v429, %v428
      %v439 = vpack.c.bf16 %v431, %v430
      %v440 = vpack.c.bf16 %v433, %v432
      %v441 = vpack.c.bf16 %v435, %v434
      %v442 = vpack.c.bf16 %v437, %v436
      %s443 = scalar_lea.vmem %s1, 128
      %v444 = vld [vmem:[%s443] sm:$0xf]
      %v445 = vld [vmem:[%s443 + $0x4] sm:$0xf]
      %v446 = vld [vmem:[%s443 + $0x8] sm:$0xf]
      %v447 = vld [vmem:[%s443 + $0xc] sm:$0xf]
      %v448 = vld [vmem:[%s443 + $0x10] sm:$0xf]
      %v449 = vld [vmem:[%s443 + $0x14] sm:$0xf]
      %v450 = vld [vmem:[%s443 + $0x18] sm:$0xf]
      %v451 = vld [vmem:[%s443 + $0x1c] sm:$0xf]
      %v452 = vld [vmem:[%s443 + $0x20] sm:$0xf]
      %v453 = vld [vmem:[%s443 + $0x24] sm:$0xf]
      %v454 = vld [vmem:[%s443 + $0x28] sm:$0xf]
      %v455 = vld [vmem:[%s443 + $0x2c] sm:$0xf]
      %v456 = vld [vmem:[%s443 + $0x30] sm:$0xf]
      %v457 = vld [vmem:[%s443 + $0x34] sm:$0xf]
      %v458 = vld [vmem:[%s443 + $0x38] sm:$0xf]
      %v459 = vld [vmem:[%s443 + $0x3c] sm:$0xf]
      %v476 = vunpack.c.l.b16 %v444
      %v477 = vunpack.c.l.b16 %v445
      %v478 = vunpack.c.l.b16 %v446
      %v479 = vunpack.c.l.b16 %v447
      %v480 = vunpack.c.l.b16 %v448
      %v481 = vunpack.c.l.b16 %v449
      %v482 = vunpack.c.l.b16 %v450
      %v483 = vunpack.c.l.b16 %v451
      %v484 = vunpack.c.l.b16 %v452
      %v485 = vunpack.c.l.b16 %v453
      %v486 = vunpack.c.l.b16 %v454
      %v487 = vunpack.c.l.b16 %v455
      %v488 = vunpack.c.l.b16 %v456
      %v489 = vunpack.c.l.b16 %v457
      %v490 = vunpack.c.l.b16 %v458
      %v491 = vunpack.c.l.b16 %v459
      %v492 = vpack.c.b16 %v477, %v476
      %v493 = vpack.c.b16 %v479, %v478
      %v494 = vpack.c.b16 %v481, %v480
      %v495 = vpack.c.b16 %v483, %v482
      %v496 = vpack.c.b16 %v485, %v484
      %v497 = vpack.c.b16 %v487, %v486
      %v498 = vpack.c.b16 %v489, %v488
      %v499 = vpack.c.b16 %v491, %v490
      %508 = vmatpush.bf16.msra.mxu0 %v499
      %509 = vmatpush.bf16.msra.mxu0 %v498
      %510 = vmatpush.bf16.msra.mxu0 %v497
      %511 = vmatpush.bf16.msra.mxu0 %v496
      %512 = vmatpush.bf16.msra.mxu0 %v495
      %513 = vmatpush.bf16.msra.mxu0 %v494
      %514 = vmatpush.bf16.msra.mxu0 %v493
      %515 = vmatpush.bf16.msra.mxu0 %v492
      %516 = vmatmul.bf16.gmra.mxu0 %v438
      %v517 = vpop.f32.mrf.mxu0
      %v518 = vadd.f32 0.0, %v517
      %v519 = vpop.f32.mrf.mxu0
      %v520 = vadd.f32 0.0, %v519
      %521 = vmatmul.bf16.gmra.mxu0 %v439
      %v522 = vpop.f32.mrf.mxu0
      %v523 = vadd.f32 0.0, %v522
      %v524 = vpop.f32.mrf.mxu0
      %v525 = vadd.f32 0.0, %v524
      %526 = vmatmul.bf16.gmra.mxu0 %v440
      %v527 = vpop.f32.mrf.mxu0
      %v528 = vadd.f32 0.0, %v527
      %v529 = vpop.f32.mrf.mxu0
      %v530 = vadd.f32 0.0, %v529
      %531 = vmatmul.bf16.gmra.mxu0 %v441
      %v532 = vpop.f32.mrf.mxu0
      %v533 = vadd.f32 0.0, %v532
      %v534 = vpop.f32.mrf.mxu0
      %v535 = vadd.f32 0.0, %v534
      %536 = vmatmul.bf16.gmra.mxu0 %v442
      %v537 = vpop.f32.mrf.mxu0
      %v538 = vadd.f32 0.0, %v537
      %v539 = vpop.f32.mrf.mxu0
      %v540 = vadd.f32 0.0, %v539
      %541 = vdwg.mxu0
      %v542 = vadd.f32 %v394, %v518
      %v543 = vadd.f32 %v396, %v520
      %v544 = vadd.f32 %v399, %v523
      %v545 = vadd.f32 %v401, %v525
      %v546 = vadd.f32 %v404, %v528
      %v547 = vadd.f32 %v406, %v530
      %v548 = vadd.f32 %v409, %v533
      %v549 = vadd.f32 %v411, %v535
      %v550 = vadd.f32 %v414, %v538
      %v551 = vadd.f32 %v416, %v540
      %v552 = vld [vmem:[%s165 + $0xa] sm:$0xff]
      %v553 = vld [vmem:[%s165 + $0x12] sm:$0xff]
      %v554 = vld [vmem:[%s165 + $0x1a] sm:$0xff]
      %v555 = vld [vmem:[%s165 + $0x22] sm:$0xff]
      %v556 = vld [vmem:[%s165 + $0x2a] sm:$0xff]
      %v557 = vld [vmem:[%s165 + $0x32] sm:$0xff]
      %v558 = vld [vmem:[%s165 + $0x3a] sm:$0xff]
      %v559 = vld [vmem:[%s165 + $0x42] sm:$0xff]
      %v560 = vld [vmem:[%s165 + $0x4a] sm:$0xff]
      %v561 = vld [vmem:[%s165 + $0x52] sm:$0xff]
      %v562 = vmax.f32 %v552, 0.0
      %v563 = vmax.f32 %v553, 0.0
      %v564 = vmax.f32 %v554, 0.0
      %v565 = vmax.f32 %v555, 0.0
      %v566 = vmax.f32 %v556, 0.0
      %v567 = vmax.f32 %v557, 0.0
      %v568 = vmax.f32 %v558, 0.0
      %v569 = vmax.f32 %v559, 0.0
      %v570 = vmax.f32 %v560, 0.0
      %v571 = vmax.f32 %v561, 0.0
      %v572 = vpack.c.bf16 %v563, %v562
      %v573 = vpack.c.bf16 %v565, %v564
      %v574 = vpack.c.bf16 %v567, %v566
      %v575 = vpack.c.bf16 %v569, %v568
      %v576 = vpack.c.bf16 %v571, %v570
      %s577 = scalar_lea.vmem %s1, 192
      %v578 = vld [vmem:[%s577] sm:$0xf]
      %v579 = vld [vmem:[%s577 + $0x4] sm:$0xf]
      %v580 = vld [vmem:[%s577 + $0x8] sm:$0xf]
      %v581 = vld [vmem:[%s577 + $0xc] sm:$0xf]
      %v582 = vld [vmem:[%s577 + $0x10] sm:$0xf]
      %v583 = vld [vmem:[%s577 + $0x14] sm:$0xf]
      %v584 = vld [vmem:[%s577 + $0x18] sm:$0xf]
      %v585 = vld [vmem:[%s577 + $0x1c] sm:$0xf]
      %v586 = vld [vmem:[%s577 + $0x20] sm:$0xf]
      %v587 = vld [vmem:[%s577 + $0x24] sm:$0xf]
      %v588 = vld [vmem:[%s577 + $0x28] sm:$0xf]
      %v589 = vld [vmem:[%s577 + $0x2c] sm:$0xf]
      %v590 = vld [vmem:[%s577 + $0x30] sm:$0xf]
      %v591 = vld [vmem:[%s577 + $0x34] sm:$0xf]
      %v592 = vld [vmem:[%s577 + $0x38] sm:$0xf]
      %v593 = vld [vmem:[%s577 + $0x3c] sm:$0xf]
      %v610 = vunpack.c.l.b16 %v578
      %v611 = vunpack.c.l.b16 %v579
      %v612 = vunpack.c.l.b16 %v580
      %v613 = vunpack.c.l.b16 %v581
      %v614 = vunpack.c.l.b16 %v582
      %v615 = vunpack.c.l.b16 %v583
      %v616 = vunpack.c.l.b16 %v584
      %v617 = vunpack.c.l.b16 %v585
      %v618 = vunpack.c.l.b16 %v586
      %v619 = vunpack.c.l.b16 %v587
      %v620 = vunpack.c.l.b16 %v588
      %v621 = vunpack.c.l.b16 %v589
      %v622 = vunpack.c.l.b16 %v590
      %v623 = vunpack.c.l.b16 %v591
      %v624 = vunpack.c.l.b16 %v592
      %v625 = vunpack.c.l.b16 %v593
      %v626 = vpack.c.b16 %v611, %v610
      %v627 = vpack.c.b16 %v613, %v612
      %v628 = vpack.c.b16 %v615, %v614
      %v629 = vpack.c.b16 %v617, %v616
      %v630 = vpack.c.b16 %v619, %v618
      %v631 = vpack.c.b16 %v621, %v620
      %v632 = vpack.c.b16 %v623, %v622
      %v633 = vpack.c.b16 %v625, %v624
      %642 = vmatpush.bf16.msra.mxu0 %v633
      %643 = vmatpush.bf16.msra.mxu0 %v632
      %644 = vmatpush.bf16.msra.mxu0 %v631
      %645 = vmatpush.bf16.msra.mxu0 %v630
      %646 = vmatpush.bf16.msra.mxu0 %v629
      %647 = vmatpush.bf16.msra.mxu0 %v628
      %648 = vmatpush.bf16.msra.mxu0 %v627
      %649 = vmatpush.bf16.msra.mxu0 %v626
      %650 = vmatmul.bf16.gmra.mxu0 %v572
      %v651 = vpop.f32.mrf.mxu0
      %v652 = vadd.f32 0.0, %v651
      %v653 = vpop.f32.mrf.mxu0
      %v654 = vadd.f32 0.0, %v653
      %655 = vmatmul.bf16.gmra.mxu0 %v573
      %v656 = vpop.f32.mrf.mxu0
      %v657 = vadd.f32 0.0, %v656
      %v658 = vpop.f32.mrf.mxu0
      %v659 = vadd.f32 0.0, %v658
      %660 = vmatmul.bf16.gmra.mxu0 %v574
      %v661 = vpop.f32.mrf.mxu0
      %v662 = vadd.f32 0.0, %v661
      %v663 = vpop.f32.mrf.mxu0
      %v664 = vadd.f32 0.0, %v663
      %665 = vmatmul.bf16.gmra.mxu0 %v575
      %v666 = vpop.f32.mrf.mxu0
      %v667 = vadd.f32 0.0, %v666
      %v668 = vpop.f32.mrf.mxu0
      %v669 = vadd.f32 0.0, %v668
      %670 = vmatmul.bf16.gmra.mxu0 %v576
      %v671 = vpop.f32.mrf.mxu0
      %v672 = vadd.f32 0.0, %v671
      %v673 = vpop.f32.mrf.mxu0
      %v674 = vadd.f32 0.0, %v673
      %675 = vdwg.mxu0
      %v676 = vadd.f32 %v542, %v652
      %v677 = vadd.f32 %v543, %v654
      %v678 = vadd.f32 %v544, %v657
      %v679 = vadd.f32 %v545, %v659
      %v680 = vadd.f32 %v546, %v662
      %v681 = vadd.f32 %v547, %v664
      %v682 = vadd.f32 %v548, %v667
      %v683 = vadd.f32 %v549, %v669
      %v684 = vadd.f32 %v550, %v672
      %v685 = vadd.f32 %v551, %v674
      %v686 = vld [vmem:[%s165 + $0xb] sm:$0xff]
      %v687 = vld [vmem:[%s165 + $0x13] sm:$0xff]
      %v688 = vld [vmem:[%s165 + $0x1b] sm:$0xff]
      %v689 = vld [vmem:[%s165 + $0x23] sm:$0xff]
      %v690 = vld [vmem:[%s165 + $0x2b] sm:$0xff]
      %v691 = vld [vmem:[%s165 + $0x33] sm:$0xff]
      %v692 = vld [vmem:[%s165 + $0x3b] sm:$0xff]
      %v693 = vld [vmem:[%s165 + $0x43] sm:$0xff]
      %v694 = vld [vmem:[%s165 + $0x4b] sm:$0xff]
      %v695 = vld [vmem:[%s165 + $0x53] sm:$0xff]
      %v696 = vmax.f32 %v686, 0.0
      %v697 = vmax.f32 %v687, 0.0
      %v698 = vmax.f32 %v688, 0.0
      %v699 = vmax.f32 %v689, 0.0
      %v700 = vmax.f32 %v690, 0.0
      %v701 = vmax.f32 %v691, 0.0
      %v702 = vmax.f32 %v692, 0.0
      %v703 = vmax.f32 %v693, 0.0
      %v704 = vmax.f32 %v694, 0.0
      %v705 = vmax.f32 %v695, 0.0
      %v706 = vpack.c.bf16 %v697, %v696
      %v707 = vpack.c.bf16 %v699, %v698
      %v708 = vpack.c.bf16 %v701, %v700
      %v709 = vpack.c.bf16 %v703, %v702
      %v710 = vpack.c.bf16 %v705, %v704
      %s711 = scalar_lea.vmem %s1, 256
      %v712 = vld [vmem:[%s711] sm:$0xf]
      %v713 = vld [vmem:[%s711 + $0x4] sm:$0xf]
      %v714 = vld [vmem:[%s711 + $0x8] sm:$0xf]
      %v715 = vld [vmem:[%s711 + $0xc] sm:$0xf]
      %v716 = vld [vmem:[%s711 + $0x10] sm:$0xf]
      %v717 = vld [vmem:[%s711 + $0x14] sm:$0xf]
      %v718 = vld [vmem:[%s711 + $0x18] sm:$0xf]
      %v719 = vld [vmem:[%s711 + $0x1c] sm:$0xf]
      %v720 = vld [vmem:[%s711 + $0x20] sm:$0xf]
      %v721 = vld [vmem:[%s711 + $0x24] sm:$0xf]
      %v722 = vld [vmem:[%s711 + $0x28] sm:$0xf]
      %v723 = vld [vmem:[%s711 + $0x2c] sm:$0xf]
      %v724 = vld [vmem:[%s711 + $0x30] sm:$0xf]
      %v725 = vld [vmem:[%s711 + $0x34] sm:$0xf]
      %v726 = vld [vmem:[%s711 + $0x38] sm:$0xf]
      %v727 = vld [vmem:[%s711 + $0x3c] sm:$0xf]
      %v744 = vunpack.c.l.b16 %v712
      %v745 = vunpack.c.l.b16 %v713
      %v746 = vunpack.c.l.b16 %v714
      %v747 = vunpack.c.l.b16 %v715
      %v748 = vunpack.c.l.b16 %v716
      %v749 = vunpack.c.l.b16 %v717
      %v750 = vunpack.c.l.b16 %v718
      %v751 = vunpack.c.l.b16 %v719
      %v752 = vunpack.c.l.b16 %v720
      %v753 = vunpack.c.l.b16 %v721
      %v754 = vunpack.c.l.b16 %v722
      %v755 = vunpack.c.l.b16 %v723
      %v756 = vunpack.c.l.b16 %v724
      %v757 = vunpack.c.l.b16 %v725
      %v758 = vunpack.c.l.b16 %v726
      %v759 = vunpack.c.l.b16 %v727
      %v760 = vpack.c.b16 %v745, %v744
      %v761 = vpack.c.b16 %v747, %v746
      %v762 = vpack.c.b16 %v749, %v748
      %v763 = vpack.c.b16 %v751, %v750
      %v764 = vpack.c.b16 %v753, %v752
      %v765 = vpack.c.b16 %v755, %v754
      %v766 = vpack.c.b16 %v757, %v756
      %v767 = vpack.c.b16 %v759, %v758
      %776 = vmatpush.bf16.msra.mxu0 %v767
      %777 = vmatpush.bf16.msra.mxu0 %v766
      %778 = vmatpush.bf16.msra.mxu0 %v765
      %779 = vmatpush.bf16.msra.mxu0 %v764
      %780 = vmatpush.bf16.msra.mxu0 %v763
      %781 = vmatpush.bf16.msra.mxu0 %v762
      %782 = vmatpush.bf16.msra.mxu0 %v761
      %783 = vmatpush.bf16.msra.mxu0 %v760
      %784 = vmatmul.bf16.gmra.mxu0 %v706
      %v785 = vpop.f32.mrf.mxu0
      %v786 = vadd.f32 0.0, %v785
      %v787 = vpop.f32.mrf.mxu0
      %v788 = vadd.f32 0.0, %v787
      %789 = vmatmul.bf16.gmra.mxu0 %v707
      %v790 = vpop.f32.mrf.mxu0
      %v791 = vadd.f32 0.0, %v790
      %v792 = vpop.f32.mrf.mxu0
      %v793 = vadd.f32 0.0, %v792
      %794 = vmatmul.bf16.gmra.mxu0 %v708
      %v795 = vpop.f32.mrf.mxu0
      %v796 = vadd.f32 0.0, %v795
      %v797 = vpop.f32.mrf.mxu0
      %v798 = vadd.f32 0.0, %v797
      %799 = vmatmul.bf16.gmra.mxu0 %v709
      %v800 = vpop.f32.mrf.mxu0
      %v801 = vadd.f32 0.0, %v800
      %v802 = vpop.f32.mrf.mxu0
      %v803 = vadd.f32 0.0, %v802
      %804 = vmatmul.bf16.gmra.mxu0 %v710
      %v805 = vpop.f32.mrf.mxu0
      %v806 = vadd.f32 0.0, %v805
      %v807 = vpop.f32.mrf.mxu0
      %v808 = vadd.f32 0.0, %v807
      %809 = vdwg.mxu0
      %v810 = vadd.f32 %v676, %v786
      %v811 = vadd.f32 %v677, %v788
      %v812 = vadd.f32 %v678, %v791
      %v813 = vadd.f32 %v679, %v793
      %v814 = vadd.f32 %v680, %v796
      %v815 = vadd.f32 %v681, %v798
      %v816 = vadd.f32 %v682, %v801
      %v817 = vadd.f32 %v683, %v803
      %v818 = vadd.f32 %v684, %v806
      %v819 = vadd.f32 %v685, %v808
      %v820 = vld [vmem:[%s165 + $0xc] sm:$0xff]
      %v821 = vld [vmem:[%s165 + $0x14] sm:$0xff]
      %v822 = vld [vmem:[%s165 + $0x1c] sm:$0xff]
      %v823 = vld [vmem:[%s165 + $0x24] sm:$0xff]
      %v824 = vld [vmem:[%s165 + $0x2c] sm:$0xff]
      %v825 = vld [vmem:[%s165 + $0x34] sm:$0xff]
      %v826 = vld [vmem:[%s165 + $0x3c] sm:$0xff]
      %v827 = vld [vmem:[%s165 + $0x44] sm:$0xff]
      %v828 = vld [vmem:[%s165 + $0x4c] sm:$0xff]
      %v829 = vld [vmem:[%s165 + $0x54] sm:$0xff]
      %v830 = vmax.f32 %v820, 0.0
      %v831 = vmax.f32 %v821, 0.0
      %v832 = vmax.f32 %v822, 0.0
      %v833 = vmax.f32 %v823, 0.0
      %v834 = vmax.f32 %v824, 0.0
      %v835 = vmax.f32 %v825, 0.0
      %v836 = vmax.f32 %v826, 0.0
      %v837 = vmax.f32 %v827, 0.0
      %v838 = vmax.f32 %v828, 0.0
      %v839 = vmax.f32 %v829, 0.0
      %v840 = vpack.c.bf16 %v831, %v830
      %v841 = vpack.c.bf16 %v833, %v832
      %v842 = vpack.c.bf16 %v835, %v834
      %v843 = vpack.c.bf16 %v837, %v836
      %v844 = vpack.c.bf16 %v839, %v838
      %s845 = scalar_lea.vmem %s1, 320
      %v846 = vld [vmem:[%s845] sm:$0xf]
      %v847 = vld [vmem:[%s845 + $0x4] sm:$0xf]
      %v848 = vld [vmem:[%s845 + $0x8] sm:$0xf]
      %v849 = vld [vmem:[%s845 + $0xc] sm:$0xf]
      %v850 = vld [vmem:[%s845 + $0x10] sm:$0xf]
      %v851 = vld [vmem:[%s845 + $0x14] sm:$0xf]
      %v852 = vld [vmem:[%s845 + $0x18] sm:$0xf]
      %v853 = vld [vmem:[%s845 + $0x1c] sm:$0xf]
      %v854 = vld [vmem:[%s845 + $0x20] sm:$0xf]
      %v855 = vld [vmem:[%s845 + $0x24] sm:$0xf]
      %v856 = vld [vmem:[%s845 + $0x28] sm:$0xf]
      %v857 = vld [vmem:[%s845 + $0x2c] sm:$0xf]
      %v858 = vld [vmem:[%s845 + $0x30] sm:$0xf]
      %v859 = vld [vmem:[%s845 + $0x34] sm:$0xf]
      %v860 = vld [vmem:[%s845 + $0x38] sm:$0xf]
      %v861 = vld [vmem:[%s845 + $0x3c] sm:$0xf]
      %v878 = vunpack.c.l.b16 %v846
      %v879 = vunpack.c.l.b16 %v847
      %v880 = vunpack.c.l.b16 %v848
      %v881 = vunpack.c.l.b16 %v849
      %v882 = vunpack.c.l.b16 %v850
      %v883 = vunpack.c.l.b16 %v851
      %v884 = vunpack.c.l.b16 %v852
      %v885 = vunpack.c.l.b16 %v853
      %v886 = vunpack.c.l.b16 %v854
      %v887 = vunpack.c.l.b16 %v855
      %v888 = vunpack.c.l.b16 %v856
      %v889 = vunpack.c.l.b16 %v857
      %v890 = vunpack.c.l.b16 %v858
      %v891 = vunpack.c.l.b16 %v859
      %v892 = vunpack.c.l.b16 %v860
      %v893 = vunpack.c.l.b16 %v861
      %v894 = vpack.c.b16 %v879, %v878
      %v895 = vpack.c.b16 %v881, %v880
      %v896 = vpack.c.b16 %v883, %v882
      %v897 = vpack.c.b16 %v885, %v884
      %v898 = vpack.c.b16 %v887, %v886
      %v899 = vpack.c.b16 %v889, %v888
      %v900 = vpack.c.b16 %v891, %v890
      %v901 = vpack.c.b16 %v893, %v892
      %910 = vmatpush.bf16.msra.mxu0 %v901
      %911 = vmatpush.bf16.msra.mxu0 %v900
      %912 = vmatpush.bf16.msra.mxu0 %v899
      %913 = vmatpush.bf16.msra.mxu0 %v898
      %914 = vmatpush.bf16.msra.mxu0 %v897
      %915 = vmatpush.bf16.msra.mxu0 %v896
      %916 = vmatpush.bf16.msra.mxu0 %v895
      %917 = vmatpush.bf16.msra.mxu0 %v894
      %918 = vmatmul.bf16.gmra.mxu0 %v840
      %v919 = vpop.f32.mrf.mxu0
      %v920 = vadd.f32 0.0, %v919
      %v921 = vpop.f32.mrf.mxu0
      %v922 = vadd.f32 0.0, %v921
      %923 = vmatmul.bf16.gmra.mxu0 %v841
      %v924 = vpop.f32.mrf.mxu0
      %v925 = vadd.f32 0.0, %v924
      %v926 = vpop.f32.mrf.mxu0
      %v927 = vadd.f32 0.0, %v926
      %928 = vmatmul.bf16.gmra.mxu0 %v842
      %v929 = vpop.f32.mrf.mxu0
      %v930 = vadd.f32 0.0, %v929
      %v931 = vpop.f32.mrf.mxu0
      %v932 = vadd.f32 0.0, %v931
      %933 = vmatmul.bf16.gmra.mxu0 %v843
      %v934 = vpop.f32.mrf.mxu0
      %v935 = vadd.f32 0.0, %v934
      %v936 = vpop.f32.mrf.mxu0
      %v937 = vadd.f32 0.0, %v936
      %938 = vmatmul.bf16.gmra.mxu0 %v844
      %v939 = vpop.f32.mrf.mxu0
      %v940 = vadd.f32 0.0, %v939
      %v941 = vpop.f32.mrf.mxu0
      %v942 = vadd.f32 0.0, %v941
      %943 = vdwg.mxu0
      %v944 = vadd.f32 %v810, %v920
      %v945 = vadd.f32 %v811, %v922
      %v946 = vadd.f32 %v812, %v925
      %v947 = vadd.f32 %v813, %v927
      %v948 = vadd.f32 %v814, %v930
      %v949 = vadd.f32 %v815, %v932
      %v950 = vadd.f32 %v816, %v935
      %v951 = vadd.f32 %v817, %v937
      %v952 = vadd.f32 %v818, %v940
      %v953 = vadd.f32 %v819, %v942
      %v954 = vld [vmem:[%s165 + $0x14] sm:$0xff]
      %v955 = vld [vmem:[%s165 + $0x1c] sm:$0xff]
      %v956 = vld [vmem:[%s165 + $0x24] sm:$0xff]
      %v957 = vld [vmem:[%s165 + $0x2c] sm:$0xff]
      %v958 = vld [vmem:[%s165 + $0x34] sm:$0xff]
      %v959 = vld [vmem:[%s165 + $0x3c] sm:$0xff]
      %v960 = vld [vmem:[%s165 + $0x44] sm:$0xff]
      %v961 = vld [vmem:[%s165 + $0x4c] sm:$0xff]
      %v962 = vld [vmem:[%s165 + $0x54] sm:$0xff]
      %v963 = vld [vmem:[%s165 + $0x5c] sm:$0xff]
      %v964 = vmax.f32 %v954, 0.0
      %v965 = vmax.f32 %v955, 0.0
      %v966 = vmax.f32 %v956, 0.0
      %v967 = vmax.f32 %v957, 0.0
      %v968 = vmax.f32 %v958, 0.0
      %v969 = vmax.f32 %v959, 0.0
      %v970 = vmax.f32 %v960, 0.0
      %v971 = vmax.f32 %v961, 0.0
      %v972 = vmax.f32 %v962, 0.0
      %v973 = vmax.f32 %v963, 0.0
      %v974 = vpack.c.bf16 %v965, %v964
      %v975 = vpack.c.bf16 %v967, %v966
      %v976 = vpack.c.bf16 %v969, %v968
      %v977 = vpack.c.bf16 %v971, %v970
      %v978 = vpack.c.bf16 %v973, %v972
      %s979 = scalar_lea.vmem %s1, 384
      %v980 = vld [vmem:[%s979] sm:$0xf]
      %v981 = vld [vmem:[%s979 + $0x4] sm:$0xf]
      %v982 = vld [vmem:[%s979 + $0x8] sm:$0xf]
      %v983 = vld [vmem:[%s979 + $0xc] sm:$0xf]
      %v984 = vld [vmem:[%s979 + $0x10] sm:$0xf]
      %v985 = vld [vmem:[%s979 + $0x14] sm:$0xf]
      %v986 = vld [vmem:[%s979 + $0x18] sm:$0xf]
      %v987 = vld [vmem:[%s979 + $0x1c] sm:$0xf]
      %v988 = vld [vmem:[%s979 + $0x20] sm:$0xf]
      %v989 = vld [vmem:[%s979 + $0x24] sm:$0xf]
      %v990 = vld [vmem:[%s979 + $0x28] sm:$0xf]
      %v991 = vld [vmem:[%s979 + $0x2c] sm:$0xf]
      %v992 = vld [vmem:[%s979 + $0x30] sm:$0xf]
      %v993 = vld [vmem:[%s979 + $0x34] sm:$0xf]
      %v994 = vld [vmem:[%s979 + $0x38] sm:$0xf]
      %v995 = vld [vmem:[%s979 + $0x3c] sm:$0xf]
      %v1012 = vunpack.c.l.b16 %v980
      %v1013 = vunpack.c.l.b16 %v981
      %v1014 = vunpack.c.l.b16 %v982
      %v1015 = vunpack.c.l.b16 %v983
      %v1016 = vunpack.c.l.b16 %v984
      %v1017 = vunpack.c.l.b16 %v985
      %v1018 = vunpack.c.l.b16 %v986
      %v1019 = vunpack.c.l.b16 %v987
      %v1020 = vunpack.c.l.b16 %v988
      %v1021 = vunpack.c.l.b16 %v989
      %v1022 = vunpack.c.l.b16 %v990
      %v1023 = vunpack.c.l.b16 %v991
      %v1024 = vunpack.c.l.b16 %v992
      %v1025 = vunpack.c.l.b16 %v993
      %v1026 = vunpack.c.l.b16 %v994
      %v1027 = vunpack.c.l.b16 %v995
      %v1028 = vpack.c.b16 %v1013, %v1012
      %v1029 = vpack.c.b16 %v1015, %v1014
      %v1030 = vpack.c.b16 %v1017, %v1016
      %v1031 = vpack.c.b16 %v1019, %v1018
      %v1032 = vpack.c.b16 %v1021, %v1020
      %v1033 = vpack.c.b16 %v1023, %v1022
      %v1034 = vpack.c.b16 %v1025, %v1024
      %v1035 = vpack.c.b16 %v1027, %v1026
      %1044 = vmatpush.bf16.msra.mxu0 %v1035
      %1045 = vmatpush.bf16.msra.mxu0 %v1034
      %1046 = vmatpush.bf16.msra.mxu0 %v1033
      %1047 = vmatpush.bf16.msra.mxu0 %v1032
      %1048 = vmatpush.bf16.msra.mxu0 %v1031
      %1049 = vmatpush.bf16.msra.mxu0 %v1030
      %1050 = vmatpush.bf16.msra.mxu0 %v1029
      %1051 = vmatpush.bf16.msra.mxu0 %v1028
      %1052 = vmatmul.bf16.gmra.mxu0 %v974
      %v1053 = vpop.f32.mrf.mxu0
      %v1054 = vadd.f32 0.0, %v1053
      %v1055 = vpop.f32.mrf.mxu0
      %v1056 = vadd.f32 0.0, %v1055
      %1057 = vmatmul.bf16.gmra.mxu0 %v975
      %v1058 = vpop.f32.mrf.mxu0
      %v1059 = vadd.f32 0.0, %v1058
      %v1060 = vpop.f32.mrf.mxu0
      %v1061 = vadd.f32 0.0, %v1060
      %1062 = vmatmul.bf16.gmra.mxu0 %v976
      %v1063 = vpop.f32.mrf.mxu0
      %v1064 = vadd.f32 0.0, %v1063
      %v1065 = vpop.f32.mrf.mxu0
      %v1066 = vadd.f32 0.0, %v1065
      %1067 = vmatmul.bf16.gmra.mxu0 %v977
      %v1068 = vpop.f32.mrf.mxu0
      %v1069 = vadd.f32 0.0, %v1068
      %v1070 = vpop.f32.mrf.mxu0
      %v1071 = vadd.f32 0.0, %v1070
      %1072 = vmatmul.bf16.gmra.mxu0 %v978
      %v1073 = vpop.f32.mrf.mxu0
      %v1074 = vadd.f32 0.0, %v1073
      %v1075 = vpop.f32.mrf.mxu0
      %v1076 = vadd.f32 0.0, %v1075
      %1077 = vdwg.mxu0
      %v1078 = vadd.f32 %v944, %v1054
      %v1079 = vadd.f32 %v945, %v1056
      %v1080 = vadd.f32 %v946, %v1059
      %v1081 = vadd.f32 %v947, %v1061
      %v1082 = vadd.f32 %v948, %v1064
      %v1083 = vadd.f32 %v949, %v1066
      %v1084 = vadd.f32 %v950, %v1069
      %v1085 = vadd.f32 %v951, %v1071
      %v1086 = vadd.f32 %v952, %v1074
      %v1087 = vadd.f32 %v953, %v1076
      %v1088 = vld [vmem:[%s165 + $0x15] sm:$0xff]
      %v1089 = vld [vmem:[%s165 + $0x1d] sm:$0xff]
      %v1090 = vld [vmem:[%s165 + $0x25] sm:$0xff]
      %v1091 = vld [vmem:[%s165 + $0x2d] sm:$0xff]
      %v1092 = vld [vmem:[%s165 + $0x35] sm:$0xff]
      %v1093 = vld [vmem:[%s165 + $0x3d] sm:$0xff]
      %v1094 = vld [vmem:[%s165 + $0x45] sm:$0xff]
      %v1095 = vld [vmem:[%s165 + $0x4d] sm:$0xff]
      %v1096 = vld [vmem:[%s165 + $0x55] sm:$0xff]
      %v1097 = vld [vmem:[%s165 + $0x5d] sm:$0xff]
      %v1098 = vmax.f32 %v1088, 0.0
      %v1099 = vmax.f32 %v1089, 0.0
      %v1100 = vmax.f32 %v1090, 0.0
      %v1101 = vmax.f32 %v1091, 0.0
      %v1102 = vmax.f32 %v1092, 0.0
      %v1103 = vmax.f32 %v1093, 0.0
      %v1104 = vmax.f32 %v1094, 0.0
      %v1105 = vmax.f32 %v1095, 0.0
      %v1106 = vmax.f32 %v1096, 0.0
      %v1107 = vmax.f32 %v1097, 0.0
      %v1108 = vpack.c.bf16 %v1099, %v1098
      %v1109 = vpack.c.bf16 %v1101, %v1100
      %v1110 = vpack.c.bf16 %v1103, %v1102
      %v1111 = vpack.c.bf16 %v1105, %v1104
      %v1112 = vpack.c.bf16 %v1107, %v1106
      %s1113 = scalar_lea.vmem %s1, 448
      %v1114 = vld [vmem:[%s1113] sm:$0xf]
      %v1115 = vld [vmem:[%s1113 + $0x4] sm:$0xf]
      %v1116 = vld [vmem:[%s1113 + $0x8] sm:$0xf]
      %v1117 = vld [vmem:[%s1113 + $0xc] sm:$0xf]
      %v1118 = vld [vmem:[%s1113 + $0x10] sm:$0xf]
      %v1119 = vld [vmem:[%s1113 + $0x14] sm:$0xf]
      %v1120 = vld [vmem:[%s1113 + $0x18] sm:$0xf]
      %v1121 = vld [vmem:[%s1113 + $0x1c] sm:$0xf]
      %v1122 = vld [vmem:[%s1113 + $0x20] sm:$0xf]
      %v1123 = vld [vmem:[%s1113 + $0x24] sm:$0xf]
      %v1124 = vld [vmem:[%s1113 + $0x28] sm:$0xf]
      %v1125 = vld [vmem:[%s1113 + $0x2c] sm:$0xf]
      %v1126 = vld [vmem:[%s1113 + $0x30] sm:$0xf]
      %v1127 = vld [vmem:[%s1113 + $0x34] sm:$0xf]
      %v1128 = vld [vmem:[%s1113 + $0x38] sm:$0xf]
      %v1129 = vld [vmem:[%s1113 + $0x3c] sm:$0xf]
      %v1146 = vunpack.c.l.b16 %v1114
      %v1147 = vunpack.c.l.b16 %v1115
      %v1148 = vunpack.c.l.b16 %v1116
      %v1149 = vunpack.c.l.b16 %v1117
      %v1150 = vunpack.c.l.b16 %v1118
      %v1151 = vunpack.c.l.b16 %v1119
      %v1152 = vunpack.c.l.b16 %v1120
      %v1153 = vunpack.c.l.b16 %v1121
      %v1154 = vunpack.c.l.b16 %v1122
      %v1155 = vunpack.c.l.b16 %v1123
      %v1156 = vunpack.c.l.b16 %v1124
      %v1157 = vunpack.c.l.b16 %v1125
      %v1158 = vunpack.c.l.b16 %v1126
      %v1159 = vunpack.c.l.b16 %v1127
      %v1160 = vunpack.c.l.b16 %v1128
      %v1161 = vunpack.c.l.b16 %v1129
      %v1162 = vpack.c.b16 %v1147, %v1146
      %v1163 = vpack.c.b16 %v1149, %v1148
      %v1164 = vpack.c.b16 %v1151, %v1150
      %v1165 = vpack.c.b16 %v1153, %v1152
      %v1166 = vpack.c.b16 %v1155, %v1154
      %v1167 = vpack.c.b16 %v1157, %v1156
      %v1168 = vpack.c.b16 %v1159, %v1158
      %v1169 = vpack.c.b16 %v1161, %v1160
      %1178 = vmatpush.bf16.msra.mxu0 %v1169
      %1179 = vmatpush.bf16.msra.mxu0 %v1168
      %1180 = vmatpush.bf16.msra.mxu0 %v1167
      %1181 = vmatpush.bf16.msra.mxu0 %v1166
      %1182 = vmatpush.bf16.msra.mxu0 %v1165
      %1183 = vmatpush.bf16.msra.mxu0 %v1164
      %1184 = vmatpush.bf16.msra.mxu0 %v1163
      %1185 = vmatpush.bf16.msra.mxu0 %v1162
      %1186 = vmatmul.bf16.gmra.mxu0 %v1108
      %v1187 = vpop.f32.mrf.mxu0
      %v1188 = vadd.f32 0.0, %v1187
      %v1189 = vpop.f32.mrf.mxu0
      %v1190 = vadd.f32 0.0, %v1189
      %1191 = vmatmul.bf16.gmra.mxu0 %v1109
      %v1192 = vpop.f32.mrf.mxu0
      %v1193 = vadd.f32 0.0, %v1192
      %v1194 = vpop.f32.mrf.mxu0
      %v1195 = vadd.f32 0.0, %v1194
      %1196 = vmatmul.bf16.gmra.mxu0 %v1110
      %v1197 = vpop.f32.mrf.mxu0
      %v1198 = vadd.f32 0.0, %v1197
      %v1199 = vpop.f32.mrf.mxu0
      %v1200 = vadd.f32 0.0, %v1199
      %1201 = vmatmul.bf16.gmra.mxu0 %v1111
      %v1202 = vpop.f32.mrf.mxu0
      %v1203 = vadd.f32 0.0, %v1202
      %v1204 = vpop.f32.mrf.mxu0
      %v1205 = vadd.f32 0.0, %v1204
      %1206 = vmatmul.bf16.gmra.mxu0 %v1112
      %v1207 = vpop.f32.mrf.mxu0
      %v1208 = vadd.f32 0.0, %v1207
      %v1209 = vpop.f32.mrf.mxu0
      %v1210 = vadd.f32 0.0, %v1209
      %1211 = vdwg.mxu0
      %v1212 = vadd.f32 %v1078, %v1188
      %v1213 = vadd.f32 %v1079, %v1190
      %v1214 = vadd.f32 %v1080, %v1193
      %v1215 = vadd.f32 %v1081, %v1195
      %v1216 = vadd.f32 %v1082, %v1198
      %v1217 = vadd.f32 %v1083, %v1200
      %v1218 = vadd.f32 %v1084, %v1203
      %v1219 = vadd.f32 %v1085, %v1205
      %v1220 = vadd.f32 %v1086, %v1208
      %v1221 = vadd.f32 %v1087, %v1210
      %v1222 = vld [vmem:[%s165 + $0x16] sm:$0xff]
      %v1223 = vld [vmem:[%s165 + $0x1e] sm:$0xff]
      %v1224 = vld [vmem:[%s165 + $0x26] sm:$0xff]
      %v1225 = vld [vmem:[%s165 + $0x2e] sm:$0xff]
      %v1226 = vld [vmem:[%s165 + $0x36] sm:$0xff]
      %v1227 = vld [vmem:[%s165 + $0x3e] sm:$0xff]
      %v1228 = vld [vmem:[%s165 + $0x46] sm:$0xff]
      %v1229 = vld [vmem:[%s165 + $0x4e] sm:$0xff]
      %v1230 = vld [vmem:[%s165 + $0x56] sm:$0xff]
      %v1231 = vld [vmem:[%s165 + $0x5e] sm:$0xff]
      %v1232 = vmax.f32 %v1222, 0.0
      %v1233 = vmax.f32 %v1223, 0.0
      %v1234 = vmax.f32 %v1224, 0.0
      %v1235 = vmax.f32 %v1225, 0.0
      %v1236 = vmax.f32 %v1226, 0.0
      %v1237 = vmax.f32 %v1227, 0.0
      %v1238 = vmax.f32 %v1228, 0.0
      %v1239 = vmax.f32 %v1229, 0.0
      %v1240 = vmax.f32 %v1230, 0.0
      %v1241 = vmax.f32 %v1231, 0.0
      %v1242 = vpack.c.bf16 %v1233, %v1232
      %v1243 = vpack.c.bf16 %v1235, %v1234
      %v1244 = vpack.c.bf16 %v1237, %v1236
      %v1245 = vpack.c.bf16 %v1239, %v1238
      %v1246 = vpack.c.bf16 %v1241, %v1240
      %s1247 = scalar_lea.vmem %s1, 512
      %v1248 = vld [vmem:[%s1247] sm:$0xf]
      %v1249 = vld [vmem:[%s1247 + $0x4] sm:$0xf]
      %v1250 = vld [vmem:[%s1247 + $0x8] sm:$0xf]
      %v1251 = vld [vmem:[%s1247 + $0xc] sm:$0xf]
      %v1252 = vld [vmem:[%s1247 + $0x10] sm:$0xf]
      %v1253 = vld [vmem:[%s1247 + $0x14] sm:$0xf]
      %v1254 = vld [vmem:[%s1247 + $0x18] sm:$0xf]
      %v1255 = vld [vmem:[%s1247 + $0x1c] sm:$0xf]
      %v1256 = vld [vmem:[%s1247 + $0x20] sm:$0xf]
      %v1257 = vld [vmem:[%s1247 + $0x24] sm:$0xf]
      %v1258 = vld [vmem:[%s1247 + $0x28] sm:$0xf]
      %v1259 = vld [vmem:[%s1247 + $0x2c] sm:$0xf]
      %v1260 = vld [vmem:[%s1247 + $0x30] sm:$0xf]
      %v1261 = vld [vmem:[%s1247 + $0x34] sm:$0xf]
      %v1262 = vld [vmem:[%s1247 + $0x38] sm:$0xf]
      %v1263 = vld [vmem:[%s1247 + $0x3c] sm:$0xf]
      %v1280 = vunpack.c.l.b16 %v1248
      %v1281 = vunpack.c.l.b16 %v1249
      %v1282 = vunpack.c.l.b16 %v1250
      %v1283 = vunpack.c.l.b16 %v1251
      %v1284 = vunpack.c.l.b16 %v1252
      %v1285 = vunpack.c.l.b16 %v1253
      %v1286 = vunpack.c.l.b16 %v1254
      %v1287 = vunpack.c.l.b16 %v1255
      %v1288 = vunpack.c.l.b16 %v1256
      %v1289 = vunpack.c.l.b16 %v1257
      %v1290 = vunpack.c.l.b16 %v1258
      %v1291 = vunpack.c.l.b16 %v1259
      %v1292 = vunpack.c.l.b16 %v1260
      %v1293 = vunpack.c.l.b16 %v1261
      %v1294 = vunpack.c.l.b16 %v1262
      %v1295 = vunpack.c.l.b16 %v1263
      %v1296 = vpack.c.b16 %v1281, %v1280
      %v1297 = vpack.c.b16 %v1283, %v1282
      %v1298 = vpack.c.b16 %v1285, %v1284
      %v1299 = vpack.c.b16 %v1287, %v1286
      %v1300 = vpack.c.b16 %v1289, %v1288
      %v1301 = vpack.c.b16 %v1291, %v1290
      %v1302 = vpack.c.b16 %v1293, %v1292
      %v1303 = vpack.c.b16 %v1295, %v1294
      %1312 = vmatpush.bf16.msra.mxu0 %v1303
      %1313 = vmatpush.bf16.msra.mxu0 %v1302
      %1314 = vmatpush.bf16.msra.mxu0 %v1301
      %1315 = vmatpush.bf16.msra.mxu0 %v1300
      %1316 = vmatpush.bf16.msra.mxu0 %v1299
      %1317 = vmatpush.bf16.msra.mxu0 %v1298
      %1318 = vmatpush.bf16.msra.mxu0 %v1297
      %1319 = vmatpush.bf16.msra.mxu0 %v1296
      %1320 = vmatmul.bf16.gmra.mxu0 %v1242
      %v1321 = vpop.f32.mrf.mxu0
      %v1322 = vadd.f32 0.0, %v1321
      %v1323 = vpop.f32.mrf.mxu0
      %v1324 = vadd.f32 0.0, %v1323
      %1325 = vmatmul.bf16.gmra.mxu0 %v1243
      %v1326 = vpop.f32.mrf.mxu0
      %v1327 = vadd.f32 0.0, %v1326
      %v1328 = vpop.f32.mrf.mxu0
      %v1329 = vadd.f32 0.0, %v1328
      %1330 = vmatmul.bf16.gmra.mxu0 %v1244
      %v1331 = vpop.f32.mrf.mxu0
      %v1332 = vadd.f32 0.0, %v1331
      %v1333 = vpop.f32.mrf.mxu0
      %v1334 = vadd.f32 0.0, %v1333
      %1335 = vmatmul.bf16.gmra.mxu0 %v1245
      %v1336 = vpop.f32.mrf.mxu0
      %v1337 = vadd.f32 0.0, %v1336
      %v1338 = vpop.f32.mrf.mxu0
      %v1339 = vadd.f32 0.0, %v1338
      %1340 = vmatmul.bf16.gmra.mxu0 %v1246
      %v1341 = vpop.f32.mrf.mxu0
      %v1342 = vadd.f32 0.0, %v1341
      %v1343 = vpop.f32.mrf.mxu0
      %v1344 = vadd.f32 0.0, %v1343
      %1345 = vdwg.mxu0
      %v1346 = vadd.f32 %v1212, %v1322
      %v1347 = vadd.f32 %v1213, %v1324
      %v1348 = vadd.f32 %v1214, %v1327
      %v1349 = vadd.f32 %v1215, %v1329
      %v1350 = vadd.f32 %v1216, %v1332
      %v1351 = vadd.f32 %v1217, %v1334
      %v1352 = vadd.f32 %v1218, %v1337
      %v1353 = vadd.f32 %v1219, %v1339
      %v1354 = vadd.f32 %v1220, %v1342
      %v1355 = vadd.f32 %v1221, %v1344
      %v1356 = vmax.f32 %v1346, 0.0
      %v1357 = vmax.f32 %v1347, 0.0
      %v1358 = vmax.f32 %v1348, 0.0
      %v1359 = vmax.f32 %v1349, 0.0
      %v1360 = vmax.f32 %v1350, 0.0
      %v1361 = vmax.f32 %v1351, 0.0
      %v1362 = vmax.f32 %v1352, 0.0
      %v1363 = vmax.f32 %v1353, 0.0
      %v1364 = vmax.f32 %v1354, 0.0
      %v1365 = vmax.f32 %v1355, 0.0
      %v1366 = vpack.c.bf16 %v1357, %v1356
      %v1367 = vpack.c.bf16 %v1359, %v1358
      %v1368 = vpack.c.bf16 %v1361, %v1360
      %v1369 = vpack.c.bf16 %v1363, %v1362
      %v1370 = vpack.c.bf16 %v1365, %v1364
      %v1371 = vld [vmem:[%s2] sm:$0xf]
      %v1372 = vld [vmem:[%s2 + $0x4] sm:$0xf]
      %v1373 = vld [vmem:[%s2 + $0x8] sm:$0xf]
      %v1374 = vld [vmem:[%s2 + $0xc] sm:$0xf]
      %v1375 = vld [vmem:[%s2 + $0x10] sm:$0xf]
      %v1376 = vld [vmem:[%s2 + $0x14] sm:$0xf]
      %v1377 = vld [vmem:[%s2 + $0x18] sm:$0xf]
      %v1378 = vld [vmem:[%s2 + $0x1c] sm:$0xf]
      %v1379 = vld [vmem:[%s2 + $0x20] sm:$0xf]
      %v1380 = vld [vmem:[%s2 + $0x24] sm:$0xf]
      %v1381 = vld [vmem:[%s2 + $0x28] sm:$0xf]
      %v1382 = vld [vmem:[%s2 + $0x2c] sm:$0xf]
      %v1383 = vld [vmem:[%s2 + $0x30] sm:$0xf]
      %v1384 = vld [vmem:[%s2 + $0x34] sm:$0xf]
      %v1385 = vld [vmem:[%s2 + $0x38] sm:$0xf]
      %v1386 = vld [vmem:[%s2 + $0x3c] sm:$0xf]
      %v1403 = vunpack.c.l.b16 %v1371
      %v1404 = vunpack.c.l.b16 %v1372
      %v1405 = vunpack.c.l.b16 %v1373
      %v1406 = vunpack.c.l.b16 %v1374
      %v1407 = vunpack.c.l.b16 %v1375
      %v1408 = vunpack.c.l.b16 %v1376
      %v1409 = vunpack.c.l.b16 %v1377
      %v1410 = vunpack.c.l.b16 %v1378
      %v1411 = vunpack.c.l.b16 %v1379
      %v1412 = vunpack.c.l.b16 %v1380
      %v1413 = vunpack.c.l.b16 %v1381
      %v1414 = vunpack.c.l.b16 %v1382
      %v1415 = vunpack.c.l.b16 %v1383
      %v1416 = vunpack.c.l.b16 %v1384
      %v1417 = vunpack.c.l.b16 %v1385
      %v1418 = vunpack.c.l.b16 %v1386
      %v1419 = vpack.c.b16 %v1404, %v1403
      %v1420 = vpack.c.b16 %v1406, %v1405
      %v1421 = vpack.c.b16 %v1408, %v1407
      %v1422 = vpack.c.b16 %v1410, %v1409
      %v1423 = vpack.c.b16 %v1412, %v1411
      %v1424 = vpack.c.b16 %v1414, %v1413
      %v1425 = vpack.c.b16 %v1416, %v1415
      %v1426 = vpack.c.b16 %v1418, %v1417
      %1435 = vmatpush.bf16.msra.mxu0 %v1426
      %1436 = vmatpush.bf16.msra.mxu0 %v1425
      %1437 = vmatpush.bf16.msra.mxu0 %v1424
      %1438 = vmatpush.bf16.msra.mxu0 %v1423
      %1439 = vmatpush.bf16.msra.mxu0 %v1422
      %1440 = vmatpush.bf16.msra.mxu0 %v1421
      %1441 = vmatpush.bf16.msra.mxu0 %v1420
      %1442 = vmatpush.bf16.msra.mxu0 %v1419
      %1443 = vmatmul.bf16.gmra.mxu0 %v1366
      %v1444 = vpop.f32.mrf.mxu0
      %v1445 = vadd.f32 0.0, %v1444
      %v1446 = vpop.f32.mrf.mxu0
      %v1447 = vadd.f32 0.0, %v1446
      %1448 = vmatmul.bf16.gmra.mxu0 %v1367
      %v1449 = vpop.f32.mrf.mxu0
      %v1450 = vadd.f32 0.0, %v1449
      %v1451 = vpop.f32.mrf.mxu0
      %v1452 = vadd.f32 0.0, %v1451
      %1453 = vmatmul.bf16.gmra.mxu0 %v1368
      %v1454 = vpop.f32.mrf.mxu0
      %v1455 = vadd.f32 0.0, %v1454
      %v1456 = vpop.f32.mrf.mxu0
      %v1457 = vadd.f32 0.0, %v1456
      %1458 = vmatmul.bf16.gmra.mxu0 %v1369
      %v1459 = vpop.f32.mrf.mxu0
      %v1460 = vadd.f32 0.0, %v1459
      %v1461 = vpop.f32.mrf.mxu0
      %v1462 = vadd.f32 0.0, %v1461
      %1463 = vmatmul.bf16.gmra.mxu0 %v1370
      %v1464 = vpop.f32.mrf.mxu0
      %v1465 = vadd.f32 0.0, %v1464
      %v1466 = vpop.f32.mrf.mxu0
      %v1467 = vadd.f32 0.0, %v1466
      %1468 = vdwg.mxu0
      %v1469 = vadd.f32 %v686, %v1445
      %v1470 = vadd.f32 %v687, %v1447
      %v1471 = vadd.f32 %v688, %v1450
      %v1472 = vadd.f32 %v689, %v1452
      %v1473 = vadd.f32 %v690, %v1455
      %v1474 = vadd.f32 %v691, %v1457
      %v1475 = vadd.f32 %v692, %v1460
      %v1476 = vadd.f32 %v693, %v1462
      %v1477 = vadd.f32 %v694, %v1465
      %v1478 = vadd.f32 %v695, %v1467
      %v1479 = vlaneseq
      %v1480 = vshrl.u32 %v1479, 7
      %v1481 = vadd.s32 %v1480, 8
      %v1482 = vadd.s32 %v1480, 16
      %v1483 = vadd.s32 %v1480, 24
      %v1484 = vadd.s32 %v1480, 32
      %v1485 = vadd.s32 %v1480, 40
      %v1486 = vadd.s32 %v1480, 48
      %v1487 = vadd.s32 %v1480, 56
      %v1488 = vadd.s32 %v1480, 64
      %v1489 = vadd.s32 %v1480, 72
      %vm1490 = vcmp.lt.s32.totalorder %v1480, 0
      %v1491 = vsub.s32 0, %v1480
      %v1492 = vsel %vm1490, %v1491, %v1480
      %v1493 = vand.u32 %v1492, 65535
      %v1494 = vshrl.u32 %v1492, 16
      %v1496 = vmul.u32 %v1493, 52429
      %v1497 = vmul.u32 %v1493, 52428
      %v1498 = vmul.u32 %v1494, 52429
      %v1499 = vmul.u32 %v1494, 52428
      %v1500 = vshll.u32 %v1497, 16
      %v1501 = vshrl.u32 %v1497, 16
      %v1502 = vshll.u32 %v1498, 16
      %v1503 = vshrl.u32 %v1498, 16
      %vm1504 = vc.u32 %v1496, %v1500
      %v1505 = vsel %vm1504, 1, 0
      %v1506 = vadd.s32 %v1496, %v1500
      %v1507 = vadd.s32 %v1499, %v1505
      %vm1508 = vc.u32 %v1506, %v1502
      %v1509 = vsel %vm1508, 1, 0
      %v1510 = vadd.s32 %v1506, %v1502
      %v1511 = vadd.s32 %v1507, %v1509
      %v1512 = vadd.s32 %v1511, %v1501
      %v1513 = vadd.s32 %v1512, %v1503
      %v1514 = vshrl.u32 %v1513, 3
      %v1515 = vmul.u32 %v1514, 10
      %v1516 = vsub.s32 %v1492, %v1515
      %v1517 = vsub.s32 0, %v1516
      %v1518 = vsel %vm1490, %v1517, %v1516
      %vm1519 = vcmp.lt.s32.totalorder %v1481, 0
      %v1520 = vsub.s32 0, %v1481
      %v1521 = vsel %vm1519, %v1520, %v1481
      %v1522 = vand.u32 %v1521, 65535
      %v1523 = vshrl.u32 %v1521, 16
      %v1525 = vmul.u32 %v1522, 52429
      %v1526 = vmul.u32 %v1522, 52428
      %v1527 = vmul.u32 %v1523, 52429
      %v1528 = vmul.u32 %v1523, 52428
      %v1529 = vshll.u32 %v1526, 16
      %v1530 = vshrl.u32 %v1526, 16
      %v1531 = vshll.u32 %v1527, 16
      %v1532 = vshrl.u32 %v1527, 16
      %vm1533 = vc.u32 %v1525, %v1529
      %v1534 = vsel %vm1533, 1, 0
      %v1535 = vadd.s32 %v1525, %v1529
      %v1536 = vadd.s32 %v1528, %v1534
      %vm1537 = vc.u32 %v1535, %v1531
      %v1538 = vsel %vm1537, 1, 0
      %v1539 = vadd.s32 %v1535, %v1531
      %v1540 = vadd.s32 %v1536, %v1538
      %v1541 = vadd.s32 %v1540, %v1530
      %v1542 = vadd.s32 %v1541, %v1532
      %v1543 = vshrl.u32 %v1542, 3
      %v1544 = vmul.u32 %v1543, 10
      %v1545 = vsub.s32 %v1521, %v1544
      %v1546 = vsub.s32 0, %v1545
      %v1547 = vsel %vm1519, %v1546, %v1545
      %vm1548 = vcmp.lt.s32.totalorder %v1482, 0
      %v1549 = vsub.s32 0, %v1482
      %v1550 = vsel %vm1548, %v1549, %v1482
      %v1551 = vand.u32 %v1550, 65535
      %v1552 = vshrl.u32 %v1550, 16
      %v1554 = vmul.u32 %v1551, 52429
      %v1555 = vmul.u32 %v1551, 52428
      %v1556 = vmul.u32 %v1552, 52429
      %v1557 = vmul.u32 %v1552, 52428
      %v1558 = vshll.u32 %v1555, 16
      %v1559 = vshrl.u32 %v1555, 16
      %v1560 = vshll.u32 %v1556, 16
      %v1561 = vshrl.u32 %v1556, 16
      %vm1562 = vc.u32 %v1554, %v1558
      %v1563 = vsel %vm1562, 1, 0
      %v1564 = vadd.s32 %v1554, %v1558
      %v1565 = vadd.s32 %v1557, %v1563
      %vm1566 = vc.u32 %v1564, %v1560
      %v1567 = vsel %vm1566, 1, 0
      %v1568 = vadd.s32 %v1564, %v1560
      %v1569 = vadd.s32 %v1565, %v1567
      %v1570 = vadd.s32 %v1569, %v1559
      %v1571 = vadd.s32 %v1570, %v1561
      %v1572 = vshrl.u32 %v1571, 3
      %v1573 = vmul.u32 %v1572, 10
      %v1574 = vsub.s32 %v1550, %v1573
      %v1575 = vsub.s32 0, %v1574
      %v1576 = vsel %vm1548, %v1575, %v1574
      %vm1577 = vcmp.lt.s32.totalorder %v1483, 0
      %v1578 = vsub.s32 0, %v1483
      %v1579 = vsel %vm1577, %v1578, %v1483
      %v1580 = vand.u32 %v1579, 65535
      %v1581 = vshrl.u32 %v1579, 16
      %v1583 = vmul.u32 %v1580, 52429
      %v1584 = vmul.u32 %v1580, 52428
      %v1585 = vmul.u32 %v1581, 52429
      %v1586 = vmul.u32 %v1581, 52428
      %v1587 = vshll.u32 %v1584, 16
      %v1588 = vshrl.u32 %v1584, 16
      %v1589 = vshll.u32 %v1585, 16
      %v1590 = vshrl.u32 %v1585, 16
      %vm1591 = vc.u32 %v1583, %v1587
      %v1592 = vsel %vm1591, 1, 0
      %v1593 = vadd.s32 %v1583, %v1587
      %v1594 = vadd.s32 %v1586, %v1592
      %vm1595 = vc.u32 %v1593, %v1589
      %v1596 = vsel %vm1595, 1, 0
      %v1597 = vadd.s32 %v1593, %v1589
      %v1598 = vadd.s32 %v1594, %v1596
      %v1599 = vadd.s32 %v1598, %v1588
      %v1600 = vadd.s32 %v1599, %v1590
      %v1601 = vshrl.u32 %v1600, 3
      %v1602 = vmul.u32 %v1601, 10
      %v1603 = vsub.s32 %v1579, %v1602
      %v1604 = vsub.s32 0, %v1603
      %v1605 = vsel %vm1577, %v1604, %v1603
      %vm1606 = vcmp.lt.s32.totalorder %v1484, 0
      %v1607 = vsub.s32 0, %v1484
      %v1608 = vsel %vm1606, %v1607, %v1484
      %v1609 = vand.u32 %v1608, 65535
      %v1610 = vshrl.u32 %v1608, 16
      %v1612 = vmul.u32 %v1609, 52429
      %v1613 = vmul.u32 %v1609, 52428
      %v1614 = vmul.u32 %v1610, 52429
      %v1615 = vmul.u32 %v1610, 52428
      %v1616 = vshll.u32 %v1613, 16
      %v1617 = vshrl.u32 %v1613, 16
      %v1618 = vshll.u32 %v1614, 16
      %v1619 = vshrl.u32 %v1614, 16
      %vm1620 = vc.u32 %v1612, %v1616
      %v1621 = vsel %vm1620, 1, 0
      %v1622 = vadd.s32 %v1612, %v1616
      %v1623 = vadd.s32 %v1615, %v1621
      %vm1624 = vc.u32 %v1622, %v1618
      %v1625 = vsel %vm1624, 1, 0
      %v1626 = vadd.s32 %v1622, %v1618
      %v1627 = vadd.s32 %v1623, %v1625
      %v1628 = vadd.s32 %v1627, %v1617
      %v1629 = vadd.s32 %v1628, %v1619
      %v1630 = vshrl.u32 %v1629, 3
      %v1631 = vmul.u32 %v1630, 10
      %v1632 = vsub.s32 %v1608, %v1631
      %v1633 = vsub.s32 0, %v1632
      %v1634 = vsel %vm1606, %v1633, %v1632
      %vm1635 = vcmp.lt.s32.totalorder %v1485, 0
      %v1636 = vsub.s32 0, %v1485
      %v1637 = vsel %vm1635, %v1636, %v1485
      %v1638 = vand.u32 %v1637, 65535
      %v1639 = vshrl.u32 %v1637, 16
      %v1641 = vmul.u32 %v1638, 52429
      %v1642 = vmul.u32 %v1638, 52428
      %v1643 = vmul.u32 %v1639, 52429
      %v1644 = vmul.u32 %v1639, 52428
      %v1645 = vshll.u32 %v1642, 16
      %v1646 = vshrl.u32 %v1642, 16
      %v1647 = vshll.u32 %v1643, 16
      %v1648 = vshrl.u32 %v1643, 16
      %vm1649 = vc.u32 %v1641, %v1645
      %v1650 = vsel %vm1649, 1, 0
      %v1651 = vadd.s32 %v1641, %v1645
      %v1652 = vadd.s32 %v1644, %v1650
      %vm1653 = vc.u32 %v1651, %v1647
      %v1654 = vsel %vm1653, 1, 0
      %v1655 = vadd.s32 %v1651, %v1647
      %v1656 = vadd.s32 %v1652, %v1654
      %v1657 = vadd.s32 %v1656, %v1646
      %v1658 = vadd.s32 %v1657, %v1648
      %v1659 = vshrl.u32 %v1658, 3
      %v1660 = vmul.u32 %v1659, 10
      %v1661 = vsub.s32 %v1637, %v1660
      %v1662 = vsub.s32 0, %v1661
      %v1663 = vsel %vm1635, %v1662, %v1661
      %vm1664 = vcmp.lt.s32.totalorder %v1486, 0
      %v1665 = vsub.s32 0, %v1486
      %v1666 = vsel %vm1664, %v1665, %v1486
      %v1667 = vand.u32 %v1666, 65535
      %v1668 = vshrl.u32 %v1666, 16
      %v1670 = vmul.u32 %v1667, 52429
      %v1671 = vmul.u32 %v1667, 52428
      %v1672 = vmul.u32 %v1668, 52429
      %v1673 = vmul.u32 %v1668, 52428
      %v1674 = vshll.u32 %v1671, 16
      %v1675 = vshrl.u32 %v1671, 16
      %v1676 = vshll.u32 %v1672, 16
      %v1677 = vshrl.u32 %v1672, 16
      %vm1678 = vc.u32 %v1670, %v1674
      %v1679 = vsel %vm1678, 1, 0
      %v1680 = vadd.s32 %v1670, %v1674
      %v1681 = vadd.s32 %v1673, %v1679
      %vm1682 = vc.u32 %v1680, %v1676
      %v1683 = vsel %vm1682, 1, 0
      %v1684 = vadd.s32 %v1680, %v1676
      %v1685 = vadd.s32 %v1681, %v1683
      %v1686 = vadd.s32 %v1685, %v1675
      %v1687 = vadd.s32 %v1686, %v1677
      %v1688 = vshrl.u32 %v1687, 3
      %v1689 = vmul.u32 %v1688, 10
      %v1690 = vsub.s32 %v1666, %v1689
      %v1691 = vsub.s32 0, %v1690
      %v1692 = vsel %vm1664, %v1691, %v1690
      %vm1693 = vcmp.lt.s32.totalorder %v1487, 0
      %v1694 = vsub.s32 0, %v1487
      %v1695 = vsel %vm1693, %v1694, %v1487
      %v1696 = vand.u32 %v1695, 65535
      %v1697 = vshrl.u32 %v1695, 16
      %v1699 = vmul.u32 %v1696, 52429
      %v1700 = vmul.u32 %v1696, 52428
      %v1701 = vmul.u32 %v1697, 52429
      %v1702 = vmul.u32 %v1697, 52428
      %v1703 = vshll.u32 %v1700, 16
      %v1704 = vshrl.u32 %v1700, 16
      %v1705 = vshll.u32 %v1701, 16
      %v1706 = vshrl.u32 %v1701, 16
      %vm1707 = vc.u32 %v1699, %v1703
      %v1708 = vsel %vm1707, 1, 0
      %v1709 = vadd.s32 %v1699, %v1703
      %v1710 = vadd.s32 %v1702, %v1708
      %vm1711 = vc.u32 %v1709, %v1705
      %v1712 = vsel %vm1711, 1, 0
      %v1713 = vadd.s32 %v1709, %v1705
      %v1714 = vadd.s32 %v1710, %v1712
      %v1715 = vadd.s32 %v1714, %v1704
      %v1716 = vadd.s32 %v1715, %v1706
      %v1717 = vshrl.u32 %v1716, 3
      %v1718 = vmul.u32 %v1717, 10
      %v1719 = vsub.s32 %v1695, %v1718
      %v1720 = vsub.s32 0, %v1719
      %v1721 = vsel %vm1693, %v1720, %v1719
      %vm1722 = vcmp.lt.s32.totalorder %v1488, 0
      %v1723 = vsub.s32 0, %v1488
      %v1724 = vsel %vm1722, %v1723, %v1488
      %v1725 = vand.u32 %v1724, 65535
      %v1726 = vshrl.u32 %v1724, 16
      %v1728 = vmul.u32 %v1725, 52429
      %v1729 = vmul.u32 %v1725, 52428
      %v1730 = vmul.u32 %v1726, 52429
      %v1731 = vmul.u32 %v1726, 52428
      %v1732 = vshll.u32 %v1729, 16
      %v1733 = vshrl.u32 %v1729, 16
      %v1734 = vshll.u32 %v1730, 16
      %v1735 = vshrl.u32 %v1730, 16
      %vm1736 = vc.u32 %v1728, %v1732
      %v1737 = vsel %vm1736, 1, 0
      %v1738 = vadd.s32 %v1728, %v1732
      %v1739 = vadd.s32 %v1731, %v1737
      %vm1740 = vc.u32 %v1738, %v1734
      %v1741 = vsel %vm1740, 1, 0
      %v1742 = vadd.s32 %v1738, %v1734
      %v1743 = vadd.s32 %v1739, %v1741
      %v1744 = vadd.s32 %v1743, %v1733
      %v1745 = vadd.s32 %v1744, %v1735
      %v1746 = vshrl.u32 %v1745, 3
      %v1747 = vmul.u32 %v1746, 10
      %v1748 = vsub.s32 %v1724, %v1747
      %v1749 = vsub.s32 0, %v1748
      %v1750 = vsel %vm1722, %v1749, %v1748
      %vm1751 = vcmp.lt.s32.totalorder %v1489, 0
      %v1752 = vsub.s32 0, %v1489
      %v1753 = vsel %vm1751, %v1752, %v1489
      %v1754 = vand.u32 %v1753, 65535
      %v1755 = vshrl.u32 %v1753, 16
      %v1757 = vmul.u32 %v1754, 52429
      %v1758 = vmul.u32 %v1754, 52428
      %v1759 = vmul.u32 %v1755, 52429
      %v1760 = vmul.u32 %v1755, 52428
      %v1761 = vshll.u32 %v1758, 16
      %v1762 = vshrl.u32 %v1758, 16
      %v1763 = vshll.u32 %v1759, 16
      %v1764 = vshrl.u32 %v1759, 16
      %vm1765 = vc.u32 %v1757, %v1761
      %v1766 = vsel %vm1765, 1, 0
      %v1767 = vadd.s32 %v1757, %v1761
      %v1768 = vadd.s32 %v1760, %v1766
      %vm1769 = vc.u32 %v1767, %v1763
      %v1770 = vsel %vm1769, 1, 0
      %v1771 = vadd.s32 %v1767, %v1763
      %v1772 = vadd.s32 %v1768, %v1770
      %v1773 = vadd.s32 %v1772, %v1762
      %v1774 = vadd.s32 %v1773, %v1764
      %v1775 = vshrl.u32 %v1774, 3
      %v1776 = vmul.u32 %v1775, 10
      %v1777 = vsub.s32 %v1753, %v1776
      %v1778 = vsub.s32 0, %v1777
      %v1779 = vsel %vm1751, %v1778, %v1777
      %vm1780 = vcmp.ne.s32.totalorder %v1518, 0
      %vm1781 = vcmp.ne.s32.totalorder %v1547, 0
      %vm1782 = vcmp.ne.s32.totalorder %v1576, 0
      %vm1783 = vcmp.ne.s32.totalorder %v1605, 0
      %vm1784 = vcmp.ne.s32.totalorder %v1634, 0
      %vm1785 = vcmp.ne.s32.totalorder %v1663, 0
      %vm1786 = vcmp.ne.s32.totalorder %v1692, 0
      %vm1787 = vcmp.ne.s32.totalorder %v1721, 0
      %vm1788 = vcmp.ne.s32.totalorder %v1750, 0
      %vm1789 = vcmp.ne.s32.totalorder %v1779, 0
      %vm1790 = vcmp.lt.s32.totalorder %v1518, 0
      %vm1791 = vcmp.lt.s32.totalorder %v1547, 0
      %vm1792 = vcmp.lt.s32.totalorder %v1576, 0
      %vm1793 = vcmp.lt.s32.totalorder %v1605, 0
      %vm1794 = vcmp.lt.s32.totalorder %v1634, 0
      %vm1795 = vcmp.lt.s32.totalorder %v1663, 0
      %vm1796 = vcmp.lt.s32.totalorder %v1692, 0
      %vm1797 = vcmp.lt.s32.totalorder %v1721, 0
      %vm1798 = vcmp.lt.s32.totalorder %v1750, 0
      %vm1799 = vcmp.lt.s32.totalorder %v1779, 0
      %vm1800 = vmand %vm1790, %vm1780
      %vm1801 = vmand %vm1791, %vm1781
      %vm1802 = vmand %vm1792, %vm1782
      %vm1803 = vmand %vm1793, %vm1783
      %vm1804 = vmand %vm1794, %vm1784
      %vm1805 = vmand %vm1795, %vm1785
      %vm1806 = vmand %vm1796, %vm1786
      %vm1807 = vmand %vm1797, %vm1787
      %vm1808 = vmand %vm1798, %vm1788
      %vm1809 = vmand %vm1799, %vm1789
      %v1810 = vadd.s32 %v1518, 10
      %v1811 = vadd.s32 %v1547, 10
      %v1812 = vadd.s32 %v1576, 10
      %v1813 = vadd.s32 %v1605, 10
      %v1814 = vadd.s32 %v1634, 10
      %v1815 = vadd.s32 %v1663, 10
      %v1816 = vadd.s32 %v1692, 10
      %v1817 = vadd.s32 %v1721, 10
      %v1818 = vadd.s32 %v1750, 10
      %v1819 = vadd.s32 %v1779, 10
      %v1820 = vsel %vm1800, %v1810, %v1518
      %v1821 = vsel %vm1801, %v1811, %v1547
      %v1822 = vsel %vm1802, %v1812, %v1576
      %v1823 = vsel %vm1803, %v1813, %v1605
      %v1824 = vsel %vm1804, %v1814, %v1634
      %v1825 = vsel %vm1805, %v1815, %v1663
      %v1826 = vsel %vm1806, %v1816, %v1692
      %v1827 = vsel %vm1807, %v1817, %v1721
      %v1828 = vsel %vm1808, %v1818, %v1750
      %v1829 = vsel %vm1809, %v1819, %v1779
      %vm1830 = vcmp.lt.s32.totalorder %v1820, 8
      %vm1831 = vcmp.lt.s32.totalorder %v1821, 8
      %vm1832 = vcmp.lt.s32.totalorder %v1822, 8
      %vm1833 = vcmp.lt.s32.totalorder %v1823, 8
      %vm1834 = vcmp.lt.s32.totalorder %v1824, 8
      %vm1835 = vcmp.lt.s32.totalorder %v1825, 8
      %vm1836 = vcmp.lt.s32.totalorder %v1826, 8
      %vm1837 = vcmp.lt.s32.totalorder %v1827, 8
      %vm1838 = vcmp.lt.s32.totalorder %v1828, 8
      %vm1839 = vcmp.lt.s32.totalorder %v1829, 8
      %v1840 = vsel %vm1830, 1, 0
      %v1841 = vsel %vm1831, 1, 0
      %v1842 = vsel %vm1832, 1, 0
      %v1843 = vsel %vm1833, 1, 0
      %v1844 = vsel %vm1834, 1, 0
      %v1845 = vsel %vm1835, 1, 0
      %v1846 = vsel %vm1836, 1, 0
      %v1847 = vsel %vm1837, 1, 0
      %v1848 = vsel %vm1838, 1, 0
      %v1849 = vsel %vm1839, 1, 0
      %vm1850 = vcmp.eq.s32.totalorder %v1840, 1
      %vm1851 = vcmp.eq.s32.totalorder %v1841, 1
      %vm1852 = vcmp.eq.s32.totalorder %v1842, 1
      %vm1853 = vcmp.eq.s32.totalorder %v1843, 1
      %vm1854 = vcmp.eq.s32.totalorder %v1844, 1
      %vm1855 = vcmp.eq.s32.totalorder %v1845, 1
      %vm1856 = vcmp.eq.s32.totalorder %v1846, 1
      %vm1857 = vcmp.eq.s32.totalorder %v1847, 1
      %vm1858 = vcmp.eq.s32.totalorder %v1848, 1
      %vm1859 = vcmp.eq.s32.totalorder %v1849, 1
      %v1860 = vsel %vm1850, %v1469, 0.0
      %v1861 = vsel %vm1851, %v1470, 0.0
      %v1862 = vsel %vm1852, %v1471, 0.0
      %v1863 = vsel %vm1853, %v1472, 0.0
      %v1864 = vsel %vm1854, %v1473, 0.0
      %v1865 = vsel %vm1855, %v1474, 0.0
      %v1866 = vsel %vm1856, %v1475, 0.0
      %v1867 = vsel %vm1857, %v1476, 0.0
      %v1868 = vsel %vm1858, %v1477, 0.0
      %v1869 = vsel %vm1859, %v1478, 0.0
      %1870 = vst [vmem:[%s170] sm:$0xff] 0.0
      %1871 = vst [vmem:[%s170 + $0x8] sm:$0x7] 0.0
      %1872 = vst [vmem:[%s170 + $0xb] sm:$0xff] %v1860
      %1873 = vst [vmem:[%s170 + $0x13] sm:$0xff] %v1861
      %1874 = vst [vmem:[%s170 + $0x1b] sm:$0xff] %v1862
      %1875 = vst [vmem:[%s170 + $0x23] sm:$0xff] %v1863
      %1876 = vst [vmem:[%s170 + $0x2b] sm:$0xff] %v1864
      %1877 = vst [vmem:[%s170 + $0x33] sm:$0xff] %v1865
      %1878 = vst [vmem:[%s170 + $0x3b] sm:$0xff] %v1866
      %1879 = vst [vmem:[%s170 + $0x43] sm:$0xff] %v1867
      %1880 = vst [vmem:[%s170 + $0x4b] sm:$0xff] %v1868
      %1881 = vst [vmem:[%s170 + $0x53] sm:$0xff] %v1869
      %1882 = vst [vmem:[%s170 + $0x5b] sm:$0xff] 0.0
      %1883 = vst [vmem:[%s170 + $0x63] sm:$0x1f] 0.0
      %p1884 = scmp.lt.s32.totalorder %s14, 1
      %s1885 = scalar_select %p1884, %s14, 1
      %s1886 = smul.addr %s1885, 13
      %s1887 = smul.addr %s1886, 8
      %s1888 = scalar_lea.vmem %s3, %s1887
      // Predicated region
      $region33: #{decoder_forward.4} parent=31 // pred_check
        %p1889 = pneg %p100
      $region34: #{decoder_forward.4} parent=31 // pred_check_branch
        %1891 = sbr.rel (%p1889) target = $region36
      $region35: #{decoder_forward.4} parent=31 // pred_region
        _
      $region36: #{decoder_forward.4} parent=31 // pred_fallthru
        _
    $region32: #{decoder_forward.4} parent=5 // pred_fallthru
      _
    %p1892 = scmp.le.s32.totalorder 2, %s9
    // Predicated region
    $region37: #{decoder_forward.4} parent=5 // pred_check
      %p1893 = pneg %p1892
    $region38: #{decoder_forward.4} parent=5 // pred_check_branch
      %1895 = sbr.rel (%p1893) target = $region40
    $region39: #{decoder_forward.4} parent=5 // pred_region
      %s1896 = ssub.s32 %s9, 2
      // Predicated region
      $region41: #{decoder_forward.4} parent=39 // pred_check
        %p1897 = pneg %p106
      $region42: #{decoder_forward.4} parent=39 // pred_check_branch
        %1899 = sbr.rel (%p1897) target = $region44
      $region43: #{decoder_forward.4} parent=39 // pred_region
        %p1900 = scmp.lt.s32.totalorder %s15, 1
        %s1901 = scalar_select %p1900, %s15, 1
        %s1902 = smul.addr %s1901, 13
        %s1903 = smul.addr %s1902, 8
        %s1904 = scalar_lea.vmem %s3, %s1903
      $region44: #{decoder_forward.4} parent=39 // pred_fallthru
        _
    $region40: #{decoder_forward.4} parent=5 // pred_fallthru
      _
  $region6: #{decoder_forward.4} parent=0 // loop_footer
    %s13 = sadd.s32 1, %s9
  $region7: #{decoder_forward.4} parent=0 // loop_footer_branch
    %8 = sbr.rel target = $region3
  $region8: #{decoder_forward.4} parent=0 // loop_exit
    _

// kernel: decoder_forward.6
$region0: #{decoder_forward.6}
  #allocation0 [shape = 'u32[]', space=smem, size = 0x4, offset = 0x4, fixed_abs, tag = 'smem constant byte address 0x4 - core index']
  #allocation1 [shape = 'u32[72,128]{1,0:T(1,128)}', space=vmem, size = 0x9000, scoped, tag = 'internal scratch']
  %s0 = inlined_call_operand.vmem [shape: f32[2,104,128], index: 0, kind: input, shape index: {}]
  %s1 = inlined_call_operand.vmem [shape: bf16[9,128,256], index: 1, kind: input, shape index: {}]
  %s2 = inlined_call_operand.vmem [shape: f32[2,80,256], index: 2, kind: output, shape index: {0}]
  %s3 = inlined_call_operand.vmem [shape: f32[2,1,256], index: 3, kind: output, shape index: {1}]
  %s4 = inlined_call_operand.vmem [shape: f32[2,1,256], index: 4, kind: output, shape index: {2}]
  %5 = xla_tuple %s2, %s3, %s4
  %s6 = sld [smem:[#allocation0]]
  $region57: #{decoder_forward.6} parent=0
    _
  %s8 = ssub.s32 1, %s6
  %s9 = scalar_select 0, %s8, %s6
  loop: start=0, step=1, limit=4
  $region2: #{decoder_forward.6} parent=0 // loop_pre_header
    _
  $region3: #{decoder_forward.6} parent=0 // loop_header
    %s11 = sphi 0, %s15
    %p12 = scmp.ge.s32.totalorder %s11, 4
    %s21 = sphi 0, %s23
    %s24 = sphi 0, %s21
    %s25 = sphi 0, %s24
    %s41 = sphi 0, %s25
    %s45 = sphi 0, %s45
    %s47 = sphi 0, %s45
    %s48 = sphi 0, %s47
    %s62 = sphi 0, %s48
    %s68 = sphi 0, %s70
    %s71 = sphi 0, %s68
    %s72 = sphi 0, %s71
    %s88 = sphi 0, %s72
    %s94 = sphi 0, %s96
    %s97 = sphi 0, %s94
    %s98 = sphi 0, %s97
    %s114 = sphi 0, %s98
    %s120 = sphi 0, %s122
    %s123 = sphi 0, %s120
    %s124 = sphi 0, %s123
    %s140 = sphi 0, %s124
  $region4: #{decoder_forward.6} parent=0 // loop_header_branch
    %14 = sbr.rel (%p12) target = $region8
  $region5: #{decoder_forward.6} parent=0 // loop_body
    %s16 = ssub.s32 %s11, 1
    %s17 = ssub.s32 %s11, 2
    %s18 = sadd.s32 %s11, 1
    %s19 = ssub.s32 %s11, %s18
    %p20 = scmp.eq.s32.totalorder %s19, 0
    %s22 = sadd.s32 %s21, 1
    %s23 = scalar_select %p20, %s21, %s22
    %p26 = pneg %p20
    %p27 = scmp.eq.s32.totalorder %s11, 1
    %p28 = por %p26, %p27
    %p29 = scmp.ne.s32.totalorder %s21, %s24
    %p30 = scmp.eq.s32.totalorder %s11, 0
    %p31 = por %p29, %p30
    %p32 = scmp.ne.s32.totalorder %s21, %s24
    %p33 = scmp.eq.s32.totalorder %s16, 1
    %p34 = por %p32, %p33
    %p35 = scmp.ne.s32.totalorder %s24, %s25
    %p36 = scmp.eq.s32.totalorder %s16, 0
    %p37 = por %p35, %p36
    %p38 = scmp.ne.s32.totalorder %s24, %s25
    %p39 = scmp.eq.s32.totalorder %s17, 1
    %p40 = por %p38, %p39
    %p42 = scmp.ne.s32.totalorder %s25, %s41
    %p43 = scmp.eq.s32.totalorder %s17, 0
    %p44 = por %p42, %p43
    %s46 = sadd.s32 %s45, 1
    %p49 = scmp.eq.s32.totalorder %s11, 1
    %p50 = scmp.ne.s32.totalorder %s45, %s47
    %p51 = scmp.eq.s32.totalorder %s11, 0
    %p52 = por %p50, %p51
    %p53 = scmp.ne.s32.totalorder %s45, %s47
    %p54 = scmp.eq.s32.totalorder %s16, 1
    %p55 = por %p53, %p54
    %p56 = scmp.ne.s32.totalorder %s47, %s48
    %p57 = scmp.eq.s32.totalorder %s16, 0
    %p58 = por %p56, %p57
    %p59 = scmp.ne.s32.totalorder %s47, %s48
    %p60 = scmp.eq.s32.totalorder %s17, 1
    %p61 = por %p59, %p60
    %p63 = scmp.ne.s32.totalorder %s48, %s62
    %p64 = scmp.eq.s32.totalorder %s17, 0
    %p65 = por %p63, %p64
    %s66 = ssub.s32 %s11, %s18
    %p67 = scmp.eq.s32.totalorder %s66, 0
    %s69 = sadd.s32 %s68, 1
    %s70 = scalar_select %p67, %s68, %s69
    %p73 = pneg %p67
    %p74 = scmp.eq.s32.totalorder %s11, 1
    %p75 = por %p73, %p74
    %p76 = scmp.ne.s32.totalorder %s68, %s71
    %p77 = scmp.eq.s32.totalorder %s11, 0
    %p78 = por %p76, %p77
    %p79 = scmp.ne.s32.totalorder %s68, %s71
    %p80 = scmp.eq.s32.totalorder %s16, 1
    %p81 = por %p79, %p80
    %p82 = scmp.ne.s32.totalorder %s71, %s72
    %p83 = scmp.eq.s32.totalorder %s16, 0
    %p84 = por %p82, %p83
    %p85 = scmp.ne.s32.totalorder %s71, %s72
    %p86 = scmp.eq.s32.totalorder %s17, 1
    %p87 = por %p85, %p86
    %p89 = scmp.ne.s32.totalorder %s72, %s88
    %p90 = scmp.eq.s32.totalorder %s17, 0
    %p91 = por %p89, %p90
    %s92 = ssub.s32 %s11, %s18
    %p93 = scmp.eq.s32.totalorder %s92, 0
    %s95 = sadd.s32 %s94, 1
    %s96 = scalar_select %p93, %s94, %s95
    %p99 = pneg %p93
    %p100 = scmp.eq.s32.totalorder %s11, 1
    %p101 = por %p99, %p100
    %p102 = scmp.ne.s32.totalorder %s94, %s97
    %p103 = scmp.eq.s32.totalorder %s11, 0
    %p104 = por %p102, %p103
    %p105 = scmp.ne.s32.totalorder %s94, %s97
    %p106 = scmp.eq.s32.totalorder %s16, 1
    %p107 = por %p105, %p106
    %p108 = scmp.ne.s32.totalorder %s97, %s98
    %p109 = scmp.eq.s32.totalorder %s16, 0
    %p110 = por %p108, %p109
    %p111 = scmp.ne.s32.totalorder %s97, %s98
    %p112 = scmp.eq.s32.totalorder %s17, 1
    %p113 = por %p111, %p112
    %p115 = scmp.ne.s32.totalorder %s98, %s114
    %p116 = scmp.eq.s32.totalorder %s17, 0
    %p117 = por %p115, %p116
    %s118 = ssub.s32 %s11, %s18
    %p119 = scmp.eq.s32.totalorder %s118, 0
    %s121 = sadd.s32 %s120, 1
    %s122 = scalar_select %p119, %s120, %s121
    %p125 = pneg %p119
    %p126 = scmp.eq.s32.totalorder %s11, 1
    %p127 = por %p125, %p126
    %p128 = scmp.ne.s32.totalorder %s120, %s123
    %p129 = scmp.eq.s32.totalorder %s11, 0
    %p130 = por %p128, %p129
    %p131 = scmp.ne.s32.totalorder %s120, %s123
    %p132 = scmp.eq.s32.totalorder %s16, 1
    %p133 = por %p131, %p132
    %p134 = scmp.ne.s32.totalorder %s123, %s124
    %p135 = scmp.eq.s32.totalorder %s16, 0
    %p136 = por %p134, %p135
    %p137 = scmp.ne.s32.totalorder %s123, %s124
    %p138 = scmp.eq.s32.totalorder %s17, 1
    %p139 = por %p137, %p138
    %p141 = scmp.ne.s32.totalorder %s124, %s140
    %p142 = scmp.eq.s32.totalorder %s17, 0
    %p143 = por %p141, %p142
    %p144 = scmp.le.s32.totalorder 1, %s11
    %p145 = scmp.lt.s32.totalorder %s11, 3
    %p146 = pnand %p144, %p145
    %p147 = pneg %p146
    // Predicated region
    $region9: #{decoder_forward.6} parent=5 // pred_check
      _
    $region10: #{decoder_forward.6} parent=5 // pred_check_branch
      %149 = sbr.rel (%p146) target = $region12
    $region11: #{decoder_forward.6} parent=5 // pred_region
      %s150 = ssub.s32 %s11, 1
      // Predicated region
      $region13: #{decoder_forward.6} parent=11 // pred_check
        %p151 = pneg %p58
      $region14: #{decoder_forward.6} parent=11 // pred_check_branch
        %153 = sbr.rel (%p151) target = $region16
      $region15: #{decoder_forward.6} parent=11 // pred_region
        _
      $region16: #{decoder_forward.6} parent=11 // pred_fallthru
        _
    $region12: #{decoder_forward.6} parent=5 // pred_fallthru
      _
    %p154 = scmp.lt.s32.totalorder %s11, 2
    // Predicated region
    $region17: #{decoder_forward.6} parent=5 // pred_check
      %p155 = pneg %p154
    $region18: #{decoder_forward.6} parent=5 // pred_check_branch
      %157 = sbr.rel (%p155) target = $region20
    $region19: #{decoder_forward.6} parent=5 // pred_region
      // Predicated region
      $region21: #{decoder_forward.6} parent=19 // pred_check
        %p158 = pneg %p31
      $region22: #{decoder_forward.6} parent=19 // pred_check_branch
        %160 = sbr.rel (%p158) target = $region24
      $region23: #{decoder_forward.6} parent=19 // pred_region
        %p161 = scmp.lt.s32.totalorder %s11, 1
        %s162 = scalar_select %p161, %s11, 1
        %s163 = smul.addr %s162, 13
        %s164 = smul.addr %s163, 8
        %s165 = scalar_lea.vmem %s0, %s164
      $region24: #{decoder_forward.6} parent=19 // pred_fallthru
        _
    $region20: #{decoder_forward.6} parent=5 // pred_fallthru
      _
    %p166 = scmp.le.s32.totalorder 1, %s11
    %p167 = scmp.lt.s32.totalorder %s11, 3
    %p168 = pnand %p166, %p167
    %p169 = pneg %p168
    // Predicated region
    $region25: #{decoder_forward.6} parent=5 // pred_check
      _
    $region26: #{decoder_forward.6} parent=5 // pred_check_branch
      %171 = sbr.rel (%p168) target = $region28
    $region27: #{decoder_forward.6} parent=5 // pred_region
      %s172 = ssub.s32 %s11, 1
      %p173 = scmp.lt.s32.totalorder %s16, 1
      %s174 = scalar_select %p173, %s16, 1
      %s175 = smul.addr %s174, 13
      %s176 = smul.addr %s175, 8
      %s177 = scalar_lea.vmem %s0, %s176
      %p178 = pneg %p37
      %p179 = pneg %p34
      %p180 = pneg %p58
      %p181 = pneg %p55
      %p182 = pneg %p84
      %p183 = pneg %p81
      %p184 = scmp.lt.s32.totalorder %s16, 1
      %s185 = scalar_select %p184, %s16, 1
      %s186 = smul.addr %s185, 20
      %s187 = smul.addr %s186, 8
      %s188 = scalar_lea.vmem %s2, %s187
      %p189 = pneg %p110
      %p190 = pneg %p107
      %p191 = scmp.lt.s32.totalorder %s16, 1
      %s192 = scalar_select %p191, %s16, 1
      %s193 = smul.addr %s192, 2
      %s194 = scalar_lea.vmem %s3, %s193
      %p195 = pneg %p136
      %p196 = pneg %p133
      %p197 = scmp.lt.s32.totalorder %s16, 1
      %s198 = scalar_select %p197, %s16, 1
      %s199 = smul.addr %s198, 2
      %s200 = scalar_lea.vmem %s4, %s199
      %p201 = scmp.lt.s32.totalorder %s16, 1
      %s202 = scalar_select %p201, %s16, 1
      %s203 = smul.addr %s202, 13
      %s204 = smul.addr %s203, 8
      %s205 = scalar_lea.vmem %s0, %s204
      %p206 = scmp.lt.s32.totalorder %s16, 1
      %s207 = scalar_select %p206, %s16, 1
      %s208 = smul.addr %s207, 20
      %s209 = smul.addr %s208, 8
      %s210 = scalar_lea.vmem %s2, %s209
      %p211 = scmp.lt.s32.totalorder %s16, 1
      %s212 = scalar_select %p211, %s16, 1
      %s213 = smul.addr %s212, 2
      %s214 = scalar_lea.vmem %s3, %s213
      %p215 = scmp.lt.s32.totalorder %s16, 1
      %s216 = scalar_select %p215, %s16, 1
      %s217 = smul.addr %s216, 2
      %s218 = scalar_lea.vmem %s4, %s217
      %v219 = vld [vmem:[%s205] sm:$0xff]
      %v220 = vld [vmem:[%s205 + $0x8] sm:$0xff]
      %v221 = vld [vmem:[%s205 + $0x10] sm:$0xff]
      %v222 = vld [vmem:[%s205 + $0x18] sm:$0xff]
      %v223 = vld [vmem:[%s205 + $0x20] sm:$0xff]
      %v224 = vld [vmem:[%s205 + $0x28] sm:$0xff]
      %v225 = vld [vmem:[%s205 + $0x30] sm:$0xff]
      %v226 = vld [vmem:[%s205 + $0x38] sm:$0xff]
      %v227 = vld [vmem:[%s205 + $0x40] sm:$0xff]
      %v228 = vld [vmem:[%s205 + $0x48] sm:$0xff]
      %v229 = vmax.f32 %v219, 0.0
      %v230 = vmax.f32 %v220, 0.0
      %v231 = vmax.f32 %v221, 0.0
      %v232 = vmax.f32 %v222, 0.0
      %v233 = vmax.f32 %v223, 0.0
      %v234 = vmax.f32 %v224, 0.0
      %v235 = vmax.f32 %v225, 0.0
      %v236 = vmax.f32 %v226, 0.0
      %v237 = vmax.f32 %v227, 0.0
      %v238 = vmax.f32 %v228, 0.0
      %v239 = vpack.c.bf16 %v230, %v229
      %v240 = vpack.c.bf16 %v232, %v231
      %v241 = vpack.c.bf16 %v234, %v233
      %v242 = vpack.c.bf16 %v236, %v235
      %v243 = vpack.c.bf16 %v238, %v237
      %v244 = vld [vmem:[%s1] sm:$0xff]
      %v245 = vld [vmem:[%s1 + $0x8] sm:$0xff]
      %v246 = vld [vmem:[%s1 + $0x10] sm:$0xff]
      %v247 = vld [vmem:[%s1 + $0x18] sm:$0xff]
      %v248 = vld [vmem:[%s1 + $0x20] sm:$0xff]
      %v249 = vld [vmem:[%s1 + $0x28] sm:$0xff]
      %v250 = vld [vmem:[%s1 + $0x30] sm:$0xff]
      %v251 = vld [vmem:[%s1 + $0x38] sm:$0xff]
      %v252 = vld [vmem:[%s1 + $0x40] sm:$0xff]
      %v253 = vld [vmem:[%s1 + $0x48] sm:$0xff]
      %v254 = vld [vmem:[%s1 + $0x50] sm:$0xff]
      %v255 = vld [vmem:[%s1 + $0x58] sm:$0xff]
      %v256 = vld [vmem:[%s1 + $0x60] sm:$0xff]
      %v257 = vld [vmem:[%s1 + $0x68] sm:$0xff]
      %v258 = vld [vmem:[%s1 + $0x70] sm:$0xff]
      %v259 = vld [vmem:[%s1 + $0x78] sm:$0xff]
      %v260 = vld [vmem:[%s205 + $0x1] sm:$0xff]
      %v261 = vld [vmem:[%s205 + $0x9] sm:$0xff]
      %v262 = vld [vmem:[%s205 + $0x11] sm:$0xff]
      %v263 = vld [vmem:[%s205 + $0x19] sm:$0xff]
      %v264 = vld [vmem:[%s205 + $0x21] sm:$0xff]
      %v265 = vld [vmem:[%s205 + $0x29] sm:$0xff]
      %v266 = vld [vmem:[%s205 + $0x31] sm:$0xff]
      %v267 = vld [vmem:[%s205 + $0x39] sm:$0xff]
      %v268 = vld [vmem:[%s205 + $0x41] sm:$0xff]
      %v269 = vld [vmem:[%s205 + $0x49] sm:$0xff]
      %v270 = vmax.f32 %v260, 0.0
      %v271 = vmax.f32 %v261, 0.0
      %v272 = vmax.f32 %v262, 0.0
      %v273 = vmax.f32 %v263, 0.0
      %v274 = vmax.f32 %v264, 0.0
      %v275 = vmax.f32 %v265, 0.0
      %v276 = vmax.f32 %v266, 0.0
      %v277 = vmax.f32 %v267, 0.0
      %v278 = vmax.f32 %v268, 0.0
      %v279 = vmax.f32 %v269, 0.0
      %v280 = vpack.c.bf16 %v271, %v270
      %v281 = vpack.c.bf16 %v273, %v272
      %v282 = vpack.c.bf16 %v275, %v274
      %v283 = vpack.c.bf16 %v277, %v276
      %v284 = vpack.c.bf16 %v279, %v278
      %s285 = scalar_lea.vmem %s1, 128
      %v286 = vld [vmem:[%s285] sm:$0xff]
      %v287 = vld [vmem:[%s285 + $0x8] sm:$0xff]
      %v288 = vld [vmem:[%s285 + $0x10] sm:$0xff]
      %v289 = vld [vmem:[%s285 + $0x18] sm:$0xff]
      %v290 = vld [vmem:[%s285 + $0x20] sm:$0xff]
      %v291 = vld [vmem:[%s285 + $0x28] sm:$0xff]
      %v292 = vld [vmem:[%s285 + $0x30] sm:$0xff]
      %v293 = vld [vmem:[%s285 + $0x38] sm:$0xff]
      %v294 = vld [vmem:[%s285 + $0x40] sm:$0xff]
      %v295 = vld [vmem:[%s285 + $0x48] sm:$0xff]
      %v296 = vld [vmem:[%s285 + $0x50] sm:$0xff]
      %v297 = vld [vmem:[%s285 + $0x58] sm:$0xff]
      %v298 = vld [vmem:[%s285 + $0x60] sm:$0xff]
      %v299 = vld [vmem:[%s285 + $0x68] sm:$0xff]
      %v300 = vld [vmem:[%s285 + $0x70] sm:$0xff]
      %v301 = vld [vmem:[%s285 + $0x78] sm:$0xff]
      %v318 = vunpack.c.l.b16 %v286
      %v319 = vunpack.c.h.b16 %v286
      %v320 = vunpack.c.l.b16 %v287
      %v321 = vunpack.c.h.b16 %v287
      %v322 = vunpack.c.l.b16 %v288
      %v323 = vunpack.c.h.b16 %v288
      %v324 = vunpack.c.l.b16 %v289
      %v325 = vunpack.c.h.b16 %v289
      %v326 = vunpack.c.l.b16 %v290
      %v327 = vunpack.c.h.b16 %v290
      %v328 = vunpack.c.l.b16 %v291
      %v329 = vunpack.c.h.b16 %v291
      %v330 = vunpack.c.l.b16 %v292
      %v331 = vunpack.c.h.b16 %v292
      %v332 = vunpack.c.l.b16 %v293
      %v333 = vunpack.c.h.b16 %v293
      %v334 = vunpack.c.l.b16 %v294
      %v335 = vunpack.c.h.b16 %v294
      %v336 = vunpack.c.l.b16 %v295
      %v337 = vunpack.c.h.b16 %v295
      %v338 = vunpack.c.l.b16 %v296
      %v339 = vunpack.c.h.b16 %v296
      %v340 = vunpack.c.l.b16 %v297
      %v341 = vunpack.c.h.b16 %v297
      %v342 = vunpack.c.l.b16 %v298
      %v343 = vunpack.c.h.b16 %v298
      %v344 = vunpack.c.l.b16 %v299
      %v345 = vunpack.c.h.b16 %v299
      %v346 = vunpack.c.l.b16 %v300
      %v347 = vunpack.c.h.b16 %v300
      %v348 = vunpack.c.l.b16 %v301
      %v349 = vunpack.c.h.b16 %v301
      %v350 = vpack.c.b16 %v320, %v318
      %v351 = vpack.c.b16 %v321, %v319
      %v352 = vpack.c.b16 %v324, %v322
      %v353 = vpack.c.b16 %v325, %v323
      %v354 = vpack.c.b16 %v328, %v326
      %v355 = vpack.c.b16 %v329, %v327
      %v356 = vpack.c.b16 %v332, %v330
      %v357 = vpack.c.b16 %v333, %v331
      %v358 = vpack.c.b16 %v336, %v334
      %v359 = vpack.c.b16 %v337, %v335
      %v360 = vpack.c.b16 %v340, %v338
      %v361 = vpack.c.b16 %v341, %v339
      %v362 = vpack.c.b16 %v344, %v342
      %v363 = vpack.c.b16 %v345, %v343
      %v364 = vpack.c.b16 %v348, %v346
      %v365 = vpack.c.b16 %v349, %v347
      %382 = vmatpush.bf16.msra.mxu0 %v364
      %383 = vmatpush.bf16.msra.mxu0 %v362
      %384 = vmatpush.bf16.msra.mxu0 %v360
      %385 = vmatpush.bf16.msra.mxu0 %v358
      %386 = vmatpush.bf16.msra.mxu0 %v356
      %387 = vmatpush.bf16.msra.mxu0 %v354
      %388 = vmatpush.bf16.msra.mxu0 %v352
      %389 = vmatpush.bf16.msra.mxu0 %v350
      %390 = vmatmul.bf16.gmra.mxu0 %v280
      %v391 = vpop.f32.mrf.mxu0
      %v392 = vadd.f32 0.0, %v391
      %v393 = vpop.f32.mrf.mxu0
      %v394 = vadd.f32 0.0, %v393
      %395 = vmatmul.bf16.gmra.mxu0 %v281
      %v396 = vpop.f32.mrf.mxu0
      %v397 = vadd.f32 0.0, %v396
      %v398 = vpop.f32.mrf.mxu0
      %v399 = vadd.f32 0.0, %v398
      %400 = vmatmul.bf16.gmra.mxu0 %v282
      %v401 = vpop.f32.mrf.mxu0
      %v402 = vadd.f32 0.0, %v401
      %v403 = vpop.f32.mrf.mxu0
      %v404 = vadd.f32 0.0, %v403
      %405 = vmatmul.bf16.gmra.mxu0 %v283
      %v406 = vpop.f32.mrf.mxu0
      %v407 = vadd.f32 0.0, %v406
      %v408 = vpop.f32.mrf.mxu0
      %v409 = vadd.f32 0.0, %v408
      %410 = vmatmul.bf16.gmra.mxu0 %v284
      %v411 = vpop.f32.mrf.mxu0
      %v412 = vadd.f32 0.0, %v411
      %v413 = vpop.f32.mrf.mxu0
      %v414 = vadd.f32 0.0, %v413
      %415 = vdwg.mxu0
      %416 = vmatpush.bf16.msra.mxu0 %v365
      %417 = vmatpush.bf16.msra.mxu0 %v363
      %418 = vmatpush.bf16.msra.mxu0 %v361
      %419 = vmatpush.bf16.msra.mxu0 %v359
      %420 = vmatpush.bf16.msra.mxu0 %v357
      %421 = vmatpush.bf16.msra.mxu0 %v355
      %422 = vmatpush.bf16.msra.mxu0 %v353
      %423 = vmatpush.bf16.msra.mxu0 %v351
      %424 = vmatmul.bf16.gmra.mxu0 %v280
      %v425 = vpop.f32.mrf.mxu0
      %v426 = vadd.f32 0.0, %v425
      %v427 = vpop.f32.mrf.mxu0
      %v428 = vadd.f32 0.0, %v427
      %429 = vmatmul.bf16.gmra.mxu0 %v281
      %v430 = vpop.f32.mrf.mxu0
      %v431 = vadd.f32 0.0, %v430
      %v432 = vpop.f32.mrf.mxu0
      %v433 = vadd.f32 0.0, %v432
      %434 = vmatmul.bf16.gmra.mxu0 %v282
      %v435 = vpop.f32.mrf.mxu0
      %v436 = vadd.f32 0.0, %v435
      %v437 = vpop.f32.mrf.mxu0
      %v438 = vadd.f32 0.0, %v437
      %439 = vmatmul.bf16.gmra.mxu0 %v283
      %v440 = vpop.f32.mrf.mxu0
      %v441 = vadd.f32 0.0, %v440
      %v442 = vpop.f32.mrf.mxu0
      %v443 = vadd.f32 0.0, %v442
      %444 = vmatmul.bf16.gmra.mxu0 %v284
      %v445 = vpop.f32.mrf.mxu0
      %v446 = vadd.f32 0.0, %v445
      %v447 = vpop.f32.mrf.mxu0
      %v448 = vadd.f32 0.0, %v447
      %449 = vdwg.mxu0
      %v466 = vunpack.c.l.b16 %v244
      %v467 = vunpack.c.h.b16 %v244
      %v468 = vunpack.c.l.b16 %v245
      %v469 = vunpack.c.h.b16 %v245
      %v470 = vunpack.c.l.b16 %v246
      %v471 = vunpack.c.h.b16 %v246
      %v472 = vunpack.c.l.b16 %v247
      %v473 = vunpack.c.h.b16 %v247
      %v474 = vunpack.c.l.b16 %v248
      %v475 = vunpack.c.h.b16 %v248
      %v476 = vunpack.c.l.b16 %v249
      %v477 = vunpack.c.h.b16 %v249
      %v478 = vunpack.c.l.b16 %v250
      %v479 = vunpack.c.h.b16 %v250
      %v480 = vunpack.c.l.b16 %v251
      %v481 = vunpack.c.h.b16 %v251
      %v482 = vunpack.c.l.b16 %v252
      %v483 = vunpack.c.h.b16 %v252
      %v484 = vunpack.c.l.b16 %v253
      %v485 = vunpack.c.h.b16 %v253
      %v486 = vunpack.c.l.b16 %v254
      %v487 = vunpack.c.h.b16 %v254
      %v488 = vunpack.c.l.b16 %v255
      %v489 = vunpack.c.h.b16 %v255
      %v490 = vunpack.c.l.b16 %v256
      %v491 = vunpack.c.h.b16 %v256
      %v492 = vunpack.c.l.b16 %v257
      %v493 = vunpack.c.h.b16 %v257
      %v494 = vunpack.c.l.b16 %v258
      %v495 = vunpack.c.h.b16 %v258
      %v496 = vunpack.c.l.b16 %v259
      %v497 = vunpack.c.h.b16 %v259
      %v498 = vpack.c.b16 %v468, %v466
      %v499 = vpack.c.b16 %v469, %v467
      %v500 = vpack.c.b16 %v472, %v470
      %v501 = vpack.c.b16 %v473, %v471
      %v502 = vpack.c.b16 %v476, %v474
      %v503 = vpack.c.b16 %v477, %v475
      %v504 = vpack.c.b16 %v480, %v478
      %v505 = vpack.c.b16 %v481, %v479
      %v506 = vpack.c.b16 %v484, %v482
      %v507 = vpack.c.b16 %v485, %v483
      %v508 = vpack.c.b16 %v488, %v486
      %v509 = vpack.c.b16 %v489, %v487
      %v510 = vpack.c.b16 %v492, %v490
      %v511 = vpack.c.b16 %v493, %v491
      %v512 = vpack.c.b16 %v496, %v494
      %v513 = vpack.c.b16 %v497, %v495
      %530 = vmatpush.bf16.msra.mxu0 %v512
      %531 = vmatpush.bf16.msra.mxu0 %v510
      %532 = vmatpush.bf16.msra.mxu0 %v508
      %533 = vmatpush.bf16.msra.mxu0 %v506
      %534 = vmatpush.bf16.msra.mxu0 %v504
      %535 = vmatpush.bf16.msra.mxu0 %v502
      %536 = vmatpush.bf16.msra.mxu0 %v500
      %537 = vmatpush.bf16.msra.mxu0 %v498
      %538 = vmatmul.bf16.gmra.mxu0 %v239
      %v539 = vpop.f32.mrf.mxu0
      %v540 = vadd.f32 %v392, %v539
      %v541 = vpop.f32.mrf.mxu0
      %v542 = vadd.f32 %v394, %v541
      %543 = vmatmul.bf16.gmra.mxu0 %v240
      %v544 = vpop.f32.mrf.mxu0
      %v545 = vadd.f32 %v397, %v544
      %v546 = vpop.f32.mrf.mxu0
      %v547 = vadd.f32 %v399, %v546
      %548 = vmatmul.bf16.gmra.mxu0 %v241
      %v549 = vpop.f32.mrf.mxu0
      %v550 = vadd.f32 %v402, %v549
      %v551 = vpop.f32.mrf.mxu0
      %v552 = vadd.f32 %v404, %v551
      %553 = vmatmul.bf16.gmra.mxu0 %v242
      %v554 = vpop.f32.mrf.mxu0
      %v555 = vadd.f32 %v407, %v554
      %v556 = vpop.f32.mrf.mxu0
      %v557 = vadd.f32 %v409, %v556
      %558 = vmatmul.bf16.gmra.mxu0 %v243
      %v559 = vpop.f32.mrf.mxu0
      %v560 = vadd.f32 %v412, %v559
      %v561 = vpop.f32.mrf.mxu0
      %v562 = vadd.f32 %v414, %v561
      %563 = vdwg.mxu0
      %564 = vmatpush.bf16.msra.mxu0 %v513
      %565 = vmatpush.bf16.msra.mxu0 %v511
      %566 = vmatpush.bf16.msra.mxu0 %v509
      %567 = vmatpush.bf16.msra.mxu0 %v507
      %568 = vmatpush.bf16.msra.mxu0 %v505
      %569 = vmatpush.bf16.msra.mxu0 %v503
      %570 = vmatpush.bf16.msra.mxu0 %v501
      %571 = vmatpush.bf16.msra.mxu0 %v499
      %572 = vmatmul.bf16.gmra.mxu0 %v239
      %v573 = vpop.f32.mrf.mxu0
      %v574 = vadd.f32 %v426, %v573
      %v575 = vpop.f32.mrf.mxu0
      %v576 = vadd.f32 %v428, %v575
      %577 = vmatmul.bf16.gmra.mxu0 %v240
      %v578 = vpop.f32.mrf.mxu0
      %v579 = vadd.f32 %v431, %v578
      %v580 = vpop.f32.mrf.mxu0
      %v581 = vadd.f32 %v433, %v580
      %582 = vmatmul.bf16.gmra.mxu0 %v241
      %v583 = vpop.f32.mrf.mxu0
      %v584 = vadd.f32 %v436, %v583
      %v585 = vpop.f32.mrf.mxu0
      %v586 = vadd.f32 %v438, %v585
      %587 = vmatmul.bf16.gmra.mxu0 %v242
      %v588 = vpop.f32.mrf.mxu0
      %v589 = vadd.f32 %v441, %v588
      %v590 = vpop.f32.mrf.mxu0
      %v591 = vadd.f32 %v443, %v590
      %592 = vmatmul.bf16.gmra.mxu0 %v243
      %v593 = vpop.f32.mrf.mxu0
      %v594 = vadd.f32 %v446, %v593
      %v595 = vpop.f32.mrf.mxu0
      %v596 = vadd.f32 %v448, %v595
      %597 = vdwg.mxu0
      %v598 = vld [vmem:[%s205 + $0x2] sm:$0xff]
      %v599 = vld [vmem:[%s205 + $0xa] sm:$0xff]
      %v600 = vld [vmem:[%s205 + $0x12] sm:$0xff]
      %v601 = vld [vmem:[%s205 + $0x1a] sm:$0xff]
      %v602 = vld [vmem:[%s205 + $0x22] sm:$0xff]
      %v603 = vld [vmem:[%s205 + $0x2a] sm:$0xff]
      %v604 = vld [vmem:[%s205 + $0x32] sm:$0xff]
      %v605 = vld [vmem:[%s205 + $0x3a] sm:$0xff]
      %v606 = vld [vmem:[%s205 + $0x42] sm:$0xff]
      %v607 = vld [vmem:[%s205 + $0x4a] sm:$0xff]
      %v608 = vmax.f32 %v598, 0.0
      %v609 = vmax.f32 %v599, 0.0
      %v610 = vmax.f32 %v600, 0.0
      %v611 = vmax.f32 %v601, 0.0
      %v612 = vmax.f32 %v602, 0.0
      %v613 = vmax.f32 %v603, 0.0
      %v614 = vmax.f32 %v604, 0.0
      %v615 = vmax.f32 %v605, 0.0
      %v616 = vmax.f32 %v606, 0.0
      %v617 = vmax.f32 %v607, 0.0
      %v618 = vpack.c.bf16 %v609, %v608
      %v619 = vpack.c.bf16 %v611, %v610
      %v620 = vpack.c.bf16 %v613, %v612
      %v621 = vpack.c.bf16 %v615, %v614
      %v622 = vpack.c.bf16 %v617, %v616
      %s623 = scalar_lea.vmem %s1, 256
      %v624 = vld [vmem:[%s623] sm:$0xff]
      %v625 = vld [vmem:[%s623 + $0x8] sm:$0xff]
      %v626 = vld [vmem:[%s623 + $0x10] sm:$0xff]
      %v627 = vld [vmem:[%s623 + $0x18] sm:$0xff]
      %v628 = vld [vmem:[%s623 + $0x20] sm:$0xff]
      %v629 = vld [vmem:[%s623 + $0x28] sm:$0xff]
      %v630 = vld [vmem:[%s623 + $0x30] sm:$0xff]
      %v631 = vld [vmem:[%s623 + $0x38] sm:$0xff]
      %v632 = vld [vmem:[%s623 + $0x40] sm:$0xff]
      %v633 = vld [vmem:[%s623 + $0x48] sm:$0xff]
      %v634 = vld [vmem:[%s623 + $0x50] sm:$0xff]
      %v635 = vld [vmem:[%s623 + $0x58] sm:$0xff]
      %v636 = vld [vmem:[%s623 + $0x60] sm:$0xff]
      %v637 = vld [vmem:[%s623 + $0x68] sm:$0xff]
      %v638 = vld [vmem:[%s623 + $0x70] sm:$0xff]
      %v639 = vld [vmem:[%s623 + $0x78] sm:$0xff]
      %v656 = vunpack.c.l.b16 %v624
      %v657 = vunpack.c.h.b16 %v624
      %v658 = vunpack.c.l.b16 %v625
      %v659 = vunpack.c.h.b16 %v625
      %v660 = vunpack.c.l.b16 %v626
      %v661 = vunpack.c.h.b16 %v626
      %v662 = vunpack.c.l.b16 %v627
      %v663 = vunpack.c.h.b16 %v627
      %v664 = vunpack.c.l.b16 %v628
      %v665 = vunpack.c.h.b16 %v628
      %v666 = vunpack.c.l.b16 %v629
      %v667 = vunpack.c.h.b16 %v629
      %v668 = vunpack.c.l.b16 %v630
      %v669 = vunpack.c.h.b16 %v630
      %v670 = vunpack.c.l.b16 %v631
      %v671 = vunpack.c.h.b16 %v631
      %v672 = vunpack.c.l.b16 %v632
      %v673 = vunpack.c.h.b16 %v632
      %v674 = vunpack.c.l.b16 %v633
      %v675 = vunpack.c.h.b16 %v633
      %v676 = vunpack.c.l.b16 %v634
      %v677 = vunpack.c.h.b16 %v634
      %v678 = vunpack.c.l.b16 %v635
      %v679 = vunpack.c.h.b16 %v635
      %v680 = vunpack.c.l.b16 %v636
      %v681 = vunpack.c.h.b16 %v636
      %v682 = vunpack.c.l.b16 %v637
      %v683 = vunpack.c.h.b16 %v637
      %v684 = vunpack.c.l.b16 %v638
      %v685 = vunpack.c.h.b16 %v638
      %v686 = vunpack.c.l.b16 %v639
      %v687 = vunpack.c.h.b16 %v639
      %v688 = vpack.c.b16 %v658, %v656
      %v689 = vpack.c.b16 %v659, %v657
      %v690 = vpack.c.b16 %v662, %v660
      %v691 = vpack.c.b16 %v663, %v661
      %v692 = vpack.c.b16 %v666, %v664
      %v693 = vpack.c.b16 %v667, %v665
      %v694 = vpack.c.b16 %v670, %v668
      %v695 = vpack.c.b16 %v671, %v669
      %v696 = vpack.c.b16 %v674, %v672
      %v697 = vpack.c.b16 %v675, %v673
      %v698 = vpack.c.b16 %v678, %v676
      %v699 = vpack.c.b16 %v679, %v677
      %v700 = vpack.c.b16 %v682, %v680
      %v701 = vpack.c.b16 %v683, %v681
      %v702 = vpack.c.b16 %v686, %v684
      %v703 = vpack.c.b16 %v687, %v685
      %720 = vmatpush.bf16.msra.mxu0 %v702
      %721 = vmatpush.bf16.msra.mxu0 %v700
      %722 = vmatpush.bf16.msra.mxu0 %v698
      %723 = vmatpush.bf16.msra.mxu0 %v696
      %724 = vmatpush.bf16.msra.mxu0 %v694
      %725 = vmatpush.bf16.msra.mxu0 %v692
      %726 = vmatpush.bf16.msra.mxu0 %v690
      %727 = vmatpush.bf16.msra.mxu0 %v688
      %728 = vmatmul.bf16.gmra.mxu0 %v618
      %v729 = vpop.f32.mrf.mxu0
      %v730 = vadd.f32 0.0, %v729
      %v731 = vpop.f32.mrf.mxu0
      %v732 = vadd.f32 0.0, %v731
      %733 = vmatmul.bf16.gmra.mxu0 %v619
      %v734 = vpop.f32.mrf.mxu0
      %v735 = vadd.f32 0.0, %v734
      %v736 = vpop.f32.mrf.mxu0
      %v737 = vadd.f32 0.0, %v736
      %738 = vmatmul.bf16.gmra.mxu0 %v620
      %v739 = vpop.f32.mrf.mxu0
      %v740 = vadd.f32 0.0, %v739
      %v741 = vpop.f32.mrf.mxu0
      %v742 = vadd.f32 0.0, %v741
      %743 = vmatmul.bf16.gmra.mxu0 %v621
      %v744 = vpop.f32.mrf.mxu0
      %v745 = vadd.f32 0.0, %v744
      %v746 = vpop.f32.mrf.mxu0
      %v747 = vadd.f32 0.0, %v746
      %748 = vmatmul.bf16.gmra.mxu0 %v622
      %v749 = vpop.f32.mrf.mxu0
      %v750 = vadd.f32 0.0, %v749
      %v751 = vpop.f32.mrf.mxu0
      %v752 = vadd.f32 0.0, %v751
      %753 = vdwg.mxu0
      %754 = vmatpush.bf16.msra.mxu0 %v703
      %755 = vmatpush.bf16.msra.mxu0 %v701
      %756 = vmatpush.bf16.msra.mxu0 %v699
      %757 = vmatpush.bf16.msra.mxu0 %v697
      %758 = vmatpush.bf16.msra.mxu0 %v695
      %759 = vmatpush.bf16.msra.mxu0 %v693
      %760 = vmatpush.bf16.msra.mxu0 %v691
      %761 = vmatpush.bf16.msra.mxu0 %v689
      %762 = vmatmul.bf16.gmra.mxu0 %v618
      %v763 = vpop.f32.mrf.mxu0
      %v764 = vadd.f32 0.0, %v763
      %v765 = vpop.f32.mrf.mxu0
      %v766 = vadd.f32 0.0, %v765
      %767 = vmatmul.bf16.gmra.mxu0 %v619
      %v768 = vpop.f32.mrf.mxu0
      %v769 = vadd.f32 0.0, %v768
      %v770 = vpop.f32.mrf.mxu0
      %v771 = vadd.f32 0.0, %v770
      %772 = vmatmul.bf16.gmra.mxu0 %v620
      %v773 = vpop.f32.mrf.mxu0
      %v774 = vadd.f32 0.0, %v773
      %v775 = vpop.f32.mrf.mxu0
      %v776 = vadd.f32 0.0, %v775
      %777 = vmatmul.bf16.gmra.mxu0 %v621
      %v778 = vpop.f32.mrf.mxu0
      %v779 = vadd.f32 0.0, %v778
      %v780 = vpop.f32.mrf.mxu0
      %v781 = vadd.f32 0.0, %v780
      %782 = vmatmul.bf16.gmra.mxu0 %v622
      %v783 = vpop.f32.mrf.mxu0
      %v784 = vadd.f32 0.0, %v783
      %v785 = vpop.f32.mrf.mxu0
      %v786 = vadd.f32 0.0, %v785
      %787 = vdwg.mxu0
      %v788 = vadd.f32 %v540, %v730
      %v789 = vadd.f32 %v574, %v764
      %v790 = vadd.f32 %v542, %v732
      %v791 = vadd.f32 %v576, %v766
      %v792 = vadd.f32 %v545, %v735
      %v793 = vadd.f32 %v579, %v769
      %v794 = vadd.f32 %v547, %v737
      %v795 = vadd.f32 %v581, %v771
      %v796 = vadd.f32 %v550, %v740
      %v797 = vadd.f32 %v584, %v774
      %v798 = vadd.f32 %v552, %v742
      %v799 = vadd.f32 %v586, %v776
      %v800 = vadd.f32 %v555, %v745
      %v801 = vadd.f32 %v589, %v779
      %v802 = vadd.f32 %v557, %v747
      %v803 = vadd.f32 %v591, %v781
      %v804 = vadd.f32 %v560, %v750
      %v805 = vadd.f32 %v594, %v784
      %v806 = vadd.f32 %v562, %v752
      %v807 = vadd.f32 %v596, %v786
      %v808 = vld [vmem:[%s205 + $0xa] sm:$0xff]
      %v809 = vld [vmem:[%s205 + $0x12] sm:$0xff]
      %v810 = vld [vmem:[%s205 + $0x1a] sm:$0xff]
      %v811 = vld [vmem:[%s205 + $0x22] sm:$0xff]
      %v812 = vld [vmem:[%s205 + $0x2a] sm:$0xff]
      %v813 = vld [vmem:[%s205 + $0x32] sm:$0xff]
      %v814 = vld [vmem:[%s205 + $0x3a] sm:$0xff]
      %v815 = vld [vmem:[%s205 + $0x42] sm:$0xff]
      %v816 = vld [vmem:[%s205 + $0x4a] sm:$0xff]
      %v817 = vld [vmem:[%s205 + $0x52] sm:$0xff]
      %v818 = vmax.f32 %v808, 0.0
      %v819 = vmax.f32 %v809, 0.0
      %v820 = vmax.f32 %v810, 0.0
      %v821 = vmax.f32 %v811, 0.0
      %v822 = vmax.f32 %v812, 0.0
      %v823 = vmax.f32 %v813, 0.0
      %v824 = vmax.f32 %v814, 0.0
      %v825 = vmax.f32 %v815, 0.0
      %v826 = vmax.f32 %v816, 0.0
      %v827 = vmax.f32 %v817, 0.0
      %v828 = vpack.c.bf16 %v819, %v818
      %v829 = vpack.c.bf16 %v821, %v820
      %v830 = vpack.c.bf16 %v823, %v822
      %v831 = vpack.c.bf16 %v825, %v824
      %v832 = vpack.c.bf16 %v827, %v826
      %s833 = scalar_lea.vmem %s1, 384
      %v834 = vld [vmem:[%s833] sm:$0xff]
      %v835 = vld [vmem:[%s833 + $0x8] sm:$0xff]
      %v836 = vld [vmem:[%s833 + $0x10] sm:$0xff]
      %v837 = vld [vmem:[%s833 + $0x18] sm:$0xff]
      %v838 = vld [vmem:[%s833 + $0x20] sm:$0xff]
      %v839 = vld [vmem:[%s833 + $0x28] sm:$0xff]
      %v840 = vld [vmem:[%s833 + $0x30] sm:$0xff]
      %v841 = vld [vmem:[%s833 + $0x38] sm:$0xff]
      %v842 = vld [vmem:[%s833 + $0x40] sm:$0xff]
      %v843 = vld [vmem:[%s833 + $0x48] sm:$0xff]
      %v844 = vld [vmem:[%s833 + $0x50] sm:$0xff]
      %v845 = vld [vmem:[%s833 + $0x58] sm:$0xff]
      %v846 = vld [vmem:[%s833 + $0x60] sm:$0xff]
      %v847 = vld [vmem:[%s833 + $0x68] sm:$0xff]
      %v848 = vld [vmem:[%s833 + $0x70] sm:$0xff]
      %v849 = vld [vmem:[%s833 + $0x78] sm:$0xff]
      %v866 = vunpack.c.l.b16 %v834
      %v867 = vunpack.c.h.b16 %v834
      %v868 = vunpack.c.l.b16 %v835
      %v869 = vunpack.c.h.b16 %v835
      %v870 = vunpack.c.l.b16 %v836
      %v871 = vunpack.c.h.b16 %v836
      %v872 = vunpack.c.l.b16 %v837
      %v873 = vunpack.c.h.b16 %v837
      %v874 = vunpack.c.l.b16 %v838
      %v875 = vunpack.c.h.b16 %v838
      %v876 = vunpack.c.l.b16 %v839
      %v877 = vunpack.c.h.b16 %v839
      %v878 = vunpack.c.l.b16 %v840
      %v879 = vunpack.c.h.b16 %v840
      %v880 = vunpack.c.l.b16 %v841
      %v881 = vunpack.c.h.b16 %v841
      %v882 = vunpack.c.l.b16 %v842
      %v883 = vunpack.c.h.b16 %v842
      %v884 = vunpack.c.l.b16 %v843
      %v885 = vunpack.c.h.b16 %v843
      %v886 = vunpack.c.l.b16 %v844
      %v887 = vunpack.c.h.b16 %v844
      %v888 = vunpack.c.l.b16 %v845
      %v889 = vunpack.c.h.b16 %v845
      %v890 = vunpack.c.l.b16 %v846
      %v891 = vunpack.c.h.b16 %v846
      %v892 = vunpack.c.l.b16 %v847
      %v893 = vunpack.c.h.b16 %v847
      %v894 = vunpack.c.l.b16 %v848
      %v895 = vunpack.c.h.b16 %v848
      %v896 = vunpack.c.l.b16 %v849
      %v897 = vunpack.c.h.b16 %v849
      %v898 = vpack.c.b16 %v868, %v866
      %v899 = vpack.c.b16 %v869, %v867
      %v900 = vpack.c.b16 %v872, %v870
      %v901 = vpack.c.b16 %v873, %v871
      %v902 = vpack.c.b16 %v876, %v874
      %v903 = vpack.c.b16 %v877, %v875
      %v904 = vpack.c.b16 %v880, %v878
      %v905 = vpack.c.b16 %v881, %v879
      %v906 = vpack.c.b16 %v884, %v882
      %v907 = vpack.c.b16 %v885, %v883
      %v908 = vpack.c.b16 %v888, %v886
      %v909 = vpack.c.b16 %v889, %v887
      %v910 = vpack.c.b16 %v892, %v890
      %v911 = vpack.c.b16 %v893, %v891
      %v912 = vpack.c.b16 %v896, %v894
      %v913 = vpack.c.b16 %v897, %v895
      %930 = vmatpush.bf16.msra.mxu0 %v912
      %931 = vmatpush.bf16.msra.mxu0 %v910
      %932 = vmatpush.bf16.msra.mxu0 %v908
      %933 = vmatpush.bf16.msra.mxu0 %v906
      %934 = vmatpush.bf16.msra.mxu0 %v904
      %935 = vmatpush.bf16.msra.mxu0 %v902
      %936 = vmatpush.bf16.msra.mxu0 %v900
      %937 = vmatpush.bf16.msra.mxu0 %v898
      %938 = vmatmul.bf16.gmra.mxu0 %v828
      %v939 = vpop.f32.mrf.mxu0
      %v940 = vadd.f32 0.0, %v939
      %v941 = vpop.f32.mrf.mxu0
      %v942 = vadd.f32 0.0, %v941
      %943 = vmatmul.bf16.gmra.mxu0 %v829
      %v944 = vpop.f32.mrf.mxu0
      %v945 = vadd.f32 0.0, %v944
      %v946 = vpop.f32.mrf.mxu0
      %v947 = vadd.f32 0.0, %v946
      %948 = vmatmul.bf16.gmra.mxu0 %v830
      %v949 = vpop.f32.mrf.mxu0
      %v950 = vadd.f32 0.0, %v949
      %v951 = vpop.f32.mrf.mxu0
      %v952 = vadd.f32 0.0, %v951
      %953 = vmatmul.bf16.gmra.mxu0 %v831
      %v954 = vpop.f32.mrf.mxu0
      %v955 = vadd.f32 0.0, %v954
      %v956 = vpop.f32.mrf.mxu0
      %v957 = vadd.f32 0.0, %v956
      %958 = vmatmul.bf16.gmra.mxu0 %v832
      %v959 = vpop.f32.mrf.mxu0
      %v960 = vadd.f32 0.0, %v959
      %v961 = vpop.f32.mrf.mxu0
      %v962 = vadd.f32 0.0, %v961
      %963 = vdwg.mxu0
      %964 = vmatpush.bf16.msra.mxu0 %v913
      %965 = vmatpush.bf16.msra.mxu0 %v911
      %966 = vmatpush.bf16.msra.mxu0 %v909
      %967 = vmatpush.bf16.msra.mxu0 %v907
      %968 = vmatpush.bf16.msra.mxu0 %v905
      %969 = vmatpush.bf16.msra.mxu0 %v903
      %970 = vmatpush.bf16.msra.mxu0 %v901
      %971 = vmatpush.bf16.msra.mxu0 %v899
      %972 = vmatmul.bf16.gmra.mxu0 %v828
      %v973 = vpop.f32.mrf.mxu0
      %v974 = vadd.f32 0.0, %v973
      %v975 = vpop.f32.mrf.mxu0
      %v976 = vadd.f32 0.0, %v975
      %977 = vmatmul.bf16.gmra.mxu0 %v829
      %v978 = vpop.f32.mrf.mxu0
      %v979 = vadd.f32 0.0, %v978
      %v980 = vpop.f32.mrf.mxu0
      %v981 = vadd.f32 0.0, %v980
      %982 = vmatmul.bf16.gmra.mxu0 %v830
      %v983 = vpop.f32.mrf.mxu0
      %v984 = vadd.f32 0.0, %v983
      %v985 = vpop.f32.mrf.mxu0
      %v986 = vadd.f32 0.0, %v985
      %987 = vmatmul.bf16.gmra.mxu0 %v831
      %v988 = vpop.f32.mrf.mxu0
      %v989 = vadd.f32 0.0, %v988
      %v990 = vpop.f32.mrf.mxu0
      %v991 = vadd.f32 0.0, %v990
      %992 = vmatmul.bf16.gmra.mxu0 %v832
      %v993 = vpop.f32.mrf.mxu0
      %v994 = vadd.f32 0.0, %v993
      %v995 = vpop.f32.mrf.mxu0
      %v996 = vadd.f32 0.0, %v995
      %997 = vdwg.mxu0
      %v998 = vadd.f32 %v788, %v940
      %v999 = vadd.f32 %v789, %v974
      %v1000 = vadd.f32 %v790, %v942
      %v1001 = vadd.f32 %v791, %v976
      %v1002 = vadd.f32 %v792, %v945
      %v1003 = vadd.f32 %v793, %v979
      %v1004 = vadd.f32 %v794, %v947
      %v1005 = vadd.f32 %v795, %v981
      %v1006 = vadd.f32 %v796, %v950
      %v1007 = vadd.f32 %v797, %v984
      %v1008 = vadd.f32 %v798, %v952
      %v1009 = vadd.f32 %v799, %v986
      %v1010 = vadd.f32 %v800, %v955
      %v1011 = vadd.f32 %v801, %v989
      %v1012 = vadd.f32 %v802, %v957
      %v1013 = vadd.f32 %v803, %v991
      %v1014 = vadd.f32 %v804, %v960
      %v1015 = vadd.f32 %v805, %v994
      %v1016 = vadd.f32 %v806, %v962
      %v1017 = vadd.f32 %v807, %v996
      %v1018 = vld [vmem:[%s205 + $0xb] sm:$0xff]
      %v1019 = vld [vmem:[%s205 + $0x13] sm:$0xff]
      %v1020 = vld [vmem:[%s205 + $0x1b] sm:$0xff]
      %v1021 = vld [vmem:[%s205 + $0x23] sm:$0xff]
      %v1022 = vld [vmem:[%s205 + $0x2b] sm:$0xff]
      %v1023 = vld [vmem:[%s205 + $0x33] sm:$0xff]
      %v1024 = vld [vmem:[%s205 + $0x3b] sm:$0xff]
      %v1025 = vld [vmem:[%s205 + $0x43] sm:$0xff]
      %v1026 = vld [vmem:[%s205 + $0x4b] sm:$0xff]
      %v1027 = vld [vmem:[%s205 + $0x53] sm:$0xff]
      %v1028 = vmax.f32 %v1018, 0.0
      %v1029 = vmax.f32 %v1019, 0.0
      %v1030 = vmax.f32 %v1020, 0.0
      %v1031 = vmax.f32 %v1021, 0.0
      %v1032 = vmax.f32 %v1022, 0.0
      %v1033 = vmax.f32 %v1023, 0.0
      %v1034 = vmax.f32 %v1024, 0.0
      %v1035 = vmax.f32 %v1025, 0.0
      %v1036 = vmax.f32 %v1026, 0.0
      %v1037 = vmax.f32 %v1027, 0.0
      %v1038 = vpack.c.bf16 %v1029, %v1028
      %v1039 = vpack.c.bf16 %v1031, %v1030
      %v1040 = vpack.c.bf16 %v1033, %v1032
      %v1041 = vpack.c.bf16 %v1035, %v1034
      %v1042 = vpack.c.bf16 %v1037, %v1036
      %s1043 = scalar_lea.vmem %s1, 512
      %v1044 = vld [vmem:[%s1043] sm:$0xff]
      %v1045 = vld [vmem:[%s1043 + $0x8] sm:$0xff]
      %v1046 = vld [vmem:[%s1043 + $0x10] sm:$0xff]
      %v1047 = vld [vmem:[%s1043 + $0x18] sm:$0xff]
      %v1048 = vld [vmem:[%s1043 + $0x20] sm:$0xff]
      %v1049 = vld [vmem:[%s1043 + $0x28] sm:$0xff]
      %v1050 = vld [vmem:[%s1043 + $0x30] sm:$0xff]
      %v1051 = vld [vmem:[%s1043 + $0x38] sm:$0xff]
      %v1052 = vld [vmem:[%s1043 + $0x40] sm:$0xff]
      %v1053 = vld [vmem:[%s1043 + $0x48] sm:$0xff]
      %v1054 = vld [vmem:[%s1043 + $0x50] sm:$0xff]
      %v1055 = vld [vmem:[%s1043 + $0x58] sm:$0xff]
      %v1056 = vld [vmem:[%s1043 + $0x60] sm:$0xff]
      %v1057 = vld [vmem:[%s1043 + $0x68] sm:$0xff]
      %v1058 = vld [vmem:[%s1043 + $0x70] sm:$0xff]
      %v1059 = vld [vmem:[%s1043 + $0x78] sm:$0xff]
      %v1076 = vunpack.c.l.b16 %v1044
      %v1077 = vunpack.c.h.b16 %v1044
      %v1078 = vunpack.c.l.b16 %v1045
      %v1079 = vunpack.c.h.b16 %v1045
      %v1080 = vunpack.c.l.b16 %v1046
      %v1081 = vunpack.c.h.b16 %v1046
      %v1082 = vunpack.c.l.b16 %v1047
      %v1083 = vunpack.c.h.b16 %v1047
      %v1084 = vunpack.c.l.b16 %v1048
      %v1085 = vunpack.c.h.b16 %v1048
      %v1086 = vunpack.c.l.b16 %v1049
      %v1087 = vunpack.c.h.b16 %v1049
      %v1088 = vunpack.c.l.b16 %v1050
      %v1089 = vunpack.c.h.b16 %v1050
      %v1090 = vunpack.c.l.b16 %v1051
      %v1091 = vunpack.c.h.b16 %v1051
      %v1092 = vunpack.c.l.b16 %v1052
      %v1093 = vunpack.c.h.b16 %v1052
      %v1094 = vunpack.c.l.b16 %v1053
      %v1095 = vunpack.c.h.b16 %v1053
      %v1096 = vunpack.c.l.b16 %v1054
      %v1097 = vunpack.c.h.b16 %v1054
      %v1098 = vunpack.c.l.b16 %v1055
      %v1099 = vunpack.c.h.b16 %v1055
      %v1100 = vunpack.c.l.b16 %v1056
      %v1101 = vunpack.c.h.b16 %v1056
      %v1102 = vunpack.c.l.b16 %v1057
      %v1103 = vunpack.c.h.b16 %v1057
      %v1104 = vunpack.c.l.b16 %v1058
      %v1105 = vunpack.c.h.b16 %v1058
      %v1106 = vunpack.c.l.b16 %v1059
      %v1107 = vunpack.c.h.b16 %v1059
      %v1108 = vpack.c.b16 %v1078, %v1076
      %v1109 = vpack.c.b16 %v1079, %v1077
      %v1110 = vpack.c.b16 %v1082, %v1080
      %v1111 = vpack.c.b16 %v1083, %v1081
      %v1112 = vpack.c.b16 %v1086, %v1084
      %v1113 = vpack.c.b16 %v1087, %v1085
      %v1114 = vpack.c.b16 %v1090, %v1088
      %v1115 = vpack.c.b16 %v1091, %v1089
      %v1116 = vpack.c.b16 %v1094, %v1092
      %v1117 = vpack.c.b16 %v1095, %v1093
      %v1118 = vpack.c.b16 %v1098, %v1096
      %v1119 = vpack.c.b16 %v1099, %v1097
      %v1120 = vpack.c.b16 %v1102, %v1100
      %v1121 = vpack.c.b16 %v1103, %v1101
      %v1122 = vpack.c.b16 %v1106, %v1104
      %v1123 = vpack.c.b16 %v1107, %v1105
      %1140 = vmatpush.bf16.msra.mxu0 %v1122
      %1141 = vmatpush.bf16.msra.mxu0 %v1120
      %1142 = vmatpush.bf16.msra.mxu0 %v1118
      %1143 = vmatpush.bf16.msra.mxu0 %v1116
      %1144 = vmatpush.bf16.msra.mxu0 %v1114
      %1145 = vmatpush.bf16.msra.mxu0 %v1112
      %1146 = vmatpush.bf16.msra.mxu0 %v1110
      %1147 = vmatpush.bf16.msra.mxu0 %v1108
      %1148 = vmatmul.bf16.gmra.mxu0 %v1038
      %v1149 = vpop.f32.mrf.mxu0
      %v1150 = vadd.f32 0.0, %v1149
      %v1151 = vpop.f32.mrf.mxu0
      %v1152 = vadd.f32 0.0, %v1151
      %1153 = vmatmul.bf16.gmra.mxu0 %v1039
      %v1154 = vpop.f32.mrf.mxu0
      %v1155 = vadd.f32 0.0, %v1154
      %v1156 = vpop.f32.mrf.mxu0
      %v1157 = vadd.f32 0.0, %v1156
      %1158 = vmatmul.bf16.gmra.mxu0 %v1040
      %v1159 = vpop.f32.mrf.mxu0
      %v1160 = vadd.f32 0.0, %v1159
      %v1161 = vpop.f32.mrf.mxu0
      %v1162 = vadd.f32 0.0, %v1161
      %1163 = vmatmul.bf16.gmra.mxu0 %v1041
      %v1164 = vpop.f32.mrf.mxu0
      %v1165 = vadd.f32 0.0, %v1164
      %v1166 = vpop.f32.mrf.mxu0
      %v1167 = vadd.f32 0.0, %v1166
      %1168 = vmatmul.bf16.gmra.mxu0 %v1042
      %v1169 = vpop.f32.mrf.mxu0
      %v1170 = vadd.f32 0.0, %v1169
      %v1171 = vpop.f32.mrf.mxu0
      %v1172 = vadd.f32 0.0, %v1171
      %1173 = vdwg.mxu0
      %1174 = vmatpush.bf16.msra.mxu0 %v1123
      %1175 = vmatpush.bf16.msra.mxu0 %v1121
      %1176 = vmatpush.bf16.msra.mxu0 %v1119
      %1177 = vmatpush.bf16.msra.mxu0 %v1117
      %1178 = vmatpush.bf16.msra.mxu0 %v1115
      %1179 = vmatpush.bf16.msra.mxu0 %v1113
      %1180 = vmatpush.bf16.msra.mxu0 %v1111
      %1181 = vmatpush.bf16.msra.mxu0 %v1109
      %1182 = vmatmul.bf16.gmra.mxu0 %v1038
      %v1183 = vpop.f32.mrf.mxu0
      %v1184 = vadd.f32 0.0, %v1183
      %v1185 = vpop.f32.mrf.mxu0
      %v1186 = vadd.f32 0.0, %v1185
      %1187 = vmatmul.bf16.gmra.mxu0 %v1039
      %v1188 = vpop.f32.mrf.mxu0
      %v1189 = vadd.f32 0.0, %v1188
      %v1190 = vpop.f32.mrf.mxu0
      %v1191 = vadd.f32 0.0, %v1190
      %1192 = vmatmul.bf16.gmra.mxu0 %v1040
      %v1193 = vpop.f32.mrf.mxu0
      %v1194 = vadd.f32 0.0, %v1193
      %v1195 = vpop.f32.mrf.mxu0
      %v1196 = vadd.f32 0.0, %v1195
      %1197 = vmatmul.bf16.gmra.mxu0 %v1041
      %v1198 = vpop.f32.mrf.mxu0
      %v1199 = vadd.f32 0.0, %v1198
      %v1200 = vpop.f32.mrf.mxu0
      %v1201 = vadd.f32 0.0, %v1200
      %1202 = vmatmul.bf16.gmra.mxu0 %v1042
      %v1203 = vpop.f32.mrf.mxu0
      %v1204 = vadd.f32 0.0, %v1203
      %v1205 = vpop.f32.mrf.mxu0
      %v1206 = vadd.f32 0.0, %v1205
      %1207 = vdwg.mxu0
      %v1208 = vadd.f32 %v998, %v1150
      %v1209 = vadd.f32 %v999, %v1184
      %v1210 = vadd.f32 %v1000, %v1152
      %v1211 = vadd.f32 %v1001, %v1186
      %v1212 = vadd.f32 %v1002, %v1155
      %v1213 = vadd.f32 %v1003, %v1189
      %v1214 = vadd.f32 %v1004, %v1157
      %v1215 = vadd.f32 %v1005, %v1191
      %v1216 = vadd.f32 %v1006, %v1160
      %v1217 = vadd.f32 %v1007, %v1194
      %v1218 = vadd.f32 %v1008, %v1162
      %v1219 = vadd.f32 %v1009, %v1196
      %v1220 = vadd.f32 %v1010, %v1165
      %v1221 = vadd.f32 %v1011, %v1199
      %v1222 = vadd.f32 %v1012, %v1167
      %v1223 = vadd.f32 %v1013, %v1201
      %v1224 = vadd.f32 %v1014, %v1170
      %v1225 = vadd.f32 %v1015, %v1204
      %v1226 = vadd.f32 %v1016, %v1172
      %v1227 = vadd.f32 %v1017, %v1206
      %v1228 = vld [vmem:[%s205 + $0xc] sm:$0xff]
      %v1229 = vld [vmem:[%s205 + $0x14] sm:$0xff]
      %v1230 = vld [vmem:[%s205 + $0x1c] sm:$0xff]
      %v1231 = vld [vmem:[%s205 + $0x24] sm:$0xff]
      %v1232 = vld [vmem:[%s205 + $0x2c] sm:$0xff]
      %v1233 = vld [vmem:[%s205 + $0x34] sm:$0xff]
      %v1234 = vld [vmem:[%s205 + $0x3c] sm:$0xff]
      %v1235 = vld [vmem:[%s205 + $0x44] sm:$0xff]
      %v1236 = vld [vmem:[%s205 + $0x4c] sm:$0xff]
      %v1237 = vld [vmem:[%s205 + $0x54] sm:$0xff]
      %v1238 = vmax.f32 %v1228, 0.0
      %v1239 = vmax.f32 %v1229, 0.0
      %v1240 = vmax.f32 %v1230, 0.0
      %v1241 = vmax.f32 %v1231, 0.0
      %v1242 = vmax.f32 %v1232, 0.0
      %v1243 = vmax.f32 %v1233, 0.0
      %v1244 = vmax.f32 %v1234, 0.0
      %v1245 = vmax.f32 %v1235, 0.0
      %v1246 = vmax.f32 %v1236, 0.0
      %v1247 = vmax.f32 %v1237, 0.0
      %v1248 = vpack.c.bf16 %v1239, %v1238
      %v1249 = vpack.c.bf16 %v1241, %v1240
      %v1250 = vpack.c.bf16 %v1243, %v1242
      %v1251 = vpack.c.bf16 %v1245, %v1244
      %v1252 = vpack.c.bf16 %v1247, %v1246
      %s1253 = scalar_lea.vmem %s1, 640
      %v1254 = vld [vmem:[%s1253] sm:$0xff]
      %v1255 = vld [vmem:[%s1253 + $0x8] sm:$0xff]
      %v1256 = vld [vmem:[%s1253 + $0x10] sm:$0xff]
      %v1257 = vld [vmem:[%s1253 + $0x18] sm:$0xff]
      %v1258 = vld [vmem:[%s1253 + $0x20] sm:$0xff]
      %v1259 = vld [vmem:[%s1253 + $0x28] sm:$0xff]
      %v1260 = vld [vmem:[%s1253 + $0x30] sm:$0xff]
      %v1261 = vld [vmem:[%s1253 + $0x38] sm:$0xff]
      %v1262 = vld [vmem:[%s1253 + $0x40] sm:$0xff]
      %v1263 = vld [vmem:[%s1253 + $0x48] sm:$0xff]
      %v1264 = vld [vmem:[%s1253 + $0x50] sm:$0xff]
      %v1265 = vld [vmem:[%s1253 + $0x58] sm:$0xff]
      %v1266 = vld [vmem:[%s1253 + $0x60] sm:$0xff]
      %v1267 = vld [vmem:[%s1253 + $0x68] sm:$0xff]
      %v1268 = vld [vmem:[%s1253 + $0x70] sm:$0xff]
      %v1269 = vld [vmem:[%s1253 + $0x78] sm:$0xff]
      %v1286 = vunpack.c.l.b16 %v1254
      %v1287 = vunpack.c.h.b16 %v1254
      %v1288 = vunpack.c.l.b16 %v1255
      %v1289 = vunpack.c.h.b16 %v1255
      %v1290 = vunpack.c.l.b16 %v1256
      %v1291 = vunpack.c.h.b16 %v1256
      %v1292 = vunpack.c.l.b16 %v1257
      %v1293 = vunpack.c.h.b16 %v1257
      %v1294 = vunpack.c.l.b16 %v1258
      %v1295 = vunpack.c.h.b16 %v1258
      %v1296 = vunpack.c.l.b16 %v1259
      %v1297 = vunpack.c.h.b16 %v1259
      %v1298 = vunpack.c.l.b16 %v1260
      %v1299 = vunpack.c.h.b16 %v1260
      %v1300 = vunpack.c.l.b16 %v1261
      %v1301 = vunpack.c.h.b16 %v1261
      %v1302 = vunpack.c.l.b16 %v1262
      %v1303 = vunpack.c.h.b16 %v1262
      %v1304 = vunpack.c.l.b16 %v1263
      %v1305 = vunpack.c.h.b16 %v1263
      %v1306 = vunpack.c.l.b16 %v1264
      %v1307 = vunpack.c.h.b16 %v1264
      %v1308 = vunpack.c.l.b16 %v1265
      %v1309 = vunpack.c.h.b16 %v1265
      %v1310 = vunpack.c.l.b16 %v1266
      %v1311 = vunpack.c.h.b16 %v1266
      %v1312 = vunpack.c.l.b16 %v1267
      %v1313 = vunpack.c.h.b16 %v1267
      %v1314 = vunpack.c.l.b16 %v1268
      %v1315 = vunpack.c.h.b16 %v1268
      %v1316 = vunpack.c.l.b16 %v1269
      %v1317 = vunpack.c.h.b16 %v1269
      %v1318 = vpack.c.b16 %v1288, %v1286
      %v1319 = vpack.c.b16 %v1289, %v1287
      %v1320 = vpack.c.b16 %v1292, %v1290
      %v1321 = vpack.c.b16 %v1293, %v1291
      %v1322 = vpack.c.b16 %v1296, %v1294
      %v1323 = vpack.c.b16 %v1297, %v1295
      %v1324 = vpack.c.b16 %v1300, %v1298
      %v1325 = vpack.c.b16 %v1301, %v1299
      %v1326 = vpack.c.b16 %v1304, %v1302
      %v1327 = vpack.c.b16 %v1305, %v1303
      %v1328 = vpack.c.b16 %v1308, %v1306
      %v1329 = vpack.c.b16 %v1309, %v1307
      %v1330 = vpack.c.b16 %v1312, %v1310
      %v1331 = vpack.c.b16 %v1313, %v1311
      %v1332 = vpack.c.b16 %v1316, %v1314
      %v1333 = vpack.c.b16 %v1317, %v1315
      %1350 = vmatpush.bf16.msra.mxu0 %v1332
      %1351 = vmatpush.bf16.msra.mxu0 %v1330
      %1352 = vmatpush.bf16.msra.mxu0 %v1328
      %1353 = vmatpush.bf16.msra.mxu0 %v1326
      %1354 = vmatpush.bf16.msra.mxu0 %v1324
      %1355 = vmatpush.bf16.msra.mxu0 %v1322
      %1356 = vmatpush.bf16.msra.mxu0 %v1320
      %1357 = vmatpush.bf16.msra.mxu0 %v1318
      %1358 = vmatmul.bf16.gmra.mxu0 %v1248
      %v1359 = vpop.f32.mrf.mxu0
      %v1360 = vadd.f32 0.0, %v1359
      %v1361 = vpop.f32.mrf.mxu0
      %v1362 = vadd.f32 0.0, %v1361
      %1363 = vmatmul.bf16.gmra.mxu0 %v1249
      %v1364 = vpop.f32.mrf.mxu0
      %v1365 = vadd.f32 0.0, %v1364
      %v1366 = vpop.f32.mrf.mxu0
      %v1367 = vadd.f32 0.0, %v1366
      %1368 = vmatmul.bf16.gmra.mxu0 %v1250
      %v1369 = vpop.f32.mrf.mxu0
      %v1370 = vadd.f32 0.0, %v1369
      %v1371 = vpop.f32.mrf.mxu0
      %v1372 = vadd.f32 0.0, %v1371
      %1373 = vmatmul.bf16.gmra.mxu0 %v1251
      %v1374 = vpop.f32.mrf.mxu0
      %v1375 = vadd.f32 0.0, %v1374
      %v1376 = vpop.f32.mrf.mxu0
      %v1377 = vadd.f32 0.0, %v1376
      %1378 = vmatmul.bf16.gmra.mxu0 %v1252
      %v1379 = vpop.f32.mrf.mxu0
      %v1380 = vadd.f32 0.0, %v1379
      %v1381 = vpop.f32.mrf.mxu0
      %v1382 = vadd.f32 0.0, %v1381
      %1383 = vdwg.mxu0
      %1384 = vmatpush.bf16.msra.mxu0 %v1333
      %1385 = vmatpush.bf16.msra.mxu0 %v1331
      %1386 = vmatpush.bf16.msra.mxu0 %v1329
      %1387 = vmatpush.bf16.msra.mxu0 %v1327
      %1388 = vmatpush.bf16.msra.mxu0 %v1325
      %1389 = vmatpush.bf16.msra.mxu0 %v1323
      %1390 = vmatpush.bf16.msra.mxu0 %v1321
      %1391 = vmatpush.bf16.msra.mxu0 %v1319
      %1392 = vmatmul.bf16.gmra.mxu0 %v1248
      %v1393 = vpop.f32.mrf.mxu0
      %v1394 = vadd.f32 0.0, %v1393
      %v1395 = vpop.f32.mrf.mxu0
      %v1396 = vadd.f32 0.0, %v1395
      %1397 = vmatmul.bf16.gmra.mxu0 %v1249
      %v1398 = vpop.f32.mrf.mxu0
      %v1399 = vadd.f32 0.0, %v1398
      %v1400 = vpop.f32.mrf.mxu0
      %v1401 = vadd.f32 0.0, %v1400
      %1402 = vmatmul.bf16.gmra.mxu0 %v1250
      %v1403 = vpop.f32.mrf.mxu0
      %v1404 = vadd.f32 0.0, %v1403
      %v1405 = vpop.f32.mrf.mxu0
      %v1406 = vadd.f32 0.0, %v1405
      %1407 = vmatmul.bf16.gmra.mxu0 %v1251
      %v1408 = vpop.f32.mrf.mxu0
      %v1409 = vadd.f32 0.0, %v1408
      %v1410 = vpop.f32.mrf.mxu0
      %v1411 = vadd.f32 0.0, %v1410
      %1412 = vmatmul.bf16.gmra.mxu0 %v1252
      %v1413 = vpop.f32.mrf.mxu0
      %v1414 = vadd.f32 0.0, %v1413
      %v1415 = vpop.f32.mrf.mxu0
      %v1416 = vadd.f32 0.0, %v1415
      %1417 = vdwg.mxu0
      %v1418 = vadd.f32 %v1208, %v1360
      %v1419 = vadd.f32 %v1209, %v1394
      %v1420 = vadd.f32 %v1210, %v1362
      %v1421 = vadd.f32 %v1211, %v1396
      %v1422 = vadd.f32 %v1212, %v1365
      %v1423 = vadd.f32 %v1213, %v1399
      %v1424 = vadd.f32 %v1214, %v1367
      %v1425 = vadd.f32 %v1215, %v1401
      %v1426 = vadd.f32 %v1216, %v1370
      %v1427 = vadd.f32 %v1217, %v1404
      %v1428 = vadd.f32 %v1218, %v1372
      %v1429 = vadd.f32 %v1219, %v1406
      %v1430 = vadd.f32 %v1220, %v1375
      %v1431 = vadd.f32 %v1221, %v1409
      %v1432 = vadd.f32 %v1222, %v1377
      %v1433 = vadd.f32 %v1223, %v1411
      %v1434 = vadd.f32 %v1224, %v1380
      %v1435 = vadd.f32 %v1225, %v1414
      %v1436 = vadd.f32 %v1226, %v1382
      %v1437 = vadd.f32 %v1227, %v1416
      %v1438 = vld [vmem:[%s205 + $0x14] sm:$0xff]
      %v1439 = vld [vmem:[%s205 + $0x1c] sm:$0xff]
      %v1440 = vld [vmem:[%s205 + $0x24] sm:$0xff]
      %v1441 = vld [vmem:[%s205 + $0x2c] sm:$0xff]
      %v1442 = vld [vmem:[%s205 + $0x34] sm:$0xff]
      %v1443 = vld [vmem:[%s205 + $0x3c] sm:$0xff]
      %v1444 = vld [vmem:[%s205 + $0x44] sm:$0xff]
      %v1445 = vld [vmem:[%s205 + $0x4c] sm:$0xff]
      %v1446 = vld [vmem:[%s205 + $0x54] sm:$0xff]
      %v1447 = vld [vmem:[%s205 + $0x5c] sm:$0xff]
      %v1448 = vmax.f32 %v1438, 0.0
      %v1449 = vmax.f32 %v1439, 0.0
      %v1450 = vmax.f32 %v1440, 0.0
      %v1451 = vmax.f32 %v1441, 0.0
      %v1452 = vmax.f32 %v1442, 0.0
      %v1453 = vmax.f32 %v1443, 0.0
      %v1454 = vmax.f32 %v1444, 0.0
      %v1455 = vmax.f32 %v1445, 0.0
      %v1456 = vmax.f32 %v1446, 0.0
      %v1457 = vmax.f32 %v1447, 0.0
      %v1458 = vpack.c.bf16 %v1449, %v1448
      %v1459 = vpack.c.bf16 %v1451, %v1450
      %v1460 = vpack.c.bf16 %v1453, %v1452
      %v1461 = vpack.c.bf16 %v1455, %v1454
      %v1462 = vpack.c.bf16 %v1457, %v1456
      %s1463 = scalar_lea.vmem %s1, 768
      %v1464 = vld [vmem:[%s1463] sm:$0xff]
      %v1465 = vld [vmem:[%s1463 + $0x8] sm:$0xff]
      %v1466 = vld [vmem:[%s1463 + $0x10] sm:$0xff]
      %v1467 = vld [vmem:[%s1463 + $0x18] sm:$0xff]
      %v1468 = vld [vmem:[%s1463 + $0x20] sm:$0xff]
      %v1469 = vld [vmem:[%s1463 + $0x28] sm:$0xff]
      %v1470 = vld [vmem:[%s1463 + $0x30] sm:$0xff]
      %v1471 = vld [vmem:[%s1463 + $0x38] sm:$0xff]
      %v1472 = vld [vmem:[%s1463 + $0x40] sm:$0xff]
      %v1473 = vld [vmem:[%s1463 + $0x48] sm:$0xff]
      %v1474 = vld [vmem:[%s1463 + $0x50] sm:$0xff]
      %v1475 = vld [vmem:[%s1463 + $0x58] sm:$0xff]
      %v1476 = vld [vmem:[%s1463 + $0x60] sm:$0xff]
      %v1477 = vld [vmem:[%s1463 + $0x68] sm:$0xff]
      %v1478 = vld [vmem:[%s1463 + $0x70] sm:$0xff]
      %v1479 = vld [vmem:[%s1463 + $0x78] sm:$0xff]
      %v1496 = vunpack.c.l.b16 %v1464
      %v1497 = vunpack.c.h.b16 %v1464
      %v1498 = vunpack.c.l.b16 %v1465
      %v1499 = vunpack.c.h.b16 %v1465
      %v1500 = vunpack.c.l.b16 %v1466
      %v1501 = vunpack.c.h.b16 %v1466
      %v1502 = vunpack.c.l.b16 %v1467
      %v1503 = vunpack.c.h.b16 %v1467
      %v1504 = vunpack.c.l.b16 %v1468
      %v1505 = vunpack.c.h.b16 %v1468
      %v1506 = vunpack.c.l.b16 %v1469
      %v1507 = vunpack.c.h.b16 %v1469
      %v1508 = vunpack.c.l.b16 %v1470
      %v1509 = vunpack.c.h.b16 %v1470
      %v1510 = vunpack.c.l.b16 %v1471
      %v1511 = vunpack.c.h.b16 %v1471
      %v1512 = vunpack.c.l.b16 %v1472
      %v1513 = vunpack.c.h.b16 %v1472
      %v1514 = vunpack.c.l.b16 %v1473
      %v1515 = vunpack.c.h.b16 %v1473
      %v1516 = vunpack.c.l.b16 %v1474
      %v1517 = vunpack.c.h.b16 %v1474
      %v1518 = vunpack.c.l.b16 %v1475
      %v1519 = vunpack.c.h.b16 %v1475
      %v1520 = vunpack.c.l.b16 %v1476
      %v1521 = vunpack.c.h.b16 %v1476
      %v1522 = vunpack.c.l.b16 %v1477
      %v1523 = vunpack.c.h.b16 %v1477
      %v1524 = vunpack.c.l.b16 %v1478
      %v1525 = vunpack.c.h.b16 %v1478
      %v1526 = vunpack.c.l.b16 %v1479
      %v1527 = vunpack.c.h.b16 %v1479
      %v1528 = vpack.c.b16 %v1498, %v1496
      %v1529 = vpack.c.b16 %v1499, %v1497
      %v1530 = vpack.c.b16 %v1502, %v1500
      %v1531 = vpack.c.b16 %v1503, %v1501
      %v1532 = vpack.c.b16 %v1506, %v1504
      %v1533 = vpack.c.b16 %v1507, %v1505
      %v1534 = vpack.c.b16 %v1510, %v1508
      %v1535 = vpack.c.b16 %v1511, %v1509
      %v1536 = vpack.c.b16 %v1514, %v1512
      %v1537 = vpack.c.b16 %v1515, %v1513
      %v1538 = vpack.c.b16 %v1518, %v1516
      %v1539 = vpack.c.b16 %v1519, %v1517
      %v1540 = vpack.c.b16 %v1522, %v1520
      %v1541 = vpack.c.b16 %v1523, %v1521
      %v1542 = vpack.c.b16 %v1526, %v1524
      %v1543 = vpack.c.b16 %v1527, %v1525
      %1560 = vmatpush.bf16.msra.mxu0 %v1542
      %1561 = vmatpush.bf16.msra.mxu0 %v1540
      %1562 = vmatpush.bf16.msra.mxu0 %v1538
      %1563 = vmatpush.bf16.msra.mxu0 %v1536
      %1564 = vmatpush.bf16.msra.mxu0 %v1534
      %1565 = vmatpush.bf16.msra.mxu0 %v1532
      %1566 = vmatpush.bf16.msra.mxu0 %v1530
      %1567 = vmatpush.bf16.msra.mxu0 %v1528
      %1568 = vmatmul.bf16.gmra.mxu0 %v1458
      %v1569 = vpop.f32.mrf.mxu0
      %v1570 = vadd.f32 0.0, %v1569
      %v1571 = vpop.f32.mrf.mxu0
      %v1572 = vadd.f32 0.0, %v1571
      %1573 = vmatmul.bf16.gmra.mxu0 %v1459
      %v1574 = vpop.f32.mrf.mxu0
      %v1575 = vadd.f32 0.0, %v1574
      %v1576 = vpop.f32.mrf.mxu0
      %v1577 = vadd.f32 0.0, %v1576
      %1578 = vmatmul.bf16.gmra.mxu0 %v1460
      %v1579 = vpop.f32.mrf.mxu0
      %v1580 = vadd.f32 0.0, %v1579
      %v1581 = vpop.f32.mrf.mxu0
      %v1582 = vadd.f32 0.0, %v1581
      %1583 = vmatmul.bf16.gmra.mxu0 %v1461
      %v1584 = vpop.f32.mrf.mxu0
      %v1585 = vadd.f32 0.0, %v1584
      %v1586 = vpop.f32.mrf.mxu0
      %v1587 = vadd.f32 0.0, %v1586
      %1588 = vmatmul.bf16.gmra.mxu0 %v1462
      %v1589 = vpop.f32.mrf.mxu0
      %v1590 = vadd.f32 0.0, %v1589
      %v1591 = vpop.f32.mrf.mxu0
      %v1592 = vadd.f32 0.0, %v1591
      %1593 = vdwg.mxu0
      %1594 = vmatpush.bf16.msra.mxu0 %v1543
      %1595 = vmatpush.bf16.msra.mxu0 %v1541
      %1596 = vmatpush.bf16.msra.mxu0 %v1539
      %1597 = vmatpush.bf16.msra.mxu0 %v1537
      %1598 = vmatpush.bf16.msra.mxu0 %v1535
      %1599 = vmatpush.bf16.msra.mxu0 %v1533
      %1600 = vmatpush.bf16.msra.mxu0 %v1531
      %1601 = vmatpush.bf16.msra.mxu0 %v1529
      %1602 = vmatmul.bf16.gmra.mxu0 %v1458
      %v1603 = vpop.f32.mrf.mxu0
      %v1604 = vadd.f32 0.0, %v1603
      %v1605 = vpop.f32.mrf.mxu0
      %v1606 = vadd.f32 0.0, %v1605
      %1607 = vmatmul.bf16.gmra.mxu0 %v1459
      %v1608 = vpop.f32.mrf.mxu0
      %v1609 = vadd.f32 0.0, %v1608
      %v1610 = vpop.f32.mrf.mxu0
      %v1611 = vadd.f32 0.0, %v1610
      %1612 = vmatmul.bf16.gmra.mxu0 %v1460
      %v1613 = vpop.f32.mrf.mxu0
      %v1614 = vadd.f32 0.0, %v1613
      %v1615 = vpop.f32.mrf.mxu0
      %v1616 = vadd.f32 0.0, %v1615
      %1617 = vmatmul.bf16.gmra.mxu0 %v1461
      %v1618 = vpop.f32.mrf.mxu0
      %v1619 = vadd.f32 0.0, %v1618
      %v1620 = vpop.f32.mrf.mxu0
      %v1621 = vadd.f32 0.0, %v1620
      %1622 = vmatmul.bf16.gmra.mxu0 %v1462
      %v1623 = vpop.f32.mrf.mxu0
      %v1624 = vadd.f32 0.0, %v1623
      %v1625 = vpop.f32.mrf.mxu0
      %v1626 = vadd.f32 0.0, %v1625
      %1627 = vdwg.mxu0
      %v1628 = vadd.f32 %v1418, %v1570
      %v1629 = vadd.f32 %v1419, %v1604
      %v1630 = vadd.f32 %v1420, %v1572
      %v1631 = vadd.f32 %v1421, %v1606
      %v1632 = vadd.f32 %v1422, %v1575
      %v1633 = vadd.f32 %v1423, %v1609
      %v1634 = vadd.f32 %v1424, %v1577
      %v1635 = vadd.f32 %v1425, %v1611
      %v1636 = vadd.f32 %v1426, %v1580
      %v1637 = vadd.f32 %v1427, %v1614
      %v1638 = vadd.f32 %v1428, %v1582
      %v1639 = vadd.f32 %v1429, %v1616
      %v1640 = vadd.f32 %v1430, %v1585
      %v1641 = vadd.f32 %v1431, %v1619
      %v1642 = vadd.f32 %v1432, %v1587
      %v1643 = vadd.f32 %v1433, %v1621
      %v1644 = vadd.f32 %v1434, %v1590
      %v1645 = vadd.f32 %v1435, %v1624
      %v1646 = vadd.f32 %v1436, %v1592
      %v1647 = vadd.f32 %v1437, %v1626
      %v1648 = vld [vmem:[%s205 + $0x15] sm:$0xff]
      %v1649 = vld [vmem:[%s205 + $0x1d] sm:$0xff]
      %v1650 = vld [vmem:[%s205 + $0x25] sm:$0xff]
      %v1651 = vld [vmem:[%s205 + $0x2d] sm:$0xff]
      %v1652 = vld [vmem:[%s205 + $0x35] sm:$0xff]
      %v1653 = vld [vmem:[%s205 + $0x3d] sm:$0xff]
      %v1654 = vld [vmem:[%s205 + $0x45] sm:$0xff]
      %v1655 = vld [vmem:[%s205 + $0x4d] sm:$0xff]
      %v1656 = vld [vmem:[%s205 + $0x55] sm:$0xff]
      %v1657 = vld [vmem:[%s205 + $0x5d] sm:$0xff]
      %v1658 = vmax.f32 %v1648, 0.0
      %v1659 = vmax.f32 %v1649, 0.0
      %v1660 = vmax.f32 %v1650, 0.0
      %v1661 = vmax.f32 %v1651, 0.0
      %v1662 = vmax.f32 %v1652, 0.0
      %v1663 = vmax.f32 %v1653, 0.0
      %v1664 = vmax.f32 %v1654, 0.0
      %v1665 = vmax.f32 %v1655, 0.0
      %v1666 = vmax.f32 %v1656, 0.0
      %v1667 = vmax.f32 %v1657, 0.0
      %v1668 = vpack.c.bf16 %v1659, %v1658
      %v1669 = vpack.c.bf16 %v1661, %v1660
      %v1670 = vpack.c.bf16 %v1663, %v1662
      %v1671 = vpack.c.bf16 %v1665, %v1664
      %v1672 = vpack.c.bf16 %v1667, %v1666
      %s1673 = scalar_lea.vmem %s1, 896
      %v1674 = vld [vmem:[%s1673] sm:$0xff]
      %v1675 = vld [vmem:[%s1673 + $0x8] sm:$0xff]
      %v1676 = vld [vmem:[%s1673 + $0x10] sm:$0xff]
      %v1677 = vld [vmem:[%s1673 + $0x18] sm:$0xff]
      %v1678 = vld [vmem:[%s1673 + $0x20] sm:$0xff]
      %v1679 = vld [vmem:[%s1673 + $0x28] sm:$0xff]
      %v1680 = vld [vmem:[%s1673 + $0x30] sm:$0xff]
      %v1681 = vld [vmem:[%s1673 + $0x38] sm:$0xff]
      %v1682 = vld [vmem:[%s1673 + $0x40] sm:$0xff]
      %v1683 = vld [vmem:[%s1673 + $0x48] sm:$0xff]
      %v1684 = vld [vmem:[%s1673 + $0x50] sm:$0xff]
      %v1685 = vld [vmem:[%s1673 + $0x58] sm:$0xff]
      %v1686 = vld [vmem:[%s1673 + $0x60] sm:$0xff]
      %v1687 = vld [vmem:[%s1673 + $0x68] sm:$0xff]
      %v1688 = vld [vmem:[%s1673 + $0x70] sm:$0xff]
      %v1689 = vld [vmem:[%s1673 + $0x78] sm:$0xff]
      %v1706 = vunpack.c.l.b16 %v1674
      %v1707 = vunpack.c.h.b16 %v1674
      %v1708 = vunpack.c.l.b16 %v1675
      %v1709 = vunpack.c.h.b16 %v1675
      %v1710 = vunpack.c.l.b16 %v1676
      %v1711 = vunpack.c.h.b16 %v1676
      %v1712 = vunpack.c.l.b16 %v1677
      %v1713 = vunpack.c.h.b16 %v1677
      %v1714 = vunpack.c.l.b16 %v1678
      %v1715 = vunpack.c.h.b16 %v1678
      %v1716 = vunpack.c.l.b16 %v1679
      %v1717 = vunpack.c.h.b16 %v1679
      %v1718 = vunpack.c.l.b16 %v1680
      %v1719 = vunpack.c.h.b16 %v1680
      %v1720 = vunpack.c.l.b16 %v1681
      %v1721 = vunpack.c.h.b16 %v1681
      %v1722 = vunpack.c.l.b16 %v1682
      %v1723 = vunpack.c.h.b16 %v1682
      %v1724 = vunpack.c.l.b16 %v1683
      %v1725 = vunpack.c.h.b16 %v1683
      %v1726 = vunpack.c.l.b16 %v1684
      %v1727 = vunpack.c.h.b16 %v1684
      %v1728 = vunpack.c.l.b16 %v1685
      %v1729 = vunpack.c.h.b16 %v1685
      %v1730 = vunpack.c.l.b16 %v1686
      %v1731 = vunpack.c.h.b16 %v1686
      %v1732 = vunpack.c.l.b16 %v1687
      %v1733 = vunpack.c.h.b16 %v1687
      %v1734 = vunpack.c.l.b16 %v1688
      %v1735 = vunpack.c.h.b16 %v1688
      %v1736 = vunpack.c.l.b16 %v1689
      %v1737 = vunpack.c.h.b16 %v1689
      %v1738 = vpack.c.b16 %v1708, %v1706
      %v1739 = vpack.c.b16 %v1709, %v1707
      %v1740 = vpack.c.b16 %v1712, %v1710
      %v1741 = vpack.c.b16 %v1713, %v1711
      %v1742 = vpack.c.b16 %v1716, %v1714
      %v1743 = vpack.c.b16 %v1717, %v1715
      %v1744 = vpack.c.b16 %v1720, %v1718
      %v1745 = vpack.c.b16 %v1721, %v1719
      %v1746 = vpack.c.b16 %v1724, %v1722
      %v1747 = vpack.c.b16 %v1725, %v1723
      %v1748 = vpack.c.b16 %v1728, %v1726
      %v1749 = vpack.c.b16 %v1729, %v1727
      %v1750 = vpack.c.b16 %v1732, %v1730
      %v1751 = vpack.c.b16 %v1733, %v1731
      %v1752 = vpack.c.b16 %v1736, %v1734
      %v1753 = vpack.c.b16 %v1737, %v1735
      %1770 = vmatpush.bf16.msra.mxu0 %v1752
      %1771 = vmatpush.bf16.msra.mxu0 %v1750
      %1772 = vmatpush.bf16.msra.mxu0 %v1748
      %1773 = vmatpush.bf16.msra.mxu0 %v1746
      %1774 = vmatpush.bf16.msra.mxu0 %v1744
      %1775 = vmatpush.bf16.msra.mxu0 %v1742
      %1776 = vmatpush.bf16.msra.mxu0 %v1740
      %1777 = vmatpush.bf16.msra.mxu0 %v1738
      %1778 = vmatmul.bf16.gmra.mxu0 %v1668
      %v1779 = vpop.f32.mrf.mxu0
      %v1780 = vadd.f32 0.0, %v1779
      %v1781 = vpop.f32.mrf.mxu0
      %v1782 = vadd.f32 0.0, %v1781
      %1783 = vmatmul.bf16.gmra.mxu0 %v1669
      %v1784 = vpop.f32.mrf.mxu0
      %v1785 = vadd.f32 0.0, %v1784
      %v1786 = vpop.f32.mrf.mxu0
      %v1787 = vadd.f32 0.0, %v1786
      %1788 = vmatmul.bf16.gmra.mxu0 %v1670
      %v1789 = vpop.f32.mrf.mxu0
      %v1790 = vadd.f32 0.0, %v1789
      %v1791 = vpop.f32.mrf.mxu0
      %v1792 = vadd.f32 0.0, %v1791
      %1793 = vmatmul.bf16.gmra.mxu0 %v1671
      %v1794 = vpop.f32.mrf.mxu0
      %v1795 = vadd.f32 0.0, %v1794
      %v1796 = vpop.f32.mrf.mxu0
      %v1797 = vadd.f32 0.0, %v1796
      %1798 = vmatmul.bf16.gmra.mxu0 %v1672
      %v1799 = vpop.f32.mrf.mxu0
      %v1800 = vadd.f32 0.0, %v1799
      %v1801 = vpop.f32.mrf.mxu0
      %v1802 = vadd.f32 0.0, %v1801
      %1803 = vdwg.mxu0
      %1804 = vmatpush.bf16.msra.mxu0 %v1753
      %1805 = vmatpush.bf16.msra.mxu0 %v1751
      %1806 = vmatpush.bf16.msra.mxu0 %v1749
      %1807 = vmatpush.bf16.msra.mxu0 %v1747
      %1808 = vmatpush.bf16.msra.mxu0 %v1745
      %1809 = vmatpush.bf16.msra.mxu0 %v1743
      %1810 = vmatpush.bf16.msra.mxu0 %v1741
      %1811 = vmatpush.bf16.msra.mxu0 %v1739
      %1812 = vmatmul.bf16.gmra.mxu0 %v1668
      %v1813 = vpop.f32.mrf.mxu0
      %v1814 = vadd.f32 0.0, %v1813
      %v1815 = vpop.f32.mrf.mxu0
      %v1816 = vadd.f32 0.0, %v1815
      %1817 = vmatmul.bf16.gmra.mxu0 %v1669
      %v1818 = vpop.f32.mrf.mxu0
      %v1819 = vadd.f32 0.0, %v1818
      %v1820 = vpop.f32.mrf.mxu0
      %v1821 = vadd.f32 0.0, %v1820
      %1822 = vmatmul.bf16.gmra.mxu0 %v1670
      %v1823 = vpop.f32.mrf.mxu0
      %v1824 = vadd.f32 0.0, %v1823
      %v1825 = vpop.f32.mrf.mxu0
      %v1826 = vadd.f32 0.0, %v1825
      %1827 = vmatmul.bf16.gmra.mxu0 %v1671
      %v1828 = vpop.f32.mrf.mxu0
      %v1829 = vadd.f32 0.0, %v1828
      %v1830 = vpop.f32.mrf.mxu0
      %v1831 = vadd.f32 0.0, %v1830
      %1832 = vmatmul.bf16.gmra.mxu0 %v1672
      %v1833 = vpop.f32.mrf.mxu0
      %v1834 = vadd.f32 0.0, %v1833
      %v1835 = vpop.f32.mrf.mxu0
      %v1836 = vadd.f32 0.0, %v1835
      %1837 = vdwg.mxu0
      %v1838 = vadd.f32 %v1628, %v1780
      %v1839 = vadd.f32 %v1629, %v1814
      %v1840 = vadd.f32 %v1630, %v1782
      %v1841 = vadd.f32 %v1631, %v1816
      %v1842 = vadd.f32 %v1632, %v1785
      %v1843 = vadd.f32 %v1633, %v1819
      %v1844 = vadd.f32 %v1634, %v1787
      %v1845 = vadd.f32 %v1635, %v1821
      %v1846 = vadd.f32 %v1636, %v1790
      %v1847 = vadd.f32 %v1637, %v1824
      %v1848 = vadd.f32 %v1638, %v1792
      %v1849 = vadd.f32 %v1639, %v1826
      %v1850 = vadd.f32 %v1640, %v1795
      %v1851 = vadd.f32 %v1641, %v1829
      %v1852 = vadd.f32 %v1642, %v1797
      %v1853 = vadd.f32 %v1643, %v1831
      %v1854 = vadd.f32 %v1644, %v1800
      %v1855 = vadd.f32 %v1645, %v1834
      %v1856 = vadd.f32 %v1646, %v1802
      %v1857 = vadd.f32 %v1647, %v1836
      %v1858 = vld [vmem:[%s205 + $0x16] sm:$0xff]
      %v1859 = vld [vmem:[%s205 + $0x1e] sm:$0xff]
      %v1860 = vld [vmem:[%s205 + $0x26] sm:$0xff]
      %v1861 = vld [vmem:[%s205 + $0x2e] sm:$0xff]
      %v1862 = vld [vmem:[%s205 + $0x36] sm:$0xff]
      %v1863 = vld [vmem:[%s205 + $0x3e] sm:$0xff]
      %v1864 = vld [vmem:[%s205 + $0x46] sm:$0xff]
      %v1865 = vld [vmem:[%s205 + $0x4e] sm:$0xff]
      %v1866 = vld [vmem:[%s205 + $0x56] sm:$0xff]
      %v1867 = vld [vmem:[%s205 + $0x5e] sm:$0xff]
      %v1868 = vmax.f32 %v1858, 0.0
      %v1869 = vmax.f32 %v1859, 0.0
      %v1870 = vmax.f32 %v1860, 0.0
      %v1871 = vmax.f32 %v1861, 0.0
      %v1872 = vmax.f32 %v1862, 0.0
      %v1873 = vmax.f32 %v1863, 0.0
      %v1874 = vmax.f32 %v1864, 0.0
      %v1875 = vmax.f32 %v1865, 0.0
      %v1876 = vmax.f32 %v1866, 0.0
      %v1877 = vmax.f32 %v1867, 0.0
      %v1878 = vpack.c.bf16 %v1869, %v1868
      %v1879 = vpack.c.bf16 %v1871, %v1870
      %v1880 = vpack.c.bf16 %v1873, %v1872
      %v1881 = vpack.c.bf16 %v1875, %v1874
      %v1882 = vpack.c.bf16 %v1877, %v1876
      %s1883 = scalar_lea.vmem %s1, 1024
      %v1884 = vld [vmem:[%s1883] sm:$0xff]
      %v1885 = vld [vmem:[%s1883 + $0x8] sm:$0xff]
      %v1886 = vld [vmem:[%s1883 + $0x10] sm:$0xff]
      %v1887 = vld [vmem:[%s1883 + $0x18] sm:$0xff]
      %v1888 = vld [vmem:[%s1883 + $0x20] sm:$0xff]
      %v1889 = vld [vmem:[%s1883 + $0x28] sm:$0xff]
      %v1890 = vld [vmem:[%s1883 + $0x30] sm:$0xff]
      %v1891 = vld [vmem:[%s1883 + $0x38] sm:$0xff]
      %v1892 = vld [vmem:[%s1883 + $0x40] sm:$0xff]
      %v1893 = vld [vmem:[%s1883 + $0x48] sm:$0xff]
      %v1894 = vld [vmem:[%s1883 + $0x50] sm:$0xff]
      %v1895 = vld [vmem:[%s1883 + $0x58] sm:$0xff]
      %v1896 = vld [vmem:[%s1883 + $0x60] sm:$0xff]
      %v1897 = vld [vmem:[%s1883 + $0x68] sm:$0xff]
      %v1898 = vld [vmem:[%s1883 + $0x70] sm:$0xff]
      %v1899 = vld [vmem:[%s1883 + $0x78] sm:$0xff]
      %v1916 = vunpack.c.l.b16 %v1884
      %v1917 = vunpack.c.h.b16 %v1884
      %v1918 = vunpack.c.l.b16 %v1885
      %v1919 = vunpack.c.h.b16 %v1885
      %v1920 = vunpack.c.l.b16 %v1886
      %v1921 = vunpack.c.h.b16 %v1886
      %v1922 = vunpack.c.l.b16 %v1887
      %v1923 = vunpack.c.h.b16 %v1887
      %v1924 = vunpack.c.l.b16 %v1888
      %v1925 = vunpack.c.h.b16 %v1888
      %v1926 = vunpack.c.l.b16 %v1889
      %v1927 = vunpack.c.h.b16 %v1889
      %v1928 = vunpack.c.l.b16 %v1890
      %v1929 = vunpack.c.h.b16 %v1890
      %v1930 = vunpack.c.l.b16 %v1891
      %v1931 = vunpack.c.h.b16 %v1891
      %v1932 = vunpack.c.l.b16 %v1892
      %v1933 = vunpack.c.h.b16 %v1892
      %v1934 = vunpack.c.l.b16 %v1893
      %v1935 = vunpack.c.h.b16 %v1893
      %v1936 = vunpack.c.l.b16 %v1894
      %v1937 = vunpack.c.h.b16 %v1894
      %v1938 = vunpack.c.l.b16 %v1895
      %v1939 = vunpack.c.h.b16 %v1895
      %v1940 = vunpack.c.l.b16 %v1896
      %v1941 = vunpack.c.h.b16 %v1896
      %v1942 = vunpack.c.l.b16 %v1897
      %v1943 = vunpack.c.h.b16 %v1897
      %v1944 = vunpack.c.l.b16 %v1898
      %v1945 = vunpack.c.h.b16 %v1898
      %v1946 = vunpack.c.l.b16 %v1899
      %v1947 = vunpack.c.h.b16 %v1899
      %v1948 = vpack.c.b16 %v1918, %v1916
      %v1949 = vpack.c.b16 %v1919, %v1917
      %v1950 = vpack.c.b16 %v1922, %v1920
      %v1951 = vpack.c.b16 %v1923, %v1921
      %v1952 = vpack.c.b16 %v1926, %v1924
      %v1953 = vpack.c.b16 %v1927, %v1925
      %v1954 = vpack.c.b16 %v1930, %v1928
      %v1955 = vpack.c.b16 %v1931, %v1929
      %v1956 = vpack.c.b16 %v1934, %v1932
      %v1957 = vpack.c.b16 %v1935, %v1933
      %v1958 = vpack.c.b16 %v1938, %v1936
      %v1959 = vpack.c.b16 %v1939, %v1937
      %v1960 = vpack.c.b16 %v1942, %v1940
      %v1961 = vpack.c.b16 %v1943, %v1941
      %v1962 = vpack.c.b16 %v1946, %v1944
      %v1963 = vpack.c.b16 %v1947, %v1945
      %1980 = vmatpush.bf16.msra.mxu0 %v1962
      %1981 = vmatpush.bf16.msra.mxu0 %v1960
      %1982 = vmatpush.bf16.msra.mxu0 %v1958
      %1983 = vmatpush.bf16.msra.mxu0 %v1956
      %1984 = vmatpush.bf16.msra.mxu0 %v1954
      %1985 = vmatpush.bf16.msra.mxu0 %v1952
      %1986 = vmatpush.bf16.msra.mxu0 %v1950
      %1987 = vmatpush.bf16.msra.mxu0 %v1948
      %1988 = vmatmul.bf16.gmra.mxu0 %v1878
      %v1989 = vpop.f32.mrf.mxu0
      %v1990 = vadd.f32 0.0, %v1989
      %v1991 = vpop.f32.mrf.mxu0
      %v1992 = vadd.f32 0.0, %v1991
      %1993 = vmatmul.bf16.gmra.mxu0 %v1879
      %v1994 = vpop.f32.mrf.mxu0
      %v1995 = vadd.f32 0.0, %v1994
      %v1996 = vpop.f32.mrf.mxu0
      %v1997 = vadd.f32 0.0, %v1996
      %1998 = vmatmul.bf16.gmra.mxu0 %v1880
      %v1999 = vpop.f32.mrf.mxu0
      %v2000 = vadd.f32 0.0, %v1999
      %v2001 = vpop.f32.mrf.mxu0
      %v2002 = vadd.f32 0.0, %v2001
      %2003 = vmatmul.bf16.gmra.mxu0 %v1881
      %v2004 = vpop.f32.mrf.mxu0
      %v2005 = vadd.f32 0.0, %v2004
      %v2006 = vpop.f32.mrf.mxu0
      %v2007 = vadd.f32 0.0, %v2006
      %2008 = vmatmul.bf16.gmra.mxu0 %v1882
      %v2009 = vpop.f32.mrf.mxu0
      %v2010 = vadd.f32 0.0, %v2009
      %v2011 = vpop.f32.mrf.mxu0
      %v2012 = vadd.f32 0.0, %v2011
      %2013 = vdwg.mxu0
      %2014 = vmatpush.bf16.msra.mxu0 %v1963
      %2015 = vmatpush.bf16.msra.mxu0 %v1961
      %2016 = vmatpush.bf16.msra.mxu0 %v1959
      %2017 = vmatpush.bf16.msra.mxu0 %v1957
      %2018 = vmatpush.bf16.msra.mxu0 %v1955
      %2019 = vmatpush.bf16.msra.mxu0 %v1953
      %2020 = vmatpush.bf16.msra.mxu0 %v1951
      %2021 = vmatpush.bf16.msra.mxu0 %v1949
      %2022 = vmatmul.bf16.gmra.mxu0 %v1878
      %v2023 = vpop.f32.mrf.mxu0
      %v2024 = vadd.f32 0.0, %v2023
      %v2025 = vpop.f32.mrf.mxu0
      %v2026 = vadd.f32 0.0, %v2025
      %2027 = vmatmul.bf16.gmra.mxu0 %v1879
      %v2028 = vpop.f32.mrf.mxu0
      %v2029 = vadd.f32 0.0, %v2028
      %v2030 = vpop.f32.mrf.mxu0
      %v2031 = vadd.f32 0.0, %v2030
      %2032 = vmatmul.bf16.gmra.mxu0 %v1880
      %v2033 = vpop.f32.mrf.mxu0
      %v2034 = vadd.f32 0.0, %v2033
      %v2035 = vpop.f32.mrf.mxu0
      %v2036 = vadd.f32 0.0, %v2035
      %2037 = vmatmul.bf16.gmra.mxu0 %v1881
      %v2038 = vpop.f32.mrf.mxu0
      %v2039 = vadd.f32 0.0, %v2038
      %v2040 = vpop.f32.mrf.mxu0
      %v2041 = vadd.f32 0.0, %v2040
      %2042 = vmatmul.bf16.gmra.mxu0 %v1882
      %v2043 = vpop.f32.mrf.mxu0
      %v2044 = vadd.f32 0.0, %v2043
      %v2045 = vpop.f32.mrf.mxu0
      %v2046 = vadd.f32 0.0, %v2045
      %2047 = vdwg.mxu0
      %v2048 = vadd.f32 %v1838, %v1990
      %v2049 = vadd.f32 %v1839, %v2024
      %v2050 = vadd.f32 %v1840, %v1992
      %v2051 = vadd.f32 %v1841, %v2026
      %v2052 = vadd.f32 %v1842, %v1995
      %v2053 = vadd.f32 %v1843, %v2029
      %v2054 = vadd.f32 %v1844, %v1997
      %v2055 = vadd.f32 %v1845, %v2031
      %v2056 = vadd.f32 %v1846, %v2000
      %v2057 = vadd.f32 %v1847, %v2034
      %v2058 = vadd.f32 %v1848, %v2002
      %v2059 = vadd.f32 %v1849, %v2036
      %v2060 = vadd.f32 %v1850, %v2005
      %v2061 = vadd.f32 %v1851, %v2039
      %v2062 = vadd.f32 %v1852, %v2007
      %v2063 = vadd.f32 %v1853, %v2041
      %v2064 = vadd.f32 %v1854, %v2010
      %v2065 = vadd.f32 %v1855, %v2044
      %v2066 = vadd.f32 %v1856, %v2012
      %v2067 = vadd.f32 %v1857, %v2046
      %v2068 = vlaneseq
      %v2069 = vshrl.u32 %v2068, 7
      %v2070 = vadd.s32 %v2069, 8
      %v2071 = vadd.s32 %v2069, 16
      %v2072 = vadd.s32 %v2069, 24
      %v2073 = vadd.s32 %v2069, 32
      %v2074 = vadd.s32 %v2069, 40
      %v2075 = vadd.s32 %v2069, 48
      %v2076 = vadd.s32 %v2069, 56
      %v2077 = vadd.s32 %v2069, 64
      %v2078 = vadd.s32 %v2069, 72
      %vm2079 = vcmp.lt.s32.totalorder %v2069, 0
      %v2080 = vsub.s32 0, %v2069
      %v2081 = vsel %vm2079, %v2080, %v2069
      %v2082 = vand.u32 %v2081, 65535
      %v2083 = vshrl.u32 %v2081, 16
      %v2085 = vmul.u32 %v2082, 52429
      %v2086 = vmul.u32 %v2082, 52428
      %v2087 = vmul.u32 %v2083, 52429
      %v2088 = vmul.u32 %v2083, 52428
      %v2089 = vshll.u32 %v2086, 16
      %v2090 = vshrl.u32 %v2086, 16
      %v2091 = vshll.u32 %v2087, 16
      %v2092 = vshrl.u32 %v2087, 16
      %vm2093 = vc.u32 %v2085, %v2089
      %v2094 = vsel %vm2093, 1, 0
      %v2095 = vadd.s32 %v2085, %v2089
      %v2096 = vadd.s32 %v2088, %v2094
      %vm2097 = vc.u32 %v2095, %v2091
      %v2098 = vsel %vm2097, 1, 0
      %v2099 = vadd.s32 %v2095, %v2091
      %v2100 = vadd.s32 %v2096, %v2098
      %v2101 = vadd.s32 %v2100, %v2090
      %v2102 = vadd.s32 %v2101, %v2092
      %v2103 = vshrl.u32 %v2102, 3
      %v2104 = vmul.u32 %v2103, 10
      %v2105 = vsub.s32 %v2081, %v2104
      %v2106 = vsub.s32 0, %v2105
      %v2107 = vsel %vm2079, %v2106, %v2105
      %vm2108 = vcmp.lt.s32.totalorder %v2070, 0
      %v2109 = vsub.s32 0, %v2070
      %v2110 = vsel %vm2108, %v2109, %v2070
      %v2111 = vand.u32 %v2110, 65535
      %v2112 = vshrl.u32 %v2110, 16
      %v2114 = vmul.u32 %v2111, 52429
      %v2115 = vmul.u32 %v2111, 52428
      %v2116 = vmul.u32 %v2112, 52429
      %v2117 = vmul.u32 %v2112, 52428
      %v2118 = vshll.u32 %v2115, 16
      %v2119 = vshrl.u32 %v2115, 16
      %v2120 = vshll.u32 %v2116, 16
      %v2121 = vshrl.u32 %v2116, 16
      %vm2122 = vc.u32 %v2114, %v2118
      %v2123 = vsel %vm2122, 1, 0
      %v2124 = vadd.s32 %v2114, %v2118
      %v2125 = vadd.s32 %v2117, %v2123
      %vm2126 = vc.u32 %v2124, %v2120
      %v2127 = vsel %vm2126, 1, 0
      %v2128 = vadd.s32 %v2124, %v2120
      %v2129 = vadd.s32 %v2125, %v2127
      %v2130 = vadd.s32 %v2129, %v2119
      %v2131 = vadd.s32 %v2130, %v2121
      %v2132 = vshrl.u32 %v2131, 3
      %v2133 = vmul.u32 %v2132, 10
      %v2134 = vsub.s32 %v2110, %v2133
      %v2135 = vsub.s32 0, %v2134
      %v2136 = vsel %vm2108, %v2135, %v2134
      %vm2137 = vcmp.lt.s32.totalorder %v2071, 0
      %v2138 = vsub.s32 0, %v2071
      %v2139 = vsel %vm2137, %v2138, %v2071
      %v2140 = vand.u32 %v2139, 65535
      %v2141 = vshrl.u32 %v2139, 16
      %v2143 = vmul.u32 %v2140, 52429
      %v2144 = vmul.u32 %v2140, 52428
      %v2145 = vmul.u32 %v2141, 52429
      %v2146 = vmul.u32 %v2141, 52428
      %v2147 = vshll.u32 %v2144, 16
      %v2148 = vshrl.u32 %v2144, 16
      %v2149 = vshll.u32 %v2145, 16
      %v2150 = vshrl.u32 %v2145, 16
      %vm2151 = vc.u32 %v2143, %v2147
      %v2152 = vsel %vm2151, 1, 0
      %v2153 = vadd.s32 %v2143, %v2147
      %v2154 = vadd.s32 %v2146, %v2152
      %vm2155 = vc.u32 %v2153, %v2149
      %v2156 = vsel %vm2155, 1, 0
      %v2157 = vadd.s32 %v2153, %v2149
      %v2158 = vadd.s32 %v2154, %v2156
      %v2159 = vadd.s32 %v2158, %v2148
      %v2160 = vadd.s32 %v2159, %v2150
      %v2161 = vshrl.u32 %v2160, 3
      %v2162 = vmul.u32 %v2161, 10
      %v2163 = vsub.s32 %v2139, %v2162
      %v2164 = vsub.s32 0, %v2163
      %v2165 = vsel %vm2137, %v2164, %v2163
      %vm2166 = vcmp.lt.s32.totalorder %v2072, 0
      %v2167 = vsub.s32 0, %v2072
      %v2168 = vsel %vm2166, %v2167, %v2072
      %v2169 = vand.u32 %v2168, 65535
      %v2170 = vshrl.u32 %v2168, 16
      %v2172 = vmul.u32 %v2169, 52429
      %v2173 = vmul.u32 %v2169, 52428
      %v2174 = vmul.u32 %v2170, 52429
      %v2175 = vmul.u32 %v2170, 52428
      %v2176 = vshll.u32 %v2173, 16
      %v2177 = vshrl.u32 %v2173, 16
      %v2178 = vshll.u32 %v2174, 16
      %v2179 = vshrl.u32 %v2174, 16
      %vm2180 = vc.u32 %v2172, %v2176
      %v2181 = vsel %vm2180, 1, 0
      %v2182 = vadd.s32 %v2172, %v2176
      %v2183 = vadd.s32 %v2175, %v2181
      %vm2184 = vc.u32 %v2182, %v2178
      %v2185 = vsel %vm2184, 1, 0
      %v2186 = vadd.s32 %v2182, %v2178
      %v2187 = vadd.s32 %v2183, %v2185
      %v2188 = vadd.s32 %v2187, %v2177
      %v2189 = vadd.s32 %v2188, %v2179
      %v2190 = vshrl.u32 %v2189, 3
      %v2191 = vmul.u32 %v2190, 10
      %v2192 = vsub.s32 %v2168, %v2191
      %v2193 = vsub.s32 0, %v2192
      %v2194 = vsel %vm2166, %v2193, %v2192
      %vm2195 = vcmp.lt.s32.totalorder %v2073, 0
      %v2196 = vsub.s32 0, %v2073
      %v2197 = vsel %vm2195, %v2196, %v2073
      %v2198 = vand.u32 %v2197, 65535
      %v2199 = vshrl.u32 %v2197, 16
      %v2201 = vmul.u32 %v2198, 52429
      %v2202 = vmul.u32 %v2198, 52428
      %v2203 = vmul.u32 %v2199, 52429
      %v2204 = vmul.u32 %v2199, 52428
      %v2205 = vshll.u32 %v2202, 16
      %v2206 = vshrl.u32 %v2202, 16
      %v2207 = vshll.u32 %v2203, 16
      %v2208 = vshrl.u32 %v2203, 16
      %vm2209 = vc.u32 %v2201, %v2205
      %v2210 = vsel %vm2209, 1, 0
      %v2211 = vadd.s32 %v2201, %v2205
      %v2212 = vadd.s32 %v2204, %v2210
      %vm2213 = vc.u32 %v2211, %v2207
      %v2214 = vsel %vm2213, 1, 0
      %v2215 = vadd.s32 %v2211, %v2207
      %v2216 = vadd.s32 %v2212, %v2214
      %v2217 = vadd.s32 %v2216, %v2206
      %v2218 = vadd.s32 %v2217, %v2208
      %v2219 = vshrl.u32 %v2218, 3
      %v2220 = vmul.u32 %v2219, 10
      %v2221 = vsub.s32 %v2197, %v2220
      %v2222 = vsub.s32 0, %v2221
      %v2223 = vsel %vm2195, %v2222, %v2221
      %vm2224 = vcmp.lt.s32.totalorder %v2074, 0
      %v2225 = vsub.s32 0, %v2074
      %v2226 = vsel %vm2224, %v2225, %v2074
      %v2227 = vand.u32 %v2226, 65535
      %v2228 = vshrl.u32 %v2226, 16
      %v2230 = vmul.u32 %v2227, 52429
      %v2231 = vmul.u32 %v2227, 52428
      %v2232 = vmul.u32 %v2228, 52429
      %v2233 = vmul.u32 %v2228, 52428
      %v2234 = vshll.u32 %v2231, 16
      %v2235 = vshrl.u32 %v2231, 16
      %v2236 = vshll.u32 %v2232, 16
      %v2237 = vshrl.u32 %v2232, 16
      %vm2238 = vc.u32 %v2230, %v2234
      %v2239 = vsel %vm2238, 1, 0
      %v2240 = vadd.s32 %v2230, %v2234
      %v2241 = vadd.s32 %v2233, %v2239
      %vm2242 = vc.u32 %v2240, %v2236
      %v2243 = vsel %vm2242, 1, 0
      %v2244 = vadd.s32 %v2240, %v2236
      %v2245 = vadd.s32 %v2241, %v2243
      %v2246 = vadd.s32 %v2245, %v2235
      %v2247 = vadd.s32 %v2246, %v2237
      %v2248 = vshrl.u32 %v2247, 3
      %v2249 = vmul.u32 %v2248, 10
      %v2250 = vsub.s32 %v2226, %v2249
      %v2251 = vsub.s32 0, %v2250
      %v2252 = vsel %vm2224, %v2251, %v2250
      %vm2253 = vcmp.lt.s32.totalorder %v2075, 0
      %v2254 = vsub.s32 0, %v2075
      %v2255 = vsel %vm2253, %v2254, %v2075
      %v2256 = vand.u32 %v2255, 65535
      %v2257 = vshrl.u32 %v2255, 16
      %v2259 = vmul.u32 %v2256, 52429
      %v2260 = vmul.u32 %v2256, 52428
      %v2261 = vmul.u32 %v2257, 52429
      %v2262 = vmul.u32 %v2257, 52428
      %v2263 = vshll.u32 %v2260, 16
      %v2264 = vshrl.u32 %v2260, 16
      %v2265 = vshll.u32 %v2261, 16
      %v2266 = vshrl.u32 %v2261, 16
      %vm2267 = vc.u32 %v2259, %v2263
      %v2268 = vsel %vm2267, 1, 0
      %v2269 = vadd.s32 %v2259, %v2263
      %v2270 = vadd.s32 %v2262, %v2268
      %vm2271 = vc.u32 %v2269, %v2265
      %v2272 = vsel %vm2271, 1, 0
      %v2273 = vadd.s32 %v2269, %v2265
      %v2274 = vadd.s32 %v2270, %v2272
      %v2275 = vadd.s32 %v2274, %v2264
      %v2276 = vadd.s32 %v2275, %v2266
      %v2277 = vshrl.u32 %v2276, 3
      %v2278 = vmul.u32 %v2277, 10
      %v2279 = vsub.s32 %v2255, %v2278
      %v2280 = vsub.s32 0, %v2279
      %v2281 = vsel %vm2253, %v2280, %v2279
      %vm2282 = vcmp.lt.s32.totalorder %v2076, 0
      %v2283 = vsub.s32 0, %v2076
      %v2284 = vsel %vm2282, %v2283, %v2076
      %v2285 = vand.u32 %v2284, 65535
      %v2286 = vshrl.u32 %v2284, 16
      %v2288 = vmul.u32 %v2285, 52429
      %v2289 = vmul.u32 %v2285, 52428
      %v2290 = vmul.u32 %v2286, 52429
      %v2291 = vmul.u32 %v2286, 52428
      %v2292 = vshll.u32 %v2289, 16
      %v2293 = vshrl.u32 %v2289, 16
      %v2294 = vshll.u32 %v2290, 16
      %v2295 = vshrl.u32 %v2290, 16
      %vm2296 = vc.u32 %v2288, %v2292
      %v2297 = vsel %vm2296, 1, 0
      %v2298 = vadd.s32 %v2288, %v2292
      %v2299 = vadd.s32 %v2291, %v2297
      %vm2300 = vc.u32 %v2298, %v2294
      %v2301 = vsel %vm2300, 1, 0
      %v2302 = vadd.s32 %v2298, %v2294
      %v2303 = vadd.s32 %v2299, %v2301
      %v2304 = vadd.s32 %v2303, %v2293
      %v2305 = vadd.s32 %v2304, %v2295
      %v2306 = vshrl.u32 %v2305, 3
      %v2307 = vmul.u32 %v2306, 10
      %v2308 = vsub.s32 %v2284, %v2307
      %v2309 = vsub.s32 0, %v2308
      %v2310 = vsel %vm2282, %v2309, %v2308
      %vm2311 = vcmp.lt.s32.totalorder %v2077, 0
      %v2312 = vsub.s32 0, %v2077
      %v2313 = vsel %vm2311, %v2312, %v2077
      %v2314 = vand.u32 %v2313, 65535
      %v2315 = vshrl.u32 %v2313, 16
      %v2317 = vmul.u32 %v2314, 52429
      %v2318 = vmul.u32 %v2314, 52428
      %v2319 = vmul.u32 %v2315, 52429
      %v2320 = vmul.u32 %v2315, 52428
      %v2321 = vshll.u32 %v2318, 16
      %v2322 = vshrl.u32 %v2318, 16
      %v2323 = vshll.u32 %v2319, 16
      %v2324 = vshrl.u32 %v2319, 16
      %vm2325 = vc.u32 %v2317, %v2321
      %v2326 = vsel %vm2325, 1, 0
      %v2327 = vadd.s32 %v2317, %v2321
      %v2328 = vadd.s32 %v2320, %v2326
      %vm2329 = vc.u32 %v2327, %v2323
      %v2330 = vsel %vm2329, 1, 0
      %v2331 = vadd.s32 %v2327, %v2323
      %v2332 = vadd.s32 %v2328, %v2330
      %v2333 = vadd.s32 %v2332, %v2322
      %v2334 = vadd.s32 %v2333, %v2324
      %v2335 = vshrl.u32 %v2334, 3
      %v2336 = vmul.u32 %v2335, 10
      %v2337 = vsub.s32 %v2313, %v2336
      %v2338 = vsub.s32 0, %v2337
      %v2339 = vsel %vm2311, %v2338, %v2337
      %vm2340 = vcmp.lt.s32.totalorder %v2078, 0
      %v2341 = vsub.s32 0, %v2078
      %v2342 = vsel %vm2340, %v2341, %v2078
      %v2343 = vand.u32 %v2342, 65535
      %v2344 = vshrl.u32 %v2342, 16
      %v2346 = vmul.u32 %v2343, 52429
      %v2347 = vmul.u32 %v2343, 52428
      %v2348 = vmul.u32 %v2344, 52429
      %v2349 = vmul.u32 %v2344, 52428
      %v2350 = vshll.u32 %v2347, 16
      %v2351 = vshrl.u32 %v2347, 16
      %v2352 = vshll.u32 %v2348, 16
      %v2353 = vshrl.u32 %v2348, 16
      %vm2354 = vc.u32 %v2346, %v2350
      %v2355 = vsel %vm2354, 1, 0
      %v2356 = vadd.s32 %v2346, %v2350
      %v2357 = vadd.s32 %v2349, %v2355
      %vm2358 = vc.u32 %v2356, %v2352
      %v2359 = vsel %vm2358, 1, 0
      %v2360 = vadd.s32 %v2356, %v2352
      %v2361 = vadd.s32 %v2357, %v2359
      %v2362 = vadd.s32 %v2361, %v2351
      %v2363 = vadd.s32 %v2362, %v2353
      %v2364 = vshrl.u32 %v2363, 3
      %v2365 = vmul.u32 %v2364, 10
      %v2366 = vsub.s32 %v2342, %v2365
      %v2367 = vsub.s32 0, %v2366
      %v2368 = vsel %vm2340, %v2367, %v2366
      %vm2369 = vcmp.ne.s32.totalorder %v2107, 0
      %vm2370 = vcmp.ne.s32.totalorder %v2136, 0
      %vm2371 = vcmp.ne.s32.totalorder %v2165, 0
      %vm2372 = vcmp.ne.s32.totalorder %v2194, 0
      %vm2373 = vcmp.ne.s32.totalorder %v2223, 0
      %vm2374 = vcmp.ne.s32.totalorder %v2252, 0
      %vm2375 = vcmp.ne.s32.totalorder %v2281, 0
      %vm2376 = vcmp.ne.s32.totalorder %v2310, 0
      %vm2377 = vcmp.ne.s32.totalorder %v2339, 0
      %vm2378 = vcmp.ne.s32.totalorder %v2368, 0
      %vm2379 = vcmp.lt.s32.totalorder %v2107, 0
      %vm2380 = vcmp.lt.s32.totalorder %v2136, 0
      %vm2381 = vcmp.lt.s32.totalorder %v2165, 0
      %vm2382 = vcmp.lt.s32.totalorder %v2194, 0
      %vm2383 = vcmp.lt.s32.totalorder %v2223, 0
      %vm2384 = vcmp.lt.s32.totalorder %v2252, 0
      %vm2385 = vcmp.lt.s32.totalorder %v2281, 0
      %vm2386 = vcmp.lt.s32.totalorder %v2310, 0
      %vm2387 = vcmp.lt.s32.totalorder %v2339, 0
      %vm2388 = vcmp.lt.s32.totalorder %v2368, 0
      %vm2389 = vmand %vm2379, %vm2369
      %vm2390 = vmand %vm2380, %vm2370
      %vm2391 = vmand %vm2381, %vm2371
      %vm2392 = vmand %vm2382, %vm2372
      %vm2393 = vmand %vm2383, %vm2373
      %vm2394 = vmand %vm2384, %vm2374
      %vm2395 = vmand %vm2385, %vm2375
      %vm2396 = vmand %vm2386, %vm2376
      %vm2397 = vmand %vm2387, %vm2377
      %vm2398 = vmand %vm2388, %vm2378
      %v2399 = vadd.s32 %v2107, 10
      %v2400 = vadd.s32 %v2136, 10
      %v2401 = vadd.s32 %v2165, 10
      %v2402 = vadd.s32 %v2194, 10
      %v2403 = vadd.s32 %v2223, 10
      %v2404 = vadd.s32 %v2252, 10
      %v2405 = vadd.s32 %v2281, 10
      %v2406 = vadd.s32 %v2310, 10
      %v2407 = vadd.s32 %v2339, 10
      %v2408 = vadd.s32 %v2368, 10
      %v2409 = vsel %vm2389, %v2399, %v2107
      %v2410 = vsel %vm2390, %v2400, %v2136
      %v2411 = vsel %vm2391, %v2401, %v2165
      %v2412 = vsel %vm2392, %v2402, %v2194
      %v2413 = vsel %vm2393, %v2403, %v2223
      %v2414 = vsel %vm2394, %v2404, %v2252
      %v2415 = vsel %vm2395, %v2405, %v2281
      %v2416 = vsel %vm2396, %v2406, %v2310
      %v2417 = vsel %vm2397, %v2407, %v2339
      %v2418 = vsel %vm2398, %v2408, %v2368
      %vm2419 = vcmp.lt.s32.totalorder %v2409, 8
      %vm2420 = vcmp.lt.s32.totalorder %v2410, 8
      %vm2421 = vcmp.lt.s32.totalorder %v2411, 8
      %vm2422 = vcmp.lt.s32.totalorder %v2412, 8
      %vm2423 = vcmp.lt.s32.totalorder %v2413, 8
      %vm2424 = vcmp.lt.s32.totalorder %v2414, 8
      %vm2425 = vcmp.lt.s32.totalorder %v2415, 8
      %vm2426 = vcmp.lt.s32.totalorder %v2416, 8
      %vm2427 = vcmp.lt.s32.totalorder %v2417, 8
      %vm2428 = vcmp.lt.s32.totalorder %v2418, 8
      %v2429 = vsel %vm2419, 1, 0
      %v2430 = vsel %vm2420, 1, 0
      %v2431 = vsel %vm2421, 1, 0
      %v2432 = vsel %vm2422, 1, 0
      %v2433 = vsel %vm2423, 1, 0
      %v2434 = vsel %vm2424, 1, 0
      %v2435 = vsel %vm2425, 1, 0
      %v2436 = vsel %vm2426, 1, 0
      %v2437 = vsel %vm2427, 1, 0
      %v2438 = vsel %vm2428, 1, 0
      %vm2439 = vcmp.eq.s32.totalorder %v2429, 1
      %vm2440 = vcmp.eq.s32.totalorder %v2430, 1
      %vm2441 = vcmp.eq.s32.totalorder %v2431, 1
      %vm2442 = vcmp.eq.s32.totalorder %v2432, 1
      %vm2443 = vcmp.eq.s32.totalorder %v2433, 1
      %vm2444 = vcmp.eq.s32.totalorder %v2434, 1
      %vm2445 = vcmp.eq.s32.totalorder %v2435, 1
      %vm2446 = vcmp.eq.s32.totalorder %v2436, 1
      %vm2447 = vcmp.eq.s32.totalorder %v2437, 1
      %vm2448 = vcmp.eq.s32.totalorder %v2438, 1
      %v2449 = vsel %vm2439, %v2048, 0.0
      %v2450 = vsel %vm2439, %v2049, 0.0
      %v2451 = vsel %vm2440, %v2050, 0.0
      %v2452 = vsel %vm2440, %v2051, 0.0
      %v2453 = vsel %vm2441, %v2052, 0.0
      %v2454 = vsel %vm2441, %v2053, 0.0
      %v2455 = vsel %vm2442, %v2054, 0.0
      %v2456 = vsel %vm2442, %v2055, 0.0
      %v2457 = vsel %vm2443, %v2056, 0.0
      %v2458 = vsel %vm2443, %v2057, 0.0
      %v2459 = vsel %vm2444, %v2058, 0.0
      %v2460 = vsel %vm2444, %v2059, 0.0
      %v2461 = vsel %vm2445, %v2060, 0.0
      %v2462 = vsel %vm2445, %v2061, 0.0
      %v2463 = vsel %vm2446, %v2062, 0.0
      %v2464 = vsel %vm2446, %v2063, 0.0
      %v2465 = vsel %vm2447, %v2064, 0.0
      %v2466 = vsel %vm2447, %v2065, 0.0
      %v2467 = vsel %vm2448, %v2066, 0.0
      %v2468 = vsel %vm2448, %v2067, 0.0
      %2469 = vst [vmem:[%s210] sm:$0xff] %v2449
      %2470 = vst [vmem:[%s210 + $0x8] sm:$0xff] %v2450
      %2471 = vst [vmem:[%s210 + $0x10] sm:$0xff] %v2451
      %2472 = vst [vmem:[%s210 + $0x18] sm:$0xff] %v2452
      %2473 = vst [vmem:[%s210 + $0x20] sm:$0xff] %v2453
      %2474 = vst [vmem:[%s210 + $0x28] sm:$0xff] %v2454
      %2475 = vst [vmem:[%s210 + $0x30] sm:$0xff] %v2455
      %2476 = vst [vmem:[%s210 + $0x38] sm:$0xff] %v2456
      %2477 = vst [vmem:[%s210 + $0x40] sm:$0xff] %v2457
      %2478 = vst [vmem:[%s210 + $0x48] sm:$0xff] %v2458
      %2479 = vst [vmem:[%s210 + $0x50] sm:$0xff] %v2459
      %2480 = vst [vmem:[%s210 + $0x58] sm:$0xff] %v2460
      %2481 = vst [vmem:[%s210 + $0x60] sm:$0xff] %v2461
      %2482 = vst [vmem:[%s210 + $0x68] sm:$0xff] %v2462
      %2483 = vst [vmem:[%s210 + $0x70] sm:$0xff] %v2463
      %2484 = vst [vmem:[%s210 + $0x78] sm:$0xff] %v2464
      %2485 = vst [vmem:[%s210 + $0x80] sm:$0xff] %v2465
      %2486 = vst [vmem:[%s210 + $0x88] sm:$0xff] %v2466
      %2487 = vst [vmem:[%s210 + $0x90] sm:$0xff] %v2467
      %2488 = vst [vmem:[%s210 + $0x98] sm:$0xff] %v2468
      %v2489 = vadd.f32 %v2449, %v2451
      %v2490 = vadd.f32 %v2489, %v2453
      %v2491 = vadd.f32 %v2490, %v2455
      %v2492 = vadd.f32 %v2491, %v2457
      %v2493 = vadd.f32 %v2492, %v2459
      %v2494 = vadd.f32 %v2493, %v2461
      %v2495 = vadd.f32 %v2494, %v2463
      %v2496 = vadd.f32 %v2495, %v2465
      %v2497 = vadd.f32 %v2496, %v2467
      %v2498 = vrot.slane %v2497, 4
      %v2499 = vadd.f32 %v2497, %v2498
      %v2500 = vrot.slane %v2499, 2
      %v2501 = vadd.f32 %v2499, %v2500
      %v2502 = vrot.slane %v2501, 1
      %v2503 = vadd.f32 %v2501, %v2502
      %v2504 = vadd.f32 %v2450, %v2452
      %v2505 = vadd.f32 %v2504, %v2454
      %v2506 = vadd.f32 %v2505, %v2456
      %v2507 = vadd.f32 %v2506, %v2458
      %v2508 = vadd.f32 %v2507, %v2460
      %v2509 = vadd.f32 %v2508, %v2462
      %v2510 = vadd.f32 %v2509, %v2464
      %v2511 = vadd.f32 %v2510, %v2466
      %v2512 = vadd.f32 %v2511, %v2468
      %v2513 = vrot.slane %v2512, 4
      %v2514 = vadd.f32 %v2512, %v2513
      %v2515 = vrot.slane %v2514, 2
      %v2516 = vadd.f32 %v2514, %v2515
      %v2517 = vrot.slane %v2516, 1
      %v2518 = vadd.f32 %v2516, %v2517
      %v2521 = vrot.slane %v2518, 7
      %vm2522 = vcmask 1040384
      %v2523 = vsel %vm2522, %v2503, %v2521
      %v2525 = vlaneseq
      %vm2526 = vcmp.ge.s32.totalorder %v2525, 0
      %vm2527 = vcmp.lt.s32.totalorder %v2525, 256
      %vm2528 = vmand %vm2526, %vm2527
      %2529 = vst.msk [vmem:[%s214] sm:$0x3] %vm2528, %v2523
      %v2530 = vmul.f32 %v2449, %v2449
      %v2531 = vmul.f32 %v2450, %v2450
      %v2532 = vmul.f32 %v2451, %v2451
      %v2533 = vmul.f32 %v2452, %v2452
      %v2534 = vmul.f32 %v2453, %v2453
      %v2535 = vmul.f32 %v2454, %v2454
      %v2536 = vmul.f32 %v2455, %v2455
      %v2537 = vmul.f32 %v2456, %v2456
      %v2538 = vmul.f32 %v2457, %v2457
      %v2539 = vmul.f32 %v2458, %v2458
      %v2540 = vmul.f32 %v2459, %v2459
      %v2541 = vmul.f32 %v2460, %v2460
      %v2542 = vmul.f32 %v2461, %v2461
      %v2543 = vmul.f32 %v2462, %v2462
      %v2544 = vmul.f32 %v2463, %v2463
      %v2545 = vmul.f32 %v2464, %v2464
      %v2546 = vmul.f32 %v2465, %v2465
      %v2547 = vmul.f32 %v2466, %v2466
      %v2548 = vmul.f32 %v2467, %v2467
      %v2549 = vmul.f32 %v2468, %v2468
      %v2550 = vadd.f32 %v2530, %v2532
      %v2551 = vadd.f32 %v2550, %v2534
      %v2552 = vadd.f32 %v2551, %v2536
      %v2553 = vadd.f32 %v2552, %v2538
      %v2554 = vadd.f32 %v2553, %v2540
      %v2555 = vadd.f32 %v2554, %v2542
      %v2556 = vadd.f32 %v2555, %v2544
      %v2557 = vadd.f32 %v2556, %v2546
      %v2558 = vadd.f32 %v2557, %v2548
      %v2559 = vrot.slane %v2558, 4
      %v2560 = vadd.f32 %v2558, %v2559
      %v2561 = vrot.slane %v2560, 2
      %v2562 = vadd.f32 %v2560, %v2561
      %v2563 = vrot.slane %v2562, 1
      %v2564 = vadd.f32 %v2562, %v2563
      %v2565 = vadd.f32 %v2531, %v2533
      %v2566 = vadd.f32 %v2565, %v2535
      %v2567 = vadd.f32 %v2566, %v2537
      %v2568 = vadd.f32 %v2567, %v2539
      %v2569 = vadd.f32 %v2568, %v2541
      %v2570 = vadd.f32 %v2569, %v2543
      %v2571 = vadd.f32 %v2570, %v2545
      %v2572 = vadd.f32 %v2571, %v2547
      %v2573 = vadd.f32 %v2572, %v2549
      %v2574 = vrot.slane %v2573, 4
      %v2575 = vadd.f32 %v2573, %v2574
      %v2576 = vrot.slane %v2575, 2
      %v2577 = vadd.f32 %v2575, %v2576
      %v2578 = vrot.slane %v2577, 1
      %v2579 = vadd.f32 %v2577, %v2578
      %v2582 = vrot.slane %v2579, 7
      %v2583 = vsel %vm2522, %v2564, %v2582
      %2585 = vst.msk [vmem:[%s218] sm:$0x3] %vm2528, %v2583
      %p2586 = scmp.lt.s32.totalorder %s16, 1
      %s2587 = scalar_select %p2586, %s16, 1
      %s2588 = smul.addr %s2587, 20
      %s2589 = smul.addr %s2588, 8
      %s2590 = scalar_lea.vmem %s2, %s2589
      %p2591 = scmp.lt.s32.totalorder %s16, 1
      %s2592 = scalar_select %p2591, %s16, 1
      %s2593 = smul.addr %s2592, 2
      %s2594 = scalar_lea.vmem %s3, %s2593
      %p2595 = scmp.lt.s32.totalorder %s16, 1
      %s2596 = scalar_select %p2595, %s16, 1
      %s2597 = smul.addr %s2596, 2
      %s2598 = scalar_lea.vmem %s4, %s2597
      // Predicated region
      $region29: #{decoder_forward.6} parent=27 // pred_check
        %p2599 = pneg %p81
      $region30: #{decoder_forward.6} parent=27 // pred_check_branch
        %2601 = sbr.rel (%p2599) target = $region32
      $region31: #{decoder_forward.6} parent=27 // pred_region
        _
      $region32: #{decoder_forward.6} parent=27 // pred_fallthru
        _
      // Predicated region
      $region33: #{decoder_forward.6} parent=27 // pred_check
        %p2602 = pneg %p107
      $region34: #{decoder_forward.6} parent=27 // pred_check_branch
        %2604 = sbr.rel (%p2602) target = $region36
      $region35: #{decoder_forward.6} parent=27 // pred_region
        _
      $region36: #{decoder_forward.6} parent=27 // pred_fallthru
        _
      // Predicated region
      $region37: #{decoder_forward.6} parent=27 // pred_check
        %p2605 = pneg %p133
      $region38: #{decoder_forward.6} parent=27 // pred_check_branch
        %2607 = sbr.rel (%p2605) target = $region40
      $region39: #{decoder_forward.6} parent=27 // pred_region
        _
      $region40: #{decoder_forward.6} parent=27 // pred_fallthru
        _
    $region28: #{decoder_forward.6} parent=5 // pred_fallthru
      _
    %p2608 = scmp.le.s32.totalorder 2, %s11
    // Predicated region
    $region41: #{decoder_forward.6} parent=5 // pred_check
      %p2609 = pneg %p2608
    $region42: #{decoder_forward.6} parent=5 // pred_check_branch
      %2611 = sbr.rel (%p2609) target = $region44
    $region43: #{decoder_forward.6} parent=5 // pred_region
      %s2612 = ssub.s32 %s11, 2
      // Predicated region
      $region45: #{decoder_forward.6} parent=43 // pred_check
        %p2613 = pneg %p87
      $region46: #{decoder_forward.6} parent=43 // pred_check_branch
        %2615 = sbr.rel (%p2613) target = $region48
      $region47: #{decoder_forward.6} parent=43 // pred_region
        %p2616 = scmp.lt.s32.totalorder %s17, 1
        %s2617 = scalar_select %p2616, %s17, 1
        %s2618 = smul.addr %s2617, 20
        %s2619 = smul.addr %s2618, 8
        %s2620 = scalar_lea.vmem %s2, %s2619
      $region48: #{decoder_forward.6} parent=43 // pred_fallthru
        _
      // Predicated region
      $region49: #{decoder_forward.6} parent=43 // pred_check
        %p2621 = pneg %p113
      $region50: #{decoder_forward.6} parent=43 // pred_check_branch
        %2623 = sbr.rel (%p2621) target = $region52
      $region51: #{decoder_forward.6} parent=43 // pred_region
        %p2624 = scmp.lt.s32.totalorder %s17, 1
        %s2625 = scalar_select %p2624, %s17, 1
        %s2626 = smul.addr %s2625, 2
        %s2627 = scalar_lea.vmem %s3, %s2626
      $region52: #{decoder_forward.6} parent=43 // pred_fallthru
        _
      // Predicated region
      $region53: #{decoder_forward.6} parent=43 // pred_check
        %p2628 = pneg %p139
      $region54: #{decoder_forward.6} parent=43 // pred_check_branch
        %2630 = sbr.rel (%p2628) target = $region56
      $region55: #{decoder_forward.6} parent=43 // pred_region
        %p2631 = scmp.lt.s32.totalorder %s17, 1
        %s2632 = scalar_select %p2631, %s17, 1
        %s2633 = smul.addr %s2632, 2
        %s2634 = scalar_lea.vmem %s4, %s2633
      $region56: #{decoder_forward.6} parent=43 // pred_fallthru
        _
    $region44: #{decoder_forward.6} parent=5 // pred_fallthru
      _
  $region6: #{decoder_forward.6} parent=0 // loop_footer
    %s15 = sadd.s32 1, %s11
  $region7: #{decoder_forward.6} parent=0 // loop_footer_branch
    %10 = sbr.rel target = $region3
  $region8: #{decoder_forward.6} parent=0 // loop_exit
    _

// kernel: decoder_forward.7
$region0: #{decoder_forward.7}
  #allocation0 [shape = 'u32[]', space=smem, size = 0x4, offset = 0x4, fixed_abs, tag = 'smem constant byte address 0x4 - core index']
  #allocation1 [shape = 'u32[72,128]{1,0:T(1,128)}', space=vmem, size = 0x9000, scoped, tag = 'internal scratch']
  %s0 = inlined_call_operand.vmem [shape: f32[2,328,64], index: 0, kind: input, shape index: {}]
  %s1 = inlined_call_operand.vmem [shape: bf16[9,64,12], index: 1, kind: input, shape index: {}]
  %s2 = inlined_call_operand.vmem [shape: f32[2,288,12], index: 2, kind: output, shape index: {0}]
  %s3 = inlined_call_operand.vmem [shape: f32[2,1,12], index: 3, kind: output, shape index: {1}]
  %s4 = inlined_call_operand.vmem [shape: f32[2,1,12], index: 4, kind: output, shape index: {2}]
  %5 = xla_tuple %s2, %s3, %s4
  %s6 = sld [smem:[#allocation0]]
  $region57: #{decoder_forward.7} parent=0
    _
  %s8 = ssub.s32 1, %s6
  %s9 = scalar_select 0, %s8, %s6
  loop: start=0, step=1, limit=4
  $region2: #{decoder_forward.7} parent=0 // loop_pre_header
    _
  $region3: #{decoder_forward.7} parent=0 // loop_header
    %s11 = sphi 0, %s15
    %p12 = scmp.ge.s32.totalorder %s11, 4
    %s21 = sphi 0, %s23
    %s24 = sphi 0, %s21
    %s25 = sphi 0, %s24
    %s41 = sphi 0, %s25
    %s45 = sphi 0, %s45
    %s47 = sphi 0, %s45
    %s48 = sphi 0, %s47
    %s62 = sphi 0, %s48
    %s68 = sphi 0, %s70
    %s71 = sphi 0, %s68
    %s72 = sphi 0, %s71
    %s88 = sphi 0, %s72
    %s94 = sphi 0, %s96
    %s97 = sphi 0, %s94
    %s98 = sphi 0, %s97
    %s114 = sphi 0, %s98
    %s120 = sphi 0, %s122
    %s123 = sphi 0, %s120
    %s124 = sphi 0, %s123
    %s140 = sphi 0, %s124
  $region4: #{decoder_forward.7} parent=0 // loop_header_branch
    %14 = sbr.rel (%p12) target = $region8
  $region5: #{decoder_forward.7} parent=0 // loop_body
    %s16 = ssub.s32 %s11, 1
    %s17 = ssub.s32 %s11, 2
    %s18 = sadd.s32 %s11, 1
    %s19 = ssub.s32 %s11, %s18
    %p20 = scmp.eq.s32.totalorder %s19, 0
    %s22 = sadd.s32 %s21, 1
    %s23 = scalar_select %p20, %s21, %s22
    %p26 = pneg %p20
    %p27 = scmp.eq.s32.totalorder %s11, 1
    %p28 = por %p26, %p27
    %p29 = scmp.ne.s32.totalorder %s21, %s24
    %p30 = scmp.eq.s32.totalorder %s11, 0
    %p31 = por %p29, %p30
    %p32 = scmp.ne.s32.totalorder %s21, %s24
    %p33 = scmp.eq.s32.totalorder %s16, 1
    %p34 = por %p32, %p33
    %p35 = scmp.ne.s32.totalorder %s24, %s25
    %p36 = scmp.eq.s32.totalorder %s16, 0
    %p37 = por %p35, %p36
    %p38 = scmp.ne.s32.totalorder %s24, %s25
    %p39 = scmp.eq.s32.totalorder %s17, 1
    %p40 = por %p38, %p39
    %p42 = scmp.ne.s32.totalorder %s25, %s41
    %p43 = scmp.eq.s32.totalorder %s17, 0
    %p44 = por %p42, %p43
    %s46 = sadd.s32 %s45, 1
    %p49 = scmp.eq.s32.totalorder %s11, 1
    %p50 = scmp.ne.s32.totalorder %s45, %s47
    %p51 = scmp.eq.s32.totalorder %s11, 0
    %p52 = por %p50, %p51
    %p53 = scmp.ne.s32.totalorder %s45, %s47
    %p54 = scmp.eq.s32.totalorder %s16, 1
    %p55 = por %p53, %p54
    %p56 = scmp.ne.s32.totalorder %s47, %s48
    %p57 = scmp.eq.s32.totalorder %s16, 0
    %p58 = por %p56, %p57
    %p59 = scmp.ne.s32.totalorder %s47, %s48
    %p60 = scmp.eq.s32.totalorder %s17, 1
    %p61 = por %p59, %p60
    %p63 = scmp.ne.s32.totalorder %s48, %s62
    %p64 = scmp.eq.s32.totalorder %s17, 0
    %p65 = por %p63, %p64
    %s66 = ssub.s32 %s11, %s18
    %p67 = scmp.eq.s32.totalorder %s66, 0
    %s69 = sadd.s32 %s68, 1
    %s70 = scalar_select %p67, %s68, %s69
    %p73 = pneg %p67
    %p74 = scmp.eq.s32.totalorder %s11, 1
    %p75 = por %p73, %p74
    %p76 = scmp.ne.s32.totalorder %s68, %s71
    %p77 = scmp.eq.s32.totalorder %s11, 0
    %p78 = por %p76, %p77
    %p79 = scmp.ne.s32.totalorder %s68, %s71
    %p80 = scmp.eq.s32.totalorder %s16, 1
    %p81 = por %p79, %p80
    %p82 = scmp.ne.s32.totalorder %s71, %s72
    %p83 = scmp.eq.s32.totalorder %s16, 0
    %p84 = por %p82, %p83
    %p85 = scmp.ne.s32.totalorder %s71, %s72
    %p86 = scmp.eq.s32.totalorder %s17, 1
    %p87 = por %p85, %p86
    %p89 = scmp.ne.s32.totalorder %s72, %s88
    %p90 = scmp.eq.s32.totalorder %s17, 0
    %p91 = por %p89, %p90
    %s92 = ssub.s32 %s11, %s18
    %p93 = scmp.eq.s32.totalorder %s92, 0
    %s95 = sadd.s32 %s94, 1
    %s96 = scalar_select %p93, %s94, %s95
    %p99 = pneg %p93
    %p100 = scmp.eq.s32.totalorder %s11, 1
    %p101 = por %p99, %p100
    %p102 = scmp.ne.s32.totalorder %s94, %s97
    %p103 = scmp.eq.s32.totalorder %s11, 0
    %p104 = por %p102, %p103
    %p105 = scmp.ne.s32.totalorder %s94, %s97
    %p106 = scmp.eq.s32.totalorder %s16, 1
    %p107 = por %p105, %p106
    %p108 = scmp.ne.s32.totalorder %s97, %s98
    %p109 = scmp.eq.s32.totalorder %s16, 0
    %p110 = por %p108, %p109
    %p111 = scmp.ne.s32.totalorder %s97, %s98
    %p112 = scmp.eq.s32.totalorder %s17, 1
    %p113 = por %p111, %p112
    %p115 = scmp.ne.s32.totalorder %s98, %s114
    %p116 = scmp.eq.s32.totalorder %s17, 0
    %p117 = por %p115, %p116
    %s118 = ssub.s32 %s11, %s18
    %p119 = scmp.eq.s32.totalorder %s118, 0
    %s121 = sadd.s32 %s120, 1
    %s122 = scalar_select %p119, %s120, %s121
    %p125 = pneg %p119
    %p126 = scmp.eq.s32.totalorder %s11, 1
    %p127 = por %p125, %p126
    %p128 = scmp.ne.s32.totalorder %s120, %s123
    %p129 = scmp.eq.s32.totalorder %s11, 0
    %p130 = por %p128, %p129
    %p131 = scmp.ne.s32.totalorder %s120, %s123
    %p132 = scmp.eq.s32.totalorder %s16, 1
    %p133 = por %p131, %p132
    %p134 = scmp.ne.s32.totalorder %s123, %s124
    %p135 = scmp.eq.s32.totalorder %s16, 0
    %p136 = por %p134, %p135
    %p137 = scmp.ne.s32.totalorder %s123, %s124
    %p138 = scmp.eq.s32.totalorder %s17, 1
    %p139 = por %p137, %p138
    %p141 = scmp.ne.s32.totalorder %s124, %s140
    %p142 = scmp.eq.s32.totalorder %s17, 0
    %p143 = por %p141, %p142
    %p144 = scmp.le.s32.totalorder 1, %s11
    %p145 = scmp.lt.s32.totalorder %s11, 3
    %p146 = pnand %p144, %p145
    %p147 = pneg %p146
    // Predicated region
    $region9: #{decoder_forward.7} parent=5 // pred_check
      _
    $region10: #{decoder_forward.7} parent=5 // pred_check_branch
      %149 = sbr.rel (%p146) target = $region12
    $region11: #{decoder_forward.7} parent=5 // pred_region
      %s150 = ssub.s32 %s11, 1
      // Predicated region
      $region13: #{decoder_forward.7} parent=11 // pred_check
        %p151 = pneg %p58
      $region14: #{decoder_forward.7} parent=11 // pred_check_branch
        %153 = sbr.rel (%p151) target = $region16
      $region15: #{decoder_forward.7} parent=11 // pred_region
        _
      $region16: #{decoder_forward.7} parent=11 // pred_fallthru
        _
    $region12: #{decoder_forward.7} parent=5 // pred_fallthru
      _
    %p154 = scmp.lt.s32.totalorder %s11, 2
    // Predicated region
    $region17: #{decoder_forward.7} parent=5 // pred_check
      %p155 = pneg %p154
    $region18: #{decoder_forward.7} parent=5 // pred_check_branch
      %157 = sbr.rel (%p155) target = $region20
    $region19: #{decoder_forward.7} parent=5 // pred_region
      // Predicated region
      $region21: #{decoder_forward.7} parent=19 // pred_check
        %p158 = pneg %p31
      $region22: #{decoder_forward.7} parent=19 // pred_check_branch
        %160 = sbr.rel (%p158) target = $region24
      $region23: #{decoder_forward.7} parent=19 // pred_region
        %p161 = scmp.lt.s32.totalorder %s11, 1
        %s162 = scalar_select %p161, %s11, 1
        %s163 = smul.addr %s162, 41
        %s164 = smul.addr %s163, 8
        %s165 = scalar_lea.vmem %s0, %s164
      $region24: #{decoder_forward.7} parent=19 // pred_fallthru
        _
    $region20: #{decoder_forward.7} parent=5 // pred_fallthru
      _
    %p166 = scmp.le.s32.totalorder 1, %s11
    %p167 = scmp.lt.s32.totalorder %s11, 3
    %p168 = pnand %p166, %p167
    %p169 = pneg %p168
    // Predicated region
    $region25: #{decoder_forward.7} parent=5 // pred_check
      _
    $region26: #{decoder_forward.7} parent=5 // pred_check_branch
      %171 = sbr.rel (%p168) target = $region28
    $region27: #{decoder_forward.7} parent=5 // pred_region
      %s172 = ssub.s32 %s11, 1
      %p173 = scmp.lt.s32.totalorder %s16, 1
      %s174 = scalar_select %p173, %s16, 1
      %s175 = smul.addr %s174, 41
      %s176 = smul.addr %s175, 8
      %s177 = scalar_lea.vmem %s0, %s176
      %p178 = pneg %p37
      %p179 = pneg %p34
      %p180 = pneg %p58
      %p181 = pneg %p55
      %p182 = pneg %p84
      %p183 = pneg %p81
      %p184 = scmp.lt.s32.totalorder %s16, 1
      %s185 = scalar_select %p184, %s16, 1
      %s186 = smul.addr %s185, 36
      %s187 = smul.addr %s186, 8
      %s188 = scalar_lea.vmem %s2, %s187
      %p189 = pneg %p110
      %p190 = pneg %p107
      %p191 = scmp.lt.s32.totalorder %s16, 1
      %s192 = scalar_select %p191, %s16, 1
      %s193 = scalar_lea.vmem %s3, %s192
      %p194 = pneg %p136
      %p195 = pneg %p133
      %p196 = scmp.lt.s32.totalorder %s16, 1
      %s197 = scalar_select %p196, %s16, 1
      %s198 = scalar_lea.vmem %s4, %s197
      %p199 = scmp.lt.s32.totalorder %s16, 1
      %s200 = scalar_select %p199, %s16, 1
      %s201 = smul.addr %s200, 41
      %s202 = smul.addr %s201, 8
      %s203 = scalar_lea.vmem %s0, %s202
      %p204 = scmp.lt.s32.totalorder %s16, 1
      %s205 = scalar_select %p204, %s16, 1
      %s206 = smul.addr %s205, 36
      %s207 = smul.addr %s206, 8
      %s208 = scalar_lea.vmem %s2, %s207
      %p209 = scmp.lt.s32.totalorder %s16, 1
      %s210 = scalar_select %p209, %s16, 1
      %s211 = scalar_lea.vmem %s3, %s210
      %p212 = scmp.lt.s32.totalorder %s16, 1
      %s213 = scalar_select %p212, %s16, 1
      %s214 = scalar_lea.vmem %s4, %s213
      %v216 = vld [vmem:[%s203] sm:$0xff]
      %v217 = vld [vmem:[%s203 + $0x8] sm:$0xff]
      %v218 = vld [vmem:[%s203 + $0x10] sm:$0xff]
      %v219 = vld [vmem:[%s203 + $0x18] sm:$0xff]
      %v220 = vld [vmem:[%s203 + $0x20] sm:$0xff]
      %v221 = vld [vmem:[%s203 + $0x28] sm:$0xff]
      %v222 = vld [vmem:[%s203 + $0x30] sm:$0xff]
      %v223 = vld [vmem:[%s203 + $0x38] sm:$0xff]
      %v224 = vld [vmem:[%s203 + $0x40] sm:$0xff]
      %v225 = vld [vmem:[%s203 + $0x48] sm:$0xff]
      %v226 = vld [vmem:[%s203 + $0x50] sm:$0xff]
      %v227 = vld [vmem:[%s203 + $0x58] sm:$0xff]
      %v228 = vld [vmem:[%s203 + $0x60] sm:$0xff]
      %v229 = vld [vmem:[%s203 + $0x68] sm:$0xff]
      %v230 = vld [vmem:[%s203 + $0x70] sm:$0xff]
      %v231 = vld [vmem:[%s203 + $0x78] sm:$0xff]
      %v232 = vld [vmem:[%s203 + $0x80] sm:$0xff]
      %v233 = vld [vmem:[%s203 + $0x88] sm:$0xff]
      %v234 = vld [vmem:[%s203 + $0x90] sm:$0xff]
      %v235 = vld [vmem:[%s203 + $0x98] sm:$0xff]
      %v236 = vld [vmem:[%s203 + $0xa0] sm:$0xff]
      %v237 = vld [vmem:[%s203 + $0xa8] sm:$0xff]
      %v238 = vld [vmem:[%s203 + $0xb0] sm:$0xff]
      %v239 = vld [vmem:[%s203 + $0xb8] sm:$0xff]
      %v240 = vld [vmem:[%s203 + $0xc0] sm:$0xff]
      %v241 = vld [vmem:[%s203 + $0xc8] sm:$0xff]
      %v242 = vld [vmem:[%s203 + $0xd0] sm:$0xff]
      %v243 = vld [vmem:[%s203 + $0xd8] sm:$0xff]
      %v244 = vld [vmem:[%s203 + $0xe0] sm:$0xff]
      %v245 = vld [vmem:[%s203 + $0xe8] sm:$0xff]
      %v246 = vld [vmem:[%s203 + $0xf0] sm:$0xff]
      %v247 = vld [vmem:[%s203 + $0xf8] sm:$0xff]
      %v248 = vld [vmem:[%s203 + $0x100] sm:$0xff]
      %v249 = vld [vmem:[%s203 + $0x108] sm:$0xff]
      %v250 = vld [vmem:[%s203 + $0x110] sm:$0xff]
      %v251 = vld [vmem:[%s203 + $0x118] sm:$0xff]
      %v252 = vmax.f32 %v216, 0.0
      %v253 = vmax.f32 %v217, 0.0
      %v254 = vmax.f32 %v218, 0.0
      %v255 = vmax.f32 %v219, 0.0
      %v256 = vmax.f32 %v220, 0.0
      %v257 = vmax.f32 %v221, 0.0
      %v258 = vmax.f32 %v222, 0.0
      %v259 = vmax.f32 %v223, 0.0
      %v260 = vmax.f32 %v224, 0.0
      %v261 = vmax.f32 %v225, 0.0
      %v262 = vmax.f32 %v226, 0.0
      %v263 = vmax.f32 %v227, 0.0
      %v264 = vmax.f32 %v228, 0.0
      %v265 = vmax.f32 %v229, 0.0
      %v266 = vmax.f32 %v230, 0.0
      %v267 = vmax.f32 %v231, 0.0
      %v268 = vmax.f32 %v232, 0.0
      %v269 = vmax.f32 %v233, 0.0
      %v270 = vmax.f32 %v234, 0.0
      %v271 = vmax.f32 %v235, 0.0
      %v272 = vmax.f32 %v236, 0.0
      %v273 = vmax.f32 %v237, 0.0
      %v274 = vmax.f32 %v238, 0.0
      %v275 = vmax.f32 %v239, 0.0
      %v276 = vmax.f32 %v240, 0.0
      %v277 = vmax.f32 %v241, 0.0
      %v278 = vmax.f32 %v242, 0.0
      %v279 = vmax.f32 %v243, 0.0
      %v280 = vmax.f32 %v244, 0.0
      %v281 = vmax.f32 %v245, 0.0
      %v282 = vmax.f32 %v246, 0.0
      %v283 = vmax.f32 %v247, 0.0
      %v284 = vmax.f32 %v248, 0.0
      %v285 = vmax.f32 %v249, 0.0
      %v286 = vmax.f32 %v250, 0.0
      %v287 = vmax.f32 %v251, 0.0
      %v288 = vpack.c.bf16 %v253, %v252
      %v289 = vpack.c.bf16 %v255, %v254
      %v290 = vpack.c.bf16 %v257, %v256
      %v291 = vpack.c.bf16 %v259, %v258
      %v292 = vpack.c.bf16 %v261, %v260
      %v293 = vpack.c.bf16 %v263, %v262
      %v294 = vpack.c.bf16 %v265, %v264
      %v295 = vpack.c.bf16 %v267, %v266
      %v296 = vpack.c.bf16 %v269, %v268
      %v297 = vpack.c.bf16 %v271, %v270
      %v298 = vpack.c.bf16 %v273, %v272
      %v299 = vpack.c.bf16 %v275, %v274
      %v300 = vpack.c.bf16 %v277, %v276
      %v301 = vpack.c.bf16 %v279, %v278
      %v302 = vpack.c.bf16 %v281, %v280
      %v303 = vpack.c.bf16 %v283, %v282
      %v304 = vpack.c.bf16 %v285, %v284
      %v305 = vpack.c.bf16 %v287, %v286
      %v306 = vld [vmem:[%s1] sm:$0xf]
      %v307 = vld [vmem:[%s1 + $0x4] sm:$0xf]
      %v308 = vld [vmem:[%s1 + $0x8] sm:$0xf]
      %v309 = vld [vmem:[%s1 + $0xc] sm:$0xf]
      %v310 = vld [vmem:[%s1 + $0x10] sm:$0xf]
      %v311 = vld [vmem:[%s1 + $0x14] sm:$0xf]
      %v312 = vld [vmem:[%s1 + $0x18] sm:$0xf]
      %v313 = vld [vmem:[%s1 + $0x1c] sm:$0xf]
      %v314 = vld [vmem:[%s203 + $0x1] sm:$0xff]
      %v315 = vld [vmem:[%s203 + $0x9] sm:$0xff]
      %v316 = vld [vmem:[%s203 + $0x11] sm:$0xff]
      %v317 = vld [vmem:[%s203 + $0x19] sm:$0xff]
      %v318 = vld [vmem:[%s203 + $0x21] sm:$0xff]
      %v319 = vld [vmem:[%s203 + $0x29] sm:$0xff]
      %v320 = vld [vmem:[%s203 + $0x31] sm:$0xff]
      %v321 = vld [vmem:[%s203 + $0x39] sm:$0xff]
      %v322 = vld [vmem:[%s203 + $0x41] sm:$0xff]
      %v323 = vld [vmem:[%s203 + $0x49] sm:$0xff]
      %v324 = vld [vmem:[%s203 + $0x51] sm:$0xff]
      %v325 = vld [vmem:[%s203 + $0x59] sm:$0xff]
      %v326 = vld [vmem:[%s203 + $0x61] sm:$0xff]
      %v327 = vld [vmem:[%s203 + $0x69] sm:$0xff]
      %v328 = vld [vmem:[%s203 + $0x71] sm:$0xff]
      %v329 = vld [vmem:[%s203 + $0x79] sm:$0xff]
      %v330 = vld [vmem:[%s203 + $0x81] sm:$0xff]
      %v331 = vld [vmem:[%s203 + $0x89] sm:$0xff]
      %v332 = vld [vmem:[%s203 + $0x91] sm:$0xff]
      %v333 = vld [vmem:[%s203 + $0x99] sm:$0xff]
      %v334 = vld [vmem:[%s203 + $0xa1] sm:$0xff]
      %v335 = vld [vmem:[%s203 + $0xa9] sm:$0xff]
      %v336 = vld [vmem:[%s203 + $0xb1] sm:$0xff]
      %v337 = vld [vmem:[%s203 + $0xb9] sm:$0xff]
      %v338 = vld [vmem:[%s203 + $0xc1] sm:$0xff]
      %v339 = vld [vmem:[%s203 + $0xc9] sm:$0xff]
      %v340 = vld [vmem:[%s203 + $0xd1] sm:$0xff]
      %v341 = vld [vmem:[%s203 + $0xd9] sm:$0xff]
      %v342 = vld [vmem:[%s203 + $0xe1] sm:$0xff]
      %v343 = vld [vmem:[%s203 + $0xe9] sm:$0xff]
      %v344 = vld [vmem:[%s203 + $0xf1] sm:$0xff]
      %v345 = vld [vmem:[%s203 + $0xf9] sm:$0xff]
      %v346 = vld [vmem:[%s203 + $0x101] sm:$0xff]
      %v347 = vld [vmem:[%s203 + $0x109] sm:$0xff]
      %v348 = vld [vmem:[%s203 + $0x111] sm:$0xff]
      %v349 = vld [vmem:[%s203 + $0x119] sm:$0xff]
      %v350 = vmax.f32 %v314, 0.0
      %v351 = vmax.f32 %v315, 0.0
      %v352 = vmax.f32 %v316, 0.0
      %v353 = vmax.f32 %v317, 0.0
      %v354 = vmax.f32 %v318, 0.0
      %v355 = vmax.f32 %v319, 0.0
      %v356 = vmax.f32 %v320, 0.0
      %v357 = vmax.f32 %v321, 0.0
      %v358 = vmax.f32 %v322, 0.0
      %v359 = vmax.f32 %v323, 0.0
      %v360 = vmax.f32 %v324, 0.0
      %v361 = vmax.f32 %v325, 0.0
      %v362 = vmax.f32 %v326, 0.0
      %v363 = vmax.f32 %v327, 0.0
      %v364 = vmax.f32 %v328, 0.0
      %v365 = vmax.f32 %v329, 0.0
      %v366 = vmax.f32 %v330, 0.0
      %v367 = vmax.f32 %v331, 0.0
      %v368 = vmax.f32 %v332, 0.0
      %v369 = vmax.f32 %v333, 0.0
      %v370 = vmax.f32 %v334, 0.0
      %v371 = vmax.f32 %v335, 0.0
      %v372 = vmax.f32 %v336, 0.0
      %v373 = vmax.f32 %v337, 0.0
      %v374 = vmax.f32 %v338, 0.0
      %v375 = vmax.f32 %v339, 0.0
      %v376 = vmax.f32 %v340, 0.0
      %v377 = vmax.f32 %v341, 0.0
      %v378 = vmax.f32 %v342, 0.0
      %v379 = vmax.f32 %v343, 0.0
      %v380 = vmax.f32 %v344, 0.0
      %v381 = vmax.f32 %v345, 0.0
      %v382 = vmax.f32 %v346, 0.0
      %v383 = vmax.f32 %v347, 0.0
      %v384 = vmax.f32 %v348, 0.0
      %v385 = vmax.f32 %v349, 0.0
      %v386 = vpack.c.bf16 %v351, %v350
      %v387 = vpack.c.bf16 %v353, %v352
      %v388 = vpack.c.bf16 %v355, %v354
      %v389 = vpack.c.bf16 %v357, %v356
      %v390 = vpack.c.bf16 %v359, %v358
      %v391 = vpack.c.bf16 %v361, %v360
      %v392 = vpack.c.bf16 %v363, %v362
      %v393 = vpack.c.bf16 %v365, %v364
      %v394 = vpack.c.bf16 %v367, %v366
      %v395 = vpack.c.bf16 %v369, %v368
      %v396 = vpack.c.bf16 %v371, %v370
      %v397 = vpack.c.bf16 %v373, %v372
      %v398 = vpack.c.bf16 %v375, %v374
      %v399 = vpack.c.bf16 %v377, %v376
      %v400 = vpack.c.bf16 %v379, %v378
      %v401 = vpack.c.bf16 %v381, %v380
      %v402 = vpack.c.bf16 %v383, %v382
      %v403 = vpack.c.bf16 %v385, %v384
      %s404 = scalar_lea.vmem %s1, 32
      %v405 = vld [vmem:[%s404] sm:$0xf]
      %v406 = vld [vmem:[%s404 + $0x4] sm:$0xf]
      %v407 = vld [vmem:[%s404 + $0x8] sm:$0xf]
      %v408 = vld [vmem:[%s404 + $0xc] sm:$0xf]
      %v409 = vld [vmem:[%s404 + $0x10] sm:$0xf]
      %v410 = vld [vmem:[%s404 + $0x14] sm:$0xf]
      %v411 = vld [vmem:[%s404 + $0x18] sm:$0xf]
      %v412 = vld [vmem:[%s404 + $0x1c] sm:$0xf]
      %v421 = vunpack.c.l.b16 %v405
      %v422 = vunpack.c.l.b16 %v406
      %v423 = vunpack.c.l.b16 %v407
      %v424 = vunpack.c.l.b16 %v408
      %v425 = vunpack.c.l.b16 %v409
      %v426 = vunpack.c.l.b16 %v410
      %v427 = vunpack.c.l.b16 %v411
      %v428 = vunpack.c.l.b16 %v412
      %v429 = vpack.c.b16 %v422, %v421
      %v430 = vpack.c.b16 %v424, %v423
      %v431 = vpack.c.b16 %v426, %v425
      %v432 = vpack.c.b16 %v428, %v427
      %vm437 = vcmask 523264
      %v439 = vsel %vm437, %v386, 0
      %v442 = vsel %vm437, %v387, 0
      %v445 = vsel %vm437, %v388, 0
      %v448 = vsel %vm437, %v389, 0
      %v451 = vsel %vm437, %v390, 0
      %v454 = vsel %vm437, %v391, 0
      %v457 = vsel %vm437, %v392, 0
      %v460 = vsel %vm437, %v393, 0
      %v463 = vsel %vm437, %v394, 0
      %v466 = vsel %vm437, %v395, 0
      %v469 = vsel %vm437, %v396, 0
      %v472 = vsel %vm437, %v397, 0
      %v475 = vsel %vm437, %v398, 0
      %v478 = vsel %vm437, %v399, 0
      %v481 = vsel %vm437, %v400, 0
      %v484 = vsel %vm437, %v401, 0
      %v487 = vsel %vm437, %v402, 0
      %v490 = vsel %vm437, %v403, 0
      %492 = vmatpush.bf16.msra.mxu0 0
      %493 = vmatpush.bf16.msra.mxu0 0
      %494 = vmatpush.bf16.msra.mxu0 0
      %495 = vmatpush.bf16.msra.mxu0 0
      %496 = vmatpush.bf16.msra.mxu0 %v432
      %497 = vmatpush.bf16.msra.mxu0 %v431
      %498 = vmatpush.bf16.msra.mxu0 %v430
      %499 = vmatpush.bf16.msra.mxu0 %v429
      %500 = vmatmul.bf16.gmra.mxu0 %v439
      %v501 = vpop.f32.mrf.mxu0
      %v502 = vadd.f32 0.0, %v501
      %v503 = vpop.f32.mrf.mxu0
      %v504 = vadd.f32 0.0, %v503
      %505 = vmatmul.bf16.gmra.mxu0 %v442
      %v506 = vpop.f32.mrf.mxu0
      %v507 = vadd.f32 0.0, %v506
      %v508 = vpop.f32.mrf.mxu0
      %v509 = vadd.f32 0.0, %v508
      %510 = vmatmul.bf16.gmra.mxu0 %v445
      %v511 = vpop.f32.mrf.mxu0
      %v512 = vadd.f32 0.0, %v511
      %v513 = vpop.f32.mrf.mxu0
      %v514 = vadd.f32 0.0, %v513
      %515 = vmatmul.bf16.gmra.mxu0 %v448
      %v516 = vpop.f32.mrf.mxu0
      %v517 = vadd.f32 0.0, %v516
      %v518 = vpop.f32.mrf.mxu0
      %v519 = vadd.f32 0.0, %v518
      %520 = vmatmul.bf16.gmra.mxu0 %v451
      %v521 = vpop.f32.mrf.mxu0
      %v522 = vadd.f32 0.0, %v521
      %v523 = vpop.f32.mrf.mxu0
      %v524 = vadd.f32 0.0, %v523
      %525 = vmatmul.bf16.gmra.mxu0 %v454
      %v526 = vpop.f32.mrf.mxu0
      %v527 = vadd.f32 0.0, %v526
      %v528 = vpop.f32.mrf.mxu0
      %v529 = vadd.f32 0.0, %v528
      %530 = vmatmul.bf16.gmra.mxu0 %v457
      %v531 = vpop.f32.mrf.mxu0
      %v532 = vadd.f32 0.0, %v531
      %v533 = vpop.f32.mrf.mxu0
      %v534 = vadd.f32 0.0, %v533
      %535 = vmatmul.bf16.gmra.mxu0 %v460
      %v536 = vpop.f32.mrf.mxu0
      %v537 = vadd.f32 0.0, %v536
      %v538 = vpop.f32.mrf.mxu0
      %v539 = vadd.f32 0.0, %v538
      %540 = vmatmul.bf16.gmra.mxu0 %v463
      %v541 = vpop.f32.mrf.mxu0
      %v542 = vadd.f32 0.0, %v541
      %v543 = vpop.f32.mrf.mxu0
      %v544 = vadd.f32 0.0, %v543
      %545 = vmatmul.bf16.gmra.mxu0 %v466
      %v546 = vpop.f32.mrf.mxu0
      %v547 = vadd.f32 0.0, %v546
      %v548 = vpop.f32.mrf.mxu0
      %v549 = vadd.f32 0.0, %v548
      %550 = vmatmul.bf16.gmra.mxu0 %v469
      %v551 = vpop.f32.mrf.mxu0
      %v552 = vadd.f32 0.0, %v551
      %v553 = vpop.f32.mrf.mxu0
      %v554 = vadd.f32 0.0, %v553
      %555 = vmatmul.bf16.gmra.mxu0 %v472
      %v556 = vpop.f32.mrf.mxu0
      %v557 = vadd.f32 0.0, %v556
      %v558 = vpop.f32.mrf.mxu0
      %v559 = vadd.f32 0.0, %v558
      %560 = vmatmul.bf16.gmra.mxu0 %v475
      %v561 = vpop.f32.mrf.mxu0
      %v562 = vadd.f32 0.0, %v561
      %v563 = vpop.f32.mrf.mxu0
      %v564 = vadd.f32 0.0, %v563
      %565 = vmatmul.bf16.gmra.mxu0 %v478
      %v566 = vpop.f32.mrf.mxu0
      %v567 = vadd.f32 0.0, %v566
      %v568 = vpop.f32.mrf.mxu0
      %v569 = vadd.f32 0.0, %v568
      %570 = vmatmul.bf16.gmra.mxu0 %v481
      %v571 = vpop.f32.mrf.mxu0
      %v572 = vadd.f32 0.0, %v571
      %v573 = vpop.f32.mrf.mxu0
      %v574 = vadd.f32 0.0, %v573
      %575 = vmatmul.bf16.gmra.mxu0 %v484
      %v576 = vpop.f32.mrf.mxu0
      %v577 = vadd.f32 0.0, %v576
      %v578 = vpop.f32.mrf.mxu0
      %v579 = vadd.f32 0.0, %v578
      %580 = vmatmul.bf16.gmra.mxu0 %v487
      %v581 = vpop.f32.mrf.mxu0
      %v582 = vadd.f32 0.0, %v581
      %v583 = vpop.f32.mrf.mxu0
      %v584 = vadd.f32 0.0, %v583
      %585 = vmatmul.bf16.gmra.mxu0 %v490
      %v586 = vpop.f32.mrf.mxu0
      %v587 = vadd.f32 0.0, %v586
      %v588 = vpop.f32.mrf.mxu0
      %v589 = vadd.f32 0.0, %v588
      %590 = vdwg.mxu0
      %v599 = vunpack.c.l.b16 %v306
      %v600 = vunpack.c.l.b16 %v307
      %v601 = vunpack.c.l.b16 %v308
      %v602 = vunpack.c.l.b16 %v309
      %v603 = vunpack.c.l.b16 %v310
      %v604 = vunpack.c.l.b16 %v311
      %v605 = vunpack.c.l.b16 %v312
      %v606 = vunpack.c.l.b16 %v313
      %v607 = vpack.c.b16 %v600, %v599
      %v608 = vpack.c.b16 %v602, %v601
      %v609 = vpack.c.b16 %v604, %v603
      %v610 = vpack.c.b16 %v606, %v605
      %v616 = vsel %vm437, %v288, 0
      %v619 = vsel %vm437, %v289, 0
      %v622 = vsel %vm437, %v290, 0
      %v625 = vsel %vm437, %v291, 0
      %v628 = vsel %vm437, %v292, 0
      %v631 = vsel %vm437, %v293, 0
      %v634 = vsel %vm437, %v294, 0
      %v637 = vsel %vm437, %v295, 0
      %v640 = vsel %vm437, %v296, 0
      %v643 = vsel %vm437, %v297, 0
      %v646 = vsel %vm437, %v298, 0
      %v649 = vsel %vm437, %v299, 0
      %v652 = vsel %vm437, %v300, 0
      %v655 = vsel %vm437, %v301, 0
      %v658 = vsel %vm437, %v302, 0
      %v661 = vsel %vm437, %v303, 0
      %v664 = vsel %vm437, %v304, 0
      %v667 = vsel %vm437, %v305, 0
      %669 = vmatpush.bf16.msra.mxu0 0
      %670 = vmatpush.bf16.msra.mxu0 0
      %671 = vmatpush.bf16.msra.mxu0 0
      %672 = vmatpush.bf16.msra.mxu0 0
      %673 = vmatpush.bf16.msra.mxu0 %v610
      %674 = vmatpush.bf16.msra.mxu0 %v609
      %675 = vmatpush.bf16.msra.mxu0 %v608
      %676 = vmatpush.bf16.msra.mxu0 %v607
      %677 = vmatmul.bf16.gmra.mxu0 %v616
      %v678 = vpop.f32.mrf.mxu0
      %v679 = vadd.f32 %v502, %v678
      %v680 = vpop.f32.mrf.mxu0
      %v681 = vadd.f32 %v504, %v680
      %682 = vmatmul.bf16.gmra.mxu0 %v619
      %v683 = vpop.f32.mrf.mxu0
      %v684 = vadd.f32 %v507, %v683
      %v685 = vpop.f32.mrf.mxu0
      %v686 = vadd.f32 %v509, %v685
      %687 = vmatmul.bf16.gmra.mxu0 %v622
      %v688 = vpop.f32.mrf.mxu0
      %v689 = vadd.f32 %v512, %v688
      %v690 = vpop.f32.mrf.mxu0
      %v691 = vadd.f32 %v514, %v690
      %692 = vmatmul.bf16.gmra.mxu0 %v625
      %v693 = vpop.f32.mrf.mxu0
      %v694 = vadd.f32 %v517, %v693
      %v695 = vpop.f32.mrf.mxu0
      %v696 = vadd.f32 %v519, %v695
      %697 = vmatmul.bf16.gmra.mxu0 %v628
      %v698 = vpop.f32.mrf.mxu0
      %v699 = vadd.f32 %v522, %v698
      %v700 = vpop.f32.mrf.mxu0
      %v701 = vadd.f32 %v524, %v700
      %702 = vmatmul.bf16.gmra.mxu0 %v631
      %v703 = vpop.f32.mrf.mxu0
      %v704 = vadd.f32 %v527, %v703
      %v705 = vpop.f32.mrf.mxu0
      %v706 = vadd.f32 %v529, %v705
      %707 = vmatmul.bf16.gmra.mxu0 %v634
      %v708 = vpop.f32.mrf.mxu0
      %v709 = vadd.f32 %v532, %v708
      %v710 = vpop.f32.mrf.mxu0
      %v711 = vadd.f32 %v534, %v710
      %712 = vmatmul.bf16.gmra.mxu0 %v637
      %v713 = vpop.f32.mrf.mxu0
      %v714 = vadd.f32 %v537, %v713
      %v715 = vpop.f32.mrf.mxu0
      %v716 = vadd.f32 %v539, %v715
      %717 = vmatmul.bf16.gmra.mxu0 %v640
      %v718 = vpop.f32.mrf.mxu0
      %v719 = vadd.f32 %v542, %v718
      %v720 = vpop.f32.mrf.mxu0
      %v721 = vadd.f32 %v544, %v720
      %722 = vmatmul.bf16.gmra.mxu0 %v643
      %v723 = vpop.f32.mrf.mxu0
      %v724 = vadd.f32 %v547, %v723
      %v725 = vpop.f32.mrf.mxu0
      %v726 = vadd.f32 %v549, %v725
      %727 = vmatmul.bf16.gmra.mxu0 %v646
      %v728 = vpop.f32.mrf.mxu0
      %v729 = vadd.f32 %v552, %v728
      %v730 = vpop.f32.mrf.mxu0
      %v731 = vadd.f32 %v554, %v730
      %732 = vmatmul.bf16.gmra.mxu0 %v649
      %v733 = vpop.f32.mrf.mxu0
      %v734 = vadd.f32 %v557, %v733
      %v735 = vpop.f32.mrf.mxu0
      %v736 = vadd.f32 %v559, %v735
      %737 = vmatmul.bf16.gmra.mxu0 %v652
      %v738 = vpop.f32.mrf.mxu0
      %v739 = vadd.f32 %v562, %v738
      %v740 = vpop.f32.mrf.mxu0
      %v741 = vadd.f32 %v564, %v740
      %742 = vmatmul.bf16.gmra.mxu0 %v655
      %v743 = vpop.f32.mrf.mxu0
      %v744 = vadd.f32 %v567, %v743
      %v745 = vpop.f32.mrf.mxu0
      %v746 = vadd.f32 %v569, %v745
      %747 = vmatmul.bf16.gmra.mxu0 %v658
      %v748 = vpop.f32.mrf.mxu0
      %v749 = vadd.f32 %v572, %v748
      %v750 = vpop.f32.mrf.mxu0
      %v751 = vadd.f32 %v574, %v750
      %752 = vmatmul.bf16.gmra.mxu0 %v661
      %v753 = vpop.f32.mrf.mxu0
      %v754 = vadd.f32 %v577, %v753
      %v755 = vpop.f32.mrf.mxu0
      %v756 = vadd.f32 %v579, %v755
      %757 = vmatmul.bf16.gmra.mxu0 %v664
      %v758 = vpop.f32.mrf.mxu0
      %v759 = vadd.f32 %v582, %v758
      %v760 = vpop.f32.mrf.mxu0
      %v761 = vadd.f32 %v584, %v760
      %762 = vmatmul.bf16.gmra.mxu0 %v667
      %v763 = vpop.f32.mrf.mxu0
      %v764 = vadd.f32 %v587, %v763
      %v765 = vpop.f32.mrf.mxu0
      %v766 = vadd.f32 %v589, %v765
      %767 = vdwg.mxu0
      %v768 = vld [vmem:[%s203 + $0x2] sm:$0xff]
      %v769 = vld [vmem:[%s203 + $0xa] sm:$0xff]
      %v770 = vld [vmem:[%s203 + $0x12] sm:$0xff]
      %v771 = vld [vmem:[%s203 + $0x1a] sm:$0xff]
      %v772 = vld [vmem:[%s203 + $0x22] sm:$0xff]
      %v773 = vld [vmem:[%s203 + $0x2a] sm:$0xff]
      %v774 = vld [vmem:[%s203 + $0x32] sm:$0xff]
      %v775 = vld [vmem:[%s203 + $0x3a] sm:$0xff]
      %v776 = vld [vmem:[%s203 + $0x42] sm:$0xff]
      %v777 = vld [vmem:[%s203 + $0x4a] sm:$0xff]
      %v778 = vld [vmem:[%s203 + $0x52] sm:$0xff]
      %v779 = vld [vmem:[%s203 + $0x5a] sm:$0xff]
      %v780 = vld [vmem:[%s203 + $0x62] sm:$0xff]
      %v781 = vld [vmem:[%s203 + $0x6a] sm:$0xff]
      %v782 = vld [vmem:[%s203 + $0x72] sm:$0xff]
      %v783 = vld [vmem:[%s203 + $0x7a] sm:$0xff]
      %v784 = vld [vmem:[%s203 + $0x82] sm:$0xff]
      %v785 = vld [vmem:[%s203 + $0x8a] sm:$0xff]
      %v786 = vld [vmem:[%s203 + $0x92] sm:$0xff]
      %v787 = vld [vmem:[%s203 + $0x9a] sm:$0xff]
      %v788 = vld [vmem:[%s203 + $0xa2] sm:$0xff]
      %v789 = vld [vmem:[%s203 + $0xaa] sm:$0xff]
      %v790 = vld [vmem:[%s203 + $0xb2] sm:$0xff]
      %v791 = vld [vmem:[%s203 + $0xba] sm:$0xff]
      %v792 = vld [vmem:[%s203 + $0xc2] sm:$0xff]
      %v793 = vld [vmem:[%s203 + $0xca] sm:$0xff]
      %v794 = vld [vmem:[%s203 + $0xd2] sm:$0xff]
      %v795 = vld [vmem:[%s203 + $0xda] sm:$0xff]
      %v796 = vld [vmem:[%s203 + $0xe2] sm:$0xff]
      %v797 = vld [vmem:[%s203 + $0xea] sm:$0xff]
      %v798 = vld [vmem:[%s203 + $0xf2] sm:$0xff]
      %v799 = vld [vmem:[%s203 + $0xfa] sm:$0xff]
      %v800 = vld [vmem:[%s203 + $0x102] sm:$0xff]
      %v801 = vld [vmem:[%s203 + $0x10a] sm:$0xff]
      %v802 = vld [vmem:[%s203 + $0x112] sm:$0xff]
      %v803 = vld [vmem:[%s203 + $0x11a] sm:$0xff]
      %v804 = vmax.f32 %v768, 0.0
      %v805 = vmax.f32 %v769, 0.0
      %v806 = vmax.f32 %v770, 0.0
      %v807 = vmax.f32 %v771, 0.0
      %v808 = vmax.f32 %v772, 0.0
      %v809 = vmax.f32 %v773, 0.0
      %v810 = vmax.f32 %v774, 0.0
      %v811 = vmax.f32 %v775, 0.0
      %v812 = vmax.f32 %v776, 0.0
      %v813 = vmax.f32 %v777, 0.0
      %v814 = vmax.f32 %v778, 0.0
      %v815 = vmax.f32 %v779, 0.0
      %v816 = vmax.f32 %v780, 0.0
      %v817 = vmax.f32 %v781, 0.0
      %v818 = vmax.f32 %v782, 0.0
      %v819 = vmax.f32 %v783, 0.0
      %v820 = vmax.f32 %v784, 0.0
      %v821 = vmax.f32 %v785, 0.0
      %v822 = vmax.f32 %v786, 0.0
      %v823 = vmax.f32 %v787, 0.0
      %v824 = vmax.f32 %v788, 0.0
      %v825 = vmax.f32 %v789, 0.0
      %v826 = vmax.f32 %v790, 0.0
      %v827 = vmax.f32 %v791, 0.0
      %v828 = vmax.f32 %v792, 0.0
      %v829 = vmax.f32 %v793, 0.0
      %v830 = vmax.f32 %v794, 0.0
      %v831 = vmax.f32 %v795, 0.0
      %v832 = vmax.f32 %v796, 0.0
      %v833 = vmax.f32 %v797, 0.0
      %v834 = vmax.f32 %v798, 0.0
      %v835 = vmax.f32 %v799, 0.0
      %v836 = vmax.f32 %v800, 0.0
      %v837 = vmax.f32 %v801, 0.0
      %v838 = vmax.f32 %v802, 0.0
      %v839 = vmax.f32 %v803, 0.0
      %v840 = vpack.c.bf16 %v805, %v804
      %v841 = vpack.c.bf16 %v807, %v806
      %v842 = vpack.c.bf16 %v809, %v808
      %v843 = vpack.c.bf16 %v811, %v810
      %v844 = vpack.c.bf16 %v813, %v812
      %v845 = vpack.c.bf16 %v815, %v814
      %v846 = vpack.c.bf16 %v817, %v816
      %v847 = vpack.c.bf16 %v819, %v818
      %v848 = vpack.c.bf16 %v821, %v820
      %v849 = vpack.c.bf16 %v823, %v822
      %v850 = vpack.c.bf16 %v825, %v824
      %v851 = vpack.c.bf16 %v827, %v826
      %v852 = vpack.c.bf16 %v829, %v828
      %v853 = vpack.c.bf16 %v831, %v830
      %v854 = vpack.c.bf16 %v833, %v832
      %v855 = vpack.c.bf16 %v835, %v834
      %v856 = vpack.c.bf16 %v837, %v836
      %v857 = vpack.c.bf16 %v839, %v838
      %s858 = scalar_lea.vmem %s1, 64
      %v859 = vld [vmem:[%s858] sm:$0xf]
      %v860 = vld [vmem:[%s858 + $0x4] sm:$0xf]
      %v861 = vld [vmem:[%s858 + $0x8] sm:$0xf]
      %v862 = vld [vmem:[%s858 + $0xc] sm:$0xf]
      %v863 = vld [vmem:[%s858 + $0x10] sm:$0xf]
      %v864 = vld [vmem:[%s858 + $0x14] sm:$0xf]
      %v865 = vld [vmem:[%s858 + $0x18] sm:$0xf]
      %v866 = vld [vmem:[%s858 + $0x1c] sm:$0xf]
      %v875 = vunpack.c.l.b16 %v859
      %v876 = vunpack.c.l.b16 %v860
      %v877 = vunpack.c.l.b16 %v861
      %v878 = vunpack.c.l.b16 %v862
      %v879 = vunpack.c.l.b16 %v863
      %v880 = vunpack.c.l.b16 %v864
      %v881 = vunpack.c.l.b16 %v865
      %v882 = vunpack.c.l.b16 %v866
      %v883 = vpack.c.b16 %v876, %v875
      %v884 = vpack.c.b16 %v878, %v877
      %v885 = vpack.c.b16 %v880, %v879
      %v886 = vpack.c.b16 %v882, %v881
      %v892 = vsel %vm437, %v840, 0
      %v895 = vsel %vm437, %v841, 0
      %v898 = vsel %vm437, %v842, 0
      %v901 = vsel %vm437, %v843, 0
      %v904 = vsel %vm437, %v844, 0
      %v907 = vsel %vm437, %v845, 0
      %v910 = vsel %vm437, %v846, 0
      %v913 = vsel %vm437, %v847, 0
      %v916 = vsel %vm437, %v848, 0
      %v919 = vsel %vm437, %v849, 0
      %v922 = vsel %vm437, %v850, 0
      %v925 = vsel %vm437, %v851, 0
      %v928 = vsel %vm437, %v852, 0
      %v931 = vsel %vm437, %v853, 0
      %v934 = vsel %vm437, %v854, 0
      %v937 = vsel %vm437, %v855, 0
      %v940 = vsel %vm437, %v856, 0
      %v943 = vsel %vm437, %v857, 0
      %945 = vmatpush.bf16.msra.mxu0 0
      %946 = vmatpush.bf16.msra.mxu0 0
      %947 = vmatpush.bf16.msra.mxu0 0
      %948 = vmatpush.bf16.msra.mxu0 0
      %949 = vmatpush.bf16.msra.mxu0 %v886
      %950 = vmatpush.bf16.msra.mxu0 %v885
      %951 = vmatpush.bf16.msra.mxu0 %v884
      %952 = vmatpush.bf16.msra.mxu0 %v883
      %953 = vmatmul.bf16.gmra.mxu0 %v892
      %v954 = vpop.f32.mrf.mxu0
      %v955 = vadd.f32 0.0, %v954
      %v956 = vpop.f32.mrf.mxu0
      %v957 = vadd.f32 0.0, %v956
      %958 = vmatmul.bf16.gmra.mxu0 %v895
      %v959 = vpop.f32.mrf.mxu0
      %v960 = vadd.f32 0.0, %v959
      %v961 = vpop.f32.mrf.mxu0
      %v962 = vadd.f32 0.0, %v961
      %963 = vmatmul.bf16.gmra.mxu0 %v898
      %v964 = vpop.f32.mrf.mxu0
      %v965 = vadd.f32 0.0, %v964
      %v966 = vpop.f32.mrf.mxu0
      %v967 = vadd.f32 0.0, %v966
      %968 = vmatmul.bf16.gmra.mxu0 %v901
      %v969 = vpop.f32.mrf.mxu0
      %v970 = vadd.f32 0.0, %v969
      %v971 = vpop.f32.mrf.mxu0
      %v972 = vadd.f32 0.0, %v971
      %973 = vmatmul.bf16.gmra.mxu0 %v904
      %v974 = vpop.f32.mrf.mxu0
      %v975 = vadd.f32 0.0, %v974
      %v976 = vpop.f32.mrf.mxu0
      %v977 = vadd.f32 0.0, %v976
      %978 = vmatmul.bf16.gmra.mxu0 %v907
      %v979 = vpop.f32.mrf.mxu0
      %v980 = vadd.f32 0.0, %v979
      %v981 = vpop.f32.mrf.mxu0
      %v982 = vadd.f32 0.0, %v981
      %983 = vmatmul.bf16.gmra.mxu0 %v910
      %v984 = vpop.f32.mrf.mxu0
      %v985 = vadd.f32 0.0, %v984
      %v986 = vpop.f32.mrf.mxu0
      %v987 = vadd.f32 0.0, %v986
      %988 = vmatmul.bf16.gmra.mxu0 %v913
      %v989 = vpop.f32.mrf.mxu0
      %v990 = vadd.f32 0.0, %v989
      %v991 = vpop.f32.mrf.mxu0
      %v992 = vadd.f32 0.0, %v991
      %993 = vmatmul.bf16.gmra.mxu0 %v916
      %v994 = vpop.f32.mrf.mxu0
      %v995 = vadd.f32 0.0, %v994
      %v996 = vpop.f32.mrf.mxu0
      %v997 = vadd.f32 0.0, %v996
      %998 = vmatmul.bf16.gmra.mxu0 %v919
      %v999 = vpop.f32.mrf.mxu0
      %v1000 = vadd.f32 0.0, %v999
      %v1001 = vpop.f32.mrf.mxu0
      %v1002 = vadd.f32 0.0, %v1001
      %1003 = vmatmul.bf16.gmra.mxu0 %v922
      %v1004 = vpop.f32.mrf.mxu0
      %v1005 = vadd.f32 0.0, %v1004
      %v1006 = vpop.f32.mrf.mxu0
      %v1007 = vadd.f32 0.0, %v1006
      %1008 = vmatmul.bf16.gmra.mxu0 %v925
      %v1009 = vpop.f32.mrf.mxu0
      %v1010 = vadd.f32 0.0, %v1009
      %v1011 = vpop.f32.mrf.mxu0
      %v1012 = vadd.f32 0.0, %v1011
      %1013 = vmatmul.bf16.gmra.mxu0 %v928
      %v1014 = vpop.f32.mrf.mxu0
      %v1015 = vadd.f32 0.0, %v1014
      %v1016 = vpop.f32.mrf.mxu0
      %v1017 = vadd.f32 0.0, %v1016
      %1018 = vmatmul.bf16.gmra.mxu0 %v931
      %v1019 = vpop.f32.mrf.mxu0
      %v1020 = vadd.f32 0.0, %v1019
      %v1021 = vpop.f32.mrf.mxu0
      %v1022 = vadd.f32 0.0, %v1021
      %1023 = vmatmul.bf16.gmra.mxu0 %v934
      %v1024 = vpop.f32.mrf.mxu0
      %v1025 = vadd.f32 0.0, %v1024
      %v1026 = vpop.f32.mrf.mxu0
      %v1027 = vadd.f32 0.0, %v1026
      %1028 = vmatmul.bf16.gmra.mxu0 %v937
      %v1029 = vpop.f32.mrf.mxu0
      %v1030 = vadd.f32 0.0, %v1029
      %v1031 = vpop.f32.mrf.mxu0
      %v1032 = vadd.f32 0.0, %v1031
      %1033 = vmatmul.bf16.gmra.mxu0 %v940
      %v1034 = vpop.f32.mrf.mxu0
      %v1035 = vadd.f32 0.0, %v1034
      %v1036 = vpop.f32.mrf.mxu0
      %v1037 = vadd.f32 0.0, %v1036
      %1038 = vmatmul.bf16.gmra.mxu0 %v943
      %v1039 = vpop.f32.mrf.mxu0
      %v1040 = vadd.f32 0.0, %v1039
      %v1041 = vpop.f32.mrf.mxu0
      %v1042 = vadd.f32 0.0, %v1041
      %1043 = vdwg.mxu0
      %v1044 = vadd.f32 %v679, %v955
      %v1045 = vadd.f32 %v681, %v957
      %v1046 = vadd.f32 %v684, %v960
      %v1047 = vadd.f32 %v686, %v962
      %v1048 = vadd.f32 %v689, %v965
      %v1049 = vadd.f32 %v691, %v967
      %v1050 = vadd.f32 %v694, %v970
      %v1051 = vadd.f32 %v696, %v972
      %v1052 = vadd.f32 %v699, %v975
      %v1053 = vadd.f32 %v701, %v977
      %v1054 = vadd.f32 %v704, %v980
      %v1055 = vadd.f32 %v706, %v982
      %v1056 = vadd.f32 %v709, %v985
      %v1057 = vadd.f32 %v711, %v987
      %v1058 = vadd.f32 %v714, %v990
      %v1059 = vadd.f32 %v716, %v992
      %v1060 = vadd.f32 %v719, %v995
      %v1061 = vadd.f32 %v721, %v997
      %v1062 = vadd.f32 %v724, %v1000
      %v1063 = vadd.f32 %v726, %v1002
      %v1064 = vadd.f32 %v729, %v1005
      %v1065 = vadd.f32 %v731, %v1007
      %v1066 = vadd.f32 %v734, %v1010
      %v1067 = vadd.f32 %v736, %v1012
      %v1068 = vadd.f32 %v739, %v1015
      %v1069 = vadd.f32 %v741, %v1017
      %v1070 = vadd.f32 %v744, %v1020
      %v1071 = vadd.f32 %v746, %v1022
      %v1072 = vadd.f32 %v749, %v1025
      %v1073 = vadd.f32 %v751, %v1027
      %v1074 = vadd.f32 %v754, %v1030
      %v1075 = vadd.f32 %v756, %v1032
      %v1076 = vadd.f32 %v759, %v1035
      %v1077 = vadd.f32 %v761, %v1037
      %v1078 = vadd.f32 %v764, %v1040
      %v1079 = vadd.f32 %v766, %v1042
      %v1080 = vld [vmem:[%s203 + $0x12] sm:$0xff]
      %v1081 = vld [vmem:[%s203 + $0x1a] sm:$0xff]
      %v1082 = vld [vmem:[%s203 + $0x22] sm:$0xff]
      %v1083 = vld [vmem:[%s203 + $0x2a] sm:$0xff]
      %v1084 = vld [vmem:[%s203 + $0x32] sm:$0xff]
      %v1085 = vld [vmem:[%s203 + $0x3a] sm:$0xff]
      %v1086 = vld [vmem:[%s203 + $0x42] sm:$0xff]
      %v1087 = vld [vmem:[%s203 + $0x4a] sm:$0xff]
      %v1088 = vld [vmem:[%s203 + $0x52] sm:$0xff]
      %v1089 = vld [vmem:[%s203 + $0x5a] sm:$0xff]
      %v1090 = vld [vmem:[%s203 + $0x62] sm:$0xff]
      %v1091 = vld [vmem:[%s203 + $0x6a] sm:$0xff]
      %v1092 = vld [vmem:[%s203 + $0x72] sm:$0xff]
      %v1093 = vld [vmem:[%s203 + $0x7a] sm:$0xff]
      %v1094 = vld [vmem:[%s203 + $0x82] sm:$0xff]
      %v1095 = vld [vmem:[%s203 + $0x8a] sm:$0xff]
      %v1096 = vld [vmem:[%s203 + $0x92] sm:$0xff]
      %v1097 = vld [vmem:[%s203 + $0x9a] sm:$0xff]
      %v1098 = vld [vmem:[%s203 + $0xa2] sm:$0xff]
      %v1099 = vld [vmem:[%s203 + $0xaa] sm:$0xff]
      %v1100 = vld [vmem:[%s203 + $0xb2] sm:$0xff]
      %v1101 = vld [vmem:[%s203 + $0xba] sm:$0xff]
      %v1102 = vld [vmem:[%s203 + $0xc2] sm:$0xff]
      %v1103 = vld [vmem:[%s203 + $0xca] sm:$0xff]
      %v1104 = vld [vmem:[%s203 + $0xd2] sm:$0xff]
      %v1105 = vld [vmem:[%s203 + $0xda] sm:$0xff]
      %v1106 = vld [vmem:[%s203 + $0xe2] sm:$0xff]
      %v1107 = vld [vmem:[%s203 + $0xea] sm:$0xff]
      %v1108 = vld [vmem:[%s203 + $0xf2] sm:$0xff]
      %v1109 = vld [vmem:[%s203 + $0xfa] sm:$0xff]
      %v1110 = vld [vmem:[%s203 + $0x102] sm:$0xff]
      %v1111 = vld [vmem:[%s203 + $0x10a] sm:$0xff]
      %v1112 = vld [vmem:[%s203 + $0x112] sm:$0xff]
      %v1113 = vld [vmem:[%s203 + $0x11a] sm:$0xff]
      %v1114 = vld [vmem:[%s203 + $0x122] sm:$0xff]
      %v1115 = vld [vmem:[%s203 + $0x12a] sm:$0xff]
      %v1116 = vmax.f32 %v1080, 0.0
      %v1117 = vmax.f32 %v1081, 0.0
      %v1118 = vmax.f32 %v1082, 0.0
      %v1119 = vmax.f32 %v1083, 0.0
      %v1120 = vmax.f32 %v1084, 0.0
      %v1121 = vmax.f32 %v1085, 0.0
      %v1122 = vmax.f32 %v1086, 0.0
      %v1123 = vmax.f32 %v1087, 0.0
      %v1124 = vmax.f32 %v1088, 0.0
      %v1125 = vmax.f32 %v1089, 0.0
      %v1126 = vmax.f32 %v1090, 0.0
      %v1127 = vmax.f32 %v1091, 0.0
      %v1128 = vmax.f32 %v1092, 0.0
      %v1129 = vmax.f32 %v1093, 0.0
      %v1130 = vmax.f32 %v1094, 0.0
      %v1131 = vmax.f32 %v1095, 0.0
      %v1132 = vmax.f32 %v1096, 0.0
      %v1133 = vmax.f32 %v1097, 0.0
      %v1134 = vmax.f32 %v1098, 0.0
      %v1135 = vmax.f32 %v1099, 0.0
      %v1136 = vmax.f32 %v1100, 0.0
      %v1137 = vmax.f32 %v1101, 0.0
      %v1138 = vmax.f32 %v1102, 0.0
      %v1139 = vmax.f32 %v1103, 0.0
      %v1140 = vmax.f32 %v1104, 0.0
      %v1141 = vmax.f32 %v1105, 0.0
      %v1142 = vmax.f32 %v1106, 0.0
      %v1143 = vmax.f32 %v1107, 0.0
      %v1144 = vmax.f32 %v1108, 0.0
      %v1145 = vmax.f32 %v1109, 0.0
      %v1146 = vmax.f32 %v1110, 0.0
      %v1147 = vmax.f32 %v1111, 0.0
      %v1148 = vmax.f32 %v1112, 0.0
      %v1149 = vmax.f32 %v1113, 0.0
      %v1150 = vmax.f32 %v1114, 0.0
      %v1151 = vmax.f32 %v1115, 0.0
      %v1152 = vpack.c.bf16 %v1117, %v1116
      %v1153 = vpack.c.bf16 %v1119, %v1118
      %v1154 = vpack.c.bf16 %v1121, %v1120
      %v1155 = vpack.c.bf16 %v1123, %v1122
      %v1156 = vpack.c.bf16 %v1125, %v1124
      %v1157 = vpack.c.bf16 %v1127, %v1126
      %v1158 = vpack.c.bf16 %v1129, %v1128
      %v1159 = vpack.c.bf16 %v1131, %v1130
      %v1160 = vpack.c.bf16 %v1133, %v1132
      %v1161 = vpack.c.bf16 %v1135, %v1134
      %v1162 = vpack.c.bf16 %v1137, %v1136
      %v1163 = vpack.c.bf16 %v1139, %v1138
      %v1164 = vpack.c.bf16 %v1141, %v1140
      %v1165 = vpack.c.bf16 %v1143, %v1142
      %v1166 = vpack.c.bf16 %v1145, %v1144
      %v1167 = vpack.c.bf16 %v1147, %v1146
      %v1168 = vpack.c.bf16 %v1149, %v1148
      %v1169 = vpack.c.bf16 %v1151, %v1150
      %s1170 = scalar_lea.vmem %s1, 96
      %v1171 = vld [vmem:[%s1170] sm:$0xf]
      %v1172 = vld [vmem:[%s1170 + $0x4] sm:$0xf]
      %v1173 = vld [vmem:[%s1170 + $0x8] sm:$0xf]
      %v1174 = vld [vmem:[%s1170 + $0xc] sm:$0xf]
      %v1175 = vld [vmem:[%s1170 + $0x10] sm:$0xf]
      %v1176 = vld [vmem:[%s1170 + $0x14] sm:$0xf]
      %v1177 = vld [vmem:[%s1170 + $0x18] sm:$0xf]
      %v1178 = vld [vmem:[%s1170 + $0x1c] sm:$0xf]
      %v1187 = vunpack.c.l.b16 %v1171
      %v1188 = vunpack.c.l.b16 %v1172
      %v1189 = vunpack.c.l.b16 %v1173
      %v1190 = vunpack.c.l.b16 %v1174
      %v1191 = vunpack.c.l.b16 %v1175
      %v1192 = vunpack.c.l.b16 %v1176
      %v1193 = vunpack.c.l.b16 %v1177
      %v1194 = vunpack.c.l.b16 %v1178
      %v1195 = vpack.c.b16 %v1188, %v1187
      %v1196 = vpack.c.b16 %v1190, %v1189
      %v1197 = vpack.c.b16 %v1192, %v1191
      %v1198 = vpack.c.b16 %v1194, %v1193
      %v1204 = vsel %vm437, %v1152, 0
      %v1207 = vsel %vm437, %v1153, 0
      %v1210 = vsel %vm437, %v1154, 0
      %v1213 = vsel %vm437, %v1155, 0
      %v1216 = vsel %vm437, %v1156, 0
      %v1219 = vsel %vm437, %v1157, 0
      %v1222 = vsel %vm437, %v1158, 0
      %v1225 = vsel %vm437, %v1159, 0
      %v1228 = vsel %vm437, %v1160, 0
      %v1231 = vsel %vm437, %v1161, 0
      %v1234 = vsel %vm437, %v1162, 0
      %v1237 = vsel %vm437, %v1163, 0
      %v1240 = vsel %vm437, %v1164, 0
      %v1243 = vsel %vm437, %v1165, 0
      %v1246 = vsel %vm437, %v1166, 0
      %v1249 = vsel %vm437, %v1167, 0
      %v1252 = vsel %vm437, %v1168, 0
      %v1255 = vsel %vm437, %v1169, 0
      %1257 = vmatpush.bf16.msra.mxu0 0
      %1258 = vmatpush.bf16.msra.mxu0 0
      %1259 = vmatpush.bf16.msra.mxu0 0
      %1260 = vmatpush.bf16.msra.mxu0 0
      %1261 = vmatpush.bf16.msra.mxu0 %v1198
      %1262 = vmatpush.bf16.msra.mxu0 %v1197
      %1263 = vmatpush.bf16.msra.mxu0 %v1196
      %1264 = vmatpush.bf16.msra.mxu0 %v1195
      %1265 = vmatmul.bf16.gmra.mxu0 %v1204
      %v1266 = vpop.f32.mrf.mxu0
      %v1267 = vadd.f32 0.0, %v1266
      %v1268 = vpop.f32.mrf.mxu0
      %v1269 = vadd.f32 0.0, %v1268
      %1270 = vmatmul.bf16.gmra.mxu0 %v1207
      %v1271 = vpop.f32.mrf.mxu0
      %v1272 = vadd.f32 0.0, %v1271
      %v1273 = vpop.f32.mrf.mxu0
      %v1274 = vadd.f32 0.0, %v1273
      %1275 = vmatmul.bf16.gmra.mxu0 %v1210
      %v1276 = vpop.f32.mrf.mxu0
      %v1277 = vadd.f32 0.0, %v1276
      %v1278 = vpop.f32.mrf.mxu0
      %v1279 = vadd.f32 0.0, %v1278
      %1280 = vmatmul.bf16.gmra.mxu0 %v1213
      %v1281 = vpop.f32.mrf.mxu0
      %v1282 = vadd.f32 0.0, %v1281
      %v1283 = vpop.f32.mrf.mxu0
      %v1284 = vadd.f32 0.0, %v1283
      %1285 = vmatmul.bf16.gmra.mxu0 %v1216
      %v1286 = vpop.f32.mrf.mxu0
      %v1287 = vadd.f32 0.0, %v1286
      %v1288 = vpop.f32.mrf.mxu0
      %v1289 = vadd.f32 0.0, %v1288
      %1290 = vmatmul.bf16.gmra.mxu0 %v1219
      %v1291 = vpop.f32.mrf.mxu0
      %v1292 = vadd.f32 0.0, %v1291
      %v1293 = vpop.f32.mrf.mxu0
      %v1294 = vadd.f32 0.0, %v1293
      %1295 = vmatmul.bf16.gmra.mxu0 %v1222
      %v1296 = vpop.f32.mrf.mxu0
      %v1297 = vadd.f32 0.0, %v1296
      %v1298 = vpop.f32.mrf.mxu0
      %v1299 = vadd.f32 0.0, %v1298
      %1300 = vmatmul.bf16.gmra.mxu0 %v1225
      %v1301 = vpop.f32.mrf.mxu0
      %v1302 = vadd.f32 0.0, %v1301
      %v1303 = vpop.f32.mrf.mxu0
      %v1304 = vadd.f32 0.0, %v1303
      %1305 = vmatmul.bf16.gmra.mxu0 %v1228
      %v1306 = vpop.f32.mrf.mxu0
      %v1307 = vadd.f32 0.0, %v1306
      %v1308 = vpop.f32.mrf.mxu0
      %v1309 = vadd.f32 0.0, %v1308
      %1310 = vmatmul.bf16.gmra.mxu0 %v1231
      %v1311 = vpop.f32.mrf.mxu0
      %v1312 = vadd.f32 0.0, %v1311
      %v1313 = vpop.f32.mrf.mxu0
      %v1314 = vadd.f32 0.0, %v1313
      %1315 = vmatmul.bf16.gmra.mxu0 %v1234
      %v1316 = vpop.f32.mrf.mxu0
      %v1317 = vadd.f32 0.0, %v1316
      %v1318 = vpop.f32.mrf.mxu0
      %v1319 = vadd.f32 0.0, %v1318
      %1320 = vmatmul.bf16.gmra.mxu0 %v1237
      %v1321 = vpop.f32.mrf.mxu0
      %v1322 = vadd.f32 0.0, %v1321
      %v1323 = vpop.f32.mrf.mxu0
      %v1324 = vadd.f32 0.0, %v1323
      %1325 = vmatmul.bf16.gmra.mxu0 %v1240
      %v1326 = vpop.f32.mrf.mxu0
      %v1327 = vadd.f32 0.0, %v1326
      %v1328 = vpop.f32.mrf.mxu0
      %v1329 = vadd.f32 0.0, %v1328
      %1330 = vmatmul.bf16.gmra.mxu0 %v1243
      %v1331 = vpop.f32.mrf.mxu0
      %v1332 = vadd.f32 0.0, %v1331
      %v1333 = vpop.f32.mrf.mxu0
      %v1334 = vadd.f32 0.0, %v1333
      %1335 = vmatmul.bf16.gmra.mxu0 %v1246
      %v1336 = vpop.f32.mrf.mxu0
      %v1337 = vadd.f32 0.0, %v1336
      %v1338 = vpop.f32.mrf.mxu0
      %v1339 = vadd.f32 0.0, %v1338
      %1340 = vmatmul.bf16.gmra.mxu0 %v1249
      %v1341 = vpop.f32.mrf.mxu0
      %v1342 = vadd.f32 0.0, %v1341
      %v1343 = vpop.f32.mrf.mxu0
      %v1344 = vadd.f32 0.0, %v1343
      %1345 = vmatmul.bf16.gmra.mxu0 %v1252
      %v1346 = vpop.f32.mrf.mxu0
      %v1347 = vadd.f32 0.0, %v1346
      %v1348 = vpop.f32.mrf.mxu0
      %v1349 = vadd.f32 0.0, %v1348
      %1350 = vmatmul.bf16.gmra.mxu0 %v1255
      %v1351 = vpop.f32.mrf.mxu0
      %v1352 = vadd.f32 0.0, %v1351
      %v1353 = vpop.f32.mrf.mxu0
      %v1354 = vadd.f32 0.0, %v1353
      %1355 = vdwg.mxu0
      %v1356 = vadd.f32 %v1044, %v1267
      %v1357 = vadd.f32 %v1045, %v1269
      %v1358 = vadd.f32 %v1046, %v1272
      %v1359 = vadd.f32 %v1047, %v1274
      %v1360 = vadd.f32 %v1048, %v1277
      %v1361 = vadd.f32 %v1049, %v1279
      %v1362 = vadd.f32 %v1050, %v1282
      %v1363 = vadd.f32 %v1051, %v1284
      %v1364 = vadd.f32 %v1052, %v1287
      %v1365 = vadd.f32 %v1053, %v1289
      %v1366 = vadd.f32 %v1054, %v1292
      %v1367 = vadd.f32 %v1055, %v1294
      %v1368 = vadd.f32 %v1056, %v1297
      %v1369 = vadd.f32 %v1057, %v1299
      %v1370 = vadd.f32 %v1058, %v1302
      %v1371 = vadd.f32 %v1059, %v1304
      %v1372 = vadd.f32 %v1060, %v1307
      %v1373 = vadd.f32 %v1061, %v1309
      %v1374 = vadd.f32 %v1062, %v1312
      %v1375 = vadd.f32 %v1063, %v1314
      %v1376 = vadd.f32 %v1064, %v1317
      %v1377 = vadd.f32 %v1065, %v1319
      %v1378 = vadd.f32 %v1066, %v1322
      %v1379 = vadd.f32 %v1067, %v1324
      %v1380 = vadd.f32 %v1068, %v1327
      %v1381 = vadd.f32 %v1069, %v1329
      %v1382 = vadd.f32 %v1070, %v1332
      %v1383 = vadd.f32 %v1071, %v1334
      %v1384 = vadd.f32 %v1072, %v1337
      %v1385 = vadd.f32 %v1073, %v1339
      %v1386 = vadd.f32 %v1074, %v1342
      %v1387 = vadd.f32 %v1075, %v1344
      %v1388 = vadd.f32 %v1076, %v1347
      %v1389 = vadd.f32 %v1077, %v1349
      %v1390 = vadd.f32 %v1078, %v1352
      %v1391 = vadd.f32 %v1079, %v1354
      %v1392 = vld [vmem:[%s203 + $0x13] sm:$0xff]
      %v1393 = vld [vmem:[%s203 + $0x1b] sm:$0xff]
      %v1394 = vld [vmem:[%s203 + $0x23] sm:$0xff]
      %v1395 = vld [vmem:[%s203 + $0x2b] sm:$0xff]
      %v1396 = vld [vmem:[%s203 + $0x33] sm:$0xff]
      %v1397 = vld [vmem:[%s203 + $0x3b] sm:$0xff]
      %v1398 = vld [vmem:[%s203 + $0x43] sm:$0xff]
      %v1399 = vld [vmem:[%s203 + $0x4b] sm:$0xff]
      %v1400 = vld [vmem:[%s203 + $0x53] sm:$0xff]
      %v1401 = vld [vmem:[%s203 + $0x5b] sm:$0xff]
      %v1402 = vld [vmem:[%s203 + $0x63] sm:$0xff]
      %v1403 = vld [vmem:[%s203 + $0x6b] sm:$0xff]
      %v1404 = vld [vmem:[%s203 + $0x73] sm:$0xff]
      %v1405 = vld [vmem:[%s203 + $0x7b] sm:$0xff]
      %v1406 = vld [vmem:[%s203 + $0x83] sm:$0xff]
      %v1407 = vld [vmem:[%s203 + $0x8b] sm:$0xff]
      %v1408 = vld [vmem:[%s203 + $0x93] sm:$0xff]
      %v1409 = vld [vmem:[%s203 + $0x9b] sm:$0xff]
      %v1410 = vld [vmem:[%s203 + $0xa3] sm:$0xff]
      %v1411 = vld [vmem:[%s203 + $0xab] sm:$0xff]
      %v1412 = vld [vmem:[%s203 + $0xb3] sm:$0xff]
      %v1413 = vld [vmem:[%s203 + $0xbb] sm:$0xff]
      %v1414 = vld [vmem:[%s203 + $0xc3] sm:$0xff]
      %v1415 = vld [vmem:[%s203 + $0xcb] sm:$0xff]
      %v1416 = vld [vmem:[%s203 + $0xd3] sm:$0xff]
      %v1417 = vld [vmem:[%s203 + $0xdb] sm:$0xff]
      %v1418 = vld [vmem:[%s203 + $0xe3] sm:$0xff]
      %v1419 = vld [vmem:[%s203 + $0xeb] sm:$0xff]
      %v1420 = vld [vmem:[%s203 + $0xf3] sm:$0xff]
      %v1421 = vld [vmem:[%s203 + $0xfb] sm:$0xff]
      %v1422 = vld [vmem:[%s203 + $0x103] sm:$0xff]
      %v1423 = vld [vmem:[%s203 + $0x10b] sm:$0xff]
      %v1424 = vld [vmem:[%s203 + $0x113] sm:$0xff]
      %v1425 = vld [vmem:[%s203 + $0x11b] sm:$0xff]
      %v1426 = vld [vmem:[%s203 + $0x123] sm:$0xff]
      %v1427 = vld [vmem:[%s203 + $0x12b] sm:$0xff]
      %v1428 = vmax.f32 %v1392, 0.0
      %v1429 = vmax.f32 %v1393, 0.0
      %v1430 = vmax.f32 %v1394, 0.0
      %v1431 = vmax.f32 %v1395, 0.0
      %v1432 = vmax.f32 %v1396, 0.0
      %v1433 = vmax.f32 %v1397, 0.0
      %v1434 = vmax.f32 %v1398, 0.0
      %v1435 = vmax.f32 %v1399, 0.0
      %v1436 = vmax.f32 %v1400, 0.0
      %v1437 = vmax.f32 %v1401, 0.0
      %v1438 = vmax.f32 %v1402, 0.0
      %v1439 = vmax.f32 %v1403, 0.0
      %v1440 = vmax.f32 %v1404, 0.0
      %v1441 = vmax.f32 %v1405, 0.0
      %v1442 = vmax.f32 %v1406, 0.0
      %v1443 = vmax.f32 %v1407, 0.0
      %v1444 = vmax.f32 %v1408, 0.0
      %v1445 = vmax.f32 %v1409, 0.0
      %v1446 = vmax.f32 %v1410, 0.0
      %v1447 = vmax.f32 %v1411, 0.0
      %v1448 = vmax.f32 %v1412, 0.0
      %v1449 = vmax.f32 %v1413, 0.0
      %v1450 = vmax.f32 %v1414, 0.0
      %v1451 = vmax.f32 %v1415, 0.0
      %v1452 = vmax.f32 %v1416, 0.0
      %v1453 = vmax.f32 %v1417, 0.0
      %v1454 = vmax.f32 %v1418, 0.0
      %v1455 = vmax.f32 %v1419, 0.0
      %v1456 = vmax.f32 %v1420, 0.0
      %v1457 = vmax.f32 %v1421, 0.0
      %v1458 = vmax.f32 %v1422, 0.0
      %v1459 = vmax.f32 %v1423, 0.0
      %v1460 = vmax.f32 %v1424, 0.0
      %v1461 = vmax.f32 %v1425, 0.0
      %v1462 = vmax.f32 %v1426, 0.0
      %v1463 = vmax.f32 %v1427, 0.0
      %v1464 = vpack.c.bf16 %v1429, %v1428
      %v1465 = vpack.c.bf16 %v1431, %v1430
      %v1466 = vpack.c.bf16 %v1433, %v1432
      %v1467 = vpack.c.bf16 %v1435, %v1434
      %v1468 = vpack.c.bf16 %v1437, %v1436
      %v1469 = vpack.c.bf16 %v1439, %v1438
      %v1470 = vpack.c.bf16 %v1441, %v1440
      %v1471 = vpack.c.bf16 %v1443, %v1442
      %v1472 = vpack.c.bf16 %v1445, %v1444
      %v1473 = vpack.c.bf16 %v1447, %v1446
      %v1474 = vpack.c.bf16 %v1449, %v1448
      %v1475 = vpack.c.bf16 %v1451, %v1450
      %v1476 = vpack.c.bf16 %v1453, %v1452
      %v1477 = vpack.c.bf16 %v1455, %v1454
      %v1478 = vpack.c.bf16 %v1457, %v1456
      %v1479 = vpack.c.bf16 %v1459, %v1458
      %v1480 = vpack.c.bf16 %v1461, %v1460
      %v1481 = vpack.c.bf16 %v1463, %v1462
      %s1482 = scalar_lea.vmem %s1, 128
      %v1483 = vld [vmem:[%s1482] sm:$0xf]
      %v1484 = vld [vmem:[%s1482 + $0x4] sm:$0xf]
      %v1485 = vld [vmem:[%s1482 + $0x8] sm:$0xf]
      %v1486 = vld [vmem:[%s1482 + $0xc] sm:$0xf]
      %v1487 = vld [vmem:[%s1482 + $0x10] sm:$0xf]
      %v1488 = vld [vmem:[%s1482 + $0x14] sm:$0xf]
      %v1489 = vld [vmem:[%s1482 + $0x18] sm:$0xf]
      %v1490 = vld [vmem:[%s1482 + $0x1c] sm:$0xf]
      %v1499 = vunpack.c.l.b16 %v1483
      %v1500 = vunpack.c.l.b16 %v1484
      %v1501 = vunpack.c.l.b16 %v1485
      %v1502 = vunpack.c.l.b16 %v1486
      %v1503 = vunpack.c.l.b16 %v1487
      %v1504 = vunpack.c.l.b16 %v1488
      %v1505 = vunpack.c.l.b16 %v1489
      %v1506 = vunpack.c.l.b16 %v1490
      %v1507 = vpack.c.b16 %v1500, %v1499
      %v1508 = vpack.c.b16 %v1502, %v1501
      %v1509 = vpack.c.b16 %v1504, %v1503
      %v1510 = vpack.c.b16 %v1506, %v1505
      %v1516 = vsel %vm437, %v1464, 0
      %v1519 = vsel %vm437, %v1465, 0
      %v1522 = vsel %vm437, %v1466, 0
      %v1525 = vsel %vm437, %v1467, 0
      %v1528 = vsel %vm437, %v1468, 0
      %v1531 = vsel %vm437, %v1469, 0
      %v1534 = vsel %vm437, %v1470, 0
      %v1537 = vsel %vm437, %v1471, 0
      %v1540 = vsel %vm437, %v1472, 0
      %v1543 = vsel %vm437, %v1473, 0
      %v1546 = vsel %vm437, %v1474, 0
      %v1549 = vsel %vm437, %v1475, 0
      %v1552 = vsel %vm437, %v1476, 0
      %v1555 = vsel %vm437, %v1477, 0
      %v1558 = vsel %vm437, %v1478, 0
      %v1561 = vsel %vm437, %v1479, 0
      %v1564 = vsel %vm437, %v1480, 0
      %v1567 = vsel %vm437, %v1481, 0
      %1569 = vmatpush.bf16.msra.mxu0 0
      %1570 = vmatpush.bf16.msra.mxu0 0
      %1571 = vmatpush.bf16.msra.mxu0 0
      %1572 = vmatpush.bf16.msra.mxu0 0
      %1573 = vmatpush.bf16.msra.mxu0 %v1510
      %1574 = vmatpush.bf16.msra.mxu0 %v1509
      %1575 = vmatpush.bf16.msra.mxu0 %v1508
      %1576 = vmatpush.bf16.msra.mxu0 %v1507
      %1577 = vmatmul.bf16.gmra.mxu0 %v1516
      %v1578 = vpop.f32.mrf.mxu0
      %v1579 = vadd.f32 0.0, %v1578
      %v1580 = vpop.f32.mrf.mxu0
      %v1581 = vadd.f32 0.0, %v1580
      %1582 = vmatmul.bf16.gmra.mxu0 %v1519
      %v1583 = vpop.f32.mrf.mxu0
      %v1584 = vadd.f32 0.0, %v1583
      %v1585 = vpop.f32.mrf.mxu0
      %v1586 = vadd.f32 0.0, %v1585
      %1587 = vmatmul.bf16.gmra.mxu0 %v1522
      %v1588 = vpop.f32.mrf.mxu0
      %v1589 = vadd.f32 0.0, %v1588
      %v1590 = vpop.f32.mrf.mxu0
      %v1591 = vadd.f32 0.0, %v1590
      %1592 = vmatmul.bf16.gmra.mxu0 %v1525
      %v1593 = vpop.f32.mrf.mxu0
      %v1594 = vadd.f32 0.0, %v1593
      %v1595 = vpop.f32.mrf.mxu0
      %v1596 = vadd.f32 0.0, %v1595
      %1597 = vmatmul.bf16.gmra.mxu0 %v1528
      %v1598 = vpop.f32.mrf.mxu0
      %v1599 = vadd.f32 0.0, %v1598
      %v1600 = vpop.f32.mrf.mxu0
      %v1601 = vadd.f32 0.0, %v1600
      %1602 = vmatmul.bf16.gmra.mxu0 %v1531
      %v1603 = vpop.f32.mrf.mxu0
      %v1604 = vadd.f32 0.0, %v1603
      %v1605 = vpop.f32.mrf.mxu0
      %v1606 = vadd.f32 0.0, %v1605
      %1607 = vmatmul.bf16.gmra.mxu0 %v1534
      %v1608 = vpop.f32.mrf.mxu0
      %v1609 = vadd.f32 0.0, %v1608
      %v1610 = vpop.f32.mrf.mxu0
      %v1611 = vadd.f32 0.0, %v1610
      %1612 = vmatmul.bf16.gmra.mxu0 %v1537
      %v1613 = vpop.f32.mrf.mxu0
      %v1614 = vadd.f32 0.0, %v1613
      %v1615 = vpop.f32.mrf.mxu0
      %v1616 = vadd.f32 0.0, %v1615
      %1617 = vmatmul.bf16.gmra.mxu0 %v1540
      %v1618 = vpop.f32.mrf.mxu0
      %v1619 = vadd.f32 0.0, %v1618
      %v1620 = vpop.f32.mrf.mxu0
      %v1621 = vadd.f32 0.0, %v1620
      %1622 = vmatmul.bf16.gmra.mxu0 %v1543
      %v1623 = vpop.f32.mrf.mxu0
      %v1624 = vadd.f32 0.0, %v1623
      %v1625 = vpop.f32.mrf.mxu0
      %v1626 = vadd.f32 0.0, %v1625
      %1627 = vmatmul.bf16.gmra.mxu0 %v1546
      %v1628 = vpop.f32.mrf.mxu0
      %v1629 = vadd.f32 0.0, %v1628
      %v1630 = vpop.f32.mrf.mxu0
      %v1631 = vadd.f32 0.0, %v1630
      %1632 = vmatmul.bf16.gmra.mxu0 %v1549
      %v1633 = vpop.f32.mrf.mxu0
      %v1634 = vadd.f32 0.0, %v1633
      %v1635 = vpop.f32.mrf.mxu0
      %v1636 = vadd.f32 0.0, %v1635
      %1637 = vmatmul.bf16.gmra.mxu0 %v1552
      %v1638 = vpop.f32.mrf.mxu0
      %v1639 = vadd.f32 0.0, %v1638
      %v1640 = vpop.f32.mrf.mxu0
      %v1641 = vadd.f32 0.0, %v1640
      %1642 = vmatmul.bf16.gmra.mxu0 %v1555
      %v1643 = vpop.f32.mrf.mxu0
      %v1644 = vadd.f32 0.0, %v1643
      %v1645 = vpop.f32.mrf.mxu0
      %v1646 = vadd.f32 0.0, %v1645
      %1647 = vmatmul.bf16.gmra.mxu0 %v1558
      %v1648 = vpop.f32.mrf.mxu0
      %v1649 = vadd.f32 0.0, %v1648
      %v1650 = vpop.f32.mrf.mxu0
      %v1651 = vadd.f32 0.0, %v1650
      %1652 = vmatmul.bf16.gmra.mxu0 %v1561
      %v1653 = vpop.f32.mrf.mxu0
      %v1654 = vadd.f32 0.0, %v1653
      %v1655 = vpop.f32.mrf.mxu0
      %v1656 = vadd.f32 0.0, %v1655
      %1657 = vmatmul.bf16.gmra.mxu0 %v1564
      %v1658 = vpop.f32.mrf.mxu0
      %v1659 = vadd.f32 0.0, %v1658
      %v1660 = vpop.f32.mrf.mxu0
      %v1661 = vadd.f32 0.0, %v1660
      %1662 = vmatmul.bf16.gmra.mxu0 %v1567
      %v1663 = vpop.f32.mrf.mxu0
      %v1664 = vadd.f32 0.0, %v1663
      %v1665 = vpop.f32.mrf.mxu0
      %v1666 = vadd.f32 0.0, %v1665
      %1667 = vdwg.mxu0
      %v1668 = vadd.f32 %v1356, %v1579
      %v1669 = vadd.f32 %v1357, %v1581
      %v1670 = vadd.f32 %v1358, %v1584
      %v1671 = vadd.f32 %v1359, %v1586
      %v1672 = vadd.f32 %v1360, %v1589
      %v1673 = vadd.f32 %v1361, %v1591
      %v1674 = vadd.f32 %v1362, %v1594
      %v1675 = vadd.f32 %v1363, %v1596
      %v1676 = vadd.f32 %v1364, %v1599
      %v1677 = vadd.f32 %v1365, %v1601
      %v1678 = vadd.f32 %v1366, %v1604
      %v1679 = vadd.f32 %v1367, %v1606
      %v1680 = vadd.f32 %v1368, %v1609
      %v1681 = vadd.f32 %v1369, %v1611
      %v1682 = vadd.f32 %v1370, %v1614
      %v1683 = vadd.f32 %v1371, %v1616
      %v1684 = vadd.f32 %v1372, %v1619
      %v1685 = vadd.f32 %v1373, %v1621
      %v1686 = vadd.f32 %v1374, %v1624
      %v1687 = vadd.f32 %v1375, %v1626
      %v1688 = vadd.f32 %v1376, %v1629
      %v1689 = vadd.f32 %v1377, %v1631
      %v1690 = vadd.f32 %v1378, %v1634
      %v1691 = vadd.f32 %v1379, %v1636
      %v1692 = vadd.f32 %v1380, %v1639
      %v1693 = vadd.f32 %v1381, %v1641
      %v1694 = vadd.f32 %v1382, %v1644
      %v1695 = vadd.f32 %v1383, %v1646
      %v1696 = vadd.f32 %v1384, %v1649
      %v1697 = vadd.f32 %v1385, %v1651
      %v1698 = vadd.f32 %v1386, %v1654
      %v1699 = vadd.f32 %v1387, %v1656
      %v1700 = vadd.f32 %v1388, %v1659
      %v1701 = vadd.f32 %v1389, %v1661
      %v1702 = vadd.f32 %v1390, %v1664
      %v1703 = vadd.f32 %v1391, %v1666
      %v1704 = vld [vmem:[%s203 + $0x14] sm:$0xff]
      %v1705 = vld [vmem:[%s203 + $0x1c] sm:$0xff]
      %v1706 = vld [vmem:[%s203 + $0x24] sm:$0xff]
      %v1707 = vld [vmem:[%s203 + $0x2c] sm:$0xff]
      %v1708 = vld [vmem:[%s203 + $0x34] sm:$0xff]
      %v1709 = vld [vmem:[%s203 + $0x3c] sm:$0xff]
      %v1710 = vld [vmem:[%s203 + $0x44] sm:$0xff]
      %v1711 = vld [vmem:[%s203 + $0x4c] sm:$0xff]
      %v1712 = vld [vmem:[%s203 + $0x54] sm:$0xff]
      %v1713 = vld [vmem:[%s203 + $0x5c] sm:$0xff]
      %v1714 = vld [vmem:[%s203 + $0x64] sm:$0xff]
      %v1715 = vld [vmem:[%s203 + $0x6c] sm:$0xff]
      %v1716 = vld [vmem:[%s203 + $0x74] sm:$0xff]
      %v1717 = vld [vmem:[%s203 + $0x7c] sm:$0xff]
      %v1718 = vld [vmem:[%s203 + $0x84] sm:$0xff]
      %v1719 = vld [vmem:[%s203 + $0x8c] sm:$0xff]
      %v1720 = vld [vmem:[%s203 + $0x94] sm:$0xff]
      %v1721 = vld [vmem:[%s203 + $0x9c] sm:$0xff]
      %v1722 = vld [vmem:[%s203 + $0xa4] sm:$0xff]
      %v1723 = vld [vmem:[%s203 + $0xac] sm:$0xff]
      %v1724 = vld [vmem:[%s203 + $0xb4] sm:$0xff]
      %v1725 = vld [vmem:[%s203 + $0xbc] sm:$0xff]
      %v1726 = vld [vmem:[%s203 + $0xc4] sm:$0xff]
      %v1727 = vld [vmem:[%s203 + $0xcc] sm:$0xff]
      %v1728 = vld [vmem:[%s203 + $0xd4] sm:$0xff]
      %v1729 = vld [vmem:[%s203 + $0xdc] sm:$0xff]
      %v1730 = vld [vmem:[%s203 + $0xe4] sm:$0xff]
      %v1731 = vld [vmem:[%s203 + $0xec] sm:$0xff]
      %v1732 = vld [vmem:[%s203 + $0xf4] sm:$0xff]
      %v1733 = vld [vmem:[%s203 + $0xfc] sm:$0xff]
      %v1734 = vld [vmem:[%s203 + $0x104] sm:$0xff]
      %v1735 = vld [vmem:[%s203 + $0x10c] sm:$0xff]
      %v1736 = vld [vmem:[%s203 + $0x114] sm:$0xff]
      %v1737 = vld [vmem:[%s203 + $0x11c] sm:$0xff]
      %v1738 = vld [vmem:[%s203 + $0x124] sm:$0xff]
      %v1739 = vld [vmem:[%s203 + $0x12c] sm:$0xff]
      %v1740 = vmax.f32 %v1704, 0.0
      %v1741 = vmax.f32 %v1705, 0.0
      %v1742 = vmax.f32 %v1706, 0.0
      %v1743 = vmax.f32 %v1707, 0.0
      %v1744 = vmax.f32 %v1708, 0.0
      %v1745 = vmax.f32 %v1709, 0.0
      %v1746 = vmax.f32 %v1710, 0.0
      %v1747 = vmax.f32 %v1711, 0.0
      %v1748 = vmax.f32 %v1712, 0.0
      %v1749 = vmax.f32 %v1713, 0.0
      %v1750 = vmax.f32 %v1714, 0.0
      %v1751 = vmax.f32 %v1715, 0.0
      %v1752 = vmax.f32 %v1716, 0.0
      %v1753 = vmax.f32 %v1717, 0.0
      %v1754 = vmax.f32 %v1718, 0.0
      %v1755 = vmax.f32 %v1719, 0.0
      %v1756 = vmax.f32 %v1720, 0.0
      %v1757 = vmax.f32 %v1721, 0.0
      %v1758 = vmax.f32 %v1722, 0.0
      %v1759 = vmax.f32 %v1723, 0.0
      %v1760 = vmax.f32 %v1724, 0.0
      %v1761 = vmax.f32 %v1725, 0.0
      %v1762 = vmax.f32 %v1726, 0.0
      %v1763 = vmax.f32 %v1727, 0.0
      %v1764 = vmax.f32 %v1728, 0.0
      %v1765 = vmax.f32 %v1729, 0.0
      %v1766 = vmax.f32 %v1730, 0.0
      %v1767 = vmax.f32 %v1731, 0.0
      %v1768 = vmax.f32 %v1732, 0.0
      %v1769 = vmax.f32 %v1733, 0.0
      %v1770 = vmax.f32 %v1734, 0.0
      %v1771 = vmax.f32 %v1735, 0.0
      %v1772 = vmax.f32 %v1736, 0.0
      %v1773 = vmax.f32 %v1737, 0.0
      %v1774 = vmax.f32 %v1738, 0.0
      %v1775 = vmax.f32 %v1739, 0.0
      %v1776 = vpack.c.bf16 %v1741, %v1740
      %v1777 = vpack.c.bf16 %v1743, %v1742
      %v1778 = vpack.c.bf16 %v1745, %v1744
      %v1779 = vpack.c.bf16 %v1747, %v1746
      %v1780 = vpack.c.bf16 %v1749, %v1748
      %v1781 = vpack.c.bf16 %v1751, %v1750
      %v1782 = vpack.c.bf16 %v1753, %v1752
      %v1783 = vpack.c.bf16 %v1755, %v1754
      %v1784 = vpack.c.bf16 %v1757, %v1756
      %v1785 = vpack.c.bf16 %v1759, %v1758
      %v1786 = vpack.c.bf16 %v1761, %v1760
      %v1787 = vpack.c.bf16 %v1763, %v1762
      %v1788 = vpack.c.bf16 %v1765, %v1764
      %v1789 = vpack.c.bf16 %v1767, %v1766
      %v1790 = vpack.c.bf16 %v1769, %v1768
      %v1791 = vpack.c.bf16 %v1771, %v1770
      %v1792 = vpack.c.bf16 %v1773, %v1772
      %v1793 = vpack.c.bf16 %v1775, %v1774
      %s1794 = scalar_lea.vmem %s1, 160
      %v1795 = vld [vmem:[%s1794] sm:$0xf]
      %v1796 = vld [vmem:[%s1794 + $0x4] sm:$0xf]
      %v1797 = vld [vmem:[%s1794 + $0x8] sm:$0xf]
      %v1798 = vld [vmem:[%s1794 + $0xc] sm:$0xf]
      %v1799 = vld [vmem:[%s1794 + $0x10] sm:$0xf]
      %v1800 = vld [vmem:[%s1794 + $0x14] sm:$0xf]
      %v1801 = vld [vmem:[%s1794 + $0x18] sm:$0xf]
      %v1802 = vld [vmem:[%s1794 + $0x1c] sm:$0xf]
      %v1811 = vunpack.c.l.b16 %v1795
      %v1812 = vunpack.c.l.b16 %v1796
      %v1813 = vunpack.c.l.b16 %v1797
      %v1814 = vunpack.c.l.b16 %v1798
      %v1815 = vunpack.c.l.b16 %v1799
      %v1816 = vunpack.c.l.b16 %v1800
      %v1817 = vunpack.c.l.b16 %v1801
      %v1818 = vunpack.c.l.b16 %v1802
      %v1819 = vpack.c.b16 %v1812, %v1811
      %v1820 = vpack.c.b16 %v1814, %v1813
      %v1821 = vpack.c.b16 %v1816, %v1815
      %v1822 = vpack.c.b16 %v1818, %v1817
      %v1828 = vsel %vm437, %v1776, 0
      %v1831 = vsel %vm437, %v1777, 0
      %v1834 = vsel %vm437, %v1778, 0
      %v1837 = vsel %vm437, %v1779, 0
      %v1840 = vsel %vm437, %v1780, 0
      %v1843 = vsel %vm437, %v1781, 0
      %v1846 = vsel %vm437, %v1782, 0
      %v1849 = vsel %vm437, %v1783, 0
      %v1852 = vsel %vm437, %v1784, 0
      %v1855 = vsel %vm437, %v1785, 0
      %v1858 = vsel %vm437, %v1786, 0
      %v1861 = vsel %vm437, %v1787, 0
      %v1864 = vsel %vm437, %v1788, 0
      %v1867 = vsel %vm437, %v1789, 0
      %v1870 = vsel %vm437, %v1790, 0
      %v1873 = vsel %vm437, %v1791, 0
      %v1876 = vsel %vm437, %v1792, 0
      %v1879 = vsel %vm437, %v1793, 0
      %1881 = vmatpush.bf16.msra.mxu0 0
      %1882 = vmatpush.bf16.msra.mxu0 0
      %1883 = vmatpush.bf16.msra.mxu0 0
      %1884 = vmatpush.bf16.msra.mxu0 0
      %1885 = vmatpush.bf16.msra.mxu0 %v1822
      %1886 = vmatpush.bf16.msra.mxu0 %v1821
      %1887 = vmatpush.bf16.msra.mxu0 %v1820
      %1888 = vmatpush.bf16.msra.mxu0 %v1819
      %1889 = vmatmul.bf16.gmra.mxu0 %v1828
      %v1890 = vpop.f32.mrf.mxu0
      %v1891 = vadd.f32 0.0, %v1890
      %v1892 = vpop.f32.mrf.mxu0
      %v1893 = vadd.f32 0.0, %v1892
      %1894 = vmatmul.bf16.gmra.mxu0 %v1831
      %v1895 = vpop.f32.mrf.mxu0
      %v1896 = vadd.f32 0.0, %v1895
      %v1897 = vpop.f32.mrf.mxu0
      %v1898 = vadd.f32 0.0, %v1897
      %1899 = vmatmul.bf16.gmra.mxu0 %v1834
      %v1900 = vpop.f32.mrf.mxu0
      %v1901 = vadd.f32 0.0, %v1900
      %v1902 = vpop.f32.mrf.mxu0
      %v1903 = vadd.f32 0.0, %v1902
      %1904 = vmatmul.bf16.gmra.mxu0 %v1837
      %v1905 = vpop.f32.mrf.mxu0
      %v1906 = vadd.f32 0.0, %v1905
      %v1907 = vpop.f32.mrf.mxu0
      %v1908 = vadd.f32 0.0, %v1907
      %1909 = vmatmul.bf16.gmra.mxu0 %v1840
      %v1910 = vpop.f32.mrf.mxu0
      %v1911 = vadd.f32 0.0, %v1910
      %v1912 = vpop.f32.mrf.mxu0
      %v1913 = vadd.f32 0.0, %v1912
      %1914 = vmatmul.bf16.gmra.mxu0 %v1843
      %v1915 = vpop.f32.mrf.mxu0
      %v1916 = vadd.f32 0.0, %v1915
      %v1917 = vpop.f32.mrf.mxu0
      %v1918 = vadd.f32 0.0, %v1917
      %1919 = vmatmul.bf16.gmra.mxu0 %v1846
      %v1920 = vpop.f32.mrf.mxu0
      %v1921 = vadd.f32 0.0, %v1920
      %v1922 = vpop.f32.mrf.mxu0
      %v1923 = vadd.f32 0.0, %v1922
      %1924 = vmatmul.bf16.gmra.mxu0 %v1849
      %v1925 = vpop.f32.mrf.mxu0
      %v1926 = vadd.f32 0.0, %v1925
      %v1927 = vpop.f32.mrf.mxu0
      %v1928 = vadd.f32 0.0, %v1927
      %1929 = vmatmul.bf16.gmra.mxu0 %v1852
      %v1930 = vpop.f32.mrf.mxu0
      %v1931 = vadd.f32 0.0, %v1930
      %v1932 = vpop.f32.mrf.mxu0
      %v1933 = vadd.f32 0.0, %v1932
      %1934 = vmatmul.bf16.gmra.mxu0 %v1855
      %v1935 = vpop.f32.mrf.mxu0
      %v1936 = vadd.f32 0.0, %v1935
      %v1937 = vpop.f32.mrf.mxu0
      %v1938 = vadd.f32 0.0, %v1937
      %1939 = vmatmul.bf16.gmra.mxu0 %v1858
      %v1940 = vpop.f32.mrf.mxu0
      %v1941 = vadd.f32 0.0, %v1940
      %v1942 = vpop.f32.mrf.mxu0
      %v1943 = vadd.f32 0.0, %v1942
      %1944 = vmatmul.bf16.gmra.mxu0 %v1861
      %v1945 = vpop.f32.mrf.mxu0
      %v1946 = vadd.f32 0.0, %v1945
      %v1947 = vpop.f32.mrf.mxu0
      %v1948 = vadd.f32 0.0, %v1947
      %1949 = vmatmul.bf16.gmra.mxu0 %v1864
      %v1950 = vpop.f32.mrf.mxu0
      %v1951 = vadd.f32 0.0, %v1950
      %v1952 = vpop.f32.mrf.mxu0
      %v1953 = vadd.f32 0.0, %v1952
      %1954 = vmatmul.bf16.gmra.mxu0 %v1867
      %v1955 = vpop.f32.mrf.mxu0
      %v1956 = vadd.f32 0.0, %v1955
      %v1957 = vpop.f32.mrf.mxu0
      %v1958 = vadd.f32 0.0, %v1957
      %1959 = vmatmul.bf16.gmra.mxu0 %v1870
      %v1960 = vpop.f32.mrf.mxu0
      %v1961 = vadd.f32 0.0, %v1960
      %v1962 = vpop.f32.mrf.mxu0
      %v1963 = vadd.f32 0.0, %v1962
      %1964 = vmatmul.bf16.gmra.mxu0 %v1873
      %v1965 = vpop.f32.mrf.mxu0
      %v1966 = vadd.f32 0.0, %v1965
      %v1967 = vpop.f32.mrf.mxu0
      %v1968 = vadd.f32 0.0, %v1967
      %1969 = vmatmul.bf16.gmra.mxu0 %v1876
      %v1970 = vpop.f32.mrf.mxu0
      %v1971 = vadd.f32 0.0, %v1970
      %v1972 = vpop.f32.mrf.mxu0
      %v1973 = vadd.f32 0.0, %v1972
      %1974 = vmatmul.bf16.gmra.mxu0 %v1879
      %v1975 = vpop.f32.mrf.mxu0
      %v1976 = vadd.f32 0.0, %v1975
      %v1977 = vpop.f32.mrf.mxu0
      %v1978 = vadd.f32 0.0, %v1977
      %1979 = vdwg.mxu0
      %v1980 = vadd.f32 %v1668, %v1891
      %v1981 = vadd.f32 %v1669, %v1893
      %v1982 = vadd.f32 %v1670, %v1896
      %v1983 = vadd.f32 %v1671, %v1898
      %v1984 = vadd.f32 %v1672, %v1901
      %v1985 = vadd.f32 %v1673, %v1903
      %v1986 = vadd.f32 %v1674, %v1906
      %v1987 = vadd.f32 %v1675, %v1908
      %v1988 = vadd.f32 %v1676, %v1911
      %v1989 = vadd.f32 %v1677, %v1913
      %v1990 = vadd.f32 %v1678, %v1916
      %v1991 = vadd.f32 %v1679, %v1918
      %v1992 = vadd.f32 %v1680, %v1921
      %v1993 = vadd.f32 %v1681, %v1923
      %v1994 = vadd.f32 %v1682, %v1926
      %v1995 = vadd.f32 %v1683, %v1928
      %v1996 = vadd.f32 %v1684, %v1931
      %v1997 = vadd.f32 %v1685, %v1933
      %v1998 = vadd.f32 %v1686, %v1936
      %v1999 = vadd.f32 %v1687, %v1938
      %v2000 = vadd.f32 %v1688, %v1941
      %v2001 = vadd.f32 %v1689, %v1943
      %v2002 = vadd.f32 %v1690, %v1946
      %v2003 = vadd.f32 %v1691, %v1948
      %v2004 = vadd.f32 %v1692, %v1951
      %v2005 = vadd.f32 %v1693, %v1953
      %v2006 = vadd.f32 %v1694, %v1956
      %v2007 = vadd.f32 %v1695, %v1958
      %v2008 = vadd.f32 %v1696, %v1961
      %v2009 = vadd.f32 %v1697, %v1963
      %v2010 = vadd.f32 %v1698, %v1966
      %v2011 = vadd.f32 %v1699, %v1968
      %v2012 = vadd.f32 %v1700, %v1971
      %v2013 = vadd.f32 %v1701, %v1973
      %v2014 = vadd.f32 %v1702, %v1976
      %v2015 = vadd.f32 %v1703, %v1978
      %v2016 = vld [vmem:[%s203 + $0x24] sm:$0xff]
      %v2017 = vld [vmem:[%s203 + $0x2c] sm:$0xff]
      %v2018 = vld [vmem:[%s203 + $0x34] sm:$0xff]
      %v2019 = vld [vmem:[%s203 + $0x3c] sm:$0xff]
      %v2020 = vld [vmem:[%s203 + $0x44] sm:$0xff]
      %v2021 = vld [vmem:[%s203 + $0x4c] sm:$0xff]
      %v2022 = vld [vmem:[%s203 + $0x54] sm:$0xff]
      %v2023 = vld [vmem:[%s203 + $0x5c] sm:$0xff]
      %v2024 = vld [vmem:[%s203 + $0x64] sm:$0xff]
      %v2025 = vld [vmem:[%s203 + $0x6c] sm:$0xff]
      %v2026 = vld [vmem:[%s203 + $0x74] sm:$0xff]
      %v2027 = vld [vmem:[%s203 + $0x7c] sm:$0xff]
      %v2028 = vld [vmem:[%s203 + $0x84] sm:$0xff]
      %v2029 = vld [vmem:[%s203 + $0x8c] sm:$0xff]
      %v2030 = vld [vmem:[%s203 + $0x94] sm:$0xff]
      %v2031 = vld [vmem:[%s203 + $0x9c] sm:$0xff]
      %v2032 = vld [vmem:[%s203 + $0xa4] sm:$0xff]
      %v2033 = vld [vmem:[%s203 + $0xac] sm:$0xff]
      %v2034 = vld [vmem:[%s203 + $0xb4] sm:$0xff]
      %v2035 = vld [vmem:[%s203 + $0xbc] sm:$0xff]
      %v2036 = vld [vmem:[%s203 + $0xc4] sm:$0xff]
      %v2037 = vld [vmem:[%s203 + $0xcc] sm:$0xff]
      %v2038 = vld [vmem:[%s203 + $0xd4] sm:$0xff]
      %v2039 = vld [vmem:[%s203 + $0xdc] sm:$0xff]
      %v2040 = vld [vmem:[%s203 + $0xe4] sm:$0xff]
      %v2041 = vld [vmem:[%s203 + $0xec] sm:$0xff]
      %v2042 = vld [vmem:[%s203 + $0xf4] sm:$0xff]
      %v2043 = vld [vmem:[%s203 + $0xfc] sm:$0xff]
      %v2044 = vld [vmem:[%s203 + $0x104] sm:$0xff]
      %v2045 = vld [vmem:[%s203 + $0x10c] sm:$0xff]
      %v2046 = vld [vmem:[%s203 + $0x114] sm:$0xff]
      %v2047 = vld [vmem:[%s203 + $0x11c] sm:$0xff]
      %v2048 = vld [vmem:[%s203 + $0x124] sm:$0xff]
      %v2049 = vld [vmem:[%s203 + $0x12c] sm:$0xff]
      %v2050 = vld [vmem:[%s203 + $0x134] sm:$0xff]
      %v2051 = vld [vmem:[%s203 + $0x13c] sm:$0xff]
      %v2052 = vmax.f32 %v2016, 0.0
      %v2053 = vmax.f32 %v2017, 0.0
      %v2054 = vmax.f32 %v2018, 0.0
      %v2055 = vmax.f32 %v2019, 0.0
      %v2056 = vmax.f32 %v2020, 0.0
      %v2057 = vmax.f32 %v2021, 0.0
      %v2058 = vmax.f32 %v2022, 0.0
      %v2059 = vmax.f32 %v2023, 0.0
      %v2060 = vmax.f32 %v2024, 0.0
      %v2061 = vmax.f32 %v2025, 0.0
      %v2062 = vmax.f32 %v2026, 0.0
      %v2063 = vmax.f32 %v2027, 0.0
      %v2064 = vmax.f32 %v2028, 0.0
      %v2065 = vmax.f32 %v2029, 0.0
      %v2066 = vmax.f32 %v2030, 0.0
      %v2067 = vmax.f32 %v2031, 0.0
      %v2068 = vmax.f32 %v2032, 0.0
      %v2069 = vmax.f32 %v2033, 0.0
      %v2070 = vmax.f32 %v2034, 0.0
      %v2071 = vmax.f32 %v2035, 0.0
      %v2072 = vmax.f32 %v2036, 0.0
      %v2073 = vmax.f32 %v2037, 0.0
      %v2074 = vmax.f32 %v2038, 0.0
      %v2075 = vmax.f32 %v2039, 0.0
      %v2076 = vmax.f32 %v2040, 0.0
      %v2077 = vmax.f32 %v2041, 0.0
      %v2078 = vmax.f32 %v2042, 0.0
      %v2079 = vmax.f32 %v2043, 0.0
      %v2080 = vmax.f32 %v2044, 0.0
      %v2081 = vmax.f32 %v2045, 0.0
      %v2082 = vmax.f32 %v2046, 0.0
      %v2083 = vmax.f32 %v2047, 0.0
      %v2084 = vmax.f32 %v2048, 0.0
      %v2085 = vmax.f32 %v2049, 0.0
      %v2086 = vmax.f32 %v2050, 0.0
      %v2087 = vmax.f32 %v2051, 0.0
      %v2088 = vpack.c.bf16 %v2053, %v2052
      %v2089 = vpack.c.bf16 %v2055, %v2054
      %v2090 = vpack.c.bf16 %v2057, %v2056
      %v2091 = vpack.c.bf16 %v2059, %v2058
      %v2092 = vpack.c.bf16 %v2061, %v2060
      %v2093 = vpack.c.bf16 %v2063, %v2062
      %v2094 = vpack.c.bf16 %v2065, %v2064
      %v2095 = vpack.c.bf16 %v2067, %v2066
      %v2096 = vpack.c.bf16 %v2069, %v2068
      %v2097 = vpack.c.bf16 %v2071, %v2070
      %v2098 = vpack.c.bf16 %v2073, %v2072
      %v2099 = vpack.c.bf16 %v2075, %v2074
      %v2100 = vpack.c.bf16 %v2077, %v2076
      %v2101 = vpack.c.bf16 %v2079, %v2078
      %v2102 = vpack.c.bf16 %v2081, %v2080
      %v2103 = vpack.c.bf16 %v2083, %v2082
      %v2104 = vpack.c.bf16 %v2085, %v2084
      %v2105 = vpack.c.bf16 %v2087, %v2086
      %s2106 = scalar_lea.vmem %s1, 192
      %v2107 = vld [vmem:[%s2106] sm:$0xf]
      %v2108 = vld [vmem:[%s2106 + $0x4] sm:$0xf]
      %v2109 = vld [vmem:[%s2106 + $0x8] sm:$0xf]
      %v2110 = vld [vmem:[%s2106 + $0xc] sm:$0xf]
      %v2111 = vld [vmem:[%s2106 + $0x10] sm:$0xf]
      %v2112 = vld [vmem:[%s2106 + $0x14] sm:$0xf]
      %v2113 = vld [vmem:[%s2106 + $0x18] sm:$0xf]
      %v2114 = vld [vmem:[%s2106 + $0x1c] sm:$0xf]
      %v2123 = vunpack.c.l.b16 %v2107
      %v2124 = vunpack.c.l.b16 %v2108
      %v2125 = vunpack.c.l.b16 %v2109
      %v2126 = vunpack.c.l.b16 %v2110
      %v2127 = vunpack.c.l.b16 %v2111
      %v2128 = vunpack.c.l.b16 %v2112
      %v2129 = vunpack.c.l.b16 %v2113
      %v2130 = vunpack.c.l.b16 %v2114
      %v2131 = vpack.c.b16 %v2124, %v2123
      %v2132 = vpack.c.b16 %v2126, %v2125
      %v2133 = vpack.c.b16 %v2128, %v2127
      %v2134 = vpack.c.b16 %v2130, %v2129
      %v2140 = vsel %vm437, %v2088, 0
      %v2143 = vsel %vm437, %v2089, 0
      %v2146 = vsel %vm437, %v2090, 0
      %v2149 = vsel %vm437, %v2091, 0
      %v2152 = vsel %vm437, %v2092, 0
      %v2155 = vsel %vm437, %v2093, 0
      %v2158 = vsel %vm437, %v2094, 0
      %v2161 = vsel %vm437, %v2095, 0
      %v2164 = vsel %vm437, %v2096, 0
      %v2167 = vsel %vm437, %v2097, 0
      %v2170 = vsel %vm437, %v2098, 0
      %v2173 = vsel %vm437, %v2099, 0
      %v2176 = vsel %vm437, %v2100, 0
      %v2179 = vsel %vm437, %v2101, 0
      %v2182 = vsel %vm437, %v2102, 0
      %v2185 = vsel %vm437, %v2103, 0
      %v2188 = vsel %vm437, %v2104, 0
      %v2191 = vsel %vm437, %v2105, 0
      %2193 = vmatpush.bf16.msra.mxu0 0
      %2194 = vmatpush.bf16.msra.mxu0 0
      %2195 = vmatpush.bf16.msra.mxu0 0
      %2196 = vmatpush.bf16.msra.mxu0 0
      %2197 = vmatpush.bf16.msra.mxu0 %v2134
      %2198 = vmatpush.bf16.msra.mxu0 %v2133
      %2199 = vmatpush.bf16.msra.mxu0 %v2132
      %2200 = vmatpush.bf16.msra.mxu0 %v2131
      %2201 = vmatmul.bf16.gmra.mxu0 %v2140
      %v2202 = vpop.f32.mrf.mxu0
      %v2203 = vadd.f32 0.0, %v2202
      %v2204 = vpop.f32.mrf.mxu0
      %v2205 = vadd.f32 0.0, %v2204
      %2206 = vmatmul.bf16.gmra.mxu0 %v2143
      %v2207 = vpop.f32.mrf.mxu0
      %v2208 = vadd.f32 0.0, %v2207
      %v2209 = vpop.f32.mrf.mxu0
      %v2210 = vadd.f32 0.0, %v2209
      %2211 = vmatmul.bf16.gmra.mxu0 %v2146
      %v2212 = vpop.f32.mrf.mxu0
      %v2213 = vadd.f32 0.0, %v2212
      %v2214 = vpop.f32.mrf.mxu0
      %v2215 = vadd.f32 0.0, %v2214
      %2216 = vmatmul.bf16.gmra.mxu0 %v2149
      %v2217 = vpop.f32.mrf.mxu0
      %v2218 = vadd.f32 0.0, %v2217
      %v2219 = vpop.f32.mrf.mxu0
      %v2220 = vadd.f32 0.0, %v2219
      %2221 = vmatmul.bf16.gmra.mxu0 %v2152
      %v2222 = vpop.f32.mrf.mxu0
      %v2223 = vadd.f32 0.0, %v2222
      %v2224 = vpop.f32.mrf.mxu0
      %v2225 = vadd.f32 0.0, %v2224
      %2226 = vmatmul.bf16.gmra.mxu0 %v2155
      %v2227 = vpop.f32.mrf.mxu0
      %v2228 = vadd.f32 0.0, %v2227
      %v2229 = vpop.f32.mrf.mxu0
      %v2230 = vadd.f32 0.0, %v2229
      %2231 = vmatmul.bf16.gmra.mxu0 %v2158
      %v2232 = vpop.f32.mrf.mxu0
      %v2233 = vadd.f32 0.0, %v2232
      %v2234 = vpop.f32.mrf.mxu0
      %v2235 = vadd.f32 0.0, %v2234
      %2236 = vmatmul.bf16.gmra.mxu0 %v2161
      %v2237 = vpop.f32.mrf.mxu0
      %v2238 = vadd.f32 0.0, %v2237
      %v2239 = vpop.f32.mrf.mxu0
      %v2240 = vadd.f32 0.0, %v2239
      %2241 = vmatmul.bf16.gmra.mxu0 %v2164
      %v2242 = vpop.f32.mrf.mxu0
      %v2243 = vadd.f32 0.0, %v2242
      %v2244 = vpop.f32.mrf.mxu0
      %v2245 = vadd.f32 0.0, %v2244
      %2246 = vmatmul.bf16.gmra.mxu0 %v2167
      %v2247 = vpop.f32.mrf.mxu0
      %v2248 = vadd.f32 0.0, %v2247
      %v2249 = vpop.f32.mrf.mxu0
      %v2250 = vadd.f32 0.0, %v2249
      %2251 = vmatmul.bf16.gmra.mxu0 %v2170
      %v2252 = vpop.f32.mrf.mxu0
      %v2253 = vadd.f32 0.0, %v2252
      %v2254 = vpop.f32.mrf.mxu0
      %v2255 = vadd.f32 0.0, %v2254
      %2256 = vmatmul.bf16.gmra.mxu0 %v2173
      %v2257 = vpop.f32.mrf.mxu0
      %v2258 = vadd.f32 0.0, %v2257
      %v2259 = vpop.f32.mrf.mxu0
      %v2260 = vadd.f32 0.0, %v2259
      %2261 = vmatmul.bf16.gmra.mxu0 %v2176
      %v2262 = vpop.f32.mrf.mxu0
      %v2263 = vadd.f32 0.0, %v2262
      %v2264 = vpop.f32.mrf.mxu0
      %v2265 = vadd.f32 0.0, %v2264
      %2266 = vmatmul.bf16.gmra.mxu0 %v2179
      %v2267 = vpop.f32.mrf.mxu0
      %v2268 = vadd.f32 0.0, %v2267
      %v2269 = vpop.f32.mrf.mxu0
      %v2270 = vadd.f32 0.0, %v2269
      %2271 = vmatmul.bf16.gmra.mxu0 %v2182
      %v2272 = vpop.f32.mrf.mxu0
      %v2273 = vadd.f32 0.0, %v2272
      %v2274 = vpop.f32.mrf.mxu0
      %v2275 = vadd.f32 0.0, %v2274
      %2276 = vmatmul.bf16.gmra.mxu0 %v2185
      %v2277 = vpop.f32.mrf.mxu0
      %v2278 = vadd.f32 0.0, %v2277
      %v2279 = vpop.f32.mrf.mxu0
      %v2280 = vadd.f32 0.0, %v2279
      %2281 = vmatmul.bf16.gmra.mxu0 %v2188
      %v2282 = vpop.f32.mrf.mxu0
      %v2283 = vadd.f32 0.0, %v2282
      %v2284 = vpop.f32.mrf.mxu0
      %v2285 = vadd.f32 0.0, %v2284
      %2286 = vmatmul.bf16.gmra.mxu0 %v2191
      %v2287 = vpop.f32.mrf.mxu0
      %v2288 = vadd.f32 0.0, %v2287
      %v2289 = vpop.f32.mrf.mxu0
      %v2290 = vadd.f32 0.0, %v2289
      %2291 = vdwg.mxu0
      %v2292 = vadd.f32 %v1980, %v2203
      %v2293 = vadd.f32 %v1981, %v2205
      %v2294 = vadd.f32 %v1982, %v2208
      %v2295 = vadd.f32 %v1983, %v2210
      %v2296 = vadd.f32 %v1984, %v2213
      %v2297 = vadd.f32 %v1985, %v2215
      %v2298 = vadd.f32 %v1986, %v2218
      %v2299 = vadd.f32 %v1987, %v2220
      %v2300 = vadd.f32 %v1988, %v2223
      %v2301 = vadd.f32 %v1989, %v2225
      %v2302 = vadd.f32 %v1990, %v2228
      %v2303 = vadd.f32 %v1991, %v2230
      %v2304 = vadd.f32 %v1992, %v2233
      %v2305 = vadd.f32 %v1993, %v2235
      %v2306 = vadd.f32 %v1994, %v2238
      %v2307 = vadd.f32 %v1995, %v2240
      %v2308 = vadd.f32 %v1996, %v2243
      %v2309 = vadd.f32 %v1997, %v2245
      %v2310 = vadd.f32 %v1998, %v2248
      %v2311 = vadd.f32 %v1999, %v2250
      %v2312 = vadd.f32 %v2000, %v2253
      %v2313 = vadd.f32 %v2001, %v2255
      %v2314 = vadd.f32 %v2002, %v2258
      %v2315 = vadd.f32 %v2003, %v2260
      %v2316 = vadd.f32 %v2004, %v2263
      %v2317 = vadd.f32 %v2005, %v2265
      %v2318 = vadd.f32 %v2006, %v2268
      %v2319 = vadd.f32 %v2007, %v2270
      %v2320 = vadd.f32 %v2008, %v2273
      %v2321 = vadd.f32 %v2009, %v2275
      %v2322 = vadd.f32 %v2010, %v2278
      %v2323 = vadd.f32 %v2011, %v2280
      %v2324 = vadd.f32 %v2012, %v2283
      %v2325 = vadd.f32 %v2013, %v2285
      %v2326 = vadd.f32 %v2014, %v2288
      %v2327 = vadd.f32 %v2015, %v2290
      %v2328 = vld [vmem:[%s203 + $0x25] sm:$0xff]
      %v2329 = vld [vmem:[%s203 + $0x2d] sm:$0xff]
      %v2330 = vld [vmem:[%s203 + $0x35] sm:$0xff]
      %v2331 = vld [vmem:[%s203 + $0x3d] sm:$0xff]
      %v2332 = vld [vmem:[%s203 + $0x45] sm:$0xff]
      %v2333 = vld [vmem:[%s203 + $0x4d] sm:$0xff]
      %v2334 = vld [vmem:[%s203 + $0x55] sm:$0xff]
      %v2335 = vld [vmem:[%s203 + $0x5d] sm:$0xff]
      %v2336 = vld [vmem:[%s203 + $0x65] sm:$0xff]
      %v2337 = vld [vmem:[%s203 + $0x6d] sm:$0xff]
      %v2338 = vld [vmem:[%s203 + $0x75] sm:$0xff]
      %v2339 = vld [vmem:[%s203 + $0x7d] sm:$0xff]
      %v2340 = vld [vmem:[%s203 + $0x85] sm:$0xff]
      %v2341 = vld [vmem:[%s203 + $0x8d] sm:$0xff]
      %v2342 = vld [vmem:[%s203 + $0x95] sm:$0xff]
      %v2343 = vld [vmem:[%s203 + $0x9d] sm:$0xff]
      %v2344 = vld [vmem:[%s203 + $0xa5] sm:$0xff]
      %v2345 = vld [vmem:[%s203 + $0xad] sm:$0xff]
      %v2346 = vld [vmem:[%s203 + $0xb5] sm:$0xff]
      %v2347 = vld [vmem:[%s203 + $0xbd] sm:$0xff]
      %v2348 = vld [vmem:[%s203 + $0xc5] sm:$0xff]
      %v2349 = vld [vmem:[%s203 + $0xcd] sm:$0xff]
      %v2350 = vld [vmem:[%s203 + $0xd5] sm:$0xff]
      %v2351 = vld [vmem:[%s203 + $0xdd] sm:$0xff]
      %v2352 = vld [vmem:[%s203 + $0xe5] sm:$0xff]
      %v2353 = vld [vmem:[%s203 + $0xed] sm:$0xff]
      %v2354 = vld [vmem:[%s203 + $0xf5] sm:$0xff]
      %v2355 = vld [vmem:[%s203 + $0xfd] sm:$0xff]
      %v2356 = vld [vmem:[%s203 + $0x105] sm:$0xff]
      %v2357 = vld [vmem:[%s203 + $0x10d] sm:$0xff]
      %v2358 = vld [vmem:[%s203 + $0x115] sm:$0xff]
      %v2359 = vld [vmem:[%s203 + $0x11d] sm:$0xff]
      %v2360 = vld [vmem:[%s203 + $0x125] sm:$0xff]
      %v2361 = vld [vmem:[%s203 + $0x12d] sm:$0xff]
      %v2362 = vld [vmem:[%s203 + $0x135] sm:$0xff]
      %v2363 = vld [vmem:[%s203 + $0x13d] sm:$0xff]
      %v2364 = vmax.f32 %v2328, 0.0
      %v2365 = vmax.f32 %v2329, 0.0
      %v2366 = vmax.f32 %v2330, 0.0
      %v2367 = vmax.f32 %v2331, 0.0
      %v2368 = vmax.f32 %v2332, 0.0
      %v2369 = vmax.f32 %v2333, 0.0
      %v2370 = vmax.f32 %v2334, 0.0
      %v2371 = vmax.f32 %v2335, 0.0
      %v2372 = vmax.f32 %v2336, 0.0
      %v2373 = vmax.f32 %v2337, 0.0
      %v2374 = vmax.f32 %v2338, 0.0
      %v2375 = vmax.f32 %v2339, 0.0
      %v2376 = vmax.f32 %v2340, 0.0
      %v2377 = vmax.f32 %v2341, 0.0
      %v2378 = vmax.f32 %v2342, 0.0
      %v2379 = vmax.f32 %v2343, 0.0
      %v2380 = vmax.f32 %v2344, 0.0
      %v2381 = vmax.f32 %v2345, 0.0
      %v2382 = vmax.f32 %v2346, 0.0
      %v2383 = vmax.f32 %v2347, 0.0
      %v2384 = vmax.f32 %v2348, 0.0
      %v2385 = vmax.f32 %v2349, 0.0
      %v2386 = vmax.f32 %v2350, 0.0
      %v2387 = vmax.f32 %v2351, 0.0
      %v2388 = vmax.f32 %v2352, 0.0
      %v2389 = vmax.f32 %v2353, 0.0
      %v2390 = vmax.f32 %v2354, 0.0
      %v2391 = vmax.f32 %v2355, 0.0
      %v2392 = vmax.f32 %v2356, 0.0
      %v2393 = vmax.f32 %v2357, 0.0
      %v2394 = vmax.f32 %v2358, 0.0
      %v2395 = vmax.f32 %v2359, 0.0
      %v2396 = vmax.f32 %v2360, 0.0
      %v2397 = vmax.f32 %v2361, 0.0
      %v2398 = vmax.f32 %v2362, 0.0
      %v2399 = vmax.f32 %v2363, 0.0
      %v2400 = vpack.c.bf16 %v2365, %v2364
      %v2401 = vpack.c.bf16 %v2367, %v2366
      %v2402 = vpack.c.bf16 %v2369, %v2368
      %v2403 = vpack.c.bf16 %v2371, %v2370
      %v2404 = vpack.c.bf16 %v2373, %v2372
      %v2405 = vpack.c.bf16 %v2375, %v2374
      %v2406 = vpack.c.bf16 %v2377, %v2376
      %v2407 = vpack.c.bf16 %v2379, %v2378
      %v2408 = vpack.c.bf16 %v2381, %v2380
      %v2409 = vpack.c.bf16 %v2383, %v2382
      %v2410 = vpack.c.bf16 %v2385, %v2384
      %v2411 = vpack.c.bf16 %v2387, %v2386
      %v2412 = vpack.c.bf16 %v2389, %v2388
      %v2413 = vpack.c.bf16 %v2391, %v2390
      %v2414 = vpack.c.bf16 %v2393, %v2392
      %v2415 = vpack.c.bf16 %v2395, %v2394
      %v2416 = vpack.c.bf16 %v2397, %v2396
      %v2417 = vpack.c.bf16 %v2399, %v2398
      %s2418 = scalar_lea.vmem %s1, 224
      %v2419 = vld [vmem:[%s2418] sm:$0xf]
      %v2420 = vld [vmem:[%s2418 + $0x4] sm:$0xf]
      %v2421 = vld [vmem:[%s2418 + $0x8] sm:$0xf]
      %v2422 = vld [vmem:[%s2418 + $0xc] sm:$0xf]
      %v2423 = vld [vmem:[%s2418 + $0x10] sm:$0xf]
      %v2424 = vld [vmem:[%s2418 + $0x14] sm:$0xf]
      %v2425 = vld [vmem:[%s2418 + $0x18] sm:$0xf]
      %v2426 = vld [vmem:[%s2418 + $0x1c] sm:$0xf]
      %v2435 = vunpack.c.l.b16 %v2419
      %v2436 = vunpack.c.l.b16 %v2420
      %v2437 = vunpack.c.l.b16 %v2421
      %v2438 = vunpack.c.l.b16 %v2422
      %v2439 = vunpack.c.l.b16 %v2423
      %v2440 = vunpack.c.l.b16 %v2424
      %v2441 = vunpack.c.l.b16 %v2425
      %v2442 = vunpack.c.l.b16 %v2426
      %v2443 = vpack.c.b16 %v2436, %v2435
      %v2444 = vpack.c.b16 %v2438, %v2437
      %v2445 = vpack.c.b16 %v2440, %v2439
      %v2446 = vpack.c.b16 %v2442, %v2441
      %v2452 = vsel %vm437, %v2400, 0
      %v2455 = vsel %vm437, %v2401, 0
      %v2458 = vsel %vm437, %v2402, 0
      %v2461 = vsel %vm437, %v2403, 0
      %v2464 = vsel %vm437, %v2404, 0
      %v2467 = vsel %vm437, %v2405, 0
      %v2470 = vsel %vm437, %v2406, 0
      %v2473 = vsel %vm437, %v2407, 0
      %v2476 = vsel %vm437, %v2408, 0
      %v2479 = vsel %vm437, %v2409, 0
      %v2482 = vsel %vm437, %v2410, 0
      %v2485 = vsel %vm437, %v2411, 0
      %v2488 = vsel %vm437, %v2412, 0
      %v2491 = vsel %vm437, %v2413, 0
      %v2494 = vsel %vm437, %v2414, 0
      %v2497 = vsel %vm437, %v2415, 0
      %v2500 = vsel %vm437, %v2416, 0
      %v2503 = vsel %vm437, %v2417, 0
      %2505 = vmatpush.bf16.msra.mxu0 0
      %2506 = vmatpush.bf16.msra.mxu0 0
      %2507 = vmatpush.bf16.msra.mxu0 0
      %2508 = vmatpush.bf16.msra.mxu0 0
      %2509 = vmatpush.bf16.msra.mxu0 %v2446
      %2510 = vmatpush.bf16.msra.mxu0 %v2445
      %2511 = vmatpush.bf16.msra.mxu0 %v2444
      %2512 = vmatpush.bf16.msra.mxu0 %v2443
      %2513 = vmatmul.bf16.gmra.mxu0 %v2452
      %v2514 = vpop.f32.mrf.mxu0
      %v2515 = vadd.f32 0.0, %v2514
      %v2516 = vpop.f32.mrf.mxu0
      %v2517 = vadd.f32 0.0, %v2516
      %2518 = vmatmul.bf16.gmra.mxu0 %v2455
      %v2519 = vpop.f32.mrf.mxu0
      %v2520 = vadd.f32 0.0, %v2519
      %v2521 = vpop.f32.mrf.mxu0
      %v2522 = vadd.f32 0.0, %v2521
      %2523 = vmatmul.bf16.gmra.mxu0 %v2458
      %v2524 = vpop.f32.mrf.mxu0
      %v2525 = vadd.f32 0.0, %v2524
      %v2526 = vpop.f32.mrf.mxu0
      %v2527 = vadd.f32 0.0, %v2526
      %2528 = vmatmul.bf16.gmra.mxu0 %v2461
      %v2529 = vpop.f32.mrf.mxu0
      %v2530 = vadd.f32 0.0, %v2529
      %v2531 = vpop.f32.mrf.mxu0
      %v2532 = vadd.f32 0.0, %v2531
      %2533 = vmatmul.bf16.gmra.mxu0 %v2464
      %v2534 = vpop.f32.mrf.mxu0
      %v2535 = vadd.f32 0.0, %v2534
      %v2536 = vpop.f32.mrf.mxu0
      %v2537 = vadd.f32 0.0, %v2536
      %2538 = vmatmul.bf16.gmra.mxu0 %v2467
      %v2539 = vpop.f32.mrf.mxu0
      %v2540 = vadd.f32 0.0, %v2539
      %v2541 = vpop.f32.mrf.mxu0
      %v2542 = vadd.f32 0.0, %v2541
      %2543 = vmatmul.bf16.gmra.mxu0 %v2470
      %v2544 = vpop.f32.mrf.mxu0
      %v2545 = vadd.f32 0.0, %v2544
      %v2546 = vpop.f32.mrf.mxu0
      %v2547 = vadd.f32 0.0, %v2546
      %2548 = vmatmul.bf16.gmra.mxu0 %v2473
      %v2549 = vpop.f32.mrf.mxu0
      %v2550 = vadd.f32 0.0, %v2549
      %v2551 = vpop.f32.mrf.mxu0
      %v2552 = vadd.f32 0.0, %v2551
      %2553 = vmatmul.bf16.gmra.mxu0 %v2476
      %v2554 = vpop.f32.mrf.mxu0
      %v2555 = vadd.f32 0.0, %v2554
      %v2556 = vpop.f32.mrf.mxu0
      %v2557 = vadd.f32 0.0, %v2556
      %2558 = vmatmul.bf16.gmra.mxu0 %v2479
      %v2559 = vpop.f32.mrf.mxu0
      %v2560 = vadd.f32 0.0, %v2559
      %v2561 = vpop.f32.mrf.mxu0
      %v2562 = vadd.f32 0.0, %v2561
      %2563 = vmatmul.bf16.gmra.mxu0 %v2482
      %v2564 = vpop.f32.mrf.mxu0
      %v2565 = vadd.f32 0.0, %v2564
      %v2566 = vpop.f32.mrf.mxu0
      %v2567 = vadd.f32 0.0, %v2566
      %2568 = vmatmul.bf16.gmra.mxu0 %v2485
      %v2569 = vpop.f32.mrf.mxu0
      %v2570 = vadd.f32 0.0, %v2569
      %v2571 = vpop.f32.mrf.mxu0
      %v2572 = vadd.f32 0.0, %v2571
      %2573 = vmatmul.bf16.gmra.mxu0 %v2488
      %v2574 = vpop.f32.mrf.mxu0
      %v2575 = vadd.f32 0.0, %v2574
      %v2576 = vpop.f32.mrf.mxu0
      %v2577 = vadd.f32 0.0, %v2576
      %2578 = vmatmul.bf16.gmra.mxu0 %v2491
      %v2579 = vpop.f32.mrf.mxu0
      %v2580 = vadd.f32 0.0, %v2579
      %v2581 = vpop.f32.mrf.mxu0
      %v2582 = vadd.f32 0.0, %v2581
      %2583 = vmatmul.bf16.gmra.mxu0 %v2494
      %v2584 = vpop.f32.mrf.mxu0
      %v2585 = vadd.f32 0.0, %v2584
      %v2586 = vpop.f32.mrf.mxu0
      %v2587 = vadd.f32 0.0, %v2586
      %2588 = vmatmul.bf16.gmra.mxu0 %v2497
      %v2589 = vpop.f32.mrf.mxu0
      %v2590 = vadd.f32 0.0, %v2589
      %v2591 = vpop.f32.mrf.mxu0
      %v2592 = vadd.f32 0.0, %v2591
      %2593 = vmatmul.bf16.gmra.mxu0 %v2500
      %v2594 = vpop.f32.mrf.mxu0
      %v2595 = vadd.f32 0.0, %v2594
      %v2596 = vpop.f32.mrf.mxu0
      %v2597 = vadd.f32 0.0, %v2596
      %2598 = vmatmul.bf16.gmra.mxu0 %v2503
      %v2599 = vpop.f32.mrf.mxu0
      %v2600 = vadd.f32 0.0, %v2599
      %v2601 = vpop.f32.mrf.mxu0
      %v2602 = vadd.f32 0.0, %v2601
      %2603 = vdwg.mxu0
      %v2604 = vadd.f32 %v2292, %v2515
      %v2605 = vadd.f32 %v2293, %v2517
      %v2606 = vadd.f32 %v2294, %v2520
      %v2607 = vadd.f32 %v2295, %v2522
      %v2608 = vadd.f32 %v2296, %v2525
      %v2609 = vadd.f32 %v2297, %v2527
      %v2610 = vadd.f32 %v2298, %v2530
      %v2611 = vadd.f32 %v2299, %v2532
      %v2612 = vadd.f32 %v2300, %v2535
      %v2613 = vadd.f32 %v2301, %v2537
      %v2614 = vadd.f32 %v2302, %v2540
      %v2615 = vadd.f32 %v2303, %v2542
      %v2616 = vadd.f32 %v2304, %v2545
      %v2617 = vadd.f32 %v2305, %v2547
      %v2618 = vadd.f32 %v2306, %v2550
      %v2619 = vadd.f32 %v2307, %v2552
      %v2620 = vadd.f32 %v2308, %v2555
      %v2621 = vadd.f32 %v2309, %v2557
      %v2622 = vadd.f32 %v2310, %v2560
      %v2623 = vadd.f32 %v2311, %v2562
      %v2624 = vadd.f32 %v2312, %v2565
      %v2625 = vadd.f32 %v2313, %v2567
      %v2626 = vadd.f32 %v2314, %v2570
      %v2627 = vadd.f32 %v2315, %v2572
      %v2628 = vadd.f32 %v2316, %v2575
      %v2629 = vadd.f32 %v2317, %v2577
      %v2630 = vadd.f32 %v2318, %v2580
      %v2631 = vadd.f32 %v2319, %v2582
      %v2632 = vadd.f32 %v2320, %v2585
      %v2633 = vadd.f32 %v2321, %v2587
      %v2634 = vadd.f32 %v2322, %v2590
      %v2635 = vadd.f32 %v2323, %v2592
      %v2636 = vadd.f32 %v2324, %v2595
      %v2637 = vadd.f32 %v2325, %v2597
      %v2638 = vadd.f32 %v2326, %v2600
      %v2639 = vadd.f32 %v2327, %v2602
      %v2640 = vld [vmem:[%s203 + $0x26] sm:$0xff]
      %v2641 = vld [vmem:[%s203 + $0x2e] sm:$0xff]
      %v2642 = vld [vmem:[%s203 + $0x36] sm:$0xff]
      %v2643 = vld [vmem:[%s203 + $0x3e] sm:$0xff]
      %v2644 = vld [vmem:[%s203 + $0x46] sm:$0xff]
      %v2645 = vld [vmem:[%s203 + $0x4e] sm:$0xff]
      %v2646 = vld [vmem:[%s203 + $0x56] sm:$0xff]
      %v2647 = vld [vmem:[%s203 + $0x5e] sm:$0xff]
      %v2648 = vld [vmem:[%s203 + $0x66] sm:$0xff]
      %v2649 = vld [vmem:[%s203 + $0x6e] sm:$0xff]
      %v2650 = vld [vmem:[%s203 + $0x76] sm:$0xff]
      %v2651 = vld [vmem:[%s203 + $0x7e] sm:$0xff]
      %v2652 = vld [vmem:[%s203 + $0x86] sm:$0xff]
      %v2653 = vld [vmem:[%s203 + $0x8e] sm:$0xff]
      %v2654 = vld [vmem:[%s203 + $0x96] sm:$0xff]
      %v2655 = vld [vmem:[%s203 + $0x9e] sm:$0xff]
      %v2656 = vld [vmem:[%s203 + $0xa6] sm:$0xff]
      %v2657 = vld [vmem:[%s203 + $0xae] sm:$0xff]
      %v2658 = vld [vmem:[%s203 + $0xb6] sm:$0xff]
      %v2659 = vld [vmem:[%s203 + $0xbe] sm:$0xff]
      %v2660 = vld [vmem:[%s203 + $0xc6] sm:$0xff]
      %v2661 = vld [vmem:[%s203 + $0xce] sm:$0xff]
      %v2662 = vld [vmem:[%s203 + $0xd6] sm:$0xff]
      %v2663 = vld [vmem:[%s203 + $0xde] sm:$0xff]
      %v2664 = vld [vmem:[%s203 + $0xe6] sm:$0xff]
      %v2665 = vld [vmem:[%s203 + $0xee] sm:$0xff]
      %v2666 = vld [vmem:[%s203 + $0xf6] sm:$0xff]
      %v2667 = vld [vmem:[%s203 + $0xfe] sm:$0xff]
      %v2668 = vld [vmem:[%s203 + $0x106] sm:$0xff]
      %v2669 = vld [vmem:[%s203 + $0x10e] sm:$0xff]
      %v2670 = vld [vmem:[%s203 + $0x116] sm:$0xff]
      %v2671 = vld [vmem:[%s203 + $0x11e] sm:$0xff]
      %v2672 = vld [vmem:[%s203 + $0x126] sm:$0xff]
      %v2673 = vld [vmem:[%s203 + $0x12e] sm:$0xff]
      %v2674 = vld [vmem:[%s203 + $0x136] sm:$0xff]
      %v2675 = vld [vmem:[%s203 + $0x13e] sm:$0xff]
      %v2676 = vmax.f32 %v2640, 0.0
      %v2677 = vmax.f32 %v2641, 0.0
      %v2678 = vmax.f32 %v2642, 0.0
      %v2679 = vmax.f32 %v2643, 0.0
      %v2680 = vmax.f32 %v2644, 0.0
      %v2681 = vmax.f32 %v2645, 0.0
      %v2682 = vmax.f32 %v2646, 0.0
      %v2683 = vmax.f32 %v2647, 0.0
      %v2684 = vmax.f32 %v2648, 0.0
      %v2685 = vmax.f32 %v2649, 0.0
      %v2686 = vmax.f32 %v2650, 0.0
      %v2687 = vmax.f32 %v2651, 0.0
      %v2688 = vmax.f32 %v2652, 0.0
      %v2689 = vmax.f32 %v2653, 0.0
      %v2690 = vmax.f32 %v2654, 0.0
      %v2691 = vmax.f32 %v2655, 0.0
      %v2692 = vmax.f32 %v2656, 0.0
      %v2693 = vmax.f32 %v2657, 0.0
      %v2694 = vmax.f32 %v2658, 0.0
      %v2695 = vmax.f32 %v2659, 0.0
      %v2696 = vmax.f32 %v2660, 0.0
      %v2697 = vmax.f32 %v2661, 0.0
      %v2698 = vmax.f32 %v2662, 0.0
      %v2699 = vmax.f32 %v2663, 0.0
      %v2700 = vmax.f32 %v2664, 0.0
      %v2701 = vmax.f32 %v2665, 0.0
      %v2702 = vmax.f32 %v2666, 0.0
      %v2703 = vmax.f32 %v2667, 0.0
      %v2704 = vmax.f32 %v2668, 0.0
      %v2705 = vmax.f32 %v2669, 0.0
      %v2706 = vmax.f32 %v2670, 0.0
      %v2707 = vmax.f32 %v2671, 0.0
      %v2708 = vmax.f32 %v2672, 0.0
      %v2709 = vmax.f32 %v2673, 0.0
      %v2710 = vmax.f32 %v2674, 0.0
      %v2711 = vmax.f32 %v2675, 0.0
      %v2712 = vpack.c.bf16 %v2677, %v2676
      %v2713 = vpack.c.bf16 %v2679, %v2678
      %v2714 = vpack.c.bf16 %v2681, %v2680
      %v2715 = vpack.c.bf16 %v2683, %v2682
      %v2716 = vpack.c.bf16 %v2685, %v2684
      %v2717 = vpack.c.bf16 %v2687, %v2686
      %v2718 = vpack.c.bf16 %v2689, %v2688
      %v2719 = vpack.c.bf16 %v2691, %v2690
      %v2720 = vpack.c.bf16 %v2693, %v2692
      %v2721 = vpack.c.bf16 %v2695, %v2694
      %v2722 = vpack.c.bf16 %v2697, %v2696
      %v2723 = vpack.c.bf16 %v2699, %v2698
      %v2724 = vpack.c.bf16 %v2701, %v2700
      %v2725 = vpack.c.bf16 %v2703, %v2702
      %v2726 = vpack.c.bf16 %v2705, %v2704
      %v2727 = vpack.c.bf16 %v2707, %v2706
      %v2728 = vpack.c.bf16 %v2709, %v2708
      %v2729 = vpack.c.bf16 %v2711, %v2710
      %s2730 = scalar_lea.vmem %s1, 256
      %v2731 = vld [vmem:[%s2730] sm:$0xf]
      %v2732 = vld [vmem:[%s2730 + $0x4] sm:$0xf]
      %v2733 = vld [vmem:[%s2730 + $0x8] sm:$0xf]
      %v2734 = vld [vmem:[%s2730 + $0xc] sm:$0xf]
      %v2735 = vld [vmem:[%s2730 + $0x10] sm:$0xf]
      %v2736 = vld [vmem:[%s2730 + $0x14] sm:$0xf]
      %v2737 = vld [vmem:[%s2730 + $0x18] sm:$0xf]
      %v2738 = vld [vmem:[%s2730 + $0x1c] sm:$0xf]
      %v2747 = vunpack.c.l.b16 %v2731
      %v2748 = vunpack.c.l.b16 %v2732
      %v2749 = vunpack.c.l.b16 %v2733
      %v2750 = vunpack.c.l.b16 %v2734
      %v2751 = vunpack.c.l.b16 %v2735
      %v2752 = vunpack.c.l.b16 %v2736
      %v2753 = vunpack.c.l.b16 %v2737
      %v2754 = vunpack.c.l.b16 %v2738
      %v2755 = vpack.c.b16 %v2748, %v2747
      %v2756 = vpack.c.b16 %v2750, %v2749
      %v2757 = vpack.c.b16 %v2752, %v2751
      %v2758 = vpack.c.b16 %v2754, %v2753
      %v2764 = vsel %vm437, %v2712, 0
      %v2767 = vsel %vm437, %v2713, 0
      %v2770 = vsel %vm437, %v2714, 0
      %v2773 = vsel %vm437, %v2715, 0
      %v2776 = vsel %vm437, %v2716, 0
      %v2779 = vsel %vm437, %v2717, 0
      %v2782 = vsel %vm437, %v2718, 0
      %v2785 = vsel %vm437, %v2719, 0
      %v2788 = vsel %vm437, %v2720, 0
      %v2791 = vsel %vm437, %v2721, 0
      %v2794 = vsel %vm437, %v2722, 0
      %v2797 = vsel %vm437, %v2723, 0
      %v2800 = vsel %vm437, %v2724, 0
      %v2803 = vsel %vm437, %v2725, 0
      %v2806 = vsel %vm437, %v2726, 0
      %v2809 = vsel %vm437, %v2727, 0
      %v2812 = vsel %vm437, %v2728, 0
      %v2815 = vsel %vm437, %v2729, 0
      %2817 = vmatpush.bf16.msra.mxu0 0
      %2818 = vmatpush.bf16.msra.mxu0 0
      %2819 = vmatpush.bf16.msra.mxu0 0
      %2820 = vmatpush.bf16.msra.mxu0 0
      %2821 = vmatpush.bf16.msra.mxu0 %v2758
      %2822 = vmatpush.bf16.msra.mxu0 %v2757
      %2823 = vmatpush.bf16.msra.mxu0 %v2756
      %2824 = vmatpush.bf16.msra.mxu0 %v2755
      %2825 = vmatmul.bf16.gmra.mxu0 %v2764
      %v2826 = vpop.f32.mrf.mxu0
      %v2827 = vadd.f32 0.0, %v2826
      %v2828 = vpop.f32.mrf.mxu0
      %v2829 = vadd.f32 0.0, %v2828
      %2830 = vmatmul.bf16.gmra.mxu0 %v2767
      %v2831 = vpop.f32.mrf.mxu0
      %v2832 = vadd.f32 0.0, %v2831
      %v2833 = vpop.f32.mrf.mxu0
      %v2834 = vadd.f32 0.0, %v2833
      %2835 = vmatmul.bf16.gmra.mxu0 %v2770
      %v2836 = vpop.f32.mrf.mxu0
      %v2837 = vadd.f32 0.0, %v2836
      %v2838 = vpop.f32.mrf.mxu0
      %v2839 = vadd.f32 0.0, %v2838
      %2840 = vmatmul.bf16.gmra.mxu0 %v2773
      %v2841 = vpop.f32.mrf.mxu0
      %v2842 = vadd.f32 0.0, %v2841
      %v2843 = vpop.f32.mrf.mxu0
      %v2844 = vadd.f32 0.0, %v2843
      %2845 = vmatmul.bf16.gmra.mxu0 %v2776
      %v2846 = vpop.f32.mrf.mxu0
      %v2847 = vadd.f32 0.0, %v2846
      %v2848 = vpop.f32.mrf.mxu0
      %v2849 = vadd.f32 0.0, %v2848
      %2850 = vmatmul.bf16.gmra.mxu0 %v2779
      %v2851 = vpop.f32.mrf.mxu0
      %v2852 = vadd.f32 0.0, %v2851
      %v2853 = vpop.f32.mrf.mxu0
      %v2854 = vadd.f32 0.0, %v2853
      %2855 = vmatmul.bf16.gmra.mxu0 %v2782
      %v2856 = vpop.f32.mrf.mxu0
      %v2857 = vadd.f32 0.0, %v2856
      %v2858 = vpop.f32.mrf.mxu0
      %v2859 = vadd.f32 0.0, %v2858
      %2860 = vmatmul.bf16.gmra.mxu0 %v2785
      %v2861 = vpop.f32.mrf.mxu0
      %v2862 = vadd.f32 0.0, %v2861
      %v2863 = vpop.f32.mrf.mxu0
      %v2864 = vadd.f32 0.0, %v2863
      %2865 = vmatmul.bf16.gmra.mxu0 %v2788
      %v2866 = vpop.f32.mrf.mxu0
      %v2867 = vadd.f32 0.0, %v2866
      %v2868 = vpop.f32.mrf.mxu0
      %v2869 = vadd.f32 0.0, %v2868
      %2870 = vmatmul.bf16.gmra.mxu0 %v2791
      %v2871 = vpop.f32.mrf.mxu0
      %v2872 = vadd.f32 0.0, %v2871
      %v2873 = vpop.f32.mrf.mxu0
      %v2874 = vadd.f32 0.0, %v2873
      %2875 = vmatmul.bf16.gmra.mxu0 %v2794
      %v2876 = vpop.f32.mrf.mxu0
      %v2877 = vadd.f32 0.0, %v2876
      %v2878 = vpop.f32.mrf.mxu0
      %v2879 = vadd.f32 0.0, %v2878
      %2880 = vmatmul.bf16.gmra.mxu0 %v2797
      %v2881 = vpop.f32.mrf.mxu0
      %v2882 = vadd.f32 0.0, %v2881
      %v2883 = vpop.f32.mrf.mxu0
      %v2884 = vadd.f32 0.0, %v2883
      %2885 = vmatmul.bf16.gmra.mxu0 %v2800
      %v2886 = vpop.f32.mrf.mxu0
      %v2887 = vadd.f32 0.0, %v2886
      %v2888 = vpop.f32.mrf.mxu0
      %v2889 = vadd.f32 0.0, %v2888
      %2890 = vmatmul.bf16.gmra.mxu0 %v2803
      %v2891 = vpop.f32.mrf.mxu0
      %v2892 = vadd.f32 0.0, %v2891
      %v2893 = vpop.f32.mrf.mxu0
      %v2894 = vadd.f32 0.0, %v2893
      %2895 = vmatmul.bf16.gmra.mxu0 %v2806
      %v2896 = vpop.f32.mrf.mxu0
      %v2897 = vadd.f32 0.0, %v2896
      %v2898 = vpop.f32.mrf.mxu0
      %v2899 = vadd.f32 0.0, %v2898
      %2900 = vmatmul.bf16.gmra.mxu0 %v2809
      %v2901 = vpop.f32.mrf.mxu0
      %v2902 = vadd.f32 0.0, %v2901
      %v2903 = vpop.f32.mrf.mxu0
      %v2904 = vadd.f32 0.0, %v2903
      %2905 = vmatmul.bf16.gmra.mxu0 %v2812
      %v2906 = vpop.f32.mrf.mxu0
      %v2907 = vadd.f32 0.0, %v2906
      %v2908 = vpop.f32.mrf.mxu0
      %v2909 = vadd.f32 0.0, %v2908
      %2910 = vmatmul.bf16.gmra.mxu0 %v2815
      %v2911 = vpop.f32.mrf.mxu0
      %v2912 = vadd.f32 0.0, %v2911
      %v2913 = vpop.f32.mrf.mxu0
      %v2914 = vadd.f32 0.0, %v2913
      %2915 = vdwg.mxu0
      %v2916 = vadd.f32 %v2604, %v2827
      %v2917 = vadd.f32 %v2605, %v2829
      %v2918 = vadd.f32 %v2606, %v2832
      %v2919 = vadd.f32 %v2607, %v2834
      %v2920 = vadd.f32 %v2608, %v2837
      %v2921 = vadd.f32 %v2609, %v2839
      %v2922 = vadd.f32 %v2610, %v2842
      %v2923 = vadd.f32 %v2611, %v2844
      %v2924 = vadd.f32 %v2612, %v2847
      %v2925 = vadd.f32 %v2613, %v2849
      %v2926 = vadd.f32 %v2614, %v2852
      %v2927 = vadd.f32 %v2615, %v2854
      %v2928 = vadd.f32 %v2616, %v2857
      %v2929 = vadd.f32 %v2617, %v2859
      %v2930 = vadd.f32 %v2618, %v2862
      %v2931 = vadd.f32 %v2619, %v2864
      %v2932 = vadd.f32 %v2620, %v2867
      %v2933 = vadd.f32 %v2621, %v2869
      %v2934 = vadd.f32 %v2622, %v2872
      %v2935 = vadd.f32 %v2623, %v2874
      %v2936 = vadd.f32 %v2624, %v2877
      %v2937 = vadd.f32 %v2625, %v2879
      %v2938 = vadd.f32 %v2626, %v2882
      %v2939 = vadd.f32 %v2627, %v2884
      %v2940 = vadd.f32 %v2628, %v2887
      %v2941 = vadd.f32 %v2629, %v2889
      %v2942 = vadd.f32 %v2630, %v2892
      %v2943 = vadd.f32 %v2631, %v2894
      %v2944 = vadd.f32 %v2632, %v2897
      %v2945 = vadd.f32 %v2633, %v2899
      %v2946 = vadd.f32 %v2634, %v2902
      %v2947 = vadd.f32 %v2635, %v2904
      %v2948 = vadd.f32 %v2636, %v2907
      %v2949 = vadd.f32 %v2637, %v2909
      %v2950 = vadd.f32 %v2638, %v2912
      %v2951 = vadd.f32 %v2639, %v2914
      %v2952 = vlaneseq
      %v2953 = vshrl.u32 %v2952, 7
      %v2954 = vadd.s32 %v2953, 8
      %v2955 = vadd.s32 %v2953, 16
      %v2956 = vadd.s32 %v2953, 24
      %v2957 = vadd.s32 %v2953, 32
      %v2958 = vadd.s32 %v2953, 40
      %v2959 = vadd.s32 %v2953, 48
      %v2960 = vadd.s32 %v2953, 56
      %v2961 = vadd.s32 %v2953, 64
      %v2962 = vadd.s32 %v2953, 72
      %v2963 = vadd.s32 %v2953, 80
      %v2964 = vadd.s32 %v2953, 88
      %v2965 = vadd.s32 %v2953, 96
      %v2966 = vadd.s32 %v2953, 104
      %v2967 = vadd.s32 %v2953, 112
      %v2968 = vadd.s32 %v2953, 120
      %v2969 = vadd.s32 %v2953, 128
      %v2970 = vadd.s32 %v2953, 136
      %v2971 = vadd.s32 %v2953, 144
      %v2972 = vadd.s32 %v2953, 152
      %v2973 = vadd.s32 %v2953, 160
      %v2974 = vadd.s32 %v2953, 168
      %v2975 = vadd.s32 %v2953, 176
      %v2976 = vadd.s32 %v2953, 184
      %v2977 = vadd.s32 %v2953, 192
      %v2978 = vadd.s32 %v2953, 200
      %v2979 = vadd.s32 %v2953, 208
      %v2980 = vadd.s32 %v2953, 216
      %v2981 = vadd.s32 %v2953, 224
      %v2982 = vadd.s32 %v2953, 232
      %v2983 = vadd.s32 %v2953, 240
      %v2984 = vadd.s32 %v2953, 248
      %v2985 = vadd.s32 %v2953, 256
      %v2986 = vadd.s32 %v2953, 264
      %v2987 = vadd.s32 %v2953, 272
      %v2988 = vadd.s32 %v2953, 280
      %vm2989 = vcmp.lt.s32.totalorder %v2953, 0
      %v2990 = vsub.s32 0, %v2953
      %v2991 = vsel %vm2989, %v2990, %v2953
      %v2992 = vand.u32 %v2991, 65535
      %v2993 = vshrl.u32 %v2991, 16
      %v2995 = vmul.u32 %v2992, 14564
      %v2996 = vmul.u32 %v2992, 58254
      %v2997 = vmul.u32 %v2993, 14564
      %v2998 = vmul.u32 %v2993, 58254
      %v2999 = vshll.u32 %v2996, 16
      %v3000 = vshrl.u32 %v2996, 16
      %v3001 = vshll.u32 %v2997, 16
      %v3002 = vshrl.u32 %v2997, 16
      %vm3003 = vc.u32 %v2995, %v2999
      %v3004 = vsel %vm3003, 1, 0
      %v3005 = vadd.s32 %v2995, %v2999
      %v3006 = vadd.s32 %v2998, %v3004
      %vm3007 = vc.u32 %v3005, %v3001
      %v3008 = vsel %vm3007, 1, 0
      %v3009 = vadd.s32 %v3005, %v3001
      %v3010 = vadd.s32 %v3006, %v3008
      %v3011 = vadd.s32 %v3010, %v3000
      %v3012 = vadd.s32 %v3011, %v3002
      %v3013 = vshrl.u32 %v3012, 4
      %v3014 = vmul.u32 %v3013, 18
      %v3015 = vsub.s32 %v2991, %v3014
      %v3016 = vsub.s32 0, %v3015
      %v3017 = vsel %vm2989, %v3016, %v3015
      %vm3018 = vcmp.lt.s32.totalorder %v2954, 0
      %v3019 = vsub.s32 0, %v2954
      %v3020 = vsel %vm3018, %v3019, %v2954
      %v3021 = vand.u32 %v3020, 65535
      %v3022 = vshrl.u32 %v3020, 16
      %v3024 = vmul.u32 %v3021, 14564
      %v3025 = vmul.u32 %v3021, 58254
      %v3026 = vmul.u32 %v3022, 14564
      %v3027 = vmul.u32 %v3022, 58254
      %v3028 = vshll.u32 %v3025, 16
      %v3029 = vshrl.u32 %v3025, 16
      %v3030 = vshll.u32 %v3026, 16
      %v3031 = vshrl.u32 %v3026, 16
      %vm3032 = vc.u32 %v3024, %v3028
      %v3033 = vsel %vm3032, 1, 0
      %v3034 = vadd.s32 %v3024, %v3028
      %v3035 = vadd.s32 %v3027, %v3033
      %vm3036 = vc.u32 %v3034, %v3030
      %v3037 = vsel %vm3036, 1, 0
      %v3038 = vadd.s32 %v3034, %v3030
      %v3039 = vadd.s32 %v3035, %v3037
      %v3040 = vadd.s32 %v3039, %v3029
      %v3041 = vadd.s32 %v3040, %v3031
      %v3042 = vshrl.u32 %v3041, 4
      %v3043 = vmul.u32 %v3042, 18
      %v3044 = vsub.s32 %v3020, %v3043
      %v3045 = vsub.s32 0, %v3044
      %v3046 = vsel %vm3018, %v3045, %v3044
      %vm3047 = vcmp.lt.s32.totalorder %v2955, 0
      %v3048 = vsub.s32 0, %v2955
      %v3049 = vsel %vm3047, %v3048, %v2955
      %v3050 = vand.u32 %v3049, 65535
      %v3051 = vshrl.u32 %v3049, 16
      %v3053 = vmul.u32 %v3050, 14564
      %v3054 = vmul.u32 %v3050, 58254
      %v3055 = vmul.u32 %v3051, 14564
      %v3056 = vmul.u32 %v3051, 58254
      %v3057 = vshll.u32 %v3054, 16
      %v3058 = vshrl.u32 %v3054, 16
      %v3059 = vshll.u32 %v3055, 16
      %v3060 = vshrl.u32 %v3055, 16
      %vm3061 = vc.u32 %v3053, %v3057
      %v3062 = vsel %vm3061, 1, 0
      %v3063 = vadd.s32 %v3053, %v3057
      %v3064 = vadd.s32 %v3056, %v3062
      %vm3065 = vc.u32 %v3063, %v3059
      %v3066 = vsel %vm3065, 1, 0
      %v3067 = vadd.s32 %v3063, %v3059
      %v3068 = vadd.s32 %v3064, %v3066
      %v3069 = vadd.s32 %v3068, %v3058
      %v3070 = vadd.s32 %v3069, %v3060
      %v3071 = vshrl.u32 %v3070, 4
      %v3072 = vmul.u32 %v3071, 18
      %v3073 = vsub.s32 %v3049, %v3072
      %v3074 = vsub.s32 0, %v3073
      %v3075 = vsel %vm3047, %v3074, %v3073
      %vm3076 = vcmp.lt.s32.totalorder %v2956, 0
      %v3077 = vsub.s32 0, %v2956
      %v3078 = vsel %vm3076, %v3077, %v2956
      %v3079 = vand.u32 %v3078, 65535
      %v3080 = vshrl.u32 %v3078, 16
      %v3082 = vmul.u32 %v3079, 14564
      %v3083 = vmul.u32 %v3079, 58254
      %v3084 = vmul.u32 %v3080, 14564
      %v3085 = vmul.u32 %v3080, 58254
      %v3086 = vshll.u32 %v3083, 16
      %v3087 = vshrl.u32 %v3083, 16
      %v3088 = vshll.u32 %v3084, 16
      %v3089 = vshrl.u32 %v3084, 16
      %vm3090 = vc.u32 %v3082, %v3086
      %v3091 = vsel %vm3090, 1, 0
      %v3092 = vadd.s32 %v3082, %v3086
      %v3093 = vadd.s32 %v3085, %v3091
      %vm3094 = vc.u32 %v3092, %v3088
      %v3095 = vsel %vm3094, 1, 0
      %v3096 = vadd.s32 %v3092, %v3088
      %v3097 = vadd.s32 %v3093, %v3095
      %v3098 = vadd.s32 %v3097, %v3087
      %v3099 = vadd.s32 %v3098, %v3089
      %v3100 = vshrl.u32 %v3099, 4
      %v3101 = vmul.u32 %v3100, 18
      %v3102 = vsub.s32 %v3078, %v3101
      %v3103 = vsub.s32 0, %v3102
      %v3104 = vsel %vm3076, %v3103, %v3102
      %vm3105 = vcmp.lt.s32.totalorder %v2957, 0
      %v3106 = vsub.s32 0, %v2957
      %v3107 = vsel %vm3105, %v3106, %v2957
      %v3108 = vand.u32 %v3107, 65535
      %v3109 = vshrl.u32 %v3107, 16
      %v3111 = vmul.u32 %v3108, 14564
      %v3112 = vmul.u32 %v3108, 58254
      %v3113 = vmul.u32 %v3109, 14564
      %v3114 = vmul.u32 %v3109, 58254
      %v3115 = vshll.u32 %v3112, 16
      %v3116 = vshrl.u32 %v3112, 16
      %v3117 = vshll.u32 %v3113, 16
      %v3118 = vshrl.u32 %v3113, 16
      %vm3119 = vc.u32 %v3111, %v3115
      %v3120 = vsel %vm3119, 1, 0
      %v3121 = vadd.s32 %v3111, %v3115
      %v3122 = vadd.s32 %v3114, %v3120
      %vm3123 = vc.u32 %v3121, %v3117
      %v3124 = vsel %vm3123, 1, 0
      %v3125 = vadd.s32 %v3121, %v3117
      %v3126 = vadd.s32 %v3122, %v3124
      %v3127 = vadd.s32 %v3126, %v3116
      %v3128 = vadd.s32 %v3127, %v3118
      %v3129 = vshrl.u32 %v3128, 4
      %v3130 = vmul.u32 %v3129, 18
      %v3131 = vsub.s32 %v3107, %v3130
      %v3132 = vsub.s32 0, %v3131
      %v3133 = vsel %vm3105, %v3132, %v3131
      %vm3134 = vcmp.lt.s32.totalorder %v2958, 0
      %v3135 = vsub.s32 0, %v2958
      %v3136 = vsel %vm3134, %v3135, %v2958
      %v3137 = vand.u32 %v3136, 65535
      %v3138 = vshrl.u32 %v3136, 16
      %v3140 = vmul.u32 %v3137, 14564
      %v3141 = vmul.u32 %v3137, 58254
      %v3142 = vmul.u32 %v3138, 14564
      %v3143 = vmul.u32 %v3138, 58254
      %v3144 = vshll.u32 %v3141, 16
      %v3145 = vshrl.u32 %v3141, 16
      %v3146 = vshll.u32 %v3142, 16
      %v3147 = vshrl.u32 %v3142, 16
      %vm3148 = vc.u32 %v3140, %v3144
      %v3149 = vsel %vm3148, 1, 0
      %v3150 = vadd.s32 %v3140, %v3144
      %v3151 = vadd.s32 %v3143, %v3149
      %vm3152 = vc.u32 %v3150, %v3146
      %v3153 = vsel %vm3152, 1, 0
      %v3154 = vadd.s32 %v3150, %v3146
      %v3155 = vadd.s32 %v3151, %v3153
      %v3156 = vadd.s32 %v3155, %v3145
      %v3157 = vadd.s32 %v3156, %v3147
      %v3158 = vshrl.u32 %v3157, 4
      %v3159 = vmul.u32 %v3158, 18
      %v3160 = vsub.s32 %v3136, %v3159
      %v3161 = vsub.s32 0, %v3160
      %v3162 = vsel %vm3134, %v3161, %v3160
      %vm3163 = vcmp.lt.s32.totalorder %v2959, 0
      %v3164 = vsub.s32 0, %v2959
      %v3165 = vsel %vm3163, %v3164, %v2959
      %v3166 = vand.u32 %v3165, 65535
      %v3167 = vshrl.u32 %v3165, 16
      %v3169 = vmul.u32 %v3166, 14564
      %v3170 = vmul.u32 %v3166, 58254
      %v3171 = vmul.u32 %v3167, 14564
      %v3172 = vmul.u32 %v3167, 58254
      %v3173 = vshll.u32 %v3170, 16
      %v3174 = vshrl.u32 %v3170, 16
      %v3175 = vshll.u32 %v3171, 16
      %v3176 = vshrl.u32 %v3171, 16
      %vm3177 = vc.u32 %v3169, %v3173
      %v3178 = vsel %vm3177, 1, 0
      %v3179 = vadd.s32 %v3169, %v3173
      %v3180 = vadd.s32 %v3172, %v3178
      %vm3181 = vc.u32 %v3179, %v3175
      %v3182 = vsel %vm3181, 1, 0
      %v3183 = vadd.s32 %v3179, %v3175
      %v3184 = vadd.s32 %v3180, %v3182
      %v3185 = vadd.s32 %v3184, %v3174
      %v3186 = vadd.s32 %v3185, %v3176
      %v3187 = vshrl.u32 %v3186, 4
      %v3188 = vmul.u32 %v3187, 18
      %v3189 = vsub.s32 %v3165, %v3188
      %v3190 = vsub.s32 0, %v3189
      %v3191 = vsel %vm3163, %v3190, %v3189
      %vm3192 = vcmp.lt.s32.totalorder %v2960, 0
      %v3193 = vsub.s32 0, %v2960
      %v3194 = vsel %vm3192, %v3193, %v2960
      %v3195 = vand.u32 %v3194, 65535
      %v3196 = vshrl.u32 %v3194, 16
      %v3198 = vmul.u32 %v3195, 14564
      %v3199 = vmul.u32 %v3195, 58254
      %v3200 = vmul.u32 %v3196, 14564
      %v3201 = vmul.u32 %v3196, 58254
      %v3202 = vshll.u32 %v3199, 16
      %v3203 = vshrl.u32 %v3199, 16
      %v3204 = vshll.u32 %v3200, 16
      %v3205 = vshrl.u32 %v3200, 16
      %vm3206 = vc.u32 %v3198, %v3202
      %v3207 = vsel %vm3206, 1, 0
      %v3208 = vadd.s32 %v3198, %v3202
      %v3209 = vadd.s32 %v3201, %v3207
      %vm3210 = vc.u32 %v3208, %v3204
      %v3211 = vsel %vm3210, 1, 0
      %v3212 = vadd.s32 %v3208, %v3204
      %v3213 = vadd.s32 %v3209, %v3211
      %v3214 = vadd.s32 %v3213, %v3203
      %v3215 = vadd.s32 %v3214, %v3205
      %v3216 = vshrl.u32 %v3215, 4
      %v3217 = vmul.u32 %v3216, 18
      %v3218 = vsub.s32 %v3194, %v3217
      %v3219 = vsub.s32 0, %v3218
      %v3220 = vsel %vm3192, %v3219, %v3218
      %vm3221 = vcmp.lt.s32.totalorder %v2961, 0
      %v3222 = vsub.s32 0, %v2961
      %v3223 = vsel %vm3221, %v3222, %v2961
      %v3224 = vand.u32 %v3223, 65535
      %v3225 = vshrl.u32 %v3223, 16
      %v3227 = vmul.u32 %v3224, 14564
      %v3228 = vmul.u32 %v3224, 58254
      %v3229 = vmul.u32 %v3225, 14564
      %v3230 = vmul.u32 %v3225, 58254
      %v3231 = vshll.u32 %v3228, 16
      %v3232 = vshrl.u32 %v3228, 16
      %v3233 = vshll.u32 %v3229, 16
      %v3234 = vshrl.u32 %v3229, 16
      %vm3235 = vc.u32 %v3227, %v3231
      %v3236 = vsel %vm3235, 1, 0
      %v3237 = vadd.s32 %v3227, %v3231
      %v3238 = vadd.s32 %v3230, %v3236
      %vm3239 = vc.u32 %v3237, %v3233
      %v3240 = vsel %vm3239, 1, 0
      %v3241 = vadd.s32 %v3237, %v3233
      %v3242 = vadd.s32 %v3238, %v3240
      %v3243 = vadd.s32 %v3242, %v3232
      %v3244 = vadd.s32 %v3243, %v3234
      %v3245 = vshrl.u32 %v3244, 4
      %v3246 = vmul.u32 %v3245, 18
      %v3247 = vsub.s32 %v3223, %v3246
      %v3248 = vsub.s32 0, %v3247
      %v3249 = vsel %vm3221, %v3248, %v3247
      %vm3250 = vcmp.lt.s32.totalorder %v2962, 0
      %v3251 = vsub.s32 0, %v2962
      %v3252 = vsel %vm3250, %v3251, %v2962
      %v3253 = vand.u32 %v3252, 65535
      %v3254 = vshrl.u32 %v3252, 16
      %v3256 = vmul.u32 %v3253, 14564
      %v3257 = vmul.u32 %v3253, 58254
      %v3258 = vmul.u32 %v3254, 14564
      %v3259 = vmul.u32 %v3254, 58254
      %v3260 = vshll.u32 %v3257, 16
      %v3261 = vshrl.u32 %v3257, 16
      %v3262 = vshll.u32 %v3258, 16
      %v3263 = vshrl.u32 %v3258, 16
      %vm3264 = vc.u32 %v3256, %v3260
      %v3265 = vsel %vm3264, 1, 0
      %v3266 = vadd.s32 %v3256, %v3260
      %v3267 = vadd.s32 %v3259, %v3265
      %vm3268 = vc.u32 %v3266, %v3262
      %v3269 = vsel %vm3268, 1, 0
      %v3270 = vadd.s32 %v3266, %v3262
      %v3271 = vadd.s32 %v3267, %v3269
      %v3272 = vadd.s32 %v3271, %v3261
      %v3273 = vadd.s32 %v3272, %v3263
      %v3274 = vshrl.u32 %v3273, 4
      %v3275 = vmul.u32 %v3274, 18
      %v3276 = vsub.s32 %v3252, %v3275
      %v3277 = vsub.s32 0, %v3276
      %v3278 = vsel %vm3250, %v3277, %v3276
      %vm3279 = vcmp.lt.s32.totalorder %v2963, 0
      %v3280 = vsub.s32 0, %v2963
      %v3281 = vsel %vm3279, %v3280, %v2963
      %v3282 = vand.u32 %v3281, 65535
      %v3283 = vshrl.u32 %v3281, 16
      %v3285 = vmul.u32 %v3282, 14564
      %v3286 = vmul.u32 %v3282, 58254
      %v3287 = vmul.u32 %v3283, 14564
      %v3288 = vmul.u32 %v3283, 58254
      %v3289 = vshll.u32 %v3286, 16
      %v3290 = vshrl.u32 %v3286, 16
      %v3291 = vshll.u32 %v3287, 16
      %v3292 = vshrl.u32 %v3287, 16
      %vm3293 = vc.u32 %v3285, %v3289
      %v3294 = vsel %vm3293, 1, 0
      %v3295 = vadd.s32 %v3285, %v3289
      %v3296 = vadd.s32 %v3288, %v3294
      %vm3297 = vc.u32 %v3295, %v3291
      %v3298 = vsel %vm3297, 1, 0
      %v3299 = vadd.s32 %v3295, %v3291
      %v3300 = vadd.s32 %v3296, %v3298
      %v3301 = vadd.s32 %v3300, %v3290
      %v3302 = vadd.s32 %v3301, %v3292
      %v3303 = vshrl.u32 %v3302, 4
      %v3304 = vmul.u32 %v3303, 18
      %v3305 = vsub.s32 %v3281, %v3304
      %v3306 = vsub.s32 0, %v3305
      %v3307 = vsel %vm3279, %v3306, %v3305
      %vm3308 = vcmp.lt.s32.totalorder %v2964, 0
      %v3309 = vsub.s32 0, %v2964
      %v3310 = vsel %vm3308, %v3309, %v2964
      %v3311 = vand.u32 %v3310, 65535
      %v3312 = vshrl.u32 %v3310, 16
      %v3314 = vmul.u32 %v3311, 14564
      %v3315 = vmul.u32 %v3311, 58254
      %v3316 = vmul.u32 %v3312, 14564
      %v3317 = vmul.u32 %v3312, 58254
      %v3318 = vshll.u32 %v3315, 16
      %v3319 = vshrl.u32 %v3315, 16
      %v3320 = vshll.u32 %v3316, 16
      %v3321 = vshrl.u32 %v3316, 16
      %vm3322 = vc.u32 %v3314, %v3318
      %v3323 = vsel %vm3322, 1, 0
      %v3324 = vadd.s32 %v3314, %v3318
      %v3325 = vadd.s32 %v3317, %v3323
      %vm3326 = vc.u32 %v3324, %v3320
      %v3327 = vsel %vm3326, 1, 0
      %v3328 = vadd.s32 %v3324, %v3320
      %v3329 = vadd.s32 %v3325, %v3327
      %v3330 = vadd.s32 %v3329, %v3319
      %v3331 = vadd.s32 %v3330, %v3321
      %v3332 = vshrl.u32 %v3331, 4
      %v3333 = vmul.u32 %v3332, 18
      %v3334 = vsub.s32 %v3310, %v3333
      %v3335 = vsub.s32 0, %v3334
      %v3336 = vsel %vm3308, %v3335, %v3334
      %vm3337 = vcmp.lt.s32.totalorder %v2965, 0
      %v3338 = vsub.s32 0, %v2965
      %v3339 = vsel %vm3337, %v3338, %v2965
      %v3340 = vand.u32 %v3339, 65535
      %v3341 = vshrl.u32 %v3339, 16
      %v3343 = vmul.u32 %v3340, 14564
      %v3344 = vmul.u32 %v3340, 58254
      %v3345 = vmul.u32 %v3341, 14564
      %v3346 = vmul.u32 %v3341, 58254
      %v3347 = vshll.u32 %v3344, 16
      %v3348 = vshrl.u32 %v3344, 16
      %v3349 = vshll.u32 %v3345, 16
      %v3350 = vshrl.u32 %v3345, 16
      %vm3351 = vc.u32 %v3343, %v3347
      %v3352 = vsel %vm3351, 1, 0
      %v3353 = vadd.s32 %v3343, %v3347
      %v3354 = vadd.s32 %v3346, %v3352
      %vm3355 = vc.u32 %v3353, %v3349
      %v3356 = vsel %vm3355, 1, 0
      %v3357 = vadd.s32 %v3353, %v3349
      %v3358 = vadd.s32 %v3354, %v3356
      %v3359 = vadd.s32 %v3358, %v3348
      %v3360 = vadd.s32 %v3359, %v3350
      %v3361 = vshrl.u32 %v3360, 4
      %v3362 = vmul.u32 %v3361, 18
      %v3363 = vsub.s32 %v3339, %v3362
      %v3364 = vsub.s32 0, %v3363
      %v3365 = vsel %vm3337, %v3364, %v3363
      %vm3366 = vcmp.lt.s32.totalorder %v2966, 0
      %v3367 = vsub.s32 0, %v2966
      %v3368 = vsel %vm3366, %v3367, %v2966
      %v3369 = vand.u32 %v3368, 65535
      %v3370 = vshrl.u32 %v3368, 16
      %v3372 = vmul.u32 %v3369, 14564
      %v3373 = vmul.u32 %v3369, 58254
      %v3374 = vmul.u32 %v3370, 14564
      %v3375 = vmul.u32 %v3370, 58254
      %v3376 = vshll.u32 %v3373, 16
      %v3377 = vshrl.u32 %v3373, 16
      %v3378 = vshll.u32 %v3374, 16
      %v3379 = vshrl.u32 %v3374, 16
      %vm3380 = vc.u32 %v3372, %v3376
      %v3381 = vsel %vm3380, 1, 0
      %v3382 = vadd.s32 %v3372, %v3376
      %v3383 = vadd.s32 %v3375, %v3381
      %vm3384 = vc.u32 %v3382, %v3378
      %v3385 = vsel %vm3384, 1, 0
      %v3386 = vadd.s32 %v3382, %v3378
      %v3387 = vadd.s32 %v3383, %v3385
      %v3388 = vadd.s32 %v3387, %v3377
      %v3389 = vadd.s32 %v3388, %v3379
      %v3390 = vshrl.u32 %v3389, 4
      %v3391 = vmul.u32 %v3390, 18
      %v3392 = vsub.s32 %v3368, %v3391
      %v3393 = vsub.s32 0, %v3392
      %v3394 = vsel %vm3366, %v3393, %v3392
      %vm3395 = vcmp.lt.s32.totalorder %v2967, 0
      %v3396 = vsub.s32 0, %v2967
      %v3397 = vsel %vm3395, %v3396, %v2967
      %v3398 = vand.u32 %v3397, 65535
      %v3399 = vshrl.u32 %v3397, 16
      %v3401 = vmul.u32 %v3398, 14564
      %v3402 = vmul.u32 %v3398, 58254
      %v3403 = vmul.u32 %v3399, 14564
      %v3404 = vmul.u32 %v3399, 58254
      %v3405 = vshll.u32 %v3402, 16
      %v3406 = vshrl.u32 %v3402, 16
      %v3407 = vshll.u32 %v3403, 16
      %v3408 = vshrl.u32 %v3403, 16
      %vm3409 = vc.u32 %v3401, %v3405
      %v3410 = vsel %vm3409, 1, 0
      %v3411 = vadd.s32 %v3401, %v3405
      %v3412 = vadd.s32 %v3404, %v3410
      %vm3413 = vc.u32 %v3411, %v3407
      %v3414 = vsel %vm3413, 1, 0
      %v3415 = vadd.s32 %v3411, %v3407
      %v3416 = vadd.s32 %v3412, %v3414
      %v3417 = vadd.s32 %v3416, %v3406
      %v3418 = vadd.s32 %v3417, %v3408
      %v3419 = vshrl.u32 %v3418, 4
      %v3420 = vmul.u32 %v3419, 18
      %v3421 = vsub.s32 %v3397, %v3420
      %v3422 = vsub.s32 0, %v3421
      %v3423 = vsel %vm3395, %v3422, %v3421
      %vm3424 = vcmp.lt.s32.totalorder %v2968, 0
      %v3425 = vsub.s32 0, %v2968
      %v3426 = vsel %vm3424, %v3425, %v2968
      %v3427 = vand.u32 %v3426, 65535
      %v3428 = vshrl.u32 %v3426, 16
      %v3430 = vmul.u32 %v3427, 14564
      %v3431 = vmul.u32 %v3427, 58254
      %v3432 = vmul.u32 %v3428, 14564
      %v3433 = vmul.u32 %v3428, 58254
      %v3434 = vshll.u32 %v3431, 16
      %v3435 = vshrl.u32 %v3431, 16
      %v3436 = vshll.u32 %v3432, 16
      %v3437 = vshrl.u32 %v3432, 16
      %vm3438 = vc.u32 %v3430, %v3434
      %v3439 = vsel %vm3438, 1, 0
      %v3440 = vadd.s32 %v3430, %v3434
      %v3441 = vadd.s32 %v3433, %v3439
      %vm3442 = vc.u32 %v3440, %v3436
      %v3443 = vsel %vm3442, 1, 0
      %v3444 = vadd.s32 %v3440, %v3436
      %v3445 = vadd.s32 %v3441, %v3443
      %v3446 = vadd.s32 %v3445, %v3435
      %v3447 = vadd.s32 %v3446, %v3437
      %v3448 = vshrl.u32 %v3447, 4
      %v3449 = vmul.u32 %v3448, 18
      %v3450 = vsub.s32 %v3426, %v3449
      %v3451 = vsub.s32 0, %v3450
      %v3452 = vsel %vm3424, %v3451, %v3450
      %vm3453 = vcmp.lt.s32.totalorder %v2969, 0
      %v3454 = vsub.s32 0, %v2969
      %v3455 = vsel %vm3453, %v3454, %v2969
      %v3456 = vand.u32 %v3455, 65535
      %v3457 = vshrl.u32 %v3455, 16
      %v3459 = vmul.u32 %v3456, 14564
      %v3460 = vmul.u32 %v3456, 58254
      %v3461 = vmul.u32 %v3457, 14564
      %v3462 = vmul.u32 %v3457, 58254
      %v3463 = vshll.u32 %v3460, 16
      %v3464 = vshrl.u32 %v3460, 16
      %v3465 = vshll.u32 %v3461, 16
      %v3466 = vshrl.u32 %v3461, 16
      %vm3467 = vc.u32 %v3459, %v3463
      %v3468 = vsel %vm3467, 1, 0
      %v3469 = vadd.s32 %v3459, %v3463
      %v3470 = vadd.s32 %v3462, %v3468
      %vm3471 = vc.u32 %v3469, %v3465
      %v3472 = vsel %vm3471, 1, 0
      %v3473 = vadd.s32 %v3469, %v3465
      %v3474 = vadd.s32 %v3470, %v3472
      %v3475 = vadd.s32 %v3474, %v3464
      %v3476 = vadd.s32 %v3475, %v3466
      %v3477 = vshrl.u32 %v3476, 4
      %v3478 = vmul.u32 %v3477, 18
      %v3479 = vsub.s32 %v3455, %v3478
      %v3480 = vsub.s32 0, %v3479
      %v3481 = vsel %vm3453, %v3480, %v3479
      %vm3482 = vcmp.lt.s32.totalorder %v2970, 0
      %v3483 = vsub.s32 0, %v2970
      %v3484 = vsel %vm3482, %v3483, %v2970
      %v3485 = vand.u32 %v3484, 65535
      %v3486 = vshrl.u32 %v3484, 16
      %v3488 = vmul.u32 %v3485, 14564
      %v3489 = vmul.u32 %v3485, 58254
      %v3490 = vmul.u32 %v3486, 14564
      %v3491 = vmul.u32 %v3486, 58254
      %v3492 = vshll.u32 %v3489, 16
      %v3493 = vshrl.u32 %v3489, 16
      %v3494 = vshll.u32 %v3490, 16
      %v3495 = vshrl.u32 %v3490, 16
      %vm3496 = vc.u32 %v3488, %v3492
      %v3497 = vsel %vm3496, 1, 0
      %v3498 = vadd.s32 %v3488, %v3492
      %v3499 = vadd.s32 %v3491, %v3497
      %vm3500 = vc.u32 %v3498, %v3494
      %v3501 = vsel %vm3500, 1, 0
      %v3502 = vadd.s32 %v3498, %v3494
      %v3503 = vadd.s32 %v3499, %v3501
      %v3504 = vadd.s32 %v3503, %v3493
      %v3505 = vadd.s32 %v3504, %v3495
      %v3506 = vshrl.u32 %v3505, 4
      %v3507 = vmul.u32 %v3506, 18
      %v3508 = vsub.s32 %v3484, %v3507
      %v3509 = vsub.s32 0, %v3508
      %v3510 = vsel %vm3482, %v3509, %v3508
      %vm3511 = vcmp.lt.s32.totalorder %v2971, 0
      %v3512 = vsub.s32 0, %v2971
      %v3513 = vsel %vm3511, %v3512, %v2971
      %v3514 = vand.u32 %v3513, 65535
      %v3515 = vshrl.u32 %v3513, 16
      %v3517 = vmul.u32 %v3514, 14564
      %v3518 = vmul.u32 %v3514, 58254
      %v3519 = vmul.u32 %v3515, 14564
      %v3520 = vmul.u32 %v3515, 58254
      %v3521 = vshll.u32 %v3518, 16
      %v3522 = vshrl.u32 %v3518, 16
      %v3523 = vshll.u32 %v3519, 16
      %v3524 = vshrl.u32 %v3519, 16
      %vm3525 = vc.u32 %v3517, %v3521
      %v3526 = vsel %vm3525, 1, 0
      %v3527 = vadd.s32 %v3517, %v3521
      %v3528 = vadd.s32 %v3520, %v3526
      %vm3529 = vc.u32 %v3527, %v3523
      %v3530 = vsel %vm3529, 1, 0
      %v3531 = vadd.s32 %v3527, %v3523
      %v3532 = vadd.s32 %v3528, %v3530
      %v3533 = vadd.s32 %v3532, %v3522
      %v3534 = vadd.s32 %v3533, %v3524
      %v3535 = vshrl.u32 %v3534, 4
      %v3536 = vmul.u32 %v3535, 18
      %v3537 = vsub.s32 %v3513, %v3536
      %v3538 = vsub.s32 0, %v3537
      %v3539 = vsel %vm3511, %v3538, %v3537
      %vm3540 = vcmp.lt.s32.totalorder %v2972, 0
      %v3541 = vsub.s32 0, %v2972
      %v3542 = vsel %vm3540, %v3541, %v2972
      %v3543 = vand.u32 %v3542, 65535
      %v3544 = vshrl.u32 %v3542, 16
      %v3546 = vmul.u32 %v3543, 14564
      %v3547 = vmul.u32 %v3543, 58254
      %v3548 = vmul.u32 %v3544, 14564
      %v3549 = vmul.u32 %v3544, 58254
      %v3550 = vshll.u32 %v3547, 16
      %v3551 = vshrl.u32 %v3547, 16
      %v3552 = vshll.u32 %v3548, 16
      %v3553 = vshrl.u32 %v3548, 16
      %vm3554 = vc.u32 %v3546, %v3550
      %v3555 = vsel %vm3554, 1, 0
      %v3556 = vadd.s32 %v3546, %v3550
      %v3557 = vadd.s32 %v3549, %v3555
      %vm3558 = vc.u32 %v3556, %v3552
      %v3559 = vsel %vm3558, 1, 0
      %v3560 = vadd.s32 %v3556, %v3552
      %v3561 = vadd.s32 %v3557, %v3559
      %v3562 = vadd.s32 %v3561, %v3551
      %v3563 = vadd.s32 %v3562, %v3553
      %v3564 = vshrl.u32 %v3563, 4
      %v3565 = vmul.u32 %v3564, 18
      %v3566 = vsub.s32 %v3542, %v3565
      %v3567 = vsub.s32 0, %v3566
      %v3568 = vsel %vm3540, %v3567, %v3566
      %vm3569 = vcmp.lt.s32.totalorder %v2973, 0
      %v3570 = vsub.s32 0, %v2973
      %v3571 = vsel %vm3569, %v3570, %v2973
      %v3572 = vand.u32 %v3571, 65535
      %v3573 = vshrl.u32 %v3571, 16
      %v3575 = vmul.u32 %v3572, 14564
      %v3576 = vmul.u32 %v3572, 58254
      %v3577 = vmul.u32 %v3573, 14564
      %v3578 = vmul.u32 %v3573, 58254
      %v3579 = vshll.u32 %v3576, 16
      %v3580 = vshrl.u32 %v3576, 16
      %v3581 = vshll.u32 %v3577, 16
      %v3582 = vshrl.u32 %v3577, 16
      %vm3583 = vc.u32 %v3575, %v3579
      %v3584 = vsel %vm3583, 1, 0
      %v3585 = vadd.s32 %v3575, %v3579
      %v3586 = vadd.s32 %v3578, %v3584
      %vm3587 = vc.u32 %v3585, %v3581
      %v3588 = vsel %vm3587, 1, 0
      %v3589 = vadd.s32 %v3585, %v3581
      %v3590 = vadd.s32 %v3586, %v3588
      %v3591 = vadd.s32 %v3590, %v3580
      %v3592 = vadd.s32 %v3591, %v3582
      %v3593 = vshrl.u32 %v3592, 4
      %v3594 = vmul.u32 %v3593, 18
      %v3595 = vsub.s32 %v3571, %v3594
      %v3596 = vsub.s32 0, %v3595
      %v3597 = vsel %vm3569, %v3596, %v3595
      %vm3598 = vcmp.lt.s32.totalorder %v2974, 0
      %v3599 = vsub.s32 0, %v2974
      %v3600 = vsel %vm3598, %v3599, %v2974
      %v3601 = vand.u32 %v3600, 65535
      %v3602 = vshrl.u32 %v3600, 16
      %v3604 = vmul.u32 %v3601, 14564
      %v3605 = vmul.u32 %v3601, 58254
      %v3606 = vmul.u32 %v3602, 14564
      %v3607 = vmul.u32 %v3602, 58254
      %v3608 = vshll.u32 %v3605, 16
      %v3609 = vshrl.u32 %v3605, 16
      %v3610 = vshll.u32 %v3606, 16
      %v3611 = vshrl.u32 %v3606, 16
      %vm3612 = vc.u32 %v3604, %v3608
      %v3613 = vsel %vm3612, 1, 0
      %v3614 = vadd.s32 %v3604, %v3608
      %v3615 = vadd.s32 %v3607, %v3613
      %vm3616 = vc.u32 %v3614, %v3610
      %v3617 = vsel %vm3616, 1, 0
      %v3618 = vadd.s32 %v3614, %v3610
      %v3619 = vadd.s32 %v3615, %v3617
      %v3620 = vadd.s32 %v3619, %v3609
      %v3621 = vadd.s32 %v3620, %v3611
      %v3622 = vshrl.u32 %v3621, 4
      %v3623 = vmul.u32 %v3622, 18
      %v3624 = vsub.s32 %v3600, %v3623
      %v3625 = vsub.s32 0, %v3624
      %v3626 = vsel %vm3598, %v3625, %v3624
      %vm3627 = vcmp.lt.s32.totalorder %v2975, 0
      %v3628 = vsub.s32 0, %v2975
      %v3629 = vsel %vm3627, %v3628, %v2975
      %v3630 = vand.u32 %v3629, 65535
      %v3631 = vshrl.u32 %v3629, 16
      %v3633 = vmul.u32 %v3630, 14564
      %v3634 = vmul.u32 %v3630, 58254
      %v3635 = vmul.u32 %v3631, 14564
      %v3636 = vmul.u32 %v3631, 58254
      %v3637 = vshll.u32 %v3634, 16
      %v3638 = vshrl.u32 %v3634, 16
      %v3639 = vshll.u32 %v3635, 16
      %v3640 = vshrl.u32 %v3635, 16
      %vm3641 = vc.u32 %v3633, %v3637
      %v3642 = vsel %vm3641, 1, 0
      %v3643 = vadd.s32 %v3633, %v3637
      %v3644 = vadd.s32 %v3636, %v3642
      %vm3645 = vc.u32 %v3643, %v3639
      %v3646 = vsel %vm3645, 1, 0
      %v3647 = vadd.s32 %v3643, %v3639
      %v3648 = vadd.s32 %v3644, %v3646
      %v3649 = vadd.s32 %v3648, %v3638
      %v3650 = vadd.s32 %v3649, %v3640
      %v3651 = vshrl.u32 %v3650, 4
      %v3652 = vmul.u32 %v3651, 18
      %v3653 = vsub.s32 %v3629, %v3652
      %v3654 = vsub.s32 0, %v3653
      %v3655 = vsel %vm3627, %v3654, %v3653
      %vm3656 = vcmp.lt.s32.totalorder %v2976, 0
      %v3657 = vsub.s32 0, %v2976
      %v3658 = vsel %vm3656, %v3657, %v2976
      %v3659 = vand.u32 %v3658, 65535
      %v3660 = vshrl.u32 %v3658, 16
      %v3662 = vmul.u32 %v3659, 14564
      %v3663 = vmul.u32 %v3659, 58254
      %v3664 = vmul.u32 %v3660, 14564
      %v3665 = vmul.u32 %v3660, 58254
      %v3666 = vshll.u32 %v3663, 16
      %v3667 = vshrl.u32 %v3663, 16
      %v3668 = vshll.u32 %v3664, 16
      %v3669 = vshrl.u32 %v3664, 16
      %vm3670 = vc.u32 %v3662, %v3666
      %v3671 = vsel %vm3670, 1, 0
      %v3672 = vadd.s32 %v3662, %v3666
      %v3673 = vadd.s32 %v3665, %v3671
      %vm3674 = vc.u32 %v3672, %v3668
      %v3675 = vsel %vm3674, 1, 0
      %v3676 = vadd.s32 %v3672, %v3668
      %v3677 = vadd.s32 %v3673, %v3675
      %v3678 = vadd.s32 %v3677, %v3667
      %v3679 = vadd.s32 %v3678, %v3669
      %v3680 = vshrl.u32 %v3679, 4
      %v3681 = vmul.u32 %v3680, 18
      %v3682 = vsub.s32 %v3658, %v3681
      %v3683 = vsub.s32 0, %v3682
      %v3684 = vsel %vm3656, %v3683, %v3682
      %vm3685 = vcmp.lt.s32.totalorder %v2977, 0
      %v3686 = vsub.s32 0, %v2977
      %v3687 = vsel %vm3685, %v3686, %v2977
      %v3688 = vand.u32 %v3687, 65535
      %v3689 = vshrl.u32 %v3687, 16
      %v3691 = vmul.u32 %v3688, 14564
      %v3692 = vmul.u32 %v3688, 58254
      %v3693 = vmul.u32 %v3689, 14564
      %v3694 = vmul.u32 %v3689, 58254
      %v3695 = vshll.u32 %v3692, 16
      %v3696 = vshrl.u32 %v3692, 16
      %v3697 = vshll.u32 %v3693, 16
      %v3698 = vshrl.u32 %v3693, 16
      %vm3699 = vc.u32 %v3691, %v3695
      %v3700 = vsel %vm3699, 1, 0
      %v3701 = vadd.s32 %v3691, %v3695
      %v3702 = vadd.s32 %v3694, %v3700
      %vm3703 = vc.u32 %v3701, %v3697
      %v3704 = vsel %vm3703, 1, 0
      %v3705 = vadd.s32 %v3701, %v3697
      %v3706 = vadd.s32 %v3702, %v3704
      %v3707 = vadd.s32 %v3706, %v3696
      %v3708 = vadd.s32 %v3707, %v3698
      %v3709 = vshrl.u32 %v3708, 4
      %v3710 = vmul.u32 %v3709, 18
      %v3711 = vsub.s32 %v3687, %v3710
      %v3712 = vsub.s32 0, %v3711
      %v3713 = vsel %vm3685, %v3712, %v3711
      %vm3714 = vcmp.lt.s32.totalorder %v2978, 0
      %v3715 = vsub.s32 0, %v2978
      %v3716 = vsel %vm3714, %v3715, %v2978
      %v3717 = vand.u32 %v3716, 65535
      %v3718 = vshrl.u32 %v3716, 16
      %v3720 = vmul.u32 %v3717, 14564
      %v3721 = vmul.u32 %v3717, 58254
      %v3722 = vmul.u32 %v3718, 14564
      %v3723 = vmul.u32 %v3718, 58254
      %v3724 = vshll.u32 %v3721, 16
      %v3725 = vshrl.u32 %v3721, 16
      %v3726 = vshll.u32 %v3722, 16
      %v3727 = vshrl.u32 %v3722, 16
      %vm3728 = vc.u32 %v3720, %v3724
      %v3729 = vsel %vm3728, 1, 0
      %v3730 = vadd.s32 %v3720, %v3724
      %v3731 = vadd.s32 %v3723, %v3729
      %vm3732 = vc.u32 %v3730, %v3726
      %v3733 = vsel %vm3732, 1, 0
      %v3734 = vadd.s32 %v3730, %v3726
      %v3735 = vadd.s32 %v3731, %v3733
      %v3736 = vadd.s32 %v3735, %v3725
      %v3737 = vadd.s32 %v3736, %v3727
      %v3738 = vshrl.u32 %v3737, 4
      %v3739 = vmul.u32 %v3738, 18
      %v3740 = vsub.s32 %v3716, %v3739
      %v3741 = vsub.s32 0, %v3740
      %v3742 = vsel %vm3714, %v3741, %v3740
      %vm3743 = vcmp.lt.s32.totalorder %v2979, 0
      %v3744 = vsub.s32 0, %v2979
      %v3745 = vsel %vm3743, %v3744, %v2979
      %v3746 = vand.u32 %v3745, 65535
      %v3747 = vshrl.u32 %v3745, 16
      %v3749 = vmul.u32 %v3746, 14564
      %v3750 = vmul.u32 %v3746, 58254
      %v3751 = vmul.u32 %v3747, 14564
      %v3752 = vmul.u32 %v3747, 58254
      %v3753 = vshll.u32 %v3750, 16
      %v3754 = vshrl.u32 %v3750, 16
      %v3755 = vshll.u32 %v3751, 16
      %v3756 = vshrl.u32 %v3751, 16
      %vm3757 = vc.u32 %v3749, %v3753
      %v3758 = vsel %vm3757, 1, 0
      %v3759 = vadd.s32 %v3749, %v3753
      %v3760 = vadd.s32 %v3752, %v3758
      %vm3761 = vc.u32 %v3759, %v3755
      %v3762 = vsel %vm3761, 1, 0
      %v3763 = vadd.s32 %v3759, %v3755
      %v3764 = vadd.s32 %v3760, %v3762
      %v3765 = vadd.s32 %v3764, %v3754
      %v3766 = vadd.s32 %v3765, %v3756
      %v3767 = vshrl.u32 %v3766, 4
      %v3768 = vmul.u32 %v3767, 18
      %v3769 = vsub.s32 %v3745, %v3768
      %v3770 = vsub.s32 0, %v3769
      %v3771 = vsel %vm3743, %v3770, %v3769
      %vm3772 = vcmp.lt.s32.totalorder %v2980, 0
      %v3773 = vsub.s32 0, %v2980
      %v3774 = vsel %vm3772, %v3773, %v2980
      %v3775 = vand.u32 %v3774, 65535
      %v3776 = vshrl.u32 %v3774, 16
      %v3778 = vmul.u32 %v3775, 14564
      %v3779 = vmul.u32 %v3775, 58254
      %v3780 = vmul.u32 %v3776, 14564
      %v3781 = vmul.u32 %v3776, 58254
      %v3782 = vshll.u32 %v3779, 16
      %v3783 = vshrl.u32 %v3779, 16
      %v3784 = vshll.u32 %v3780, 16
      %v3785 = vshrl.u32 %v3780, 16
      %vm3786 = vc.u32 %v3778, %v3782
      %v3787 = vsel %vm3786, 1, 0
      %v3788 = vadd.s32 %v3778, %v3782
      %v3789 = vadd.s32 %v3781, %v3787
      %vm3790 = vc.u32 %v3788, %v3784
      %v3791 = vsel %vm3790, 1, 0
      %v3792 = vadd.s32 %v3788, %v3784
      %v3793 = vadd.s32 %v3789, %v3791
      %v3794 = vadd.s32 %v3793, %v3783
      %v3795 = vadd.s32 %v3794, %v3785
      %v3796 = vshrl.u32 %v3795, 4
      %v3797 = vmul.u32 %v3796, 18
      %v3798 = vsub.s32 %v3774, %v3797
      %v3799 = vsub.s32 0, %v3798
      %v3800 = vsel %vm3772, %v3799, %v3798
      %vm3801 = vcmp.lt.s32.totalorder %v2981, 0
      %v3802 = vsub.s32 0, %v2981
      %v3803 = vsel %vm3801, %v3802, %v2981
      %v3804 = vand.u32 %v3803, 65535
      %v3805 = vshrl.u32 %v3803, 16
      %v3807 = vmul.u32 %v3804, 14564
      %v3808 = vmul.u32 %v3804, 58254
      %v3809 = vmul.u32 %v3805, 14564
      %v3810 = vmul.u32 %v3805, 58254
      %v3811 = vshll.u32 %v3808, 16
      %v3812 = vshrl.u32 %v3808, 16
      %v3813 = vshll.u32 %v3809, 16
      %v3814 = vshrl.u32 %v3809, 16
      %vm3815 = vc.u32 %v3807, %v3811
      %v3816 = vsel %vm3815, 1, 0
      %v3817 = vadd.s32 %v3807, %v3811
      %v3818 = vadd.s32 %v3810, %v3816
      %vm3819 = vc.u32 %v3817, %v3813
      %v3820 = vsel %vm3819, 1, 0
      %v3821 = vadd.s32 %v3817, %v3813
      %v3822 = vadd.s32 %v3818, %v3820
      %v3823 = vadd.s32 %v3822, %v3812
      %v3824 = vadd.s32 %v3823, %v3814
      %v3825 = vshrl.u32 %v3824, 4
      %v3826 = vmul.u32 %v3825, 18
      %v3827 = vsub.s32 %v3803, %v3826
      %v3828 = vsub.s32 0, %v3827
      %v3829 = vsel %vm3801, %v3828, %v3827
      %vm3830 = vcmp.lt.s32.totalorder %v2982, 0
      %v3831 = vsub.s32 0, %v2982
      %v3832 = vsel %vm3830, %v3831, %v2982
      %v3833 = vand.u32 %v3832, 65535
      %v3834 = vshrl.u32 %v3832, 16
      %v3836 = vmul.u32 %v3833, 14564
      %v3837 = vmul.u32 %v3833, 58254
      %v3838 = vmul.u32 %v3834, 14564
      %v3839 = vmul.u32 %v3834, 58254
      %v3840 = vshll.u32 %v3837, 16
      %v3841 = vshrl.u32 %v3837, 16
      %v3842 = vshll.u32 %v3838, 16
      %v3843 = vshrl.u32 %v3838, 16
      %vm3844 = vc.u32 %v3836, %v3840
      %v3845 = vsel %vm3844, 1, 0
      %v3846 = vadd.s32 %v3836, %v3840
      %v3847 = vadd.s32 %v3839, %v3845
      %vm3848 = vc.u32 %v3846, %v3842
      %v3849 = vsel %vm3848, 1, 0
      %v3850 = vadd.s32 %v3846, %v3842
      %v3851 = vadd.s32 %v3847, %v3849
      %v3852 = vadd.s32 %v3851, %v3841
      %v3853 = vadd.s32 %v3852, %v3843
      %v3854 = vshrl.u32 %v3853, 4
      %v3855 = vmul.u32 %v3854, 18
      %v3856 = vsub.s32 %v3832, %v3855
      %v3857 = vsub.s32 0, %v3856
      %v3858 = vsel %vm3830, %v3857, %v3856
      %vm3859 = vcmp.lt.s32.totalorder %v2983, 0
      %v3860 = vsub.s32 0, %v2983
      %v3861 = vsel %vm3859, %v3860, %v2983
      %v3862 = vand.u32 %v3861, 65535
      %v3863 = vshrl.u32 %v3861, 16
      %v3865 = vmul.u32 %v3862, 14564
      %v3866 = vmul.u32 %v3862, 58254
      %v3867 = vmul.u32 %v3863, 14564
      %v3868 = vmul.u32 %v3863, 58254
      %v3869 = vshll.u32 %v3866, 16
      %v3870 = vshrl.u32 %v3866, 16
      %v3871 = vshll.u32 %v3867, 16
      %v3872 = vshrl.u32 %v3867, 16
      %vm3873 = vc.u32 %v3865, %v3869
      %v3874 = vsel %vm3873, 1, 0
      %v3875 = vadd.s32 %v3865, %v3869
      %v3876 = vadd.s32 %v3868, %v3874
      %vm3877 = vc.u32 %v3875, %v3871
      %v3878 = vsel %vm3877, 1, 0
      %v3879 = vadd.s32 %v3875, %v3871
      %v3880 = vadd.s32 %v3876, %v3878
      %v3881 = vadd.s32 %v3880, %v3870
      %v3882 = vadd.s32 %v3881, %v3872
      %v3883 = vshrl.u32 %v3882, 4
      %v3884 = vmul.u32 %v3883, 18
      %v3885 = vsub.s32 %v3861, %v3884
      %v3886 = vsub.s32 0, %v3885
      %v3887 = vsel %vm3859, %v3886, %v3885
      %vm3888 = vcmp.lt.s32.totalorder %v2984, 0
      %v3889 = vsub.s32 0, %v2984
      %v3890 = vsel %vm3888, %v3889, %v2984
      %v3891 = vand.u32 %v3890, 65535
      %v3892 = vshrl.u32 %v3890, 16
      %v3894 = vmul.u32 %v3891, 14564
      %v3895 = vmul.u32 %v3891, 58254
      %v3896 = vmul.u32 %v3892, 14564
      %v3897 = vmul.u32 %v3892, 58254
      %v3898 = vshll.u32 %v3895, 16
      %v3899 = vshrl.u32 %v3895, 16
      %v3900 = vshll.u32 %v3896, 16
      %v3901 = vshrl.u32 %v3896, 16
      %vm3902 = vc.u32 %v3894, %v3898
      %v3903 = vsel %vm3902, 1, 0
      %v3904 = vadd.s32 %v3894, %v3898
      %v3905 = vadd.s32 %v3897, %v3903
      %vm3906 = vc.u32 %v3904, %v3900
      %v3907 = vsel %vm3906, 1, 0
      %v3908 = vadd.s32 %v3904, %v3900
      %v3909 = vadd.s32 %v3905, %v3907
      %v3910 = vadd.s32 %v3909, %v3899
      %v3911 = vadd.s32 %v3910, %v3901
      %v3912 = vshrl.u32 %v3911, 4
      %v3913 = vmul.u32 %v3912, 18
      %v3914 = vsub.s32 %v3890, %v3913
      %v3915 = vsub.s32 0, %v3914
      %v3916 = vsel %vm3888, %v3915, %v3914
      %vm3917 = vcmp.lt.s32.totalorder %v2985, 0
      %v3918 = vsub.s32 0, %v2985
      %v3919 = vsel %vm3917, %v3918, %v2985
      %v3920 = vand.u32 %v3919, 65535
      %v3921 = vshrl.u32 %v3919, 16
      %v3923 = vmul.u32 %v3920, 14564
      %v3924 = vmul.u32 %v3920, 58254
      %v3925 = vmul.u32 %v3921, 14564
      %v3926 = vmul.u32 %v3921, 58254
      %v3927 = vshll.u32 %v3924, 16
      %v3928 = vshrl.u32 %v3924, 16
      %v3929 = vshll.u32 %v3925, 16
      %v3930 = vshrl.u32 %v3925, 16
      %vm3931 = vc.u32 %v3923, %v3927
      %v3932 = vsel %vm3931, 1, 0
      %v3933 = vadd.s32 %v3923, %v3927
      %v3934 = vadd.s32 %v3926, %v3932
      %vm3935 = vc.u32 %v3933, %v3929
      %v3936 = vsel %vm3935, 1, 0
      %v3937 = vadd.s32 %v3933, %v3929
      %v3938 = vadd.s32 %v3934, %v3936
      %v3939 = vadd.s32 %v3938, %v3928
      %v3940 = vadd.s32 %v3939, %v3930
      %v3941 = vshrl.u32 %v3940, 4
      %v3942 = vmul.u32 %v3941, 18
      %v3943 = vsub.s32 %v3919, %v3942
      %v3944 = vsub.s32 0, %v3943
      %v3945 = vsel %vm3917, %v3944, %v3943
      %vm3946 = vcmp.lt.s32.totalorder %v2986, 0
      %v3947 = vsub.s32 0, %v2986
      %v3948 = vsel %vm3946, %v3947, %v2986
      %v3949 = vand.u32 %v3948, 65535
      %v3950 = vshrl.u32 %v3948, 16
      %v3952 = vmul.u32 %v3949, 14564
      %v3953 = vmul.u32 %v3949, 58254
      %v3954 = vmul.u32 %v3950, 14564
      %v3955 = vmul.u32 %v3950, 58254
      %v3956 = vshll.u32 %v3953, 16
      %v3957 = vshrl.u32 %v3953, 16
      %v3958 = vshll.u32 %v3954, 16
      %v3959 = vshrl.u32 %v3954, 16
      %vm3960 = vc.u32 %v3952, %v3956
      %v3961 = vsel %vm3960, 1, 0
      %v3962 = vadd.s32 %v3952, %v3956
      %v3963 = vadd.s32 %v3955, %v3961
      %vm3964 = vc.u32 %v3962, %v3958
      %v3965 = vsel %vm3964, 1, 0
      %v3966 = vadd.s32 %v3962, %v3958
      %v3967 = vadd.s32 %v3963, %v3965
      %v3968 = vadd.s32 %v3967, %v3957
      %v3969 = vadd.s32 %v3968, %v3959
      %v3970 = vshrl.u32 %v3969, 4
      %v3971 = vmul.u32 %v3970, 18
      %v3972 = vsub.s32 %v3948, %v3971
      %v3973 = vsub.s32 0, %v3972
      %v3974 = vsel %vm3946, %v3973, %v3972
      %vm3975 = vcmp.lt.s32.totalorder %v2987, 0
      %v3976 = vsub.s32 0, %v2987
      %v3977 = vsel %vm3975, %v3976, %v2987
      %v3978 = vand.u32 %v3977, 65535
      %v3979 = vshrl.u32 %v3977, 16
      %v3981 = vmul.u32 %v3978, 14564
      %v3982 = vmul.u32 %v3978, 58254
      %v3983 = vmul.u32 %v3979, 14564
      %v3984 = vmul.u32 %v3979, 58254
      %v3985 = vshll.u32 %v3982, 16
      %v3986 = vshrl.u32 %v3982, 16
      %v3987 = vshll.u32 %v3983, 16
      %v3988 = vshrl.u32 %v3983, 16
      %vm3989 = vc.u32 %v3981, %v3985
      %v3990 = vsel %vm3989, 1, 0
      %v3991 = vadd.s32 %v3981, %v3985
      %v3992 = vadd.s32 %v3984, %v3990
      %vm3993 = vc.u32 %v3991, %v3987
      %v3994 = vsel %vm3993, 1, 0
      %v3995 = vadd.s32 %v3991, %v3987
      %v3996 = vadd.s32 %v3992, %v3994
      %v3997 = vadd.s32 %v3996, %v3986
      %v3998 = vadd.s32 %v3997, %v3988
      %v3999 = vshrl.u32 %v3998, 4
      %v4000 = vmul.u32 %v3999, 18
      %v4001 = vsub.s32 %v3977, %v4000
      %v4002 = vsub.s32 0, %v4001
      %v4003 = vsel %vm3975, %v4002, %v4001
      %vm4004 = vcmp.lt.s32.totalorder %v2988, 0
      %v4005 = vsub.s32 0, %v2988
      %v4006 = vsel %vm4004, %v4005, %v2988
      %v4007 = vand.u32 %v4006, 65535
      %v4008 = vshrl.u32 %v4006, 16
      %v4010 = vmul.u32 %v4007, 14564
      %v4011 = vmul.u32 %v4007, 58254
      %v4012 = vmul.u32 %v4008, 14564
      %v4013 = vmul.u32 %v4008, 58254
      %v4014 = vshll.u32 %v4011, 16
      %v4015 = vshrl.u32 %v4011, 16
      %v4016 = vshll.u32 %v4012, 16
      %v4017 = vshrl.u32 %v4012, 16
      %vm4018 = vc.u32 %v4010, %v4014
      %v4019 = vsel %vm4018, 1, 0
      %v4020 = vadd.s32 %v4010, %v4014
      %v4021 = vadd.s32 %v4013, %v4019
      %vm4022 = vc.u32 %v4020, %v4016
      %v4023 = vsel %vm4022, 1, 0
      %v4024 = vadd.s32 %v4020, %v4016
      %v4025 = vadd.s32 %v4021, %v4023
      %v4026 = vadd.s32 %v4025, %v4015
      %v4027 = vadd.s32 %v4026, %v4017
      %v4028 = vshrl.u32 %v4027, 4
      %v4029 = vmul.u32 %v4028, 18
      %v4030 = vsub.s32 %v4006, %v4029
      %v4031 = vsub.s32 0, %v4030
      %v4032 = vsel %vm4004, %v4031, %v4030
      %vm4033 = vcmp.ne.s32.totalorder %v3017, 0
      %vm4034 = vcmp.ne.s32.totalorder %v3046, 0
      %vm4035 = vcmp.ne.s32.totalorder %v3075, 0
      %vm4036 = vcmp.ne.s32.totalorder %v3104, 0
      %vm4037 = vcmp.ne.s32.totalorder %v3133, 0
      %vm4038 = vcmp.ne.s32.totalorder %v3162, 0
      %vm4039 = vcmp.ne.s32.totalorder %v3191, 0
      %vm4040 = vcmp.ne.s32.totalorder %v3220, 0
      %vm4041 = vcmp.ne.s32.totalorder %v3249, 0
      %vm4042 = vcmp.ne.s32.totalorder %v3278, 0
      %vm4043 = vcmp.ne.s32.totalorder %v3307, 0
      %vm4044 = vcmp.ne.s32.totalorder %v3336, 0
      %vm4045 = vcmp.ne.s32.totalorder %v3365, 0
      %vm4046 = vcmp.ne.s32.totalorder %v3394, 0
      %vm4047 = vcmp.ne.s32.totalorder %v3423, 0
      %vm4048 = vcmp.ne.s32.totalorder %v3452, 0
      %vm4049 = vcmp.ne.s32.totalorder %v3481, 0
      %vm4050 = vcmp.ne.s32.totalorder %v3510, 0
      %vm4051 = vcmp.ne.s32.totalorder %v3539, 0
      %vm4052 = vcmp.ne.s32.totalorder %v3568, 0
      %vm4053 = vcmp.ne.s32.totalorder %v3597, 0
      %vm4054 = vcmp.ne.s32.totalorder %v3626, 0
      %vm4055 = vcmp.ne.s32.totalorder %v3655, 0
      %vm4056 = vcmp.ne.s32.totalorder %v3684, 0
      %vm4057 = vcmp.ne.s32.totalorder %v3713, 0
      %vm4058 = vcmp.ne.s32.totalorder %v3742, 0
      %vm4059 = vcmp.ne.s32.totalorder %v3771, 0
      %vm4060 = vcmp.ne.s32.totalorder %v3800, 0
      %vm4061 = vcmp.ne.s32.totalorder %v3829, 0
      %vm4062 = vcmp.ne.s32.totalorder %v3858, 0
      %vm4063 = vcmp.ne.s32.totalorder %v3887, 0
      %vm4064 = vcmp.ne.s32.totalorder %v3916, 0
      %vm4065 = vcmp.ne.s32.totalorder %v3945, 0
      %vm4066 = vcmp.ne.s32.totalorder %v3974, 0
      %vm4067 = vcmp.ne.s32.totalorder %v4003, 0
      %vm4068 = vcmp.ne.s32.totalorder %v4032, 0
      %vm4069 = vcmp.lt.s32.totalorder %v3017, 0
      %vm4070 = vcmp.lt.s32.totalorder %v3046, 0
      %vm4071 = vcmp.lt.s32.totalorder %v3075, 0
      %vm4072 = vcmp.lt.s32.totalorder %v3104, 0
      %vm4073 = vcmp.lt.s32.totalorder %v3133, 0
      %vm4074 = vcmp.lt.s32.totalorder %v3162, 0
      %vm4075 = vcmp.lt.s32.totalorder %v3191, 0
      %vm4076 = vcmp.lt.s32.totalorder %v3220, 0
      %vm4077 = vcmp.lt.s32.totalorder %v3249, 0
      %vm4078 = vcmp.lt.s32.totalorder %v3278, 0
      %vm4079 = vcmp.lt.s32.totalorder %v3307, 0
      %vm4080 = vcmp.lt.s32.totalorder %v3336, 0
      %vm4081 = vcmp.lt.s32.totalorder %v3365, 0
      %vm4082 = vcmp.lt.s32.totalorder %v3394, 0
      %vm4083 = vcmp.lt.s32.totalorder %v3423, 0
      %vm4084 = vcmp.lt.s32.totalorder %v3452, 0
      %vm4085 = vcmp.lt.s32.totalorder %v3481, 0
      %vm4086 = vcmp.lt.s32.totalorder %v3510, 0
      %vm4087 = vcmp.lt.s32.totalorder %v3539, 0
      %vm4088 = vcmp.lt.s32.totalorder %v3568, 0
      %vm4089 = vcmp.lt.s32.totalorder %v3597, 0
      %vm4090 = vcmp.lt.s32.totalorder %v3626, 0
      %vm4091 = vcmp.lt.s32.totalorder %v3655, 0
      %vm4092 = vcmp.lt.s32.totalorder %v3684, 0
      %vm4093 = vcmp.lt.s32.totalorder %v3713, 0
      %vm4094 = vcmp.lt.s32.totalorder %v3742, 0
      %vm4095 = vcmp.lt.s32.totalorder %v3771, 0
      %vm4096 = vcmp.lt.s32.totalorder %v3800, 0
      %vm4097 = vcmp.lt.s32.totalorder %v3829, 0
      %vm4098 = vcmp.lt.s32.totalorder %v3858, 0
      %vm4099 = vcmp.lt.s32.totalorder %v3887, 0
      %vm4100 = vcmp.lt.s32.totalorder %v3916, 0
      %vm4101 = vcmp.lt.s32.totalorder %v3945, 0
      %vm4102 = vcmp.lt.s32.totalorder %v3974, 0
      %vm4103 = vcmp.lt.s32.totalorder %v4003, 0
      %vm4104 = vcmp.lt.s32.totalorder %v4032, 0
      %vm4105 = vmand %vm4069, %vm4033
      %vm4106 = vmand %vm4070, %vm4034
      %vm4107 = vmand %vm4071, %vm4035
      %vm4108 = vmand %vm4072, %vm4036
      %vm4109 = vmand %vm4073, %vm4037
      %vm4110 = vmand %vm4074, %vm4038
      %vm4111 = vmand %vm4075, %vm4039
      %vm4112 = vmand %vm4076, %vm4040
      %vm4113 = vmand %vm4077, %vm4041
      %vm4114 = vmand %vm4078, %vm4042
      %vm4115 = vmand %vm4079, %vm4043
      %vm4116 = vmand %vm4080, %vm4044
      %vm4117 = vmand %vm4081, %vm4045
      %vm4118 = vmand %vm4082, %vm4046
      %vm4119 = vmand %vm4083, %vm4047
      %vm4120 = vmand %vm4084, %vm4048
      %vm4121 = vmand %vm4085, %vm4049
      %vm4122 = vmand %vm4086, %vm4050
      %vm4123 = vmand %vm4087, %vm4051
      %vm4124 = vmand %vm4088, %vm4052
      %vm4125 = vmand %vm4089, %vm4053
      %vm4126 = vmand %vm4090, %vm4054
      %vm4127 = vmand %vm4091, %vm4055
      %vm4128 = vmand %vm4092, %vm4056
      %vm4129 = vmand %vm4093, %vm4057
      %vm4130 = vmand %vm4094, %vm4058
      %vm4131 = vmand %vm4095, %vm4059
      %vm4132 = vmand %vm4096, %vm4060
      %vm4133 = vmand %vm4097, %vm4061
      %vm4134 = vmand %vm4098, %vm4062
      %vm4135 = vmand %vm4099, %vm4063
      %vm4136 = vmand %vm4100, %vm4064
      %vm4137 = vmand %vm4101, %vm4065
      %vm4138 = vmand %vm4102, %vm4066
      %vm4139 = vmand %vm4103, %vm4067
      %vm4140 = vmand %vm4104, %vm4068
      %v4141 = vadd.s32 %v3017, 18
      %v4142 = vadd.s32 %v3046, 18
      %v4143 = vadd.s32 %v3075, 18
      %v4144 = vadd.s32 %v3104, 18
      %v4145 = vadd.s32 %v3133, 18
      %v4146 = vadd.s32 %v3162, 18
      %v4147 = vadd.s32 %v3191, 18
      %v4148 = vadd.s32 %v3220, 18
      %v4149 = vadd.s32 %v3249, 18
      %v4150 = vadd.s32 %v3278, 18
      %v4151 = vadd.s32 %v3307, 18
      %v4152 = vadd.s32 %v3336, 18
      %v4153 = vadd.s32 %v3365, 18
      %v4154 = vadd.s32 %v3394, 18
      %v4155 = vadd.s32 %v3423, 18
      %v4156 = vadd.s32 %v3452, 18
      %v4157 = vadd.s32 %v3481, 18
      %v4158 = vadd.s32 %v3510, 18
      %v4159 = vadd.s32 %v3539, 18
      %v4160 = vadd.s32 %v3568, 18
      %v4161 = vadd.s32 %v3597, 18
      %v4162 = vadd.s32 %v3626, 18
      %v4163 = vadd.s32 %v3655, 18
      %v4164 = vadd.s32 %v3684, 18
      %v4165 = vadd.s32 %v3713, 18
      %v4166 = vadd.s32 %v3742, 18
      %v4167 = vadd.s32 %v3771, 18
      %v4168 = vadd.s32 %v3800, 18
      %v4169 = vadd.s32 %v3829, 18
      %v4170 = vadd.s32 %v3858, 18
      %v4171 = vadd.s32 %v3887, 18
      %v4172 = vadd.s32 %v3916, 18
      %v4173 = vadd.s32 %v3945, 18
      %v4174 = vadd.s32 %v3974, 18
      %v4175 = vadd.s32 %v4003, 18
      %v4176 = vadd.s32 %v4032, 18
      %v4177 = vsel %vm4105, %v4141, %v3017
      %v4178 = vsel %vm4106, %v4142, %v3046
      %v4179 = vsel %vm4107, %v4143, %v3075
      %v4180 = vsel %vm4108, %v4144, %v3104
      %v4181 = vsel %vm4109, %v4145, %v3133
      %v4182 = vsel %vm4110, %v4146, %v3162
      %v4183 = vsel %vm4111, %v4147, %v3191
      %v4184 = vsel %vm4112, %v4148, %v3220
      %v4185 = vsel %vm4113, %v4149, %v3249
      %v4186 = vsel %vm4114, %v4150, %v3278
      %v4187 = vsel %vm4115, %v4151, %v3307
      %v4188 = vsel %vm4116, %v4152, %v3336
      %v4189 = vsel %vm4117, %v4153, %v3365
      %v4190 = vsel %vm4118, %v4154, %v3394
      %v4191 = vsel %vm4119, %v4155, %v3423
      %v4192 = vsel %vm4120, %v4156, %v3452
      %v4193 = vsel %vm4121, %v4157, %v3481
      %v4194 = vsel %vm4122, %v4158, %v3510
      %v4195 = vsel %vm4123, %v4159, %v3539
      %v4196 = vsel %vm4124, %v4160, %v3568
      %v4197 = vsel %vm4125, %v4161, %v3597
      %v4198 = vsel %vm4126, %v4162, %v3626
      %v4199 = vsel %vm4127, %v4163, %v3655
      %v4200 = vsel %vm4128, %v4164, %v3684
      %v4201 = vsel %vm4129, %v4165, %v3713
      %v4202 = vsel %vm4130, %v4166, %v3742
      %v4203 = vsel %vm4131, %v4167, %v3771
      %v4204 = vsel %vm4132, %v4168, %v3800
      %v4205 = vsel %vm4133, %v4169, %v3829
      %v4206 = vsel %vm4134, %v4170, %v3858
      %v4207 = vsel %vm4135, %v4171, %v3887
      %v4208 = vsel %vm4136, %v4172, %v3916
      %v4209 = vsel %vm4137, %v4173, %v3945
      %v4210 = vsel %vm4138, %v4174, %v3974
      %v4211 = vsel %vm4139, %v4175, %v4003
      %v4212 = vsel %vm4140, %v4176, %v4032
      %vm4213 = vcmp.lt.s32.totalorder %v4177, 16
      %vm4214 = vcmp.lt.s32.totalorder %v4178, 16
      %vm4215 = vcmp.lt.s32.totalorder %v4179, 16
      %vm4216 = vcmp.lt.s32.totalorder %v4180, 16
      %vm4217 = vcmp.lt.s32.totalorder %v4181, 16
      %vm4218 = vcmp.lt.s32.totalorder %v4182, 16
      %vm4219 = vcmp.lt.s32.totalorder %v4183, 16
      %vm4220 = vcmp.lt.s32.totalorder %v4184, 16
      %vm4221 = vcmp.lt.s32.totalorder %v4185, 16
      %vm4222 = vcmp.lt.s32.totalorder %v4186, 16
      %vm4223 = vcmp.lt.s32.totalorder %v4187, 16
      %vm4224 = vcmp.lt.s32.totalorder %v4188, 16
      %vm4225 = vcmp.lt.s32.totalorder %v4189, 16
      %vm4226 = vcmp.lt.s32.totalorder %v4190, 16
      %vm4227 = vcmp.lt.s32.totalorder %v4191, 16
      %vm4228 = vcmp.lt.s32.totalorder %v4192, 16
      %vm4229 = vcmp.lt.s32.totalorder %v4193, 16
      %vm4230 = vcmp.lt.s32.totalorder %v4194, 16
      %vm4231 = vcmp.lt.s32.totalorder %v4195, 16
      %vm4232 = vcmp.lt.s32.totalorder %v4196, 16
      %vm4233 = vcmp.lt.s32.totalorder %v4197, 16
      %vm4234 = vcmp.lt.s32.totalorder %v4198, 16
      %vm4235 = vcmp.lt.s32.totalorder %v4199, 16
      %vm4236 = vcmp.lt.s32.totalorder %v4200, 16
      %vm4237 = vcmp.lt.s32.totalorder %v4201, 16
      %vm4238 = vcmp.lt.s32.totalorder %v4202, 16
      %vm4239 = vcmp.lt.s32.totalorder %v4203, 16
      %vm4240 = vcmp.lt.s32.totalorder %v4204, 16
      %vm4241 = vcmp.lt.s32.totalorder %v4205, 16
      %vm4242 = vcmp.lt.s32.totalorder %v4206, 16
      %vm4243 = vcmp.lt.s32.totalorder %v4207, 16
      %vm4244 = vcmp.lt.s32.totalorder %v4208, 16
      %vm4245 = vcmp.lt.s32.totalorder %v4209, 16
      %vm4246 = vcmp.lt.s32.totalorder %v4210, 16
      %vm4247 = vcmp.lt.s32.totalorder %v4211, 16
      %vm4248 = vcmp.lt.s32.totalorder %v4212, 16
      %v4249 = vsel %vm4213, 1, 0
      %v4250 = vsel %vm4214, 1, 0
      %v4251 = vsel %vm4215, 1, 0
      %v4252 = vsel %vm4216, 1, 0
      %v4253 = vsel %vm4217, 1, 0
      %v4254 = vsel %vm4218, 1, 0
      %v4255 = vsel %vm4219, 1, 0
      %v4256 = vsel %vm4220, 1, 0
      %v4257 = vsel %vm4221, 1, 0
      %v4258 = vsel %vm4222, 1, 0
      %v4259 = vsel %vm4223, 1, 0
      %v4260 = vsel %vm4224, 1, 0
      %v4261 = vsel %vm4225, 1, 0
      %v4262 = vsel %vm4226, 1, 0
      %v4263 = vsel %vm4227, 1, 0
      %v4264 = vsel %vm4228, 1, 0
      %v4265 = vsel %vm4229, 1, 0
      %v4266 = vsel %vm4230, 1, 0
      %v4267 = vsel %vm4231, 1, 0
      %v4268 = vsel %vm4232, 1, 0
      %v4269 = vsel %vm4233, 1, 0
      %v4270 = vsel %vm4234, 1, 0
      %v4271 = vsel %vm4235, 1, 0
      %v4272 = vsel %vm4236, 1, 0
      %v4273 = vsel %vm4237, 1, 0
      %v4274 = vsel %vm4238, 1, 0
      %v4275 = vsel %vm4239, 1, 0
      %v4276 = vsel %vm4240, 1, 0
      %v4277 = vsel %vm4241, 1, 0
      %v4278 = vsel %vm4242, 1, 0
      %v4279 = vsel %vm4243, 1, 0
      %v4280 = vsel %vm4244, 1, 0
      %v4281 = vsel %vm4245, 1, 0
      %v4282 = vsel %vm4246, 1, 0
      %v4283 = vsel %vm4247, 1, 0
      %v4284 = vsel %vm4248, 1, 0
      %vm4285 = vcmp.eq.s32.totalorder %v4249, 1
      %vm4286 = vcmp.eq.s32.totalorder %v4250, 1
      %vm4287 = vcmp.eq.s32.totalorder %v4251, 1
      %vm4288 = vcmp.eq.s32.totalorder %v4252, 1
      %vm4289 = vcmp.eq.s32.totalorder %v4253, 1
      %vm4290 = vcmp.eq.s32.totalorder %v4254, 1
      %vm4291 = vcmp.eq.s32.totalorder %v4255, 1
      %vm4292 = vcmp.eq.s32.totalorder %v4256, 1
      %vm4293 = vcmp.eq.s32.totalorder %v4257, 1
      %vm4294 = vcmp.eq.s32.totalorder %v4258, 1
      %vm4295 = vcmp.eq.s32.totalorder %v4259, 1
      %vm4296 = vcmp.eq.s32.totalorder %v4260, 1
      %vm4297 = vcmp.eq.s32.totalorder %v4261, 1
      %vm4298 = vcmp.eq.s32.totalorder %v4262, 1
      %vm4299 = vcmp.eq.s32.totalorder %v4263, 1
      %vm4300 = vcmp.eq.s32.totalorder %v4264, 1
      %vm4301 = vcmp.eq.s32.totalorder %v4265, 1
      %vm4302 = vcmp.eq.s32.totalorder %v4266, 1
      %vm4303 = vcmp.eq.s32.totalorder %v4267, 1
      %vm4304 = vcmp.eq.s32.totalorder %v4268, 1
      %vm4305 = vcmp.eq.s32.totalorder %v4269, 1
      %vm4306 = vcmp.eq.s32.totalorder %v4270, 1
      %vm4307 = vcmp.eq.s32.totalorder %v4271, 1
      %vm4308 = vcmp.eq.s32.totalorder %v4272, 1
      %vm4309 = vcmp.eq.s32.totalorder %v4273, 1
      %vm4310 = vcmp.eq.s32.totalorder %v4274, 1
      %vm4311 = vcmp.eq.s32.totalorder %v4275, 1
      %vm4312 = vcmp.eq.s32.totalorder %v4276, 1
      %vm4313 = vcmp.eq.s32.totalorder %v4277, 1
      %vm4314 = vcmp.eq.s32.totalorder %v4278, 1
      %vm4315 = vcmp.eq.s32.totalorder %v4279, 1
      %vm4316 = vcmp.eq.s32.totalorder %v4280, 1
      %vm4317 = vcmp.eq.s32.totalorder %v4281, 1
      %vm4318 = vcmp.eq.s32.totalorder %v4282, 1
      %vm4319 = vcmp.eq.s32.totalorder %v4283, 1
      %vm4320 = vcmp.eq.s32.totalorder %v4284, 1
      %v4321 = vsel %vm4285, %v2916, 0.0
      %v4322 = vsel %vm4286, %v2917, 0.0
      %v4323 = vsel %vm4287, %v2918, 0.0
      %v4324 = vsel %vm4288, %v2919, 0.0
      %v4325 = vsel %vm4289, %v2920, 0.0
      %v4326 = vsel %vm4290, %v2921, 0.0
      %v4327 = vsel %vm4291, %v2922, 0.0
      %v4328 = vsel %vm4292, %v2923, 0.0
      %v4329 = vsel %vm4293, %v2924, 0.0
      %v4330 = vsel %vm4294, %v2925, 0.0
      %v4331 = vsel %vm4295, %v2926, 0.0
      %v4332 = vsel %vm4296, %v2927, 0.0
      %v4333 = vsel %vm4297, %v2928, 0.0
      %v4334 = vsel %vm4298, %v2929, 0.0
      %v4335 = vsel %vm4299, %v2930, 0.0
      %v4336 = vsel %vm4300, %v2931, 0.0
      %v4337 = vsel %vm4301, %v2932, 0.0
      %v4338 = vsel %vm4302, %v2933, 0.0
      %v4339 = vsel %vm4303, %v2934, 0.0
      %v4340 = vsel %vm4304, %v2935, 0.0
      %v4341 = vsel %vm4305, %v2936, 0.0
      %v4342 = vsel %vm4306, %v2937, 0.0
      %v4343 = vsel %vm4307, %v2938, 0.0
      %v4344 = vsel %vm4308, %v2939, 0.0
      %v4345 = vsel %vm4309, %v2940, 0.0
      %v4346 = vsel %vm4310, %v2941, 0.0
      %v4347 = vsel %vm4311, %v2942, 0.0
      %v4348 = vsel %vm4312, %v2943, 0.0
      %v4349 = vsel %vm4313, %v2944, 0.0
      %v4350 = vsel %vm4314, %v2945, 0.0
      %v4351 = vsel %vm4315, %v2946, 0.0
      %v4352 = vsel %vm4316, %v2947, 0.0
      %v4353 = vsel %vm4317, %v2948, 0.0
      %v4354 = vsel %vm4318, %v2949, 0.0
      %v4355 = vsel %vm4319, %v2950, 0.0
      %v4356 = vsel %vm4320, %v2951, 0.0
      %vm4357 = vcmask 97280
      %4358 = vst.msk [vmem:[%s208] sm:$0xff] %vm4357, %v4321
      %4359 = vst.msk [vmem:[%s208 + $0x8] sm:$0xff] %vm4357, %v4322
      %4360 = vst.msk [vmem:[%s208 + $0x10] sm:$0xff] %vm4357, %v4323
      %4361 = vst.msk [vmem:[%s208 + $0x18] sm:$0xff] %vm4357, %v4324
      %4362 = vst.msk [vmem:[%s208 + $0x20] sm:$0xff] %vm4357, %v4325
      %4363 = vst.msk [vmem:[%s208 + $0x28] sm:$0xff] %vm4357, %v4326
      %4364 = vst.msk [vmem:[%s208 + $0x30] sm:$0xff] %vm4357, %v4327
      %4365 = vst.msk [vmem:[%s208 + $0x38] sm:$0xff] %vm4357, %v4328
      %4366 = vst.msk [vmem:[%s208 + $0x40] sm:$0xff] %vm4357, %v4329
      %4367 = vst.msk [vmem:[%s208 + $0x48] sm:$0xff] %vm4357, %v4330
      %4368 = vst.msk [vmem:[%s208 + $0x50] sm:$0xff] %vm4357, %v4331
      %4369 = vst.msk [vmem:[%s208 + $0x58] sm:$0xff] %vm4357, %v4332
      %4370 = vst.msk [vmem:[%s208 + $0x60] sm:$0xff] %vm4357, %v4333
      %4371 = vst.msk [vmem:[%s208 + $0x68] sm:$0xff] %vm4357, %v4334
      %4372 = vst.msk [vmem:[%s208 + $0x70] sm:$0xff] %vm4357, %v4335
      %4373 = vst.msk [vmem:[%s208 + $0x78] sm:$0xff] %vm4357, %v4336
      %4374 = vst.msk [vmem:[%s208 + $0x80] sm:$0xff] %vm4357, %v4337
      %4375 = vst.msk [vmem:[%s208 + $0x88] sm:$0xff] %vm4357, %v4338
      %4376 = vst.msk [vmem:[%s208 + $0x90] sm:$0xff] %vm4357, %v4339
      %4377 = vst.msk [vmem:[%s208 + $0x98] sm:$0xff] %vm4357, %v4340
      %4378 = vst.msk [vmem:[%s208 + $0xa0] sm:$0xff] %vm4357, %v4341
      %4379 = vst.msk [vmem:[%s208 + $0xa8] sm:$0xff] %vm4357, %v4342
      %4380 = vst.msk [vmem:[%s208 + $0xb0] sm:$0xff] %vm4357, %v4343
      %4381 = vst.msk [vmem:[%s208 + $0xb8] sm:$0xff] %vm4357, %v4344
      %4382 = vst.msk [vmem:[%s208 + $0xc0] sm:$0xff] %vm4357, %v4345
      %4383 = vst.msk [vmem:[%s208 + $0xc8] sm:$0xff] %vm4357, %v4346
      %4384 = vst.msk [vmem:[%s208 + $0xd0] sm:$0xff] %vm4357, %v4347
      %4385 = vst.msk [vmem:[%s208 + $0xd8] sm:$0xff] %vm4357, %v4348
      %4386 = vst.msk [vmem:[%s208 + $0xe0] sm:$0xff] %vm4357, %v4349
      %4387 = vst.msk [vmem:[%s208 + $0xe8] sm:$0xff] %vm4357, %v4350
      %4388 = vst.msk [vmem:[%s208 + $0xf0] sm:$0xff] %vm4357, %v4351
      %4389 = vst.msk [vmem:[%s208 + $0xf8] sm:$0xff] %vm4357, %v4352
      %4390 = vst.msk [vmem:[%s208 + $0x100] sm:$0xff] %vm4357, %v4353
      %4391 = vst.msk [vmem:[%s208 + $0x108] sm:$0xff] %vm4357, %v4354
      %4392 = vst.msk [vmem:[%s208 + $0x110] sm:$0xff] %vm4357, %v4355
      %4393 = vst.msk [vmem:[%s208 + $0x118] sm:$0xff] %vm4357, %v4356
      %v4394 = vsel %vm4357, %v4321, 0.0
      %v4395 = vsel %vm4357, %v4322, 0.0
      %v4396 = vadd.f32 %v4394, %v4395
      %v4397 = vsel %vm4357, %v4323, 0.0
      %v4398 = vadd.f32 %v4396, %v4397
      %v4399 = vsel %vm4357, %v4324, 0.0
      %v4400 = vadd.f32 %v4398, %v4399
      %v4401 = vsel %vm4357, %v4325, 0.0
      %v4402 = vadd.f32 %v4400, %v4401
      %v4403 = vsel %vm4357, %v4326, 0.0
      %v4404 = vadd.f32 %v4402, %v4403
      %v4405 = vsel %vm4357, %v4327, 0.0
      %v4406 = vadd.f32 %v4404, %v4405
      %v4407 = vsel %vm4357, %v4328, 0.0
      %v4408 = vadd.f32 %v4406, %v4407
      %v4409 = vsel %vm4357, %v4329, 0.0
      %v4410 = vadd.f32 %v4408, %v4409
      %v4411 = vsel %vm4357, %v4330, 0.0
      %v4412 = vadd.f32 %v4410, %v4411
      %v4413 = vsel %vm4357, %v4331, 0.0
      %v4414 = vadd.f32 %v4412, %v4413
      %v4415 = vsel %vm4357, %v4332, 0.0
      %v4416 = vadd.f32 %v4414, %v4415
      %v4417 = vsel %vm4357, %v4333, 0.0
      %v4418 = vadd.f32 %v4416, %v4417
      %v4419 = vsel %vm4357, %v4334, 0.0
      %v4420 = vadd.f32 %v4418, %v4419
      %v4421 = vsel %vm4357, %v4335, 0.0
      %v4422 = vadd.f32 %v4420, %v4421
      %v4423 = vsel %vm4357, %v4336, 0.0
      %v4424 = vadd.f32 %v4422, %v4423
      %v4425 = vsel %vm4357, %v4337, 0.0
      %v4426 = vadd.f32 %v4424, %v4425
      %v4427 = vsel %vm4357, %v4338, 0.0
      %v4428 = vadd.f32 %v4426, %v4427
      %v4429 = vsel %vm4357, %v4339, 0.0
      %v4430 = vadd.f32 %v4428, %v4429
      %v4431 = vsel %vm4357, %v4340, 0.0
      %v4432 = vadd.f32 %v4430, %v4431
      %v4433 = vsel %vm4357, %v4341, 0.0
      %v4434 = vadd.f32 %v4432, %v4433
      %v4435 = vsel %vm4357, %v4342, 0.0
      %v4436 = vadd.f32 %v4434, %v4435
      %v4437 = vsel %vm4357, %v4343, 0.0
      %v4438 = vadd.f32 %v4436, %v4437
      %v4439 = vsel %vm4357, %v4344, 0.0
      %v4440 = vadd.f32 %v4438, %v4439
      %v4441 = vsel %vm4357, %v4345, 0.0
      %v4442 = vadd.f32 %v4440, %v4441
      %v4443 = vsel %vm4357, %v4346, 0.0
      %v4444 = vadd.f32 %v4442, %v4443
      %v4445 = vsel %vm4357, %v4347, 0.0
      %v4446 = vadd.f32 %v4444, %v4445
      %v4447 = vsel %vm4357, %v4348, 0.0
      %v4448 = vadd.f32 %v4446, %v4447
      %v4449 = vsel %vm4357, %v4349, 0.0
      %v4450 = vadd.f32 %v4448, %v4449
      %v4451 = vsel %vm4357, %v4350, 0.0
      %v4452 = vadd.f32 %v4450, %v4451
      %v4453 = vsel %vm4357, %v4351, 0.0
      %v4454 = vadd.f32 %v4452, %v4453
      %v4455 = vsel %vm4357, %v4352, 0.0
      %v4456 = vadd.f32 %v4454, %v4455
      %v4457 = vsel %vm4357, %v4353, 0.0
      %v4458 = vadd.f32 %v4456, %v4457
      %v4459 = vsel %vm4357, %v4354, 0.0
      %v4460 = vadd.f32 %v4458, %v4459
      %v4461 = vsel %vm4357, %v4355, 0.0
      %v4462 = vadd.f32 %v4460, %v4461
      %v4463 = vsel %vm4357, %v4356, 0.0
      %v4464 = vadd.f32 %v4462, %v4463
      %v4465 = vrot.slane %v4464, 4
      %v4466 = vadd.f32 %v4464, %v4465
      %v4467 = vrot.slane %v4466, 2
      %v4468 = vadd.f32 %v4466, %v4467
      %v4469 = vrot.slane %v4468, 1
      %v4470 = vadd.f32 %v4468, %v4469
      %vm4471 = vcmask 90112
      %4472 = vst.msk [vmem:[%s211] sm:$0x1] %vm4471, %v4470
      %v4473 = vmul.f32 %v4321, %v4321
      %v4474 = vmul.f32 %v4322, %v4322
      %v4475 = vmul.f32 %v4323, %v4323
      %v4476 = vmul.f32 %v4324, %v4324
      %v4477 = vmul.f32 %v4325, %v4325
      %v4478 = vmul.f32 %v4326, %v4326
      %v4479 = vmul.f32 %v4327, %v4327
      %v4480 = vmul.f32 %v4328, %v4328
      %v4481 = vmul.f32 %v4329, %v4329
      %v4482 = vmul.f32 %v4330, %v4330
      %v4483 = vmul.f32 %v4331, %v4331
      %v4484 = vmul.f32 %v4332, %v4332
      %v4485 = vmul.f32 %v4333, %v4333
      %v4486 = vmul.f32 %v4334, %v4334
      %v4487 = vmul.f32 %v4335, %v4335
      %v4488 = vmul.f32 %v4336, %v4336
      %v4489 = vmul.f32 %v4337, %v4337
      %v4490 = vmul.f32 %v4338, %v4338
      %v4491 = vmul.f32 %v4339, %v4339
      %v4492 = vmul.f32 %v4340, %v4340
      %v4493 = vmul.f32 %v4341, %v4341
      %v4494 = vmul.f32 %v4342, %v4342
      %v4495 = vmul.f32 %v4343, %v4343
      %v4496 = vmul.f32 %v4344, %v4344
      %v4497 = vmul.f32 %v4345, %v4345
      %v4498 = vmul.f32 %v4346, %v4346
      %v4499 = vmul.f32 %v4347, %v4347
      %v4500 = vmul.f32 %v4348, %v4348
      %v4501 = vmul.f32 %v4349, %v4349
      %v4502 = vmul.f32 %v4350, %v4350
      %v4503 = vmul.f32 %v4351, %v4351
      %v4504 = vmul.f32 %v4352, %v4352
      %v4505 = vmul.f32 %v4353, %v4353
      %v4506 = vmul.f32 %v4354, %v4354
      %v4507 = vmul.f32 %v4355, %v4355
      %v4508 = vmul.f32 %v4356, %v4356
      %v4509 = vsel %vm4357, %v4473, 0.0
      %v4510 = vsel %vm4357, %v4474, 0.0
      %v4511 = vadd.f32 %v4509, %v4510
      %v4512 = vsel %vm4357, %v4475, 0.0
      %v4513 = vadd.f32 %v4511, %v4512
      %v4514 = vsel %vm4357, %v4476, 0.0
      %v4515 = vadd.f32 %v4513, %v4514
      %v4516 = vsel %vm4357, %v4477, 0.0
      %v4517 = vadd.f32 %v4515, %v4516
      %v4518 = vsel %vm4357, %v4478, 0.0
      %v4519 = vadd.f32 %v4517, %v4518
      %v4520 = vsel %vm4357, %v4479, 0.0
      %v4521 = vadd.f32 %v4519, %v4520
      %v4522 = vsel %vm4357, %v4480, 0.0
      %v4523 = vadd.f32 %v4521, %v4522
      %v4524 = vsel %vm4357, %v4481, 0.0
      %v4525 = vadd.f32 %v4523, %v4524
      %v4526 = vsel %vm4357, %v4482, 0.0
      %v4527 = vadd.f32 %v4525, %v4526
      %v4528 = vsel %vm4357, %v4483, 0.0
      %v4529 = vadd.f32 %v4527, %v4528
      %v4530 = vsel %vm4357, %v4484, 0.0
      %v4531 = vadd.f32 %v4529, %v4530
      %v4532 = vsel %vm4357, %v4485, 0.0
      %v4533 = vadd.f32 %v4531, %v4532
      %v4534 = vsel %vm4357, %v4486, 0.0
      %v4535 = vadd.f32 %v4533, %v4534
      %v4536 = vsel %vm4357, %v4487, 0.0
      %v4537 = vadd.f32 %v4535, %v4536
      %v4538 = vsel %vm4357, %v4488, 0.0
      %v4539 = vadd.f32 %v4537, %v4538
      %v4540 = vsel %vm4357, %v4489, 0.0
      %v4541 = vadd.f32 %v4539, %v4540
      %v4542 = vsel %vm4357, %v4490, 0.0
      %v4543 = vadd.f32 %v4541, %v4542
      %v4544 = vsel %vm4357, %v4491, 0.0
      %v4545 = vadd.f32 %v4543, %v4544
      %v4546 = vsel %vm4357, %v4492, 0.0
      %v4547 = vadd.f32 %v4545, %v4546
      %v4548 = vsel %vm4357, %v4493, 0.0
      %v4549 = vadd.f32 %v4547, %v4548
      %v4550 = vsel %vm4357, %v4494, 0.0
      %v4551 = vadd.f32 %v4549, %v4550
      %v4552 = vsel %vm4357, %v4495, 0.0
      %v4553 = vadd.f32 %v4551, %v4552
      %v4554 = vsel %vm4357, %v4496, 0.0
      %v4555 = vadd.f32 %v4553, %v4554
      %v4556 = vsel %vm4357, %v4497, 0.0
      %v4557 = vadd.f32 %v4555, %v4556
      %v4558 = vsel %vm4357, %v4498, 0.0
      %v4559 = vadd.f32 %v4557, %v4558
      %v4560 = vsel %vm4357, %v4499, 0.0
      %v4561 = vadd.f32 %v4559, %v4560
      %v4562 = vsel %vm4357, %v4500, 0.0
      %v4563 = vadd.f32 %v4561, %v4562
      %v4564 = vsel %vm4357, %v4501, 0.0
      %v4565 = vadd.f32 %v4563, %v4564
      %v4566 = vsel %vm4357, %v4502, 0.0
      %v4567 = vadd.f32 %v4565, %v4566
      %v4568 = vsel %vm4357, %v4503, 0.0
      %v4569 = vadd.f32 %v4567, %v4568
      %v4570 = vsel %vm4357, %v4504, 0.0
      %v4571 = vadd.f32 %v4569, %v4570
      %v4572 = vsel %vm4357, %v4505, 0.0
      %v4573 = vadd.f32 %v4571, %v4572
      %v4574 = vsel %vm4357, %v4506, 0.0
      %v4575 = vadd.f32 %v4573, %v4574
      %v4576 = vsel %vm4357, %v4507, 0.0
      %v4577 = vadd.f32 %v4575, %v4576
      %v4578 = vsel %vm4357, %v4508, 0.0
      %v4579 = vadd.f32 %v4577, %v4578
      %v4580 = vrot.slane %v4579, 4
      %v4581 = vadd.f32 %v4579, %v4580
      %v4582 = vrot.slane %v4581, 2
      %v4583 = vadd.f32 %v4581, %v4582
      %v4584 = vrot.slane %v4583, 1
      %v4585 = vadd.f32 %v4583, %v4584
      %4586 = vst.msk [vmem:[%s214] sm:$0x1] %vm4471, %v4585
      %p4587 = scmp.lt.s32.totalorder %s16, 1
      %s4588 = scalar_select %p4587, %s16, 1
      %s4589 = smul.addr %s4588, 36
      %s4590 = smul.addr %s4589, 8
      %s4591 = scalar_lea.vmem %s2, %s4590
      %p4592 = scmp.lt.s32.totalorder %s16, 1
      %s4593 = scalar_select %p4592, %s16, 1
      %s4594 = scalar_lea.vmem %s3, %s4593
      %p4595 = scmp.lt.s32.totalorder %s16, 1
      %s4596 = scalar_select %p4595, %s16, 1
      %s4597 = scalar_lea.vmem %s4, %s4596
      // Predicated region
      $region29: #{decoder_forward.7} parent=27 // pred_check
        %p4598 = pneg %p81
      $region30: #{decoder_forward.7} parent=27 // pred_check_branch
        %4600 = sbr.rel (%p4598) target = $region32
      $region31: #{decoder_forward.7} parent=27 // pred_region
        _
      $region32: #{decoder_forward.7} parent=27 // pred_fallthru
        _
      // Predicated region
      $region33: #{decoder_forward.7} parent=27 // pred_check
        %p4601 = pneg %p107
      $region34: #{decoder_forward.7} parent=27 // pred_check_branch
        %4603 = sbr.rel (%p4601) target = $region36
      $region35: #{decoder_forward.7} parent=27 // pred_region
        _
      $region36: #{decoder_forward.7} parent=27 // pred_fallthru
        _
      // Predicated region
      $region37: #{decoder_forward.7} parent=27 // pred_check
        %p4604 = pneg %p133
      $region38: #{decoder_forward.7} parent=27 // pred_check_branch
        %4606 = sbr.rel (%p4604) target = $region40
      $region39: #{decoder_forward.7} parent=27 // pred_region
        _
      $region40: #{decoder_forward.7} parent=27 // pred_fallthru
        _
    $region28: #{decoder_forward.7} parent=5 // pred_fallthru
      _
    %p4607 = scmp.le.s32.totalorder 2, %s11
    // Predicated region
    $region41: #{decoder_forward.7} parent=5 // pred_check
      %p4608 = pneg %p4607
    $region42: #{decoder_forward.7} parent=5 // pred_check_branch
      %4610 = sbr.rel (%p4608) target = $region44
    $region43: #{decoder_forward.7} parent=5 // pred_region
      %s4611 = ssub.s32 %s11, 2
      // Predicated region
      $region45: #{decoder_forward.7} parent=43 // pred_check
        %p4612 = pneg %p87
      $region46: #{decoder_forward.7} parent=43 // pred_check_branch
        %4614 = sbr.rel (%p4612) target = $region48
      $region47: #{decoder_forward.7} parent=43 // pred_region
        %p4615 = scmp.lt.s32.totalorder %s17, 1
        %s4616 = scalar_select %p4615, %s17, 1
        %s4617 = smul.addr %s4616, 36
        %s4618 = smul.addr %s4617, 8
        %s4619 = scalar_lea.vmem %s2, %s4618
      $region48: #{decoder_forward.7} parent=43 // pred_fallthru
        _
      // Predicated region
      $region49: #{decoder_forward.7} parent=43 // pred_check
        %p4620 = pneg %p113
      $region50: #{decoder_forward.7} parent=43 // pred_check_branch
        %4622 = sbr.rel (%p4620) target = $region52
      $region51: #{decoder_forward.7} parent=43 // pred_region
        %p4623 = scmp.lt.s32.totalorder %s17, 1
        %s4624 = scalar_select %p4623, %s17, 1
        %s4625 = scalar_lea.vmem %s3, %s4624
      $region52: #{decoder_forward.7} parent=43 // pred_fallthru
        _
      // Predicated region
      $region53: #{decoder_forward.7} parent=43 // pred_check
        %p4626 = pneg %p139
      $region54: #{decoder_forward.7} parent=43 // pred_check_branch
        %4628 = sbr.rel (%p4626) target = $region56
      $region55: #{decoder_forward.7} parent=43 // pred_region
        %p4629 = scmp.lt.s32.totalorder %s17, 1
        %s4630 = scalar_select %p4629, %s17, 1
        %s4631 = scalar_lea.vmem %s4, %s4630
      $region56: #{decoder_forward.7} parent=43 // pred_fallthru
        _
    $region44: #{decoder_forward.7} parent=5 // pred_fallthru
      _
  $region6: #{decoder_forward.7} parent=0 // loop_footer
    %s15 = sadd.s32 1, %s11
  $region7: #{decoder_forward.7} parent=0 // loop_footer_branch
    %10 = sbr.rel target = $region3
  $region8: #{decoder_forward.7} parent=0 // loop_exit
    _

</llo_original>
